<compile_context>
chip_gen: v7x
topology: tpu7x:2x2x1
jax: 0.10.0
libtpu: 0.0.40
codegen_flags: <defaults>
</compile_context>

<pallas_src>
from functools import partial

import numpy as np

import jax
import jax.numpy as jnp
from jax import lax
from jax.experimental import pallas as pl
from jax.experimental.pallas import tpu as pltpu


def _round_up(x, m):
    return ((x + m - 1) // m) * m


# ----------------------------------------------------------------------------
# Host-side parameter preparation (pure re-layout, done once).
# ----------------------------------------------------------------------------
def _toeplitz(w_hwio, in_lanes, out_w, col_stride):
    """HWIO conv weight -> (KH, in_lanes, out_w*Cout) block-Toeplitz slab.

    Input lanes are laid out as (w, cin) with w striding by `col_stride`;
    stride 2 lets the slab read the *non-decimated* pooled activation directly
    (garbage lanes hit zero rows).
    """
    w = np.asarray(w_hwio, np.float32)
    KH, KW, Cin, Cout = w.shape
    T = np.zeros((KH, in_lanes, out_w * Cout), np.float32)
    for kh in range(KH):
        for ow in range(out_w):
            for kw in range(KW):
                lane0 = col_stride * (ow + kw) * Cin
                T[kh, lane0:lane0 + Cin, ow * Cout:(ow + 1) * Cout] = w[kh, kw]
    return T


def prepare_params(p):
    """Torch-layout params -> kernel-ready slabs (Toeplitz convs, padded FCs)."""
    l1 = int(np.asarray(p["w_fc1"]).shape[1])
    l2 = int(np.asarray(p["w_fc2"]).shape[1])
    L1, L2 = _round_up(l1, 128), _round_up(l2, 128)

    t1 = _toeplitz(p["w_conv1"], in_lanes=32 * 3, out_w=28, col_stride=1)   # (5, 96, 168)
    t2 = _toeplitz(p["w_conv2"], in_lanes=28 * 6, out_w=10, col_stride=2)   # (5, 168, 160)
    b1 = np.tile(np.asarray(p["b_conv1"], np.float32).reshape(-1), 28)[None]  # (1, 168)
    b2 = np.tile(np.asarray(p["b_conv2"], np.float32).reshape(-1), 10)[None]  # (1, 160)

    # fc1: torch rows are NCHW-flattened (c*25 + h*5 + w).  Regroup per pooled
    # row h into (160 -> L1) slabs indexed by the non-decimated lane layout
    # (w stride 2, 16 channels); all other rows / padded cols are zero.
    wfc1 = np.asarray(p["w_fc1"], np.float32)
    wf1 = np.zeros((5, 160, L1), np.float32)
    for h in range(5):
        for w in range(5):
            for c in range(16):
                wf1[h, 2 * w * 16 + c, :l1] = wfc1[c * 25 + h * 5 + w]
    bf1 = np.zeros((1, L1), np.float32); bf1[0, :l1] = np.asarray(p["b_fc1"]).reshape(-1)
    wf2 = np.zeros((L1, L2), np.float32); wf2[:l1, :l2] = np.asarray(p["w_fc2"])
    bf2 = np.zeros((1, L2), np.float32); bf2[0, :l2] = np.asarray(p["b_fc2"]).reshape(-1)
    wf3 = np.zeros((L2, 128), np.float32); wf3[:l2, :10] = np.asarray(p["w_fc3"])
    bf3 = np.zeros((1, 128), np.float32); bf3[0, :10] = np.asarray(p["b_fc3"]).reshape(-1)

    bf16 = jnp.bfloat16
    return {
        "t1": jnp.asarray(t1, bf16), "b1": jnp.asarray(b1),
        "t2": jnp.asarray(t2, bf16), "b2": jnp.asarray(b2),
        "wf1": jnp.asarray(wf1, bf16), "bf1": jnp.asarray(bf1),
        "wf2": jnp.asarray(wf2, bf16), "bf2": jnp.asarray(bf2),
        "wf3": jnp.asarray(wf3, bf16), "bf3": jnp.asarray(bf3),
    }


# ----------------------------------------------------------------------------
# Fused whole-network kernel (one batch tile per grid step).
# ----------------------------------------------------------------------------
def _net_kernel(x_ref, t1_ref, b1_ref, t2_ref, b2_ref,
                wf1_ref, bf1_ref, wf2_ref, bf2_ref, wf3_ref, bf3_ref,
                o_ref):
    M = x_ref.shape[0]            # tile_b * 32 image rows
    tb = o_ref.shape[0]           # images in this tile
    rows_per_img = M // tb        # 32
    f32 = jnp.float32

    def down(a, k):               # value at row j+k (wrapped rows are never valid)
        return a if k == 0 else jnp.roll(a, -k, axis=0)

    def right(a, k):              # value at lane l+k
        return a if k == 0 else jnp.roll(a, -k, axis=1)

    # ---- conv1 (5x5, 3->6) + bias + ReLU: one wide MXU dot per kernel row.
    xb = x_ref[...].astype(jnp.bfloat16)                            # (M, 96)
    acc = jnp.dot(xb, t1_ref[0], preferred_element_type=f32)
    for kh in range(1, 5):
        acc += jnp.dot(down(xb, kh), t1_ref[kh], preferred_element_type=f32)
    y = jnp.maximum(acc + b1_ref[...], 0.0)                         # (M, 28*6)

    # ---- maxpool 2x2/2 #1: adjacent max; decimation is absorbed downstream
    #      (valid data now at rows 2*ph, lanes 12*pw + c).
    y = jnp.maximum(y, down(y, 1))
    y = jnp.maximum(y, right(y, 6))

    # ---- conv2 (5x5, 6->16) + bias + ReLU (row stride 2; lane stride in t2).
    pb = y.astype(jnp.bfloat16)
    acc = jnp.dot(pb, t2_ref[0], preferred_element_type=f32)
    for kh in range(1, 5):
        acc += jnp.dot(down(pb, 2 * kh), t2_ref[kh], preferred_element_type=f32)
    y = jnp.maximum(acc + b2_ref[...], 0.0)                         # (M, 10*16)

    # ---- maxpool 2x2/2 #2 (valid data at rows 4*ph, lanes 32*pw + c).
    y = jnp.maximum(y, down(y, 2))
    y = jnp.maximum(y, right(y, 16))

    # ---- fc1 computed over all rows; the valid result lands at row 32*b.
    pb = y.astype(jnp.bfloat16)
    zf = jnp.dot(pb, wf1_ref[0], preferred_element_type=f32)
    for r in range(1, 5):
        zf += jnp.dot(down(pb, 4 * r), wf1_ref[r], preferred_element_type=f32)

    # ---- pick row 32*b of every image with an exact 0/1 f32 selection matmul.
    b_idx = lax.broadcasted_iota(jnp.int32, (tb, M), 0)
    r_idx = lax.broadcasted_iota(jnp.int32, (tb, M), 1)
    sel = jnp.where(r_idx == b_idx * rows_per_img, 1.0, 0.0).astype(f32)
    z = jnp.dot(sel, zf, preferred_element_type=f32)                # (tb, 128)

    # ---- fc head (all lane-padded to 128; zero pads stay exactly zero).
    z = jnp.maximum(z + bf1_ref[...], 0.0)
    z = jnp.dot(z.astype(jnp.bfloat16), wf2_ref[...], preferred_element_type=f32)
    z = jnp.maximum(z + bf2_ref[...], 0.0)
    z = jnp.dot(z.astype(jnp.bfloat16), wf3_ref[...], preferred_element_type=f32)
    o_ref[...] = z + bf3_ref[...]                                   # (tb, 128), lanes 0..9 valid


def net_forward(x_nchw, kp, tile_b=128):
    """x_nchw: (N, 3, 32, 32) f32 (torch layout) -> (N, 10) logits."""
    N, C, H, W = x_nchw.shape
    assert (C, H, W) == (3, 32, 32), "Net requires 3x32x32 inputs (16*5*5 flatten)"

    tb = max(8, (min(int(tile_b), _round_up(N, 8)) // 8) * 8)
    n_pad = _round_up(N, tb)

    # Layout glue (plain XLA): NCHW -> NHWC, flatten (W,C) onto lanes, stack all
    # image rows so one grid step sees `tb` whole images as a (tb*32, 96) slab.
    x = jnp.transpose(x_nchw, (0, 2, 3, 1)).reshape(N, H, W * C)
    if n_pad != N:
        x = jnp.pad(x, ((0, n_pad - N), (0, 0), (0, 0)))
    x2 = x.reshape(n_pad * H, W * C)

    def full_spec(a):
        nd = a.ndim
        return pl.BlockSpec(a.shape, lambda n, nd=nd: (0,) * nd)

    weights = (kp["t1"], kp["b1"], kp["t2"], kp["b2"],
               kp["wf1"], kp["bf1"], kp["wf2"], kp["bf2"], kp["wf3"], kp["bf3"])
    in_specs = [pl.BlockSpec((tb * H, W * C), lambda n: (n, 0))]
    in_specs += [full_spec(a) for a in weights]

    out = pl.pallas_call(
        _net_kernel,
        out_shape=jax.ShapeDtypeStruct((n_pad, 128), jnp.float32),
        grid=(n_pad // tb,),
        in_specs=in_specs,
        out_specs=pl.BlockSpec((tb, 128), lambda n: (n, 0)),
        compiler_params=pltpu.CompilerParams(
            dimension_semantics=("parallel",),          # megacore: split batch tiles
            vmem_limit_bytes=48 * 1024 * 1024),         # safe on v5e/v6e/v7x
    )(x2, *weights)
    return out[:N, :10]


# ----------------------------------------------------------------------------
# Pure-JAX reference (torch semantics, f32, original params) for correctness.
# ----------------------------------------------------------------------------
def ref_forward(x_nchw, p):
    x = jnp.transpose(x_nchw, (0, 2, 3, 1))

    def conv_block(x, w, b):
        y = lax.conv_general_dilated(
            x, w, (1, 1), "VALID",
            dimension_numbers=("NHWC", "HWIO", "NHWC")) + b.reshape(1, 1, 1, -1)
        y = jnp.maximum(y, 0.0)
        return lax.reduce_window(y, -jnp.inf, lax.max,
                                 (1, 2, 2, 1), (1, 2, 2, 1), "VALID")

    x = conv_block(x, p["w_conv1"], p["b_conv1"])
    x = conv_block(x, p["w_conv2"], p["b_conv2"])
    x = jnp.transpose(x, (0, 3, 1, 2)).reshape(x.shape[0], -1)   # torch .view order
    h = jnp.maximum(x @ p["w_fc1"] + p["b_fc1"], 0.0)
    h = jnp.maximum(h @ p["w_fc2"] + p["b_fc2"], 0.0)
    return h @ p["w_fc3"] + p["b_fc3"]


def init_params(key, l1=120, l2=84):
    ks = jax.random.split(key, 10)

    def u(k, shape, fan_in):
        bound = 1.0 / float(fan_in) ** 0.5
        return jax.random.uniform(k, shape, jnp.float32, -bound, bound)

    return {
        "w_conv1": u(ks[0], (5, 5, 3, 6), 3 * 5 * 5),
        "b_conv1": u(ks[1], (1, 6), 3 * 5 * 5),
        "w_conv2": u(ks[2], (5, 5, 6, 16), 6 * 5 * 5),
        "b_conv2": u(ks[3], (1, 16), 6 * 5 * 5),
        "w_fc1": u(ks[4], (16 * 5 * 5, l1), 16 * 5 * 5),
        "b_fc1": u(ks[5], (1, l1), 16 * 5 * 5),
        "w_fc2": u(ks[6], (l1, l2), l1),
        "b_fc2": u(ks[7], (1, l2), l1),
        "w_fc3": u(ks[8], (l2, 10), l2),
        "b_fc3": u(ks[9], (1, 10), l2),
    }


if __name__ == "__main__":
    key = jax.random.PRNGKey(0)
    kx, kp = jax.random.split(key)
    # Spatial 32x32 / 3 channels are required by the 16*5*5 flatten; small batch.
    x = jax.random.normal(kx, (16, 3, 32, 32), jnp.float32)
    params = init_params(kp)
    kparams = prepare_params(params)

    fwd = jax.jit(partial(net_forward, tile_b=8))      # 2 batch tiles -> grid=(2,)
    out = jax.block_until_ready(fwd(x, kparams))
    assert out.shape == (16, 10) and out.dtype == jnp.float32

    ref = ref_forward(x, params)
    err = float(jnp.max(jnp.abs(out - ref)))
    assert jnp.allclose(out, ref, atol=5e-2, rtol=5e-2), err

    print("KERNEL_OK")
</pallas_src>

<mosaic_0001>
module attributes {stable_mosaic.version = 11 : i64} {
  func.func @_net_kernel(%arg0: i32, %arg1: memref<256x96xf32, #tpu.memory_space<vmem>>, %arg2: memref<5x96x168xbf16, #tpu.memory_space<vmem>>, %arg3: memref<1x168xf32, #tpu.memory_space<vmem>>, %arg4: memref<5x168x160xbf16, #tpu.memory_space<vmem>>, %arg5: memref<1x160xf32, #tpu.memory_space<vmem>>, %arg6: memref<5x160x128xbf16, #tpu.memory_space<vmem>>, %arg7: memref<1x128xf32, #tpu.memory_space<vmem>>, %arg8: memref<128x128xbf16, #tpu.memory_space<vmem>>, %arg9: memref<1x128xf32, #tpu.memory_space<vmem>>, %arg10: memref<128x128xbf16, #tpu.memory_space<vmem>>, %arg11: memref<1x128xf32, #tpu.memory_space<vmem>>, %arg12: memref<8x128xf32, #tpu.memory_space<vmem>>) attributes {dimension_semantics = [#tpu.dimension_semantics<parallel>], iteration_bounds = array<i64: 2>, scalar_prefetch = 0 : i64, scratch_operands = 0 : i64, tpu.core_type = #tpu.core_type<tc>, window_params = [{transform_indices = @transform_0, window_bounds = array<i64: 256, 96>}, {pipeline_mode = #tpu.pipeline_mode<synchronous>, transform_indices = @transform_1, window_bounds = array<i64: 5, 96, 168>}, {pipeline_mode = #tpu.pipeline_mode<synchronous>, transform_indices = @transform_2, window_bounds = array<i64: 1, 168>}, {pipeline_mode = #tpu.pipeline_mode<synchronous>, transform_indices = @transform_3, window_bounds = array<i64: 5, 168, 160>}, {pipeline_mode = #tpu.pipeline_mode<synchronous>, transform_indices = @transform_4, window_bounds = array<i64: 1, 160>}, {pipeline_mode = #tpu.pipeline_mode<synchronous>, transform_indices = @transform_5, window_bounds = array<i64: 5, 160, 128>}, {pipeline_mode = #tpu.pipeline_mode<synchronous>, transform_indices = @transform_6, window_bounds = array<i64: 1, 128>}, {pipeline_mode = #tpu.pipeline_mode<synchronous>, transform_indices = @transform_7, window_bounds = array<i64: 128, 128>}, {pipeline_mode = #tpu.pipeline_mode<synchronous>, transform_indices = @transform_8, window_bounds = array<i64: 1, 128>}, {pipeline_mode = #tpu.pipeline_mode<synchronous>, transform_indices = @transform_9, window_bounds = array<i64: 128, 128>}, {pipeline_mode = #tpu.pipeline_mode<synchronous>, transform_indices = @transform_10, window_bounds = array<i64: 1, 128>}, {transform_indices = @transform_11, window_bounds = array<i64: 8, 128>}]} {
    %c0 = arith.constant 0 : index
    %c0_0 = arith.constant 0 : index
    %0 = vector.load %arg1[%c0, %c0_0] : memref<256x96xf32, #tpu.memory_space<vmem>>, vector<256x96xf32>
    %1 = arith.truncf %0 : vector<256x96xf32> to vector<256x96xbf16>
    %c0_1 = arith.constant 0 : index
    %c0_2 = arith.constant 0 : index
    %c0_3 = arith.constant 0 : index
    %2 = vector.load %arg2[%c0_1, %c0_2, %c0_3] : memref<5x96x168xbf16, #tpu.memory_space<vmem>>, vector<1x96x168xbf16>
    %3 = vector.shape_cast %2 : vector<1x96x168xbf16> to vector<96x168xbf16>
    %cst = arith.constant dense<0.000000e+00> : vector<256x168xf32>
    %4 = tpu.matmul %1, %3, %cst {dimension_numbers = #tpu.dot_dimension_numbers<[1], [0], [0], [1], [0, 0, 1, 1], [], []>} : vector<256x96xbf16>, vector<96x168xbf16>, vector<256x168xf32> -> vector<256x168xf32>
    %5 = vector.extract_strided_slice %1 {offsets = [1, 0], sizes = [255, 96], strides = [1, 1]} : vector<256x96xbf16> to vector<255x96xbf16>
    %6 = vector.extract_strided_slice %1 {offsets = [0, 0], sizes = [1, 96], strides = [1, 1]} : vector<256x96xbf16> to vector<1x96xbf16>
    %7 = tpu.concatenate %5, %6 in 0 : vector<255x96xbf16>, vector<1x96xbf16> -> vector<256x96xbf16>
    %c1 = arith.constant 1 : index
    %c0_4 = arith.constant 0 : index
    %c0_5 = arith.constant 0 : index
    %8 = vector.load %arg2[%c1, %c0_4, %c0_5] : memref<5x96x168xbf16, #tpu.memory_space<vmem>>, vector<1x96x168xbf16>
    %9 = vector.shape_cast %8 : vector<1x96x168xbf16> to vector<96x168xbf16>
    %cst_6 = arith.constant dense<0.000000e+00> : vector<256x168xf32>
    %10 = tpu.matmul %7, %9, %cst_6 {dimension_numbers = #tpu.dot_dimension_numbers<[1], [0], [0], [1], [0, 0, 1, 1], [], []>} : vector<256x96xbf16>, vector<96x168xbf16>, vector<256x168xf32> -> vector<256x168xf32>
    %11 = arith.addf %4, %10 : vector<256x168xf32>
    %12 = vector.extract_strided_slice %1 {offsets = [2, 0], sizes = [254, 96], strides = [1, 1]} : vector<256x96xbf16> to vector<254x96xbf16>
    %13 = vector.extract_strided_slice %1 {offsets = [0, 0], sizes = [2, 96], strides = [1, 1]} : vector<256x96xbf16> to vector<2x96xbf16>
    %14 = tpu.concatenate %12, %13 in 0 : vector<254x96xbf16>, vector<2x96xbf16> -> vector<256x96xbf16>
    %c2 = arith.constant 2 : index
    %c0_7 = arith.constant 0 : index
    %c0_8 = arith.constant 0 : index
    %15 = vector.load %arg2[%c2, %c0_7, %c0_8] : memref<5x96x168xbf16, #tpu.memory_space<vmem>>, vector<1x96x168xbf16>
    %16 = vector.shape_cast %15 : vector<1x96x168xbf16> to vector<96x168xbf16>
    %cst_9 = arith.constant dense<0.000000e+00> : vector<256x168xf32>
    %17 = tpu.matmul %14, %16, %cst_9 {dimension_numbers = #tpu.dot_dimension_numbers<[1], [0], [0], [1], [0, 0, 1, 1], [], []>} : vector<256x96xbf16>, vector<96x168xbf16>, vector<256x168xf32> -> vector<256x168xf32>
    %18 = arith.addf %11, %17 : vector<256x168xf32>
    %19 = vector.extract_strided_slice %1 {offsets = [3, 0], sizes = [253, 96], strides = [1, 1]} : vector<256x96xbf16> to vector<253x96xbf16>
    %20 = vector.extract_strided_slice %1 {offsets = [0, 0], sizes = [3, 96], strides = [1, 1]} : vector<256x96xbf16> to vector<3x96xbf16>
    %21 = tpu.concatenate %19, %20 in 0 : vector<253x96xbf16>, vector<3x96xbf16> -> vector<256x96xbf16>
    %c3 = arith.constant 3 : index
    %c0_10 = arith.constant 0 : index
    %c0_11 = arith.constant 0 : index
    %22 = vector.load %arg2[%c3, %c0_10, %c0_11] : memref<5x96x168xbf16, #tpu.memory_space<vmem>>, vector<1x96x168xbf16>
    %23 = vector.shape_cast %22 : vector<1x96x168xbf16> to vector<96x168xbf16>
    %cst_12 = arith.constant dense<0.000000e+00> : vector<256x168xf32>
    %24 = tpu.matmul %21, %23, %cst_12 {dimension_numbers = #tpu.dot_dimension_numbers<[1], [0], [0], [1], [0, 0, 1, 1], [], []>} : vector<256x96xbf16>, vector<96x168xbf16>, vector<256x168xf32> -> vector<256x168xf32>
    %25 = arith.addf %18, %24 : vector<256x168xf32>
    %26 = vector.extract_strided_slice %1 {offsets = [4, 0], sizes = [252, 96], strides = [1, 1]} : vector<256x96xbf16> to vector<252x96xbf16>
    %27 = vector.extract_strided_slice %1 {offsets = [0, 0], sizes = [4, 96], strides = [1, 1]} : vector<256x96xbf16> to vector<4x96xbf16>
    %28 = tpu.concatenate %26, %27 in 0 : vector<252x96xbf16>, vector<4x96xbf16> -> vector<256x96xbf16>
    %c4 = arith.constant 4 : index
    %c0_13 = arith.constant 0 : index
    %c0_14 = arith.constant 0 : index
    %29 = vector.load %arg2[%c4, %c0_13, %c0_14] : memref<5x96x168xbf16, #tpu.memory_space<vmem>>, vector<1x96x168xbf16>
    %30 = vector.shape_cast %29 : vector<1x96x168xbf16> to vector<96x168xbf16>
    %cst_15 = arith.constant dense<0.000000e+00> : vector<256x168xf32>
    %31 = tpu.matmul %28, %30, %cst_15 {dimension_numbers = #tpu.dot_dimension_numbers<[1], [0], [0], [1], [0, 0, 1, 1], [], []>} : vector<256x96xbf16>, vector<96x168xbf16>, vector<256x168xf32> -> vector<256x168xf32>
    %32 = arith.addf %25, %31 : vector<256x168xf32>
    %c0_16 = arith.constant 0 : index
    %c0_17 = arith.constant 0 : index
    %33 = vector.load %arg3[%c0_16, %c0_17] : memref<1x168xf32, #tpu.memory_space<vmem>>, vector<1x168xf32>
    %34 = vector.broadcast %33 : vector<1x168xf32> to vector<256x168xf32>
    %35 = arith.addf %32, %34 : vector<256x168xf32>
    %cst_18 = arith.constant 0.000000e+00 : f32
    %36 = vector.broadcast %cst_18 : f32 to vector<256x168xf32>
    %37 = arith.maximumf %35, %36 : vector<256x168xf32>
    %38 = vector.extract_strided_slice %37 {offsets = [1, 0], sizes = [255, 168], strides = [1, 1]} : vector<256x168xf32> to vector<255x168xf32>
    %39 = vector.extract_strided_slice %37 {offsets = [0, 0], sizes = [1, 168], strides = [1, 1]} : vector<256x168xf32> to vector<1x168xf32>
    %40 = tpu.concatenate %38, %39 in 0 : vector<255x168xf32>, vector<1x168xf32> -> vector<256x168xf32>
    %41 = arith.maximumf %37, %40 : vector<256x168xf32>
    %42 = vector.extract_strided_slice %41 {offsets = [0, 6], sizes = [256, 162], strides = [1, 1]} : vector<256x168xf32> to vector<256x162xf32>
    %43 = vector.extract_strided_slice %41 {offsets = [0, 0], sizes = [256, 6], strides = [1, 1]} : vector<256x168xf32> to vector<256x6xf32>
    %44 = tpu.concatenate %42, %43 in 1 : vector<256x162xf32>, vector<256x6xf32> -> vector<256x168xf32>
    %45 = arith.maximumf %41, %44 : vector<256x168xf32>
    %46 = arith.truncf %45 : vector<256x168xf32> to vector<256x168xbf16>
    %c0_19 = arith.constant 0 : index
    %c0_20 = arith.constant 0 : index
    %c0_21 = arith.constant 0 : index
    %47 = vector.load %arg4[%c0_19, %c0_20, %c0_21] : memref<5x168x160xbf16, #tpu.memory_space<vmem>>, vector<1x168x160xbf16>
    %48 = vector.shape_cast %47 : vector<1x168x160xbf16> to vector<168x160xbf16>
    %cst_22 = arith.constant dense<0.000000e+00> : vector<256x160xf32>
    %49 = tpu.matmul %46, %48, %cst_22 {dimension_numbers = #tpu.dot_dimension_numbers<[1], [0], [0], [1], [0, 0, 1, 1], [], []>} : vector<256x168xbf16>, vector<168x160xbf16>, vector<256x160xf32> -> vector<256x160xf32>
    %50 = vector.extract_strided_slice %46 {offsets = [2, 0], sizes = [254, 168], strides = [1, 1]} : vector<256x168xbf16> to vector<254x168xbf16>
    %51 = vector.extract_strided_slice %46 {offsets = [0, 0], sizes = [2, 168], strides = [1, 1]} : vector<256x168xbf16> to vector<2x168xbf16>
    %52 = tpu.concatenate %50, %51 in 0 : vector<254x168xbf16>, vector<2x168xbf16> -> vector<256x168xbf16>
    %c1_23 = arith.constant 1 : index
    %c0_24 = arith.constant 0 : index
    %c0_25 = arith.constant 0 : index
    %53 = vector.load %arg4[%c1_23, %c0_24, %c0_25] : memref<5x168x160xbf16, #tpu.memory_space<vmem>>, vector<1x168x160xbf16>
    %54 = vector.shape_cast %53 : vector<1x168x160xbf16> to vector<168x160xbf16>
    %cst_26 = arith.constant dense<0.000000e+00> : vector<256x160xf32>
    %55 = tpu.matmul %52, %54, %cst_26 {dimension_numbers = #tpu.dot_dimension_numbers<[1], [0], [0], [1], [0, 0, 1, 1], [], []>} : vector<256x168xbf16>, vector<168x160xbf16>, vector<256x160xf32> -> vector<256x160xf32>
    %56 = arith.addf %49, %55 : vector<256x160xf32>
    %57 = vector.extract_strided_slice %46 {offsets = [4, 0], sizes = [252, 168], strides = [1, 1]} : vector<256x168xbf16> to vector<252x168xbf16>
    %58 = vector.extract_strided_slice %46 {offsets = [0, 0], sizes = [4, 168], strides = [1, 1]} : vector<256x168xbf16> to vector<4x168xbf16>
    %59 = tpu.concatenate %57, %58 in 0 : vector<252x168xbf16>, vector<4x168xbf16> -> vector<256x168xbf16>
    %c2_27 = arith.constant 2 : index
    %c0_28 = arith.constant 0 : index
    %c0_29 = arith.constant 0 : index
    %60 = vector.load %arg4[%c2_27, %c0_28, %c0_29] : memref<5x168x160xbf16, #tpu.memory_space<vmem>>, vector<1x168x160xbf16>
    %61 = vector.shape_cast %60 : vector<1x168x160xbf16> to vector<168x160xbf16>
    %cst_30 = arith.constant dense<0.000000e+00> : vector<256x160xf32>
    %62 = tpu.matmul %59, %61, %cst_30 {dimension_numbers = #tpu.dot_dimension_numbers<[1], [0], [0], [1], [0, 0, 1, 1], [], []>} : vector<256x168xbf16>, vector<168x160xbf16>, vector<256x160xf32> -> vector<256x160xf32>
    %63 = arith.addf %56, %62 : vector<256x160xf32>
    %64 = vector.extract_strided_slice %46 {offsets = [6, 0], sizes = [250, 168], strides = [1, 1]} : vector<256x168xbf16> to vector<250x168xbf16>
    %65 = vector.extract_strided_slice %46 {offsets = [0, 0], sizes = [6, 168], strides = [1, 1]} : vector<256x168xbf16> to vector<6x168xbf16>
    %66 = tpu.concatenate %64, %65 in 0 : vector<250x168xbf16>, vector<6x168xbf16> -> vector<256x168xbf16>
    %c3_31 = arith.constant 3 : index
    %c0_32 = arith.constant 0 : index
    %c0_33 = arith.constant 0 : index
    %67 = vector.load %arg4[%c3_31, %c0_32, %c0_33] : memref<5x168x160xbf16, #tpu.memory_space<vmem>>, vector<1x168x160xbf16>
    %68 = vector.shape_cast %67 : vector<1x168x160xbf16> to vector<168x160xbf16>
    %cst_34 = arith.constant dense<0.000000e+00> : vector<256x160xf32>
    %69 = tpu.matmul %66, %68, %cst_34 {dimension_numbers = #tpu.dot_dimension_numbers<[1], [0], [0], [1], [0, 0, 1, 1], [], []>} : vector<256x168xbf16>, vector<168x160xbf16>, vector<256x160xf32> -> vector<256x160xf32>
    %70 = arith.addf %63, %69 : vector<256x160xf32>
    %71 = vector.extract_strided_slice %46 {offsets = [8, 0], sizes = [248, 168], strides = [1, 1]} : vector<256x168xbf16> to vector<248x168xbf16>
    %72 = vector.extract_strided_slice %46 {offsets = [0, 0], sizes = [8, 168], strides = [1, 1]} : vector<256x168xbf16> to vector<8x168xbf16>
    %73 = tpu.concatenate %71, %72 in 0 : vector<248x168xbf16>, vector<8x168xbf16> -> vector<256x168xbf16>
    %c4_35 = arith.constant 4 : index
    %c0_36 = arith.constant 0 : index
    %c0_37 = arith.constant 0 : index
    %74 = vector.load %arg4[%c4_35, %c0_36, %c0_37] : memref<5x168x160xbf16, #tpu.memory_space<vmem>>, vector<1x168x160xbf16>
    %75 = vector.shape_cast %74 : vector<1x168x160xbf16> to vector<168x160xbf16>
    %cst_38 = arith.constant dense<0.000000e+00> : vector<256x160xf32>
    %76 = tpu.matmul %73, %75, %cst_38 {dimension_numbers = #tpu.dot_dimension_numbers<[1], [0], [0], [1], [0, 0, 1, 1], [], []>} : vector<256x168xbf16>, vector<168x160xbf16>, vector<256x160xf32> -> vector<256x160xf32>
    %77 = arith.addf %70, %76 : vector<256x160xf32>
    %c0_39 = arith.constant 0 : index
    %c0_40 = arith.constant 0 : index
    %78 = vector.load %arg5[%c0_39, %c0_40] : memref<1x160xf32, #tpu.memory_space<vmem>>, vector<1x160xf32>
    %79 = vector.broadcast %78 : vector<1x160xf32> to vector<256x160xf32>
    %80 = arith.addf %77, %79 : vector<256x160xf32>
    %cst_41 = arith.constant 0.000000e+00 : f32
    %81 = vector.broadcast %cst_41 : f32 to vector<256x160xf32>
    %82 = arith.maximumf %80, %81 : vector<256x160xf32>
    %83 = vector.extract_strided_slice %82 {offsets = [2, 0], sizes = [254, 160], strides = [1, 1]} : vector<256x160xf32> to vector<254x160xf32>
    %84 = vector.extract_strided_slice %82 {offsets = [0, 0], sizes = [2, 160], strides = [1, 1]} : vector<256x160xf32> to vector<2x160xf32>
    %85 = tpu.concatenate %83, %84 in 0 : vector<254x160xf32>, vector<2x160xf32> -> vector<256x160xf32>
    %86 = arith.maximumf %82, %85 : vector<256x160xf32>
    %87 = vector.extract_strided_slice %86 {offsets = [0, 16], sizes = [256, 144], strides = [1, 1]} : vector<256x160xf32> to vector<256x144xf32>
    %88 = vector.extract_strided_slice %86 {offsets = [0, 0], sizes = [256, 16], strides = [1, 1]} : vector<256x160xf32> to vector<256x16xf32>
    %89 = tpu.concatenate %87, %88 in 1 : vector<256x144xf32>, vector<256x16xf32> -> vector<256x160xf32>
    %90 = arith.maximumf %86, %89 : vector<256x160xf32>
    %91 = arith.truncf %90 : vector<256x160xf32> to vector<256x160xbf16>
    %c0_42 = arith.constant 0 : index
    %c0_43 = arith.constant 0 : index
    %c0_44 = arith.constant 0 : index
    %92 = vector.load %arg6[%c0_42, %c0_43, %c0_44] : memref<5x160x128xbf16, #tpu.memory_space<vmem>>, vector<1x160x128xbf16>
    %93 = vector.shape_cast %92 : vector<1x160x128xbf16> to vector<160x128xbf16>
    %cst_45 = arith.constant dense<0.000000e+00> : vector<256x128xf32>
    %94 = tpu.matmul %91, %93, %cst_45 {dimension_numbers = #tpu.dot_dimension_numbers<[1], [0], [0], [1], [0, 0, 1, 1], [], []>} : vector<256x160xbf16>, vector<160x128xbf16>, vector<256x128xf32> -> vector<256x128xf32>
    %95 = vector.extract_strided_slice %91 {offsets = [4, 0], sizes = [252, 160], strides = [1, 1]} : vector<256x160xbf16> to vector<252x160xbf16>
    %96 = vector.extract_strided_slice %91 {offsets = [0, 0], sizes = [4, 160], strides = [1, 1]} : vector<256x160xbf16> to vector<4x160xbf16>
    %97 = tpu.concatenate %95, %96 in 0 : vector<252x160xbf16>, vector<4x160xbf16> -> vector<256x160xbf16>
    %c1_46 = arith.constant 1 : index
    %c0_47 = arith.constant 0 : index
    %c0_48 = arith.constant 0 : index
    %98 = vector.load %arg6[%c1_46, %c0_47, %c0_48] : memref<5x160x128xbf16, #tpu.memory_space<vmem>>, vector<1x160x128xbf16>
    %99 = vector.shape_cast %98 : vector<1x160x128xbf16> to vector<160x128xbf16>
    %cst_49 = arith.constant dense<0.000000e+00> : vector<256x128xf32>
    %100 = tpu.matmul %97, %99, %cst_49 {dimension_numbers = #tpu.dot_dimension_numbers<[1], [0], [0], [1], [0, 0, 1, 1], [], []>} : vector<256x160xbf16>, vector<160x128xbf16>, vector<256x128xf32> -> vector<256x128xf32>
    %101 = arith.addf %94, %100 : vector<256x128xf32>
    %102 = vector.extract_strided_slice %91 {offsets = [8, 0], sizes = [248, 160], strides = [1, 1]} : vector<256x160xbf16> to vector<248x160xbf16>
    %103 = vector.extract_strided_slice %91 {offsets = [0, 0], sizes = [8, 160], strides = [1, 1]} : vector<256x160xbf16> to vector<8x160xbf16>
    %104 = tpu.concatenate %102, %103 in 0 : vector<248x160xbf16>, vector<8x160xbf16> -> vector<256x160xbf16>
    %c2_50 = arith.constant 2 : index
    %c0_51 = arith.constant 0 : index
    %c0_52 = arith.constant 0 : index
    %105 = vector.load %arg6[%c2_50, %c0_51, %c0_52] : memref<5x160x128xbf16, #tpu.memory_space<vmem>>, vector<1x160x128xbf16>
    %106 = vector.shape_cast %105 : vector<1x160x128xbf16> to vector<160x128xbf16>
    %cst_53 = arith.constant dense<0.000000e+00> : vector<256x128xf32>
    %107 = tpu.matmul %104, %106, %cst_53 {dimension_numbers = #tpu.dot_dimension_numbers<[1], [0], [0], [1], [0, 0, 1, 1], [], []>} : vector<256x160xbf16>, vector<160x128xbf16>, vector<256x128xf32> -> vector<256x128xf32>
    %108 = arith.addf %101, %107 : vector<256x128xf32>
    %109 = vector.extract_strided_slice %91 {offsets = [12, 0], sizes = [244, 160], strides = [1, 1]} : vector<256x160xbf16> to vector<244x160xbf16>
    %110 = vector.extract_strided_slice %91 {offsets = [0, 0], sizes = [12, 160], strides = [1, 1]} : vector<256x160xbf16> to vector<12x160xbf16>
    %111 = tpu.concatenate %109, %110 in 0 : vector<244x160xbf16>, vector<12x160xbf16> -> vector<256x160xbf16>
    %c3_54 = arith.constant 3 : index
    %c0_55 = arith.constant 0 : index
    %c0_56 = arith.constant 0 : index
    %112 = vector.load %arg6[%c3_54, %c0_55, %c0_56] : memref<5x160x128xbf16, #tpu.memory_space<vmem>>, vector<1x160x128xbf16>
    %113 = vector.shape_cast %112 : vector<1x160x128xbf16> to vector<160x128xbf16>
    %cst_57 = arith.constant dense<0.000000e+00> : vector<256x128xf32>
    %114 = tpu.matmul %111, %113, %cst_57 {dimension_numbers = #tpu.dot_dimension_numbers<[1], [0], [0], [1], [0, 0, 1, 1], [], []>} : vector<256x160xbf16>, vector<160x128xbf16>, vector<256x128xf32> -> vector<256x128xf32>
    %115 = arith.addf %108, %114 : vector<256x128xf32>
    %116 = vector.extract_strided_slice %91 {offsets = [16, 0], sizes = [240, 160], strides = [1, 1]} : vector<256x160xbf16> to vector<240x160xbf16>
    %117 = vector.extract_strided_slice %91 {offsets = [0, 0], sizes = [16, 160], strides = [1, 1]} : vector<256x160xbf16> to vector<16x160xbf16>
    %118 = tpu.concatenate %116, %117 in 0 : vector<240x160xbf16>, vector<16x160xbf16> -> vector<256x160xbf16>
    %c4_58 = arith.constant 4 : index
    %c0_59 = arith.constant 0 : index
    %c0_60 = arith.constant 0 : index
    %119 = vector.load %arg6[%c4_58, %c0_59, %c0_60] : memref<5x160x128xbf16, #tpu.memory_space<vmem>>, vector<1x160x128xbf16>
    %120 = vector.shape_cast %119 : vector<1x160x128xbf16> to vector<160x128xbf16>
    %cst_61 = arith.constant dense<0.000000e+00> : vector<256x128xf32>
    %121 = tpu.matmul %118, %120, %cst_61 {dimension_numbers = #tpu.dot_dimension_numbers<[1], [0], [0], [1], [0, 0, 1, 1], [], []>} : vector<256x160xbf16>, vector<160x128xbf16>, vector<256x128xf32> -> vector<256x128xf32>
    %122 = arith.addf %115, %121 : vector<256x128xf32>
    %123 = tpu.iota {dimensions = array<i32: 0>} : vector<8x256xi32>
    %124 = tpu.iota {dimensions = array<i32: 1>} : vector<8x256xi32>
    %c32_i32 = arith.constant 32 : i32
    %125 = vector.broadcast %c32_i32 : i32 to vector<8x256xi32>
    %126 = arith.muli %123, %125 : vector<8x256xi32>
    %127 = arith.cmpi eq, %124, %126 : vector<8x256xi32>
    %cst_62 = arith.constant 1.000000e+00 : f32
    %cst_63 = arith.constant 0.000000e+00 : f32
    %128 = vector.broadcast %cst_62 : f32 to vector<8x256xf32>
    %129 = vector.broadcast %cst_63 : f32 to vector<8x256xf32>
    %130 = arith.select %127, %128, %129 : vector<8x256xi1>, vector<8x256xf32>
    %cst_64 = arith.constant dense<0.000000e+00> : vector<8x128xf32>
    %131 = tpu.matmul %130, %122, %cst_64 {dimension_numbers = #tpu.dot_dimension_numbers<[1], [0], [0], [1], [0, 0, 1, 1], [], []>} : vector<8x256xf32>, vector<256x128xf32>, vector<8x128xf32> -> vector<8x128xf32>
    %c0_65 = arith.constant 0 : index
    %c0_66 = arith.constant 0 : index
    %132 = vector.load %arg7[%c0_65, %c0_66] : memref<1x128xf32, #tpu.memory_space<vmem>>, vector<1x128xf32>
    %133 = vector.broadcast %132 : vector<1x128xf32> to vector<8x128xf32>
    %134 = arith.addf %131, %133 : vector<8x128xf32>
    %cst_67 = arith.constant 0.000000e+00 : f32
    %135 = vector.broadcast %cst_67 : f32 to vector<8x128xf32>
    %136 = arith.maximumf %134, %135 : vector<8x128xf32>
    %137 = arith.truncf %136 : vector<8x128xf32> to vector<8x128xbf16>
    %c0_68 = arith.constant 0 : index
    %c0_69 = arith.constant 0 : index
    %138 = vector.load %arg8[%c0_68, %c0_69] : memref<128x128xbf16, #tpu.memory_space<vmem>>, vector<128x128xbf16>
    %cst_70 = arith.constant dense<0.000000e+00> : vector<8x128xf32>
    %139 = tpu.matmul %137, %138, %cst_70 {dimension_numbers = #tpu.dot_dimension_numbers<[1], [0], [0], [1], [0, 0, 1, 1], [], []>} : vector<8x128xbf16>, vector<128x128xbf16>, vector<8x128xf32> -> vector<8x128xf32>
    %c0_71 = arith.constant 0 : index
    %c0_72 = arith.constant 0 : index
    %140 = vector.load %arg9[%c0_71, %c0_72] : memref<1x128xf32, #tpu.memory_space<vmem>>, vector<1x128xf32>
    %141 = vector.broadcast %140 : vector<1x128xf32> to vector<8x128xf32>
    %142 = arith.addf %139, %141 : vector<8x128xf32>
    %cst_73 = arith.constant 0.000000e+00 : f32
    %143 = vector.broadcast %cst_73 : f32 to vector<8x128xf32>
    %144 = arith.maximumf %142, %143 : vector<8x128xf32>
    %145 = arith.truncf %144 : vector<8x128xf32> to vector<8x128xbf16>
    %c0_74 = arith.constant 0 : index
    %c0_75 = arith.constant 0 : index
    %146 = vector.load %arg10[%c0_74, %c0_75] : memref<128x128xbf16, #tpu.memory_space<vmem>>, vector<128x128xbf16>
    %cst_76 = arith.constant dense<0.000000e+00> : vector<8x128xf32>
    %147 = tpu.matmul %145, %146, %cst_76 {dimension_numbers = #tpu.dot_dimension_numbers<[1], [0], [0], [1], [0, 0, 1, 1], [], []>} : vector<8x128xbf16>, vector<128x128xbf16>, vector<8x128xf32> -> vector<8x128xf32>
    %c0_77 = arith.constant 0 : index
    %c0_78 = arith.constant 0 : index
    %148 = vector.load %arg11[%c0_77, %c0_78] : memref<1x128xf32, #tpu.memory_space<vmem>>, vector<1x128xf32>
    %149 = vector.broadcast %148 : vector<1x128xf32> to vector<8x128xf32>
    %150 = arith.addf %147, %149 : vector<8x128xf32>
    %c0_79 = arith.constant 0 : index
    %c0_80 = arith.constant 0 : index
    %151 = vector.load %arg12[%c0_79, %c0_80] : memref<8x128xf32, #tpu.memory_space<vmem>>, vector<8x128xf32>
    tpu.vector_store %arg12[%c0_79, %c0_80], %150 {strides = array<i32>} : memref<8x128xf32, #tpu.memory_space<vmem>>, vector<8x128xf32>,
    return
  }
  func.func @transform_0(%arg0: i32) -> (i32, i32) {
    %c0_i32 = arith.constant 0 : i32
    %c0_i32_0 = arith.constant 0 : i32
    return %arg0, %c0_i32 : i32, i32
  }
  func.func @transform_1(%arg0: i32) -> (i32, i32, i32) {
    %c0_i32 = arith.constant 0 : i32
    %c0_i32_0 = arith.constant 0 : i32
    %c0_i32_1 = arith.constant 0 : i32
    %c0_i32_2 = arith.constant 0 : i32
    return %c0_i32, %c0_i32_0, %c0_i32_1 : i32, i32, i32
  }
  func.func @transform_2(%arg0: i32) -> (i32, i32) {
    %c0_i32 = arith.constant 0 : i32
    %c0_i32_0 = arith.constant 0 : i32
    %c0_i32_1 = arith.constant 0 : i32
    return %c0_i32, %c0_i32_0 : i32, i32
  }
  func.func @transform_3(%arg0: i32) -> (i32, i32, i32) {
    %c0_i32 = arith.constant 0 : i32
    %c0_i32_0 = arith.constant 0 : i32
    %c0_i32_1 = arith.constant 0 : i32
    %c0_i32_2 = arith.constant 0 : i32
    return %c0_i32, %c0_i32_0, %c0_i32_1 : i32, i32, i32
  }
  func.func @transform_4(%arg0: i32) -> (i32, i32) {
    %c0_i32 = arith.constant 0 : i32
    %c0_i32_0 = arith.constant 0 : i32
    %c0_i32_1 = arith.constant 0 : i32
    return %c0_i32, %c0_i32_0 : i32, i32
  }
  func.func @transform_5(%arg0: i32) -> (i32, i32, i32) {
    %c0_i32 = arith.constant 0 : i32
    %c0_i32_0 = arith.constant 0 : i32
    %c0_i32_1 = arith.constant 0 : i32
    %c0_i32_2 = arith.constant 0 : i32
    return %c0_i32, %c0_i32_0, %c0_i32_1 : i32, i32, i32
  }
  func.func @transform_6(%arg0: i32) -> (i32, i32) {
    %c0_i32 = arith.constant 0 : i32
    %c0_i32_0 = arith.constant 0 : i32
    %c0_i32_1 = arith.constant 0 : i32
    return %c0_i32, %c0_i32_0 : i32, i32
  }
  func.func @transform_7(%arg0: i32) -> (i32, i32) {
    %c0_i32 = arith.constant 0 : i32
    %c0_i32_0 = arith.constant 0 : i32
    %c0_i32_1 = arith.constant 0 : i32
    return %c0_i32, %c0_i32_0 : i32, i32
  }
  func.func @transform_8(%arg0: i32) -> (i32, i32) {
    %c0_i32 = arith.constant 0 : i32
    %c0_i32_0 = arith.constant 0 : i32
    %c0_i32_1 = arith.constant 0 : i32
    return %c0_i32, %c0_i32_0 : i32, i32
  }
  func.func @transform_9(%arg0: i32) -> (i32, i32) {
    %c0_i32 = arith.constant 0 : i32
    %c0_i32_0 = arith.constant 0 : i32
    %c0_i32_1 = arith.constant 0 : i32
    return %c0_i32, %c0_i32_0 : i32, i32
  }
  func.func @transform_10(%arg0: i32) -> (i32, i32) {
    %c0_i32 = arith.constant 0 : i32
    %c0_i32_0 = arith.constant 0 : i32
    %c0_i32_1 = arith.constant 0 : i32
    return %c0_i32, %c0_i32_0 : i32, i32
  }
  func.func @transform_11(%arg0: i32) -> (i32, i32) {
    %c0_i32 = arith.constant 0 : i32
    %c0_i32_0 = arith.constant 0 : i32
    return %arg0, %c0_i32 : i32, i32
  }
}

</mosaic_0001>

<llo_original>
// kernel: net_forward.1
$region0: #{net_forward.1}
  #allocation0 [shape = 'u32[]', space=smem, size = 0x4, offset = 0x4, fixed_abs, tag = 'smem constant byte address 0x4 - core index']
  #allocation1 [shape = 'u32[144,128]{1,0:T(1,128)}', space=vmem, size = 0x12000, scoped, tag = 'internal scratch']
  %s0 = inlined_call_operand.vmem [shape: f32[512,96], index: 0, kind: input, shape index: {}]
  %s1 = inlined_call_operand.vmem [shape: bf16[5,96,168], index: 1, kind: input, shape index: {}]
  %s2 = inlined_call_operand.vmem [shape: f32[1,168], index: 2, kind: input, shape index: {}]
  %s3 = inlined_call_operand.vmem [shape: bf16[5,168,160], index: 3, kind: input, shape index: {}]
  %s4 = inlined_call_operand.vmem [shape: f32[1,160], index: 4, kind: input, shape index: {}]
  %s5 = inlined_call_operand.vmem [shape: bf16[5,160,128], index: 5, kind: input, shape index: {}]
  %s6 = inlined_call_operand.vmem [shape: f32[1,128], index: 6, kind: input, shape index: {}]
  %s7 = inlined_call_operand.vmem [shape: bf16[128,128], index: 7, kind: input, shape index: {}]
  %s8 = inlined_call_operand.vmem [shape: f32[1,128], index: 8, kind: input, shape index: {}]
  %s9 = inlined_call_operand.vmem [shape: bf16[128,128], index: 9, kind: input, shape index: {}]
  %s10 = inlined_call_operand.vmem [shape: f32[1,128], index: 10, kind: input, shape index: {}]
  %s11 = inlined_call_operand.hbm [shape: f32[16,128], index: 11, kind: output, shape index: {}]
  %s12 = sld [smem:[#allocation0]]
  $region77: #{net_forward.1} parent=0
    _
  %s14 = ssub.s32 1, %s12
  %s15 = scalar_select 0, %s14, %s12
  $region1: #{net_forward.1} parent=0
    #allocation2 [shape = 'u8[8192]{0}', space=vmem, size = 0x2000, scoped, tag = 'output window, operand 0']
    #allocation3 [shape = 's32[2]{0}', space=sflag, size = 0x8, scoped, tag = 'scoped memory for net_forward.1']
    %16 = vsyncpa [#allocation3], 0
    %s17 = scalar_lea.sflag [#allocation3], 1
    %18 = vsyncpa %s17, 0
    loop: start=0, step=1, limit=4
    $region2: #{net_forward.1} parent=1 // loop_pre_header
      _
    $region3: #{net_forward.1} parent=1 // loop_header
      %s20 = sphi 0, %s24
      %p21 = scmp.ge.s32.totalorder %s20, 4
      %s30 = sphi 0, %s32
      %s33 = sphi 0, %s30
      %s34 = sphi 0, %s33
      %s50 = sphi 0, %s34
      %s54 = sphi 0, %s54
      %s56 = sphi 0, %s54
      %s57 = sphi 0, %s56
      %s71 = sphi 0, %s57
      %s75 = sphi 0, %s75
      %s77 = sphi 0, %s75
      %s78 = sphi 0, %s77
      %s92 = sphi 0, %s78
      %s96 = sphi 0, %s96
      %s98 = sphi 0, %s96
      %s99 = sphi 0, %s98
      %s113 = sphi 0, %s99
      %s117 = sphi 0, %s117
      %s119 = sphi 0, %s117
      %s120 = sphi 0, %s119
      %s134 = sphi 0, %s120
      %s138 = sphi 0, %s138
      %s140 = sphi 0, %s138
      %s141 = sphi 0, %s140
      %s155 = sphi 0, %s141
      %s159 = sphi 0, %s159
      %s161 = sphi 0, %s159
      %s162 = sphi 0, %s161
      %s176 = sphi 0, %s162
      %s180 = sphi 0, %s180
      %s182 = sphi 0, %s180
      %s183 = sphi 0, %s182
      %s197 = sphi 0, %s183
      %s201 = sphi 0, %s201
      %s203 = sphi 0, %s201
      %s204 = sphi 0, %s203
      %s218 = sphi 0, %s204
      %s222 = sphi 0, %s222
      %s224 = sphi 0, %s222
      %s225 = sphi 0, %s224
      %s239 = sphi 0, %s225
      %s243 = sphi 0, %s243
      %s245 = sphi 0, %s243
      %s246 = sphi 0, %s245
      %s260 = sphi 0, %s246
      %s266 = sphi 0, %s268
      %s269 = sphi 0, %s266
      %s270 = sphi 0, %s269
      %s286 = sphi 0, %s270
    $region4: #{net_forward.1} parent=1 // loop_header_branch
      %23 = sbr.rel (%p21) target = $region8
    $region5: #{net_forward.1} parent=1 // loop_body
      %s25 = ssub.s32 %s20, 1
      %s26 = ssub.s32 %s20, 2
      %s27 = sadd.s32 %s20, 1
      %s28 = ssub.s32 %s20, %s27
      %p29 = scmp.eq.s32.totalorder %s28, 0
      %s31 = sadd.s32 %s30, 1
      %s32 = scalar_select %p29, %s30, %s31
      %p35 = pneg %p29
      %p36 = scmp.eq.s32.totalorder %s20, 1
      %p37 = por %p35, %p36
      %p38 = scmp.ne.s32.totalorder %s30, %s33
      %p39 = scmp.eq.s32.totalorder %s20, 0
      %p40 = por %p38, %p39
      %p41 = scmp.ne.s32.totalorder %s30, %s33
      %p42 = scmp.eq.s32.totalorder %s25, 1
      %p43 = por %p41, %p42
      %p44 = scmp.ne.s32.totalorder %s33, %s34
      %p45 = scmp.eq.s32.totalorder %s25, 0
      %p46 = por %p44, %p45
      %p47 = scmp.ne.s32.totalorder %s33, %s34
      %p48 = scmp.eq.s32.totalorder %s26, 1
      %p49 = por %p47, %p48
      %p51 = scmp.ne.s32.totalorder %s34, %s50
      %p52 = scmp.eq.s32.totalorder %s26, 0
      %p53 = por %p51, %p52
      %s55 = sadd.s32 %s54, 1
      %p58 = scmp.eq.s32.totalorder %s20, 1
      %p59 = scmp.ne.s32.totalorder %s54, %s56
      %p60 = scmp.eq.s32.totalorder %s20, 0
      %p61 = por %p59, %p60
      %p62 = scmp.ne.s32.totalorder %s54, %s56
      %p63 = scmp.eq.s32.totalorder %s25, 1
      %p64 = por %p62, %p63
      %p65 = scmp.ne.s32.totalorder %s56, %s57
      %p66 = scmp.eq.s32.totalorder %s25, 0
      %p67 = por %p65, %p66
      %p68 = scmp.ne.s32.totalorder %s56, %s57
      %p69 = scmp.eq.s32.totalorder %s26, 1
      %p70 = por %p68, %p69
      %p72 = scmp.ne.s32.totalorder %s57, %s71
      %p73 = scmp.eq.s32.totalorder %s26, 0
      %p74 = por %p72, %p73
      %s76 = sadd.s32 %s75, 1
      %p79 = scmp.eq.s32.totalorder %s20, 1
      %p80 = scmp.ne.s32.totalorder %s75, %s77
      %p81 = scmp.eq.s32.totalorder %s20, 0
      %p82 = por %p80, %p81
      %p83 = scmp.ne.s32.totalorder %s75, %s77
      %p84 = scmp.eq.s32.totalorder %s25, 1
      %p85 = por %p83, %p84
      %p86 = scmp.ne.s32.totalorder %s77, %s78
      %p87 = scmp.eq.s32.totalorder %s25, 0
      %p88 = por %p86, %p87
      %p89 = scmp.ne.s32.totalorder %s77, %s78
      %p90 = scmp.eq.s32.totalorder %s26, 1
      %p91 = por %p89, %p90
      %p93 = scmp.ne.s32.totalorder %s78, %s92
      %p94 = scmp.eq.s32.totalorder %s26, 0
      %p95 = por %p93, %p94
      %s97 = sadd.s32 %s96, 1
      %p100 = scmp.eq.s32.totalorder %s20, 1
      %p101 = scmp.ne.s32.totalorder %s96, %s98
      %p102 = scmp.eq.s32.totalorder %s20, 0
      %p103 = por %p101, %p102
      %p104 = scmp.ne.s32.totalorder %s96, %s98
      %p105 = scmp.eq.s32.totalorder %s25, 1
      %p106 = por %p104, %p105
      %p107 = scmp.ne.s32.totalorder %s98, %s99
      %p108 = scmp.eq.s32.totalorder %s25, 0
      %p109 = por %p107, %p108
      %p110 = scmp.ne.s32.totalorder %s98, %s99
      %p111 = scmp.eq.s32.totalorder %s26, 1
      %p112 = por %p110, %p111
      %p114 = scmp.ne.s32.totalorder %s99, %s113
      %p115 = scmp.eq.s32.totalorder %s26, 0
      %p116 = por %p114, %p115
      %s118 = sadd.s32 %s117, 1
      %p121 = scmp.eq.s32.totalorder %s20, 1
      %p122 = scmp.ne.s32.totalorder %s117, %s119
      %p123 = scmp.eq.s32.totalorder %s20, 0
      %p124 = por %p122, %p123
      %p125 = scmp.ne.s32.totalorder %s117, %s119
      %p126 = scmp.eq.s32.totalorder %s25, 1
      %p127 = por %p125, %p126
      %p128 = scmp.ne.s32.totalorder %s119, %s120
      %p129 = scmp.eq.s32.totalorder %s25, 0
      %p130 = por %p128, %p129
      %p131 = scmp.ne.s32.totalorder %s119, %s120
      %p132 = scmp.eq.s32.totalorder %s26, 1
      %p133 = por %p131, %p132
      %p135 = scmp.ne.s32.totalorder %s120, %s134
      %p136 = scmp.eq.s32.totalorder %s26, 0
      %p137 = por %p135, %p136
      %s139 = sadd.s32 %s138, 1
      %p142 = scmp.eq.s32.totalorder %s20, 1
      %p143 = scmp.ne.s32.totalorder %s138, %s140
      %p144 = scmp.eq.s32.totalorder %s20, 0
      %p145 = por %p143, %p144
      %p146 = scmp.ne.s32.totalorder %s138, %s140
      %p147 = scmp.eq.s32.totalorder %s25, 1
      %p148 = por %p146, %p147
      %p149 = scmp.ne.s32.totalorder %s140, %s141
      %p150 = scmp.eq.s32.totalorder %s25, 0
      %p151 = por %p149, %p150
      %p152 = scmp.ne.s32.totalorder %s140, %s141
      %p153 = scmp.eq.s32.totalorder %s26, 1
      %p154 = por %p152, %p153
      %p156 = scmp.ne.s32.totalorder %s141, %s155
      %p157 = scmp.eq.s32.totalorder %s26, 0
      %p158 = por %p156, %p157
      %s160 = sadd.s32 %s159, 1
      %p163 = scmp.eq.s32.totalorder %s20, 1
      %p164 = scmp.ne.s32.totalorder %s159, %s161
      %p165 = scmp.eq.s32.totalorder %s20, 0
      %p166 = por %p164, %p165
      %p167 = scmp.ne.s32.totalorder %s159, %s161
      %p168 = scmp.eq.s32.totalorder %s25, 1
      %p169 = por %p167, %p168
      %p170 = scmp.ne.s32.totalorder %s161, %s162
      %p171 = scmp.eq.s32.totalorder %s25, 0
      %p172 = por %p170, %p171
      %p173 = scmp.ne.s32.totalorder %s161, %s162
      %p174 = scmp.eq.s32.totalorder %s26, 1
      %p175 = por %p173, %p174
      %p177 = scmp.ne.s32.totalorder %s162, %s176
      %p178 = scmp.eq.s32.totalorder %s26, 0
      %p179 = por %p177, %p178
      %s181 = sadd.s32 %s180, 1
      %p184 = scmp.eq.s32.totalorder %s20, 1
      %p185 = scmp.ne.s32.totalorder %s180, %s182
      %p186 = scmp.eq.s32.totalorder %s20, 0
      %p187 = por %p185, %p186
      %p188 = scmp.ne.s32.totalorder %s180, %s182
      %p189 = scmp.eq.s32.totalorder %s25, 1
      %p190 = por %p188, %p189
      %p191 = scmp.ne.s32.totalorder %s182, %s183
      %p192 = scmp.eq.s32.totalorder %s25, 0
      %p193 = por %p191, %p192
      %p194 = scmp.ne.s32.totalorder %s182, %s183
      %p195 = scmp.eq.s32.totalorder %s26, 1
      %p196 = por %p194, %p195
      %p198 = scmp.ne.s32.totalorder %s183, %s197
      %p199 = scmp.eq.s32.totalorder %s26, 0
      %p200 = por %p198, %p199
      %s202 = sadd.s32 %s201, 1
      %p205 = scmp.eq.s32.totalorder %s20, 1
      %p206 = scmp.ne.s32.totalorder %s201, %s203
      %p207 = scmp.eq.s32.totalorder %s20, 0
      %p208 = por %p206, %p207
      %p209 = scmp.ne.s32.totalorder %s201, %s203
      %p210 = scmp.eq.s32.totalorder %s25, 1
      %p211 = por %p209, %p210
      %p212 = scmp.ne.s32.totalorder %s203, %s204
      %p213 = scmp.eq.s32.totalorder %s25, 0
      %p214 = por %p212, %p213
      %p215 = scmp.ne.s32.totalorder %s203, %s204
      %p216 = scmp.eq.s32.totalorder %s26, 1
      %p217 = por %p215, %p216
      %p219 = scmp.ne.s32.totalorder %s204, %s218
      %p220 = scmp.eq.s32.totalorder %s26, 0
      %p221 = por %p219, %p220
      %s223 = sadd.s32 %s222, 1
      %p226 = scmp.eq.s32.totalorder %s20, 1
      %p227 = scmp.ne.s32.totalorder %s222, %s224
      %p228 = scmp.eq.s32.totalorder %s20, 0
      %p229 = por %p227, %p228
      %p230 = scmp.ne.s32.totalorder %s222, %s224
      %p231 = scmp.eq.s32.totalorder %s25, 1
      %p232 = por %p230, %p231
      %p233 = scmp.ne.s32.totalorder %s224, %s225
      %p234 = scmp.eq.s32.totalorder %s25, 0
      %p235 = por %p233, %p234
      %p236 = scmp.ne.s32.totalorder %s224, %s225
      %p237 = scmp.eq.s32.totalorder %s26, 1
      %p238 = por %p236, %p237
      %p240 = scmp.ne.s32.totalorder %s225, %s239
      %p241 = scmp.eq.s32.totalorder %s26, 0
      %p242 = por %p240, %p241
      %s244 = sadd.s32 %s243, 1
      %p247 = scmp.eq.s32.totalorder %s20, 1
      %p248 = scmp.ne.s32.totalorder %s243, %s245
      %p249 = scmp.eq.s32.totalorder %s20, 0
      %p250 = por %p248, %p249
      %p251 = scmp.ne.s32.totalorder %s243, %s245
      %p252 = scmp.eq.s32.totalorder %s25, 1
      %p253 = por %p251, %p252
      %p254 = scmp.ne.s32.totalorder %s245, %s246
      %p255 = scmp.eq.s32.totalorder %s25, 0
      %p256 = por %p254, %p255
      %p257 = scmp.ne.s32.totalorder %s245, %s246
      %p258 = scmp.eq.s32.totalorder %s26, 1
      %p259 = por %p257, %p258
      %p261 = scmp.ne.s32.totalorder %s246, %s260
      %p262 = scmp.eq.s32.totalorder %s26, 0
      %p263 = por %p261, %p262
      %s264 = ssub.s32 %s20, %s27
      %p265 = scmp.eq.s32.totalorder %s264, 0
      %s267 = sadd.s32 %s266, 1
      %s268 = scalar_select %p265, %s266, %s267
      %p271 = pneg %p265
      %p272 = scmp.eq.s32.totalorder %s20, 1
      %p273 = por %p271, %p272
      %p274 = scmp.ne.s32.totalorder %s266, %s269
      %p275 = scmp.eq.s32.totalorder %s20, 0
      %p276 = por %p274, %p275
      %p277 = scmp.ne.s32.totalorder %s266, %s269
      %p278 = scmp.eq.s32.totalorder %s25, 1
      %p279 = por %p277, %p278
      %p280 = scmp.ne.s32.totalorder %s269, %s270
      %p281 = scmp.eq.s32.totalorder %s25, 0
      %p282 = por %p280, %p281
      %p283 = scmp.ne.s32.totalorder %s269, %s270
      %p284 = scmp.eq.s32.totalorder %s26, 1
      %p285 = por %p283, %p284
      %p287 = scmp.ne.s32.totalorder %s270, %s286
      %p288 = scmp.eq.s32.totalorder %s26, 0
      %p289 = por %p287, %p288
      %p290 = scmp.le.s32.totalorder 1, %s20
      %p291 = scmp.lt.s32.totalorder %s20, 3
      %p292 = pnand %p290, %p291
      %p293 = pneg %p292
      // Predicated region
      $region9: #{net_forward.1} parent=5 // pred_check
        _
      $region10: #{net_forward.1} parent=5 // pred_check_branch
        %295 = sbr.rel (%p292) target = $region12
      $region11: #{net_forward.1} parent=5 // pred_region
        %s296 = ssub.s32 %s20, 1
        // Predicated region
        $region13: #{net_forward.1} parent=11 // pred_check
          %p297 = pneg %p67
        $region14: #{net_forward.1} parent=11 // pred_check_branch
          %299 = sbr.rel (%p297) target = $region16
        $region15: #{net_forward.1} parent=11 // pred_region
          _
        $region16: #{net_forward.1} parent=11 // pred_fallthru
          _
        // Predicated region
        $region17: #{net_forward.1} parent=11 // pred_check
          %p300 = pneg %p88
        $region18: #{net_forward.1} parent=11 // pred_check_branch
          %302 = sbr.rel (%p300) target = $region20
        $region19: #{net_forward.1} parent=11 // pred_region
          _
        $region20: #{net_forward.1} parent=11 // pred_fallthru
          _
        // Predicated region
        $region21: #{net_forward.1} parent=11 // pred_check
          %p303 = pneg %p109
        $region22: #{net_forward.1} parent=11 // pred_check_branch
          %305 = sbr.rel (%p303) target = $region24
        $region23: #{net_forward.1} parent=11 // pred_region
          _
        $region24: #{net_forward.1} parent=11 // pred_fallthru
          _
        // Predicated region
        $region25: #{net_forward.1} parent=11 // pred_check
          %p306 = pneg %p130
        $region26: #{net_forward.1} parent=11 // pred_check_branch
          %308 = sbr.rel (%p306) target = $region28
        $region27: #{net_forward.1} parent=11 // pred_region
          _
        $region28: #{net_forward.1} parent=11 // pred_fallthru
          _
        // Predicated region
        $region29: #{net_forward.1} parent=11 // pred_check
          %p309 = pneg %p151
        $region30: #{net_forward.1} parent=11 // pred_check_branch
          %311 = sbr.rel (%p309) target = $region32
        $region31: #{net_forward.1} parent=11 // pred_region
          _
        $region32: #{net_forward.1} parent=11 // pred_fallthru
          _
        // Predicated region
        $region33: #{net_forward.1} parent=11 // pred_check
          %p312 = pneg %p172
        $region34: #{net_forward.1} parent=11 // pred_check_branch
          %314 = sbr.rel (%p312) target = $region36
        $region35: #{net_forward.1} parent=11 // pred_region
          _
        $region36: #{net_forward.1} parent=11 // pred_fallthru
          _
        // Predicated region
        $region37: #{net_forward.1} parent=11 // pred_check
          %p315 = pneg %p193
        $region38: #{net_forward.1} parent=11 // pred_check_branch
          %317 = sbr.rel (%p315) target = $region40
        $region39: #{net_forward.1} parent=11 // pred_region
          _
        $region40: #{net_forward.1} parent=11 // pred_fallthru
          _
        // Predicated region
        $region41: #{net_forward.1} parent=11 // pred_check
          %p318 = pneg %p214
        $region42: #{net_forward.1} parent=11 // pred_check_branch
          %320 = sbr.rel (%p318) target = $region44
        $region43: #{net_forward.1} parent=11 // pred_region
          _
        $region44: #{net_forward.1} parent=11 // pred_fallthru
          _
        // Predicated region
        $region45: #{net_forward.1} parent=11 // pred_check
          %p321 = pneg %p235
        $region46: #{net_forward.1} parent=11 // pred_check_branch
          %323 = sbr.rel (%p321) target = $region48
        $region47: #{net_forward.1} parent=11 // pred_region
          _
        $region48: #{net_forward.1} parent=11 // pred_fallthru
          _
        // Predicated region
        $region49: #{net_forward.1} parent=11 // pred_check
          %p324 = pneg %p256
        $region50: #{net_forward.1} parent=11 // pred_check_branch
          %326 = sbr.rel (%p324) target = $region52
        $region51: #{net_forward.1} parent=11 // pred_region
          _
        $region52: #{net_forward.1} parent=11 // pred_fallthru
          _
      $region12: #{net_forward.1} parent=5 // pred_fallthru
        _
      %p327 = scmp.lt.s32.totalorder %s20, 2
      // Predicated region
      $region53: #{net_forward.1} parent=5 // pred_check
        %p328 = pneg %p327
      $region54: #{net_forward.1} parent=5 // pred_check_branch
        %330 = sbr.rel (%p328) target = $region56
      $region55: #{net_forward.1} parent=5 // pred_region
        // Predicated region
        $region57: #{net_forward.1} parent=55 // pred_check
          %p331 = pneg %p40
        $region58: #{net_forward.1} parent=55 // pred_check_branch
          %333 = sbr.rel (%p331) target = $region60
        $region59: #{net_forward.1} parent=55 // pred_region
          %s334 = smul.u32 32, %s20
          %p335 = scmp.lt.s32.totalorder %s334, 63
          %s336 = scalar_select %p335, %s334, 63
          %s337 = smul.addr %s336, 8
          %s338 = scalar_lea.vmem %s0, %s337
          %s339 = smul.u32 32, %s20
        $region60: #{net_forward.1} parent=55 // pred_fallthru
          _
      $region56: #{net_forward.1} parent=5 // pred_fallthru
        _
      %p340 = scmp.le.s32.totalorder 1, %s20
      %p341 = scmp.lt.s32.totalorder %s20, 3
      %p342 = pnand %p340, %p341
      %p343 = pneg %p342
      // Predicated region
      $region61: #{net_forward.1} parent=5 // pred_check
        _
      $region62: #{net_forward.1} parent=5 // pred_check_branch
        %345 = sbr.rel (%p342) target = $region64
      $region63: #{net_forward.1} parent=5 // pred_region
        %s346 = ssub.s32 %s20, 1
        %s347 = smul.u32 32, %s25
        %p348 = scmp.lt.s32.totalorder %s347, 63
        %s349 = scalar_select %p348, %s347, 63
        %s350 = smul.addr %s349, 8
        %s351 = scalar_lea.vmem %s0, %s350
        %p352 = pneg %p46
        %p353 = pneg %p43
        %p354 = pneg %p67
        %p355 = pneg %p64
        %p356 = pneg %p88
        %p357 = pneg %p85
        %p358 = pneg %p109
        %p359 = pneg %p106
        %p360 = pneg %p130
        %p361 = pneg %p127
        %p362 = pneg %p151
        %p363 = pneg %p148
        %p364 = pneg %p172
        %p365 = pneg %p169
        %p366 = pneg %p193
        %p367 = pneg %p190
        %p368 = pneg %p214
        %p369 = pneg %p211
        %p370 = pneg %p235
        %p371 = pneg %p232
        %p372 = pneg %p256
        %p373 = pneg %p253
        %p374 = pneg %p282
        %p375 = pneg %p279
        %s376 = sand.u32 %s269, 1
        %s377 = scalar_lea.sflag [#allocation3], %s376
        %s378 = sand.u32 %s269, 1
        %s379 = smul.addr %s378, 8
        %s380 = scalar_lea.vmem [#allocation2], %s379
        %s381 = smul.u32 32, %s25
        %p382 = scmp.lt.s32.totalorder %s381, 63
        %s383 = scalar_select %p382, %s381, 63
        %s384 = smul.addr %s383, 8
        %s385 = scalar_lea.vmem %s0, %s384
        %s386 = smul.u32 32, %s25
        %v388 = vld [vmem:[%s385] sm:$0xff]
        %v389 = vld [vmem:[%s385 + $0x8] sm:$0xff]
        %v390 = vld [vmem:[%s385 + $0x10] sm:$0xff]
        %v391 = vld [vmem:[%s385 + $0x18] sm:$0xff]
        %v392 = vld [vmem:[%s385 + $0x20] sm:$0xff]
        %v393 = vld [vmem:[%s385 + $0x28] sm:$0xff]
        %v394 = vld [vmem:[%s385 + $0x30] sm:$0xff]
        %v395 = vld [vmem:[%s385 + $0x38] sm:$0xff]
        %v396 = vld [vmem:[%s385 + $0x40] sm:$0xff]
        %v397 = vld [vmem:[%s385 + $0x48] sm:$0xff]
        %v398 = vld [vmem:[%s385 + $0x50] sm:$0xff]
        %v399 = vld [vmem:[%s385 + $0x58] sm:$0xff]
        %v400 = vld [vmem:[%s385 + $0x60] sm:$0xff]
        %v401 = vld [vmem:[%s385 + $0x68] sm:$0xff]
        %v402 = vld [vmem:[%s385 + $0x70] sm:$0xff]
        %v403 = vld [vmem:[%s385 + $0x78] sm:$0xff]
        %v404 = vld [vmem:[%s385 + $0x80] sm:$0xff]
        %v405 = vld [vmem:[%s385 + $0x88] sm:$0xff]
        %v406 = vld [vmem:[%s385 + $0x90] sm:$0xff]
        %v407 = vld [vmem:[%s385 + $0x98] sm:$0xff]
        %v408 = vld [vmem:[%s385 + $0xa0] sm:$0xff]
        %v409 = vld [vmem:[%s385 + $0xa8] sm:$0xff]
        %v410 = vld [vmem:[%s385 + $0xb0] sm:$0xff]
        %v411 = vld [vmem:[%s385 + $0xb8] sm:$0xff]
        %v412 = vld [vmem:[%s385 + $0xc0] sm:$0xff]
        %v413 = vld [vmem:[%s385 + $0xc8] sm:$0xff]
        %v414 = vld [vmem:[%s385 + $0xd0] sm:$0xff]
        %v415 = vld [vmem:[%s385 + $0xd8] sm:$0xff]
        %v416 = vld [vmem:[%s385 + $0xe0] sm:$0xff]
        %v417 = vld [vmem:[%s385 + $0xe8] sm:$0xff]
        %v418 = vld [vmem:[%s385 + $0xf0] sm:$0xff]
        %v419 = vld [vmem:[%s385 + $0xf8] sm:$0xff]
        %v420 = vpack.c.bf16 %v389, %v388
        %v421 = vpack.c.bf16 %v391, %v390
        %v422 = vpack.c.bf16 %v393, %v392
        %v423 = vpack.c.bf16 %v395, %v394
        %v424 = vpack.c.bf16 %v397, %v396
        %v425 = vpack.c.bf16 %v399, %v398
        %v426 = vpack.c.bf16 %v401, %v400
        %v427 = vpack.c.bf16 %v403, %v402
        %v428 = vpack.c.bf16 %v405, %v404
        %v429 = vpack.c.bf16 %v407, %v406
        %v430 = vpack.c.bf16 %v409, %v408
        %v431 = vpack.c.bf16 %v411, %v410
        %v432 = vpack.c.bf16 %v413, %v412
        %v433 = vpack.c.bf16 %v415, %v414
        %v434 = vpack.c.bf16 %v417, %v416
        %v435 = vpack.c.bf16 %v419, %v418
        %v436 = vld [vmem:[%s1] sm:$0xff]
        %v437 = vld [vmem:[%s1 + $0x8] sm:$0xff]
        %v438 = vld [vmem:[%s1 + $0x10] sm:$0xff]
        %v439 = vld [vmem:[%s1 + $0x18] sm:$0xff]
        %v440 = vld [vmem:[%s1 + $0x20] sm:$0xff]
        %v441 = vld [vmem:[%s1 + $0x28] sm:$0xff]
        %v442 = vld [vmem:[%s1 + $0x30] sm:$0xff]
        %v443 = vld [vmem:[%s1 + $0x38] sm:$0xff]
        %v444 = vld [vmem:[%s1 + $0x40] sm:$0xff]
        %v445 = vld [vmem:[%s1 + $0x48] sm:$0xff]
        %v446 = vld [vmem:[%s1 + $0x50] sm:$0xff]
        %v447 = vld [vmem:[%s1 + $0x58] sm:$0xff]
        %vm448 = vsmask.f32 7424
        %v450 = vshrl.u32 %v420, 16
        %v452 = vshll.u32 %v420, 16
        %v454 = vrot.slane %v452, 1
        %v455 = vor.u32 %v450, %v454
        %v457 = vshll.u32 %v421, 16
        %v459 = vrot.slane %v457, 1
        %v460 = vsel %vm448, %v455, %v459
        %v461 = vshrl.u32 %v421, 16
        %v463 = vor.u32 %v461, %v459
        %v465 = vshll.u32 %v422, 16
        %v467 = vrot.slane %v465, 1
        %v468 = vsel %vm448, %v463, %v467
        %v469 = vshrl.u32 %v422, 16
        %v471 = vor.u32 %v469, %v467
        %v473 = vshll.u32 %v423, 16
        %v475 = vrot.slane %v473, 1
        %v476 = vsel %vm448, %v471, %v475
        %v477 = vshrl.u32 %v423, 16
        %v479 = vor.u32 %v477, %v475
        %v481 = vshll.u32 %v424, 16
        %v483 = vrot.slane %v481, 1
        %v484 = vsel %vm448, %v479, %v483
        %v485 = vshrl.u32 %v424, 16
        %v487 = vor.u32 %v485, %v483
        %v489 = vshll.u32 %v425, 16
        %v491 = vrot.slane %v489, 1
        %v492 = vsel %vm448, %v487, %v491
        %v493 = vshrl.u32 %v425, 16
        %v495 = vor.u32 %v493, %v491
        %v497 = vshll.u32 %v426, 16
        %v499 = vrot.slane %v497, 1
        %v500 = vsel %vm448, %v495, %v499
        %v501 = vshrl.u32 %v426, 16
        %v503 = vor.u32 %v501, %v499
        %v505 = vshll.u32 %v427, 16
        %v507 = vrot.slane %v505, 1
        %v508 = vsel %vm448, %v503, %v507
        %v509 = vshrl.u32 %v427, 16
        %v511 = vor.u32 %v509, %v507
        %v513 = vshll.u32 %v428, 16
        %v515 = vrot.slane %v513, 1
        %v516 = vsel %vm448, %v511, %v515
        %v517 = vshrl.u32 %v428, 16
        %v519 = vor.u32 %v517, %v515
        %v521 = vshll.u32 %v429, 16
        %v523 = vrot.slane %v521, 1
        %v524 = vsel %vm448, %v519, %v523
        %v525 = vshrl.u32 %v429, 16
        %v527 = vor.u32 %v525, %v523
        %v529 = vshll.u32 %v430, 16
        %v531 = vrot.slane %v529, 1
        %v532 = vsel %vm448, %v527, %v531
        %v533 = vshrl.u32 %v430, 16
        %v535 = vor.u32 %v533, %v531
        %v537 = vshll.u32 %v431, 16
        %v539 = vrot.slane %v537, 1
        %v540 = vsel %vm448, %v535, %v539
        %v541 = vshrl.u32 %v431, 16
        %v543 = vor.u32 %v541, %v539
        %v545 = vshll.u32 %v432, 16
        %v547 = vrot.slane %v545, 1
        %v548 = vsel %vm448, %v543, %v547
        %v549 = vshrl.u32 %v432, 16
        %v551 = vor.u32 %v549, %v547
        %v553 = vshll.u32 %v433, 16
        %v555 = vrot.slane %v553, 1
        %v556 = vsel %vm448, %v551, %v555
        %v557 = vshrl.u32 %v433, 16
        %v559 = vor.u32 %v557, %v555
        %v561 = vshll.u32 %v434, 16
        %v563 = vrot.slane %v561, 1
        %v564 = vsel %vm448, %v559, %v563
        %v565 = vshrl.u32 %v434, 16
        %v567 = vor.u32 %v565, %v563
        %v569 = vshll.u32 %v435, 16
        %v571 = vrot.slane %v569, 1
        %v572 = vsel %vm448, %v567, %v571
        %v573 = vshrl.u32 %v435, 16
        %v575 = vor.u32 %v573, %v571
        %vm578 = vcmask 1047552
        %vm579 = vmand %vm578, %vm448
        %v580 = vsel %vm579, %v575, %v454
        %s581 = scalar_lea.vmem %s1, 96
        %v582 = vld [vmem:[%s581] sm:$0xff]
        %v583 = vld [vmem:[%s581 + $0x8] sm:$0xff]
        %v584 = vld [vmem:[%s581 + $0x10] sm:$0xff]
        %v585 = vld [vmem:[%s581 + $0x18] sm:$0xff]
        %v586 = vld [vmem:[%s581 + $0x20] sm:$0xff]
        %v587 = vld [vmem:[%s581 + $0x28] sm:$0xff]
        %v588 = vld [vmem:[%s581 + $0x30] sm:$0xff]
        %v589 = vld [vmem:[%s581 + $0x38] sm:$0xff]
        %v590 = vld [vmem:[%s581 + $0x40] sm:$0xff]
        %v591 = vld [vmem:[%s581 + $0x48] sm:$0xff]
        %v592 = vld [vmem:[%s581 + $0x50] sm:$0xff]
        %v593 = vld [vmem:[%s581 + $0x58] sm:$0xff]
        %v606 = vunpack.c.l.b16 %v582
        %v607 = vunpack.c.h.b16 %v582
        %v608 = vunpack.c.l.b16 %v583
        %v609 = vunpack.c.h.b16 %v583
        %v610 = vunpack.c.l.b16 %v584
        %v611 = vunpack.c.h.b16 %v584
        %v612 = vunpack.c.l.b16 %v585
        %v613 = vunpack.c.h.b16 %v585
        %v614 = vunpack.c.l.b16 %v586
        %v615 = vunpack.c.h.b16 %v586
        %v616 = vunpack.c.l.b16 %v587
        %v617 = vunpack.c.h.b16 %v587
        %v618 = vunpack.c.l.b16 %v588
        %v619 = vunpack.c.h.b16 %v588
        %v620 = vunpack.c.l.b16 %v589
        %v621 = vunpack.c.h.b16 %v589
        %v622 = vunpack.c.l.b16 %v590
        %v623 = vunpack.c.h.b16 %v590
        %v624 = vunpack.c.l.b16 %v591
        %v625 = vunpack.c.h.b16 %v591
        %v626 = vunpack.c.l.b16 %v592
        %v627 = vunpack.c.h.b16 %v592
        %v628 = vunpack.c.l.b16 %v593
        %v629 = vunpack.c.h.b16 %v593
        %v630 = vpack.c.b16 %v608, %v606
        %v631 = vpack.c.b16 %v609, %v607
        %v632 = vpack.c.b16 %v612, %v610
        %v633 = vpack.c.b16 %v613, %v611
        %v634 = vpack.c.b16 %v616, %v614
        %v635 = vpack.c.b16 %v617, %v615
        %v636 = vpack.c.b16 %v620, %v618
        %v637 = vpack.c.b16 %v621, %v619
        %v638 = vpack.c.b16 %v624, %v622
        %v639 = vpack.c.b16 %v625, %v623
        %v640 = vpack.c.b16 %v628, %v626
        %v641 = vpack.c.b16 %v629, %v627
        %vm654 = vcmask 785408
        %v656 = vsel %vm654, %v460, 0
        %v659 = vsel %vm654, %v468, 0
        %v662 = vsel %vm654, %v476, 0
        %v665 = vsel %vm654, %v484, 0
        %v668 = vsel %vm654, %v492, 0
        %v671 = vsel %vm654, %v500, 0
        %v674 = vsel %vm654, %v508, 0
        %v677 = vsel %vm654, %v516, 0
        %v680 = vsel %vm654, %v524, 0
        %v683 = vsel %vm654, %v532, 0
        %v686 = vsel %vm654, %v540, 0
        %v689 = vsel %vm654, %v548, 0
        %v692 = vsel %vm654, %v556, 0
        %v695 = vsel %vm654, %v564, 0
        %v698 = vsel %vm654, %v572, 0
        %v701 = vsel %vm654, %v580, 0
        %703 = vmatprep.subr.bf16.mxu0 %v631
        %704 = vmatpush1.bf16.msra.mxu0 %v630
        %705 = vmatprep.subr.bf16.mxu0 %v633
        %706 = vmatpush1.bf16.msra.mxu0 %v632
        %707 = vmatprep.subr.bf16.mxu0 %v635
        %708 = vmatpush1.bf16.msra.mxu0 %v634
        %709 = vmatprep.subr.bf16.mxu0 %v637
        %710 = vmatpush1.bf16.msra.mxu0 %v636
        %711 = vmatprep.subr.bf16.mxu0 %v639
        %712 = vmatpush1.bf16.msra.mxu0 %v638
        %713 = vmatprep.subr.bf16.mxu0 %v641
        %714 = vmatpush1.bf16.msra.mxu0 %v640
        %715 = vmatprep.subr.bf16.mxu0 0
        %716 = vmatpush1.bf16.msra.mxu0 0
        %717 = vmatprep.subr.bf16.mxu0 0
        %718 = vmatpush1.bf16.msra.mxu0 0
        %719 = vmatprep.subr.bf16.mxu0 0
        %720 = vmatpush1.bf16.msra.mxu0 0
        %721 = vmatprep.subr.bf16.mxu0 0
        %722 = vmatpush1.bf16.msra.mxu0 0
        %723 = vmatprep.subr.bf16.mxu0 0
        %724 = vmatpush1.bf16.msra.mxu0 0
        %725 = vmatprep.subr.bf16.mxu0 0
        %726 = vmatpush1.bf16.msra.mxu0 0
        %727 = vmatprep.subr.bf16.mxu0 0
        %728 = vmatpush1.bf16.msra.mxu0 0
        %729 = vmatprep.subr.bf16.mxu0 0
        %730 = vmatpush1.bf16.msra.mxu0 0
        %731 = vmatprep.subr.bf16.mxu0 0
        %732 = vmatpush1.bf16.msra.mxu0 0
        %733 = vmatprep.subr.bf16.mxu0 0
        %734 = vmatpush1.bf16.msra.mxu0 0
        %735 = vmatprep.mubr.bf16.mxu0 0
        %736 = vmatmul.mubr.bf16.gmra.mrb[0].mxu0 %v656
        %v737 = vpop.f32.mrb[0].mxu0
        %v738 = vadd.f32 0.0, %v737
        %v739 = vpop.f32.mrb[0].mxu0
        %v740 = vadd.f32 0.0, %v739
        %v741 = vpop.f32.mrb[0].mxu0
        %v742 = vadd.f32 0.0, %v741
        %v743 = vpop.f32.mrb[0].mxu0
        %v744 = vadd.f32 0.0, %v743
        %745 = vmatprep.mubr.bf16.mxu0 0
        %746 = vmatmul.mubr.bf16.gmra.mrb[0].mxu0 %v659
        %v747 = vpop.f32.mrb[0].mxu0
        %v748 = vadd.f32 0.0, %v747
        %v749 = vpop.f32.mrb[0].mxu0
        %v750 = vadd.f32 0.0, %v749
        %v751 = vpop.f32.mrb[0].mxu0
        %v752 = vadd.f32 0.0, %v751
        %v753 = vpop.f32.mrb[0].mxu0
        %v754 = vadd.f32 0.0, %v753
        %755 = vmatprep.mubr.bf16.mxu0 0
        %756 = vmatmul.mubr.bf16.gmra.mrb[0].mxu0 %v662
        %v757 = vpop.f32.mrb[0].mxu0
        %v758 = vadd.f32 0.0, %v757
        %v759 = vpop.f32.mrb[0].mxu0
        %v760 = vadd.f32 0.0, %v759
        %v761 = vpop.f32.mrb[0].mxu0
        %v762 = vadd.f32 0.0, %v761
        %v763 = vpop.f32.mrb[0].mxu0
        %v764 = vadd.f32 0.0, %v763
        %765 = vmatprep.mubr.bf16.mxu0 0
        %766 = vmatmul.mubr.bf16.gmra.mrb[0].mxu0 %v665
        %v767 = vpop.f32.mrb[0].mxu0
        %v768 = vadd.f32 0.0, %v767
        %v769 = vpop.f32.mrb[0].mxu0
        %v770 = vadd.f32 0.0, %v769
        %v771 = vpop.f32.mrb[0].mxu0
        %v772 = vadd.f32 0.0, %v771
        %v773 = vpop.f32.mrb[0].mxu0
        %v774 = vadd.f32 0.0, %v773
        %775 = vmatprep.mubr.bf16.mxu0 0
        %776 = vmatmul.mubr.bf16.gmra.mrb[0].mxu0 %v668
        %v777 = vpop.f32.mrb[0].mxu0
        %v778 = vadd.f32 0.0, %v777
        %v779 = vpop.f32.mrb[0].mxu0
        %v780 = vadd.f32 0.0, %v779
        %v781 = vpop.f32.mrb[0].mxu0
        %v782 = vadd.f32 0.0, %v781
        %v783 = vpop.f32.mrb[0].mxu0
        %v784 = vadd.f32 0.0, %v783
        %785 = vmatprep.mubr.bf16.mxu0 0
        %786 = vmatmul.mubr.bf16.gmra.mrb[0].mxu0 %v671
        %v787 = vpop.f32.mrb[0].mxu0
        %v788 = vadd.f32 0.0, %v787
        %v789 = vpop.f32.mrb[0].mxu0
        %v790 = vadd.f32 0.0, %v789
        %v791 = vpop.f32.mrb[0].mxu0
        %v792 = vadd.f32 0.0, %v791
        %v793 = vpop.f32.mrb[0].mxu0
        %v794 = vadd.f32 0.0, %v793
        %795 = vmatprep.mubr.bf16.mxu0 0
        %796 = vmatmul.mubr.bf16.gmra.mrb[0].mxu0 %v674
        %v797 = vpop.f32.mrb[0].mxu0
        %v798 = vadd.f32 0.0, %v797
        %v799 = vpop.f32.mrb[0].mxu0
        %v800 = vadd.f32 0.0, %v799
        %v801 = vpop.f32.mrb[0].mxu0
        %v802 = vadd.f32 0.0, %v801
        %v803 = vpop.f32.mrb[0].mxu0
        %v804 = vadd.f32 0.0, %v803
        %805 = vmatprep.mubr.bf16.mxu0 0
        %806 = vmatmul.mubr.bf16.gmra.mrb[0].mxu0 %v677
        %v807 = vpop.f32.mrb[0].mxu0
        %v808 = vadd.f32 0.0, %v807
        %v809 = vpop.f32.mrb[0].mxu0
        %v810 = vadd.f32 0.0, %v809
        %v811 = vpop.f32.mrb[0].mxu0
        %v812 = vadd.f32 0.0, %v811
        %v813 = vpop.f32.mrb[0].mxu0
        %v814 = vadd.f32 0.0, %v813
        %815 = vmatprep.mubr.bf16.mxu0 0
        %816 = vmatmul.mubr.bf16.gmra.mrb[0].mxu0 %v680
        %v817 = vpop.f32.mrb[0].mxu0
        %v818 = vadd.f32 0.0, %v817
        %v819 = vpop.f32.mrb[0].mxu0
        %v820 = vadd.f32 0.0, %v819
        %v821 = vpop.f32.mrb[0].mxu0
        %v822 = vadd.f32 0.0, %v821
        %v823 = vpop.f32.mrb[0].mxu0
        %v824 = vadd.f32 0.0, %v823
        %825 = vmatprep.mubr.bf16.mxu0 0
        %826 = vmatmul.mubr.bf16.gmra.mrb[0].mxu0 %v683
        %v827 = vpop.f32.mrb[0].mxu0
        %v828 = vadd.f32 0.0, %v827
        %v829 = vpop.f32.mrb[0].mxu0
        %v830 = vadd.f32 0.0, %v829
        %v831 = vpop.f32.mrb[0].mxu0
        %v832 = vadd.f32 0.0, %v831
        %v833 = vpop.f32.mrb[0].mxu0
        %v834 = vadd.f32 0.0, %v833
        %835 = vmatprep.mubr.bf16.mxu0 0
        %836 = vmatmul.mubr.bf16.gmra.mrb[0].mxu0 %v686
        %v837 = vpop.f32.mrb[0].mxu0
        %v838 = vadd.f32 0.0, %v837
        %v839 = vpop.f32.mrb[0].mxu0
        %v840 = vadd.f32 0.0, %v839
        %v841 = vpop.f32.mrb[0].mxu0
        %v842 = vadd.f32 0.0, %v841
        %v843 = vpop.f32.mrb[0].mxu0
        %v844 = vadd.f32 0.0, %v843
        %845 = vmatprep.mubr.bf16.mxu0 0
        %846 = vmatmul.mubr.bf16.gmra.mrb[0].mxu0 %v689
        %v847 = vpop.f32.mrb[0].mxu0
        %v848 = vadd.f32 0.0, %v847
        %v849 = vpop.f32.mrb[0].mxu0
        %v850 = vadd.f32 0.0, %v849
        %v851 = vpop.f32.mrb[0].mxu0
        %v852 = vadd.f32 0.0, %v851
        %v853 = vpop.f32.mrb[0].mxu0
        %v854 = vadd.f32 0.0, %v853
        %855 = vmatprep.mubr.bf16.mxu0 0
        %856 = vmatmul.mubr.bf16.gmra.mrb[0].mxu0 %v692
        %v857 = vpop.f32.mrb[0].mxu0
        %v858 = vadd.f32 0.0, %v857
        %v859 = vpop.f32.mrb[0].mxu0
        %v860 = vadd.f32 0.0, %v859
        %v861 = vpop.f32.mrb[0].mxu0
        %v862 = vadd.f32 0.0, %v861
        %v863 = vpop.f32.mrb[0].mxu0
        %v864 = vadd.f32 0.0, %v863
        %865 = vmatprep.mubr.bf16.mxu0 0
        %866 = vmatmul.mubr.bf16.gmra.mrb[0].mxu0 %v695
        %v867 = vpop.f32.mrb[0].mxu0
        %v868 = vadd.f32 0.0, %v867
        %v869 = vpop.f32.mrb[0].mxu0
        %v870 = vadd.f32 0.0, %v869
        %v871 = vpop.f32.mrb[0].mxu0
        %v872 = vadd.f32 0.0, %v871
        %v873 = vpop.f32.mrb[0].mxu0
        %v874 = vadd.f32 0.0, %v873
        %875 = vmatprep.mubr.bf16.mxu0 0
        %876 = vmatmul.mubr.bf16.gmra.mrb[0].mxu0 %v698
        %v877 = vpop.f32.mrb[0].mxu0
        %v878 = vadd.f32 0.0, %v877
        %v879 = vpop.f32.mrb[0].mxu0
        %v880 = vadd.f32 0.0, %v879
        %v881 = vpop.f32.mrb[0].mxu0
        %v882 = vadd.f32 0.0, %v881
        %v883 = vpop.f32.mrb[0].mxu0
        %v884 = vadd.f32 0.0, %v883
        %885 = vmatprep.mubr.bf16.mxu0 0
        %886 = vmatmul.mubr.bf16.gmra.mrb[0].mxu0 %v701
        %v887 = vpop.f32.mrb[0].mxu0
        %v888 = vadd.f32 0.0, %v887
        %v889 = vpop.f32.mrb[0].mxu0
        %v890 = vadd.f32 0.0, %v889
        %v891 = vpop.f32.mrb[0].mxu0
        %v892 = vadd.f32 0.0, %v891
        %v893 = vpop.f32.mrb[0].mxu0
        %v894 = vadd.f32 0.0, %v893
        %895 = vdwg.mxu0
        %v908 = vunpack.c.l.b16 %v436
        %v909 = vunpack.c.h.b16 %v436
        %v910 = vunpack.c.l.b16 %v437
        %v911 = vunpack.c.h.b16 %v437
        %v912 = vunpack.c.l.b16 %v438
        %v913 = vunpack.c.h.b16 %v438
        %v914 = vunpack.c.l.b16 %v439
        %v915 = vunpack.c.h.b16 %v439
        %v916 = vunpack.c.l.b16 %v440
        %v917 = vunpack.c.h.b16 %v440
        %v918 = vunpack.c.l.b16 %v441
        %v919 = vunpack.c.h.b16 %v441
        %v920 = vunpack.c.l.b16 %v442
        %v921 = vunpack.c.h.b16 %v442
        %v922 = vunpack.c.l.b16 %v443
        %v923 = vunpack.c.h.b16 %v443
        %v924 = vunpack.c.l.b16 %v444
        %v925 = vunpack.c.h.b16 %v444
        %v926 = vunpack.c.l.b16 %v445
        %v927 = vunpack.c.h.b16 %v445
        %v928 = vunpack.c.l.b16 %v446
        %v929 = vunpack.c.h.b16 %v446
        %v930 = vunpack.c.l.b16 %v447
        %v931 = vunpack.c.h.b16 %v447
        %v932 = vpack.c.b16 %v910, %v908
        %v933 = vpack.c.b16 %v911, %v909
        %v934 = vpack.c.b16 %v914, %v912
        %v935 = vpack.c.b16 %v915, %v913
        %v936 = vpack.c.b16 %v918, %v916
        %v937 = vpack.c.b16 %v919, %v917
        %v938 = vpack.c.b16 %v922, %v920
        %v939 = vpack.c.b16 %v923, %v921
        %v940 = vpack.c.b16 %v926, %v924
        %v941 = vpack.c.b16 %v927, %v925
        %v942 = vpack.c.b16 %v930, %v928
        %v943 = vpack.c.b16 %v931, %v929
        %v956 = vsel %vm654, %v420, 0
        %v958 = vsel %vm654, %v421, 0
        %v960 = vsel %vm654, %v422, 0
        %v962 = vsel %vm654, %v423, 0
        %v964 = vsel %vm654, %v424, 0
        %v966 = vsel %vm654, %v425, 0
        %v968 = vsel %vm654, %v426, 0
        %v970 = vsel %vm654, %v427, 0
        %v972 = vsel %vm654, %v428, 0
        %v974 = vsel %vm654, %v429, 0
        %v976 = vsel %vm654, %v430, 0
        %v978 = vsel %vm654, %v431, 0
        %v980 = vsel %vm654, %v432, 0
        %v982 = vsel %vm654, %v433, 0
        %v984 = vsel %vm654, %v434, 0
        %v986 = vsel %vm654, %v435, 0
        %988 = vmatprep.subr.bf16.mxu0 %v933
        %989 = vmatpush1.bf16.msra.mxu0 %v932
        %990 = vmatprep.subr.bf16.mxu0 %v935
        %991 = vmatpush1.bf16.msra.mxu0 %v934
        %992 = vmatprep.subr.bf16.mxu0 %v937
        %993 = vmatpush1.bf16.msra.mxu0 %v936
        %994 = vmatprep.subr.bf16.mxu0 %v939
        %995 = vmatpush1.bf16.msra.mxu0 %v938
        %996 = vmatprep.subr.bf16.mxu0 %v941
        %997 = vmatpush1.bf16.msra.mxu0 %v940
        %998 = vmatprep.subr.bf16.mxu0 %v943
        %999 = vmatpush1.bf16.msra.mxu0 %v942
        %1000 = vmatprep.subr.bf16.mxu0 0
        %1001 = vmatpush1.bf16.msra.mxu0 0
        %1002 = vmatprep.subr.bf16.mxu0 0
        %1003 = vmatpush1.bf16.msra.mxu0 0
        %1004 = vmatprep.subr.bf16.mxu0 0
        %1005 = vmatpush1.bf16.msra.mxu0 0
        %1006 = vmatprep.subr.bf16.mxu0 0
        %1007 = vmatpush1.bf16.msra.mxu0 0
        %1008 = vmatprep.subr.bf16.mxu0 0
        %1009 = vmatpush1.bf16.msra.mxu0 0
        %1010 = vmatprep.subr.bf16.mxu0 0
        %1011 = vmatpush1.bf16.msra.mxu0 0
        %1012 = vmatprep.subr.bf16.mxu0 0
        %1013 = vmatpush1.bf16.msra.mxu0 0
        %1014 = vmatprep.subr.bf16.mxu0 0
        %1015 = vmatpush1.bf16.msra.mxu0 0
        %1016 = vmatprep.subr.bf16.mxu0 0
        %1017 = vmatpush1.bf16.msra.mxu0 0
        %1018 = vmatprep.subr.bf16.mxu0 0
        %1019 = vmatpush1.bf16.msra.mxu0 0
        %1020 = vmatprep.mubr.bf16.mxu0 0
        %1021 = vmatmul.mubr.bf16.gmra.mrb[0].mxu0 %v956
        %v1022 = vpop.f32.mrb[0].mxu0
        %v1023 = vadd.f32 %v738, %v1022
        %v1024 = vpop.f32.mrb[0].mxu0
        %v1025 = vadd.f32 %v740, %v1024
        %v1026 = vpop.f32.mrb[0].mxu0
        %v1027 = vadd.f32 %v742, %v1026
        %v1028 = vpop.f32.mrb[0].mxu0
        %v1029 = vadd.f32 %v744, %v1028
        %1030 = vmatprep.mubr.bf16.mxu0 0
        %1031 = vmatmul.mubr.bf16.gmra.mrb[0].mxu0 %v958
        %v1032 = vpop.f32.mrb[0].mxu0
        %v1033 = vadd.f32 %v748, %v1032
        %v1034 = vpop.f32.mrb[0].mxu0
        %v1035 = vadd.f32 %v750, %v1034
        %v1036 = vpop.f32.mrb[0].mxu0
        %v1037 = vadd.f32 %v752, %v1036
        %v1038 = vpop.f32.mrb[0].mxu0
        %v1039 = vadd.f32 %v754, %v1038
        %1040 = vmatprep.mubr.bf16.mxu0 0
        %1041 = vmatmul.mubr.bf16.gmra.mrb[0].mxu0 %v960
        %v1042 = vpop.f32.mrb[0].mxu0
        %v1043 = vadd.f32 %v758, %v1042
        %v1044 = vpop.f32.mrb[0].mxu0
        %v1045 = vadd.f32 %v760, %v1044
        %v1046 = vpop.f32.mrb[0].mxu0
        %v1047 = vadd.f32 %v762, %v1046
        %v1048 = vpop.f32.mrb[0].mxu0
        %v1049 = vadd.f32 %v764, %v1048
        %1050 = vmatprep.mubr.bf16.mxu0 0
        %1051 = vmatmul.mubr.bf16.gmra.mrb[0].mxu0 %v962
        %v1052 = vpop.f32.mrb[0].mxu0
        %v1053 = vadd.f32 %v768, %v1052
        %v1054 = vpop.f32.mrb[0].mxu0
        %v1055 = vadd.f32 %v770, %v1054
        %v1056 = vpop.f32.mrb[0].mxu0
        %v1057 = vadd.f32 %v772, %v1056
        %v1058 = vpop.f32.mrb[0].mxu0
        %v1059 = vadd.f32 %v774, %v1058
        %1060 = vmatprep.mubr.bf16.mxu0 0
        %1061 = vmatmul.mubr.bf16.gmra.mrb[0].mxu0 %v964
        %v1062 = vpop.f32.mrb[0].mxu0
        %v1063 = vadd.f32 %v778, %v1062
        %v1064 = vpop.f32.mrb[0].mxu0
        %v1065 = vadd.f32 %v780, %v1064
        %v1066 = vpop.f32.mrb[0].mxu0
        %v1067 = vadd.f32 %v782, %v1066
        %v1068 = vpop.f32.mrb[0].mxu0
        %v1069 = vadd.f32 %v784, %v1068
        %1070 = vmatprep.mubr.bf16.mxu0 0
        %1071 = vmatmul.mubr.bf16.gmra.mrb[0].mxu0 %v966
        %v1072 = vpop.f32.mrb[0].mxu0
        %v1073 = vadd.f32 %v788, %v1072
        %v1074 = vpop.f32.mrb[0].mxu0
        %v1075 = vadd.f32 %v790, %v1074
        %v1076 = vpop.f32.mrb[0].mxu0
        %v1077 = vadd.f32 %v792, %v1076
        %v1078 = vpop.f32.mrb[0].mxu0
        %v1079 = vadd.f32 %v794, %v1078
        %1080 = vmatprep.mubr.bf16.mxu0 0
        %1081 = vmatmul.mubr.bf16.gmra.mrb[0].mxu0 %v968
        %v1082 = vpop.f32.mrb[0].mxu0
        %v1083 = vadd.f32 %v798, %v1082
        %v1084 = vpop.f32.mrb[0].mxu0
        %v1085 = vadd.f32 %v800, %v1084
        %v1086 = vpop.f32.mrb[0].mxu0
        %v1087 = vadd.f32 %v802, %v1086
        %v1088 = vpop.f32.mrb[0].mxu0
        %v1089 = vadd.f32 %v804, %v1088
        %1090 = vmatprep.mubr.bf16.mxu0 0
        %1091 = vmatmul.mubr.bf16.gmra.mrb[0].mxu0 %v970
        %v1092 = vpop.f32.mrb[0].mxu0
        %v1093 = vadd.f32 %v808, %v1092
        %v1094 = vpop.f32.mrb[0].mxu0
        %v1095 = vadd.f32 %v810, %v1094
        %v1096 = vpop.f32.mrb[0].mxu0
        %v1097 = vadd.f32 %v812, %v1096
        %v1098 = vpop.f32.mrb[0].mxu0
        %v1099 = vadd.f32 %v814, %v1098
        %1100 = vmatprep.mubr.bf16.mxu0 0
        %1101 = vmatmul.mubr.bf16.gmra.mrb[0].mxu0 %v972
        %v1102 = vpop.f32.mrb[0].mxu0
        %v1103 = vadd.f32 %v818, %v1102
        %v1104 = vpop.f32.mrb[0].mxu0
        %v1105 = vadd.f32 %v820, %v1104
        %v1106 = vpop.f32.mrb[0].mxu0
        %v1107 = vadd.f32 %v822, %v1106
        %v1108 = vpop.f32.mrb[0].mxu0
        %v1109 = vadd.f32 %v824, %v1108
        %1110 = vmatprep.mubr.bf16.mxu0 0
        %1111 = vmatmul.mubr.bf16.gmra.mrb[0].mxu0 %v974
        %v1112 = vpop.f32.mrb[0].mxu0
        %v1113 = vadd.f32 %v828, %v1112
        %v1114 = vpop.f32.mrb[0].mxu0
        %v1115 = vadd.f32 %v830, %v1114
        %v1116 = vpop.f32.mrb[0].mxu0
        %v1117 = vadd.f32 %v832, %v1116
        %v1118 = vpop.f32.mrb[0].mxu0
        %v1119 = vadd.f32 %v834, %v1118
        %1120 = vmatprep.mubr.bf16.mxu0 0
        %1121 = vmatmul.mubr.bf16.gmra.mrb[0].mxu0 %v976
        %v1122 = vpop.f32.mrb[0].mxu0
        %v1123 = vadd.f32 %v838, %v1122
        %v1124 = vpop.f32.mrb[0].mxu0
        %v1125 = vadd.f32 %v840, %v1124
        %v1126 = vpop.f32.mrb[0].mxu0
        %v1127 = vadd.f32 %v842, %v1126
        %v1128 = vpop.f32.mrb[0].mxu0
        %v1129 = vadd.f32 %v844, %v1128
        %1130 = vmatprep.mubr.bf16.mxu0 0
        %1131 = vmatmul.mubr.bf16.gmra.mrb[0].mxu0 %v978
        %v1132 = vpop.f32.mrb[0].mxu0
        %v1133 = vadd.f32 %v848, %v1132
        %v1134 = vpop.f32.mrb[0].mxu0
        %v1135 = vadd.f32 %v850, %v1134
        %v1136 = vpop.f32.mrb[0].mxu0
        %v1137 = vadd.f32 %v852, %v1136
        %v1138 = vpop.f32.mrb[0].mxu0
        %v1139 = vadd.f32 %v854, %v1138
        %1140 = vmatprep.mubr.bf16.mxu0 0
        %1141 = vmatmul.mubr.bf16.gmra.mrb[0].mxu0 %v980
        %v1142 = vpop.f32.mrb[0].mxu0
        %v1143 = vadd.f32 %v858, %v1142
        %v1144 = vpop.f32.mrb[0].mxu0
        %v1145 = vadd.f32 %v860, %v1144
        %v1146 = vpop.f32.mrb[0].mxu0
        %v1147 = vadd.f32 %v862, %v1146
        %v1148 = vpop.f32.mrb[0].mxu0
        %v1149 = vadd.f32 %v864, %v1148
        %1150 = vmatprep.mubr.bf16.mxu0 0
        %1151 = vmatmul.mubr.bf16.gmra.mrb[0].mxu0 %v982
        %v1152 = vpop.f32.mrb[0].mxu0
        %v1153 = vadd.f32 %v868, %v1152
        %v1154 = vpop.f32.mrb[0].mxu0
        %v1155 = vadd.f32 %v870, %v1154
        %v1156 = vpop.f32.mrb[0].mxu0
        %v1157 = vadd.f32 %v872, %v1156
        %v1158 = vpop.f32.mrb[0].mxu0
        %v1159 = vadd.f32 %v874, %v1158
        %1160 = vmatprep.mubr.bf16.mxu0 0
        %1161 = vmatmul.mubr.bf16.gmra.mrb[0].mxu0 %v984
        %v1162 = vpop.f32.mrb[0].mxu0
        %v1163 = vadd.f32 %v878, %v1162
        %v1164 = vpop.f32.mrb[0].mxu0
        %v1165 = vadd.f32 %v880, %v1164
        %v1166 = vpop.f32.mrb[0].mxu0
        %v1167 = vadd.f32 %v882, %v1166
        %v1168 = vpop.f32.mrb[0].mxu0
        %v1169 = vadd.f32 %v884, %v1168
        %1170 = vmatprep.mubr.bf16.mxu0 0
        %1171 = vmatmul.mubr.bf16.gmra.mrb[0].mxu0 %v986
        %v1172 = vpop.f32.mrb[0].mxu0
        %v1173 = vadd.f32 %v888, %v1172
        %v1174 = vpop.f32.mrb[0].mxu0
        %v1175 = vadd.f32 %v890, %v1174
        %v1176 = vpop.f32.mrb[0].mxu0
        %v1177 = vadd.f32 %v892, %v1176
        %v1178 = vpop.f32.mrb[0].mxu0
        %v1179 = vadd.f32 %v894, %v1178
        %1180 = vdwg.mxu0
        %vm1197 = vcmask 1046528
        %v1198 = vrot.slane %v420, 1
        %v1199 = vrot.slane %v421, 1
        %v1200 = vsel %vm1197, %v1198, %v1199
        %v1201 = vrot.slane %v422, 1
        %v1202 = vsel %vm1197, %v1199, %v1201
        %v1203 = vrot.slane %v423, 1
        %v1204 = vsel %vm1197, %v1201, %v1203
        %v1205 = vrot.slane %v424, 1
        %v1206 = vsel %vm1197, %v1203, %v1205
        %v1207 = vrot.slane %v425, 1
        %v1208 = vsel %vm1197, %v1205, %v1207
        %v1209 = vrot.slane %v426, 1
        %v1210 = vsel %vm1197, %v1207, %v1209
        %v1211 = vrot.slane %v427, 1
        %v1212 = vsel %vm1197, %v1209, %v1211
        %v1213 = vrot.slane %v428, 1
        %v1214 = vsel %vm1197, %v1211, %v1213
        %v1215 = vrot.slane %v429, 1
        %v1216 = vsel %vm1197, %v1213, %v1215
        %v1217 = vrot.slane %v430, 1
        %v1218 = vsel %vm1197, %v1215, %v1217
        %v1219 = vrot.slane %v431, 1
        %v1220 = vsel %vm1197, %v1217, %v1219
        %v1221 = vrot.slane %v432, 1
        %v1222 = vsel %vm1197, %v1219, %v1221
        %v1223 = vrot.slane %v433, 1
        %v1224 = vsel %vm1197, %v1221, %v1223
        %v1225 = vrot.slane %v434, 1
        %v1226 = vsel %vm1197, %v1223, %v1225
        %v1227 = vrot.slane %v435, 1
        %v1228 = vsel %vm1197, %v1225, %v1227
        %vm1229 = vcmask 1046528
        %v1232 = vsel %vm1229, %v1227, %v1198
        %s1233 = scalar_lea.vmem %s1, 192
        %v1234 = vld [vmem:[%s1233] sm:$0xff]
        %v1235 = vld [vmem:[%s1233 + $0x8] sm:$0xff]
        %v1236 = vld [vmem:[%s1233 + $0x10] sm:$0xff]
        %v1237 = vld [vmem:[%s1233 + $0x18] sm:$0xff]
        %v1238 = vld [vmem:[%s1233 + $0x20] sm:$0xff]
        %v1239 = vld [vmem:[%s1233 + $0x28] sm:$0xff]
        %v1240 = vld [vmem:[%s1233 + $0x30] sm:$0xff]
        %v1241 = vld [vmem:[%s1233 + $0x38] sm:$0xff]
        %v1242 = vld [vmem:[%s1233 + $0x40] sm:$0xff]
        %v1243 = vld [vmem:[%s1233 + $0x48] sm:$0xff]
        %v1244 = vld [vmem:[%s1233 + $0x50] sm:$0xff]
        %v1245 = vld [vmem:[%s1233 + $0x58] sm:$0xff]
        %v1258 = vunpack.c.l.b16 %v1234
        %v1259 = vunpack.c.h.b16 %v1234
        %v1260 = vunpack.c.l.b16 %v1235
        %v1261 = vunpack.c.h.b16 %v1235
        %v1262 = vunpack.c.l.b16 %v1236
        %v1263 = vunpack.c.h.b16 %v1236
        %v1264 = vunpack.c.l.b16 %v1237
        %v1265 = vunpack.c.h.b16 %v1237
        %v1266 = vunpack.c.l.b16 %v1238
        %v1267 = vunpack.c.h.b16 %v1238
        %v1268 = vunpack.c.l.b16 %v1239
        %v1269 = vunpack.c.h.b16 %v1239
        %v1270 = vunpack.c.l.b16 %v1240
        %v1271 = vunpack.c.h.b16 %v1240
        %v1272 = vunpack.c.l.b16 %v1241
        %v1273 = vunpack.c.h.b16 %v1241
        %v1274 = vunpack.c.l.b16 %v1242
        %v1275 = vunpack.c.h.b16 %v1242
        %v1276 = vunpack.c.l.b16 %v1243
        %v1277 = vunpack.c.h.b16 %v1243
        %v1278 = vunpack.c.l.b16 %v1244
        %v1279 = vunpack.c.h.b16 %v1244
        %v1280 = vunpack.c.l.b16 %v1245
        %v1281 = vunpack.c.h.b16 %v1245
        %v1282 = vpack.c.b16 %v1260, %v1258
        %v1283 = vpack.c.b16 %v1261, %v1259
        %v1284 = vpack.c.b16 %v1264, %v1262
        %v1285 = vpack.c.b16 %v1265, %v1263
        %v1286 = vpack.c.b16 %v1268, %v1266
        %v1287 = vpack.c.b16 %v1269, %v1267
        %v1288 = vpack.c.b16 %v1272, %v1270
        %v1289 = vpack.c.b16 %v1273, %v1271
        %v1290 = vpack.c.b16 %v1276, %v1274
        %v1291 = vpack.c.b16 %v1277, %v1275
        %v1292 = vpack.c.b16 %v1280, %v1278
        %v1293 = vpack.c.b16 %v1281, %v1279
        %v1307 = vsel %vm654, %v1200, 0
        %v1310 = vsel %vm654, %v1202, 0
        %v1313 = vsel %vm654, %v1204, 0
        %v1316 = vsel %vm654, %v1206, 0
        %v1319 = vsel %vm654, %v1208, 0
        %v1322 = vsel %vm654, %v1210, 0
        %v1325 = vsel %vm654, %v1212, 0
        %v1328 = vsel %vm654, %v1214, 0
        %v1331 = vsel %vm654, %v1216, 0
        %v1334 = vsel %vm654, %v1218, 0
        %v1337 = vsel %vm654, %v1220, 0
        %v1340 = vsel %vm654, %v1222, 0
        %v1343 = vsel %vm654, %v1224, 0
        %v1346 = vsel %vm654, %v1226, 0
        %v1349 = vsel %vm654, %v1228, 0
        %v1351 = vsel %vm654, %v1232, 0
        %1353 = vmatprep.subr.bf16.mxu0 %v1283
        %1354 = vmatpush1.bf16.msra.mxu0 %v1282
        %1355 = vmatprep.subr.bf16.mxu0 %v1285
        %1356 = vmatpush1.bf16.msra.mxu0 %v1284
        %1357 = vmatprep.subr.bf16.mxu0 %v1287
        %1358 = vmatpush1.bf16.msra.mxu0 %v1286
        %1359 = vmatprep.subr.bf16.mxu0 %v1289
        %1360 = vmatpush1.bf16.msra.mxu0 %v1288
        %1361 = vmatprep.subr.bf16.mxu0 %v1291
        %1362 = vmatpush1.bf16.msra.mxu0 %v1290
        %1363 = vmatprep.subr.bf16.mxu0 %v1293
        %1364 = vmatpush1.bf16.msra.mxu0 %v1292
        %1365 = vmatprep.subr.bf16.mxu0 0
        %1366 = vmatpush1.bf16.msra.mxu0 0
        %1367 = vmatprep.subr.bf16.mxu0 0
        %1368 = vmatpush1.bf16.msra.mxu0 0
        %1369 = vmatprep.subr.bf16.mxu0 0
        %1370 = vmatpush1.bf16.msra.mxu0 0
        %1371 = vmatprep.subr.bf16.mxu0 0
        %1372 = vmatpush1.bf16.msra.mxu0 0
        %1373 = vmatprep.subr.bf16.mxu0 0
        %1374 = vmatpush1.bf16.msra.mxu0 0
        %1375 = vmatprep.subr.bf16.mxu0 0
        %1376 = vmatpush1.bf16.msra.mxu0 0
        %1377 = vmatprep.subr.bf16.mxu0 0
        %1378 = vmatpush1.bf16.msra.mxu0 0
        %1379 = vmatprep.subr.bf16.mxu0 0
        %1380 = vmatpush1.bf16.msra.mxu0 0
        %1381 = vmatprep.subr.bf16.mxu0 0
        %1382 = vmatpush1.bf16.msra.mxu0 0
        %1383 = vmatprep.subr.bf16.mxu0 0
        %1384 = vmatpush1.bf16.msra.mxu0 0
        %1385 = vmatprep.mubr.bf16.mxu0 0
        %1386 = vmatmul.mubr.bf16.gmra.mrb[0].mxu0 %v1307
        %v1387 = vpop.f32.mrb[0].mxu0
        %v1388 = vadd.f32 0.0, %v1387
        %v1389 = vpop.f32.mrb[0].mxu0
        %v1390 = vadd.f32 0.0, %v1389
        %v1391 = vpop.f32.mrb[0].mxu0
        %v1392 = vadd.f32 0.0, %v1391
        %v1393 = vpop.f32.mrb[0].mxu0
        %v1394 = vadd.f32 0.0, %v1393
        %1395 = vmatprep.mubr.bf16.mxu0 0
        %1396 = vmatmul.mubr.bf16.gmra.mrb[0].mxu0 %v1310
        %v1397 = vpop.f32.mrb[0].mxu0
        %v1398 = vadd.f32 0.0, %v1397
        %v1399 = vpop.f32.mrb[0].mxu0
        %v1400 = vadd.f32 0.0, %v1399
        %v1401 = vpop.f32.mrb[0].mxu0
        %v1402 = vadd.f32 0.0, %v1401
        %v1403 = vpop.f32.mrb[0].mxu0
        %v1404 = vadd.f32 0.0, %v1403
        %1405 = vmatprep.mubr.bf16.mxu0 0
        %1406 = vmatmul.mubr.bf16.gmra.mrb[0].mxu0 %v1313
        %v1407 = vpop.f32.mrb[0].mxu0
        %v1408 = vadd.f32 0.0, %v1407
        %v1409 = vpop.f32.mrb[0].mxu0
        %v1410 = vadd.f32 0.0, %v1409
        %v1411 = vpop.f32.mrb[0].mxu0
        %v1412 = vadd.f32 0.0, %v1411
        %v1413 = vpop.f32.mrb[0].mxu0
        %v1414 = vadd.f32 0.0, %v1413
        %1415 = vmatprep.mubr.bf16.mxu0 0
        %1416 = vmatmul.mubr.bf16.gmra.mrb[0].mxu0 %v1316
        %v1417 = vpop.f32.mrb[0].mxu0
        %v1418 = vadd.f32 0.0, %v1417
        %v1419 = vpop.f32.mrb[0].mxu0
        %v1420 = vadd.f32 0.0, %v1419
        %v1421 = vpop.f32.mrb[0].mxu0
        %v1422 = vadd.f32 0.0, %v1421
        %v1423 = vpop.f32.mrb[0].mxu0
        %v1424 = vadd.f32 0.0, %v1423
        %1425 = vmatprep.mubr.bf16.mxu0 0
        %1426 = vmatmul.mubr.bf16.gmra.mrb[0].mxu0 %v1319
        %v1427 = vpop.f32.mrb[0].mxu0
        %v1428 = vadd.f32 0.0, %v1427
        %v1429 = vpop.f32.mrb[0].mxu0
        %v1430 = vadd.f32 0.0, %v1429
        %v1431 = vpop.f32.mrb[0].mxu0
        %v1432 = vadd.f32 0.0, %v1431
        %v1433 = vpop.f32.mrb[0].mxu0
        %v1434 = vadd.f32 0.0, %v1433
        %1435 = vmatprep.mubr.bf16.mxu0 0
        %1436 = vmatmul.mubr.bf16.gmra.mrb[0].mxu0 %v1322
        %v1437 = vpop.f32.mrb[0].mxu0
        %v1438 = vadd.f32 0.0, %v1437
        %v1439 = vpop.f32.mrb[0].mxu0
        %v1440 = vadd.f32 0.0, %v1439
        %v1441 = vpop.f32.mrb[0].mxu0
        %v1442 = vadd.f32 0.0, %v1441
        %v1443 = vpop.f32.mrb[0].mxu0
        %v1444 = vadd.f32 0.0, %v1443
        %1445 = vmatprep.mubr.bf16.mxu0 0
        %1446 = vmatmul.mubr.bf16.gmra.mrb[0].mxu0 %v1325
        %v1447 = vpop.f32.mrb[0].mxu0
        %v1448 = vadd.f32 0.0, %v1447
        %v1449 = vpop.f32.mrb[0].mxu0
        %v1450 = vadd.f32 0.0, %v1449
        %v1451 = vpop.f32.mrb[0].mxu0
        %v1452 = vadd.f32 0.0, %v1451
        %v1453 = vpop.f32.mrb[0].mxu0
        %v1454 = vadd.f32 0.0, %v1453
        %1455 = vmatprep.mubr.bf16.mxu0 0
        %1456 = vmatmul.mubr.bf16.gmra.mrb[0].mxu0 %v1328
        %v1457 = vpop.f32.mrb[0].mxu0
        %v1458 = vadd.f32 0.0, %v1457
        %v1459 = vpop.f32.mrb[0].mxu0
        %v1460 = vadd.f32 0.0, %v1459
        %v1461 = vpop.f32.mrb[0].mxu0
        %v1462 = vadd.f32 0.0, %v1461
        %v1463 = vpop.f32.mrb[0].mxu0
        %v1464 = vadd.f32 0.0, %v1463
        %1465 = vmatprep.mubr.bf16.mxu0 0
        %1466 = vmatmul.mubr.bf16.gmra.mrb[0].mxu0 %v1331
        %v1467 = vpop.f32.mrb[0].mxu0
        %v1468 = vadd.f32 0.0, %v1467
        %v1469 = vpop.f32.mrb[0].mxu0
        %v1470 = vadd.f32 0.0, %v1469
        %v1471 = vpop.f32.mrb[0].mxu0
        %v1472 = vadd.f32 0.0, %v1471
        %v1473 = vpop.f32.mrb[0].mxu0
        %v1474 = vadd.f32 0.0, %v1473
        %1475 = vmatprep.mubr.bf16.mxu0 0
        %1476 = vmatmul.mubr.bf16.gmra.mrb[0].mxu0 %v1334
        %v1477 = vpop.f32.mrb[0].mxu0
        %v1478 = vadd.f32 0.0, %v1477
        %v1479 = vpop.f32.mrb[0].mxu0
        %v1480 = vadd.f32 0.0, %v1479
        %v1481 = vpop.f32.mrb[0].mxu0
        %v1482 = vadd.f32 0.0, %v1481
        %v1483 = vpop.f32.mrb[0].mxu0
        %v1484 = vadd.f32 0.0, %v1483
        %1485 = vmatprep.mubr.bf16.mxu0 0
        %1486 = vmatmul.mubr.bf16.gmra.mrb[0].mxu0 %v1337
        %v1487 = vpop.f32.mrb[0].mxu0
        %v1488 = vadd.f32 0.0, %v1487
        %v1489 = vpop.f32.mrb[0].mxu0
        %v1490 = vadd.f32 0.0, %v1489
        %v1491 = vpop.f32.mrb[0].mxu0
        %v1492 = vadd.f32 0.0, %v1491
        %v1493 = vpop.f32.mrb[0].mxu0
        %v1494 = vadd.f32 0.0, %v1493
        %1495 = vmatprep.mubr.bf16.mxu0 0
        %1496 = vmatmul.mubr.bf16.gmra.mrb[0].mxu0 %v1340
        %v1497 = vpop.f32.mrb[0].mxu0
        %v1498 = vadd.f32 0.0, %v1497
        %v1499 = vpop.f32.mrb[0].mxu0
        %v1500 = vadd.f32 0.0, %v1499
        %v1501 = vpop.f32.mrb[0].mxu0
        %v1502 = vadd.f32 0.0, %v1501
        %v1503 = vpop.f32.mrb[0].mxu0
        %v1504 = vadd.f32 0.0, %v1503
        %1505 = vmatprep.mubr.bf16.mxu0 0
        %1506 = vmatmul.mubr.bf16.gmra.mrb[0].mxu0 %v1343
        %v1507 = vpop.f32.mrb[0].mxu0
        %v1508 = vadd.f32 0.0, %v1507
        %v1509 = vpop.f32.mrb[0].mxu0
        %v1510 = vadd.f32 0.0, %v1509
        %v1511 = vpop.f32.mrb[0].mxu0
        %v1512 = vadd.f32 0.0, %v1511
        %v1513 = vpop.f32.mrb[0].mxu0
        %v1514 = vadd.f32 0.0, %v1513
        %1515 = vmatprep.mubr.bf16.mxu0 0
        %1516 = vmatmul.mubr.bf16.gmra.mrb[0].mxu0 %v1346
        %v1517 = vpop.f32.mrb[0].mxu0
        %v1518 = vadd.f32 0.0, %v1517
        %v1519 = vpop.f32.mrb[0].mxu0
        %v1520 = vadd.f32 0.0, %v1519
        %v1521 = vpop.f32.mrb[0].mxu0
        %v1522 = vadd.f32 0.0, %v1521
        %v1523 = vpop.f32.mrb[0].mxu0
        %v1524 = vadd.f32 0.0, %v1523
        %1525 = vmatprep.mubr.bf16.mxu0 0
        %1526 = vmatmul.mubr.bf16.gmra.mrb[0].mxu0 %v1349
        %v1527 = vpop.f32.mrb[0].mxu0
        %v1528 = vadd.f32 0.0, %v1527
        %v1529 = vpop.f32.mrb[0].mxu0
        %v1530 = vadd.f32 0.0, %v1529
        %v1531 = vpop.f32.mrb[0].mxu0
        %v1532 = vadd.f32 0.0, %v1531
        %v1533 = vpop.f32.mrb[0].mxu0
        %v1534 = vadd.f32 0.0, %v1533
        %1535 = vmatprep.mubr.bf16.mxu0 0
        %1536 = vmatmul.mubr.bf16.gmra.mrb[0].mxu0 %v1351
        %v1537 = vpop.f32.mrb[0].mxu0
        %v1538 = vadd.f32 0.0, %v1537
        %v1539 = vpop.f32.mrb[0].mxu0
        %v1540 = vadd.f32 0.0, %v1539
        %v1541 = vpop.f32.mrb[0].mxu0
        %v1542 = vadd.f32 0.0, %v1541
        %v1543 = vpop.f32.mrb[0].mxu0
        %v1544 = vadd.f32 0.0, %v1543
        %1545 = vdwg.mxu0
        %v1546 = vadd.f32 %v1023, %v1388
        %v1547 = vadd.f32 %v1025, %v1390
        %v1548 = vadd.f32 %v1027, %v1392
        %v1549 = vadd.f32 %v1029, %v1394
        %v1550 = vadd.f32 %v1033, %v1398
        %v1551 = vadd.f32 %v1035, %v1400
        %v1552 = vadd.f32 %v1037, %v1402
        %v1553 = vadd.f32 %v1039, %v1404
        %v1554 = vadd.f32 %v1043, %v1408
        %v1555 = vadd.f32 %v1045, %v1410
        %v1556 = vadd.f32 %v1047, %v1412
        %v1557 = vadd.f32 %v1049, %v1414
        %v1558 = vadd.f32 %v1053, %v1418
        %v1559 = vadd.f32 %v1055, %v1420
        %v1560 = vadd.f32 %v1057, %v1422
        %v1561 = vadd.f32 %v1059, %v1424
        %v1562 = vadd.f32 %v1063, %v1428
        %v1563 = vadd.f32 %v1065, %v1430
        %v1564 = vadd.f32 %v1067, %v1432
        %v1565 = vadd.f32 %v1069, %v1434
        %v1566 = vadd.f32 %v1073, %v1438
        %v1567 = vadd.f32 %v1075, %v1440
        %v1568 = vadd.f32 %v1077, %v1442
        %v1569 = vadd.f32 %v1079, %v1444
        %v1570 = vadd.f32 %v1083, %v1448
        %v1571 = vadd.f32 %v1085, %v1450
        %v1572 = vadd.f32 %v1087, %v1452
        %v1573 = vadd.f32 %v1089, %v1454
        %v1574 = vadd.f32 %v1093, %v1458
        %v1575 = vadd.f32 %v1095, %v1460
        %v1576 = vadd.f32 %v1097, %v1462
        %v1577 = vadd.f32 %v1099, %v1464
        %v1578 = vadd.f32 %v1103, %v1468
        %v1579 = vadd.f32 %v1105, %v1470
        %v1580 = vadd.f32 %v1107, %v1472
        %v1581 = vadd.f32 %v1109, %v1474
        %v1582 = vadd.f32 %v1113, %v1478
        %v1583 = vadd.f32 %v1115, %v1480
        %v1584 = vadd.f32 %v1117, %v1482
        %v1585 = vadd.f32 %v1119, %v1484
        %v1586 = vadd.f32 %v1123, %v1488
        %v1587 = vadd.f32 %v1125, %v1490
        %v1588 = vadd.f32 %v1127, %v1492
        %v1589 = vadd.f32 %v1129, %v1494
        %v1590 = vadd.f32 %v1133, %v1498
        %v1591 = vadd.f32 %v1135, %v1500
        %v1592 = vadd.f32 %v1137, %v1502
        %v1593 = vadd.f32 %v1139, %v1504
        %v1594 = vadd.f32 %v1143, %v1508
        %v1595 = vadd.f32 %v1145, %v1510
        %v1596 = vadd.f32 %v1147, %v1512
        %v1597 = vadd.f32 %v1149, %v1514
        %v1598 = vadd.f32 %v1153, %v1518
        %v1599 = vadd.f32 %v1155, %v1520
        %v1600 = vadd.f32 %v1157, %v1522
        %v1601 = vadd.f32 %v1159, %v1524
        %v1602 = vadd.f32 %v1163, %v1528
        %v1603 = vadd.f32 %v1165, %v1530
        %v1604 = vadd.f32 %v1167, %v1532
        %v1605 = vadd.f32 %v1169, %v1534
        %v1606 = vadd.f32 %v1173, %v1538
        %v1607 = vadd.f32 %v1175, %v1540
        %v1608 = vadd.f32 %v1177, %v1542
        %v1609 = vadd.f32 %v1179, %v1544
        %vm1610 = vsmask.f32 6400
        %v1611 = vrot.slane %v450, 1
        %v1612 = vrot.slane %v452, 2
        %v1613 = vor.u32 %v1611, %v1612
        %v1614 = vrot.slane %v461, 1
        %v1615 = vrot.slane %v457, 2
        %v1616 = vor.u32 %v1614, %v1615
        %v1617 = vsel %vm1610, %v1613, %v1616
        %v1618 = vrot.slane %v469, 1
        %v1619 = vrot.slane %v465, 2
        %v1620 = vor.u32 %v1618, %v1619
        %v1621 = vsel %vm1610, %v1616, %v1620
        %v1622 = vrot.slane %v477, 1
        %v1623 = vrot.slane %v473, 2
        %v1624 = vor.u32 %v1622, %v1623
        %v1625 = vsel %vm1610, %v1620, %v1624
        %v1626 = vrot.slane %v485, 1
        %v1627 = vrot.slane %v481, 2
        %v1628 = vor.u32 %v1626, %v1627
        %v1629 = vsel %vm1610, %v1624, %v1628
        %v1630 = vrot.slane %v493, 1
        %v1631 = vrot.slane %v489, 2
        %v1632 = vor.u32 %v1630, %v1631
        %v1633 = vsel %vm1610, %v1628, %v1632
        %v1634 = vrot.slane %v501, 1
        %v1635 = vrot.slane %v497, 2
        %v1636 = vor.u32 %v1634, %v1635
        %v1637 = vsel %vm1610, %v1632, %v1636
        %v1638 = vrot.slane %v509, 1
        %v1639 = vrot.slane %v505, 2
        %v1640 = vor.u32 %v1638, %v1639
        %v1641 = vsel %vm1610, %v1636, %v1640
        %v1642 = vrot.slane %v517, 1
        %v1643 = vrot.slane %v513, 2
        %v1644 = vor.u32 %v1642, %v1643
        %v1645 = vsel %vm1610, %v1640, %v1644
        %v1646 = vrot.slane %v525, 1
        %v1647 = vrot.slane %v521, 2
        %v1648 = vor.u32 %v1646, %v1647
        %v1649 = vsel %vm1610, %v1644, %v1648
        %v1650 = vrot.slane %v533, 1
        %v1651 = vrot.slane %v529, 2
        %v1652 = vor.u32 %v1650, %v1651
        %v1653 = vsel %vm1610, %v1648, %v1652
        %v1654 = vrot.slane %v541, 1
        %v1655 = vrot.slane %v537, 2
        %v1656 = vor.u32 %v1654, %v1655
        %v1657 = vsel %vm1610, %v1652, %v1656
        %v1658 = vrot.slane %v549, 1
        %v1659 = vrot.slane %v545, 2
        %v1660 = vor.u32 %v1658, %v1659
        %v1661 = vsel %vm1610, %v1656, %v1660
        %v1662 = vrot.slane %v557, 1
        %v1663 = vrot.slane %v553, 2
        %v1664 = vor.u32 %v1662, %v1663
        %v1665 = vsel %vm1610, %v1660, %v1664
        %v1666 = vrot.slane %v565, 1
        %v1667 = vrot.slane %v561, 2
        %v1668 = vor.u32 %v1666, %v1667
        %v1669 = vsel %vm1610, %v1664, %v1668
        %v1670 = vrot.slane %v573, 1
        %v1671 = vrot.slane %v569, 2
        %v1672 = vor.u32 %v1670, %v1671
        %v1673 = vsel %vm1610, %v1668, %v1672
        %vm1676 = vmand %vm1197, %vm1610
        %v1677 = vsel %vm1676, %v1672, %v1613
        %s1678 = scalar_lea.vmem %s1, 288
        %v1679 = vld [vmem:[%s1678] sm:$0xff]
        %v1680 = vld [vmem:[%s1678 + $0x8] sm:$0xff]
        %v1681 = vld [vmem:[%s1678 + $0x10] sm:$0xff]
        %v1682 = vld [vmem:[%s1678 + $0x18] sm:$0xff]
        %v1683 = vld [vmem:[%s1678 + $0x20] sm:$0xff]
        %v1684 = vld [vmem:[%s1678 + $0x28] sm:$0xff]
        %v1685 = vld [vmem:[%s1678 + $0x30] sm:$0xff]
        %v1686 = vld [vmem:[%s1678 + $0x38] sm:$0xff]
        %v1687 = vld [vmem:[%s1678 + $0x40] sm:$0xff]
        %v1688 = vld [vmem:[%s1678 + $0x48] sm:$0xff]
        %v1689 = vld [vmem:[%s1678 + $0x50] sm:$0xff]
        %v1690 = vld [vmem:[%s1678 + $0x58] sm:$0xff]
        %v1703 = vunpack.c.l.b16 %v1679
        %v1704 = vunpack.c.h.b16 %v1679
        %v1705 = vunpack.c.l.b16 %v1680
        %v1706 = vunpack.c.h.b16 %v1680
        %v1707 = vunpack.c.l.b16 %v1681
        %v1708 = vunpack.c.h.b16 %v1681
        %v1709 = vunpack.c.l.b16 %v1682
        %v1710 = vunpack.c.h.b16 %v1682
        %v1711 = vunpack.c.l.b16 %v1683
        %v1712 = vunpack.c.h.b16 %v1683
        %v1713 = vunpack.c.l.b16 %v1684
        %v1714 = vunpack.c.h.b16 %v1684
        %v1715 = vunpack.c.l.b16 %v1685
        %v1716 = vunpack.c.h.b16 %v1685
        %v1717 = vunpack.c.l.b16 %v1686
        %v1718 = vunpack.c.h.b16 %v1686
        %v1719 = vunpack.c.l.b16 %v1687
        %v1720 = vunpack.c.h.b16 %v1687
        %v1721 = vunpack.c.l.b16 %v1688
        %v1722 = vunpack.c.h.b16 %v1688
        %v1723 = vunpack.c.l.b16 %v1689
        %v1724 = vunpack.c.h.b16 %v1689
        %v1725 = vunpack.c.l.b16 %v1690
        %v1726 = vunpack.c.h.b16 %v1690
        %v1727 = vpack.c.b16 %v1705, %v1703
        %v1728 = vpack.c.b16 %v1706, %v1704
        %v1729 = vpack.c.b16 %v1709, %v1707
        %v1730 = vpack.c.b16 %v1710, %v1708
        %v1731 = vpack.c.b16 %v1713, %v1711
        %v1732 = vpack.c.b16 %v1714, %v1712
        %v1733 = vpack.c.b16 %v1717, %v1715
        %v1734 = vpack.c.b16 %v1718, %v1716
        %v1735 = vpack.c.b16 %v1721, %v1719
        %v1736 = vpack.c.b16 %v1722, %v1720
        %v1737 = vpack.c.b16 %v1725, %v1723
        %v1738 = vpack.c.b16 %v1726, %v1724
        %v1752 = vsel %vm654, %v1617, 0
        %v1755 = vsel %vm654, %v1621, 0
        %v1758 = vsel %vm654, %v1625, 0
        %v1761 = vsel %vm654, %v1629, 0
        %v1764 = vsel %vm654, %v1633, 0
        %v1767 = vsel %vm654, %v1637, 0
        %v1770 = vsel %vm654, %v1641, 0
        %v1773 = vsel %vm654, %v1645, 0
        %v1776 = vsel %vm654, %v1649, 0
        %v1779 = vsel %vm654, %v1653, 0
        %v1782 = vsel %vm654, %v1657, 0
        %v1785 = vsel %vm654, %v1661, 0
        %v1788 = vsel %vm654, %v1665, 0
        %v1791 = vsel %vm654, %v1669, 0
        %v1794 = vsel %vm654, %v1673, 0
        %v1797 = vsel %vm654, %v1677, 0
        %1799 = vmatprep.subr.bf16.mxu0 %v1728
        %1800 = vmatpush1.bf16.msra.mxu0 %v1727
        %1801 = vmatprep.subr.bf16.mxu0 %v1730
        %1802 = vmatpush1.bf16.msra.mxu0 %v1729
        %1803 = vmatprep.subr.bf16.mxu0 %v1732
        %1804 = vmatpush1.bf16.msra.mxu0 %v1731
        %1805 = vmatprep.subr.bf16.mxu0 %v1734
        %1806 = vmatpush1.bf16.msra.mxu0 %v1733
        %1807 = vmatprep.subr.bf16.mxu0 %v1736
        %1808 = vmatpush1.bf16.msra.mxu0 %v1735
        %1809 = vmatprep.subr.bf16.mxu0 %v1738
        %1810 = vmatpush1.bf16.msra.mxu0 %v1737
        %1811 = vmatprep.subr.bf16.mxu0 0
        %1812 = vmatpush1.bf16.msra.mxu0 0
        %1813 = vmatprep.subr.bf16.mxu0 0
        %1814 = vmatpush1.bf16.msra.mxu0 0
        %1815 = vmatprep.subr.bf16.mxu0 0
        %1816 = vmatpush1.bf16.msra.mxu0 0
        %1817 = vmatprep.subr.bf16.mxu0 0
        %1818 = vmatpush1.bf16.msra.mxu0 0
        %1819 = vmatprep.subr.bf16.mxu0 0
        %1820 = vmatpush1.bf16.msra.mxu0 0
        %1821 = vmatprep.subr.bf16.mxu0 0
        %1822 = vmatpush1.bf16.msra.mxu0 0
        %1823 = vmatprep.subr.bf16.mxu0 0
        %1824 = vmatpush1.bf16.msra.mxu0 0
        %1825 = vmatprep.subr.bf16.mxu0 0
        %1826 = vmatpush1.bf16.msra.mxu0 0
        %1827 = vmatprep.subr.bf16.mxu0 0
        %1828 = vmatpush1.bf16.msra.mxu0 0
        %1829 = vmatprep.subr.bf16.mxu0 0
        %1830 = vmatpush1.bf16.msra.mxu0 0
        %1831 = vmatprep.mubr.bf16.mxu0 0
        %1832 = vmatmul.mubr.bf16.gmra.mrb[0].mxu0 %v1752
        %v1833 = vpop.f32.mrb[0].mxu0
        %v1834 = vadd.f32 0.0, %v1833
        %v1835 = vpop.f32.mrb[0].mxu0
        %v1836 = vadd.f32 0.0, %v1835
        %v1837 = vpop.f32.mrb[0].mxu0
        %v1838 = vadd.f32 0.0, %v1837
        %v1839 = vpop.f32.mrb[0].mxu0
        %v1840 = vadd.f32 0.0, %v1839
        %1841 = vmatprep.mubr.bf16.mxu0 0
        %1842 = vmatmul.mubr.bf16.gmra.mrb[0].mxu0 %v1755
        %v1843 = vpop.f32.mrb[0].mxu0
        %v1844 = vadd.f32 0.0, %v1843
        %v1845 = vpop.f32.mrb[0].mxu0
        %v1846 = vadd.f32 0.0, %v1845
        %v1847 = vpop.f32.mrb[0].mxu0
        %v1848 = vadd.f32 0.0, %v1847
        %v1849 = vpop.f32.mrb[0].mxu0
        %v1850 = vadd.f32 0.0, %v1849
        %1851 = vmatprep.mubr.bf16.mxu0 0
        %1852 = vmatmul.mubr.bf16.gmra.mrb[0].mxu0 %v1758
        %v1853 = vpop.f32.mrb[0].mxu0
        %v1854 = vadd.f32 0.0, %v1853
        %v1855 = vpop.f32.mrb[0].mxu0
        %v1856 = vadd.f32 0.0, %v1855
        %v1857 = vpop.f32.mrb[0].mxu0
        %v1858 = vadd.f32 0.0, %v1857
        %v1859 = vpop.f32.mrb[0].mxu0
        %v1860 = vadd.f32 0.0, %v1859
        %1861 = vmatprep.mubr.bf16.mxu0 0
        %1862 = vmatmul.mubr.bf16.gmra.mrb[0].mxu0 %v1761
        %v1863 = vpop.f32.mrb[0].mxu0
        %v1864 = vadd.f32 0.0, %v1863
        %v1865 = vpop.f32.mrb[0].mxu0
        %v1866 = vadd.f32 0.0, %v1865
        %v1867 = vpop.f32.mrb[0].mxu0
        %v1868 = vadd.f32 0.0, %v1867
        %v1869 = vpop.f32.mrb[0].mxu0
        %v1870 = vadd.f32 0.0, %v1869
        %1871 = vmatprep.mubr.bf16.mxu0 0
        %1872 = vmatmul.mubr.bf16.gmra.mrb[0].mxu0 %v1764
        %v1873 = vpop.f32.mrb[0].mxu0
        %v1874 = vadd.f32 0.0, %v1873
        %v1875 = vpop.f32.mrb[0].mxu0
        %v1876 = vadd.f32 0.0, %v1875
        %v1877 = vpop.f32.mrb[0].mxu0
        %v1878 = vadd.f32 0.0, %v1877
        %v1879 = vpop.f32.mrb[0].mxu0
        %v1880 = vadd.f32 0.0, %v1879
        %1881 = vmatprep.mubr.bf16.mxu0 0
        %1882 = vmatmul.mubr.bf16.gmra.mrb[0].mxu0 %v1767
        %v1883 = vpop.f32.mrb[0].mxu0
        %v1884 = vadd.f32 0.0, %v1883
        %v1885 = vpop.f32.mrb[0].mxu0
        %v1886 = vadd.f32 0.0, %v1885
        %v1887 = vpop.f32.mrb[0].mxu0
        %v1888 = vadd.f32 0.0, %v1887
        %v1889 = vpop.f32.mrb[0].mxu0
        %v1890 = vadd.f32 0.0, %v1889
        %1891 = vmatprep.mubr.bf16.mxu0 0
        %1892 = vmatmul.mubr.bf16.gmra.mrb[0].mxu0 %v1770
        %v1893 = vpop.f32.mrb[0].mxu0
        %v1894 = vadd.f32 0.0, %v1893
        %v1895 = vpop.f32.mrb[0].mxu0
        %v1896 = vadd.f32 0.0, %v1895
        %v1897 = vpop.f32.mrb[0].mxu0
        %v1898 = vadd.f32 0.0, %v1897
        %v1899 = vpop.f32.mrb[0].mxu0
        %v1900 = vadd.f32 0.0, %v1899
        %1901 = vmatprep.mubr.bf16.mxu0 0
        %1902 = vmatmul.mubr.bf16.gmra.mrb[0].mxu0 %v1773
        %v1903 = vpop.f32.mrb[0].mxu0
        %v1904 = vadd.f32 0.0, %v1903
        %v1905 = vpop.f32.mrb[0].mxu0
        %v1906 = vadd.f32 0.0, %v1905
        %v1907 = vpop.f32.mrb[0].mxu0
        %v1908 = vadd.f32 0.0, %v1907
        %v1909 = vpop.f32.mrb[0].mxu0
        %v1910 = vadd.f32 0.0, %v1909
        %1911 = vmatprep.mubr.bf16.mxu0 0
        %1912 = vmatmul.mubr.bf16.gmra.mrb[0].mxu0 %v1776
        %v1913 = vpop.f32.mrb[0].mxu0
        %v1914 = vadd.f32 0.0, %v1913
        %v1915 = vpop.f32.mrb[0].mxu0
        %v1916 = vadd.f32 0.0, %v1915
        %v1917 = vpop.f32.mrb[0].mxu0
        %v1918 = vadd.f32 0.0, %v1917
        %v1919 = vpop.f32.mrb[0].mxu0
        %v1920 = vadd.f32 0.0, %v1919
        %1921 = vmatprep.mubr.bf16.mxu0 0
        %1922 = vmatmul.mubr.bf16.gmra.mrb[0].mxu0 %v1779
        %v1923 = vpop.f32.mrb[0].mxu0
        %v1924 = vadd.f32 0.0, %v1923
        %v1925 = vpop.f32.mrb[0].mxu0
        %v1926 = vadd.f32 0.0, %v1925
        %v1927 = vpop.f32.mrb[0].mxu0
        %v1928 = vadd.f32 0.0, %v1927
        %v1929 = vpop.f32.mrb[0].mxu0
        %v1930 = vadd.f32 0.0, %v1929
        %1931 = vmatprep.mubr.bf16.mxu0 0
        %1932 = vmatmul.mubr.bf16.gmra.mrb[0].mxu0 %v1782
        %v1933 = vpop.f32.mrb[0].mxu0
        %v1934 = vadd.f32 0.0, %v1933
        %v1935 = vpop.f32.mrb[0].mxu0
        %v1936 = vadd.f32 0.0, %v1935
        %v1937 = vpop.f32.mrb[0].mxu0
        %v1938 = vadd.f32 0.0, %v1937
        %v1939 = vpop.f32.mrb[0].mxu0
        %v1940 = vadd.f32 0.0, %v1939
        %1941 = vmatprep.mubr.bf16.mxu0 0
        %1942 = vmatmul.mubr.bf16.gmra.mrb[0].mxu0 %v1785
        %v1943 = vpop.f32.mrb[0].mxu0
        %v1944 = vadd.f32 0.0, %v1943
        %v1945 = vpop.f32.mrb[0].mxu0
        %v1946 = vadd.f32 0.0, %v1945
        %v1947 = vpop.f32.mrb[0].mxu0
        %v1948 = vadd.f32 0.0, %v1947
        %v1949 = vpop.f32.mrb[0].mxu0
        %v1950 = vadd.f32 0.0, %v1949
        %1951 = vmatprep.mubr.bf16.mxu0 0
        %1952 = vmatmul.mubr.bf16.gmra.mrb[0].mxu0 %v1788
        %v1953 = vpop.f32.mrb[0].mxu0
        %v1954 = vadd.f32 0.0, %v1953
        %v1955 = vpop.f32.mrb[0].mxu0
        %v1956 = vadd.f32 0.0, %v1955
        %v1957 = vpop.f32.mrb[0].mxu0
        %v1958 = vadd.f32 0.0, %v1957
        %v1959 = vpop.f32.mrb[0].mxu0
        %v1960 = vadd.f32 0.0, %v1959
        %1961 = vmatprep.mubr.bf16.mxu0 0
        %1962 = vmatmul.mubr.bf16.gmra.mrb[0].mxu0 %v1791
        %v1963 = vpop.f32.mrb[0].mxu0
        %v1964 = vadd.f32 0.0, %v1963
        %v1965 = vpop.f32.mrb[0].mxu0
        %v1966 = vadd.f32 0.0, %v1965
        %v1967 = vpop.f32.mrb[0].mxu0
        %v1968 = vadd.f32 0.0, %v1967
        %v1969 = vpop.f32.mrb[0].mxu0
        %v1970 = vadd.f32 0.0, %v1969
        %1971 = vmatprep.mubr.bf16.mxu0 0
        %1972 = vmatmul.mubr.bf16.gmra.mrb[0].mxu0 %v1794
        %v1973 = vpop.f32.mrb[0].mxu0
        %v1974 = vadd.f32 0.0, %v1973
        %v1975 = vpop.f32.mrb[0].mxu0
        %v1976 = vadd.f32 0.0, %v1975
        %v1977 = vpop.f32.mrb[0].mxu0
        %v1978 = vadd.f32 0.0, %v1977
        %v1979 = vpop.f32.mrb[0].mxu0
        %v1980 = vadd.f32 0.0, %v1979
        %1981 = vmatprep.mubr.bf16.mxu0 0
        %1982 = vmatmul.mubr.bf16.gmra.mrb[0].mxu0 %v1797
        %v1983 = vpop.f32.mrb[0].mxu0
        %v1984 = vadd.f32 0.0, %v1983
        %v1985 = vpop.f32.mrb[0].mxu0
        %v1986 = vadd.f32 0.0, %v1985
        %v1987 = vpop.f32.mrb[0].mxu0
        %v1988 = vadd.f32 0.0, %v1987
        %v1989 = vpop.f32.mrb[0].mxu0
        %v1990 = vadd.f32 0.0, %v1989
        %1991 = vdwg.mxu0
        %v1992 = vadd.f32 %v1546, %v1834
        %v1993 = vadd.f32 %v1547, %v1836
        %v1994 = vadd.f32 %v1548, %v1838
        %v1995 = vadd.f32 %v1549, %v1840
        %v1996 = vadd.f32 %v1550, %v1844
        %v1997 = vadd.f32 %v1551, %v1846
        %v1998 = vadd.f32 %v1552, %v1848
        %v1999 = vadd.f32 %v1553, %v1850
        %v2000 = vadd.f32 %v1554, %v1854
        %v2001 = vadd.f32 %v1555, %v1856
        %v2002 = vadd.f32 %v1556, %v1858
        %v2003 = vadd.f32 %v1557, %v1860
        %v2004 = vadd.f32 %v1558, %v1864
        %v2005 = vadd.f32 %v1559, %v1866
        %v2006 = vadd.f32 %v1560, %v1868
        %v2007 = vadd.f32 %v1561, %v1870
        %v2008 = vadd.f32 %v1562, %v1874
        %v2009 = vadd.f32 %v1563, %v1876
        %v2010 = vadd.f32 %v1564, %v1878
        %v2011 = vadd.f32 %v1565, %v1880
        %v2012 = vadd.f32 %v1566, %v1884
        %v2013 = vadd.f32 %v1567, %v1886
        %v2014 = vadd.f32 %v1568, %v1888
        %v2015 = vadd.f32 %v1569, %v1890
        %v2016 = vadd.f32 %v1570, %v1894
        %v2017 = vadd.f32 %v1571, %v1896
        %v2018 = vadd.f32 %v1572, %v1898
        %v2019 = vadd.f32 %v1573, %v1900
        %v2020 = vadd.f32 %v1574, %v1904
        %v2021 = vadd.f32 %v1575, %v1906
        %v2022 = vadd.f32 %v1576, %v1908
        %v2023 = vadd.f32 %v1577, %v1910
        %v2024 = vadd.f32 %v1578, %v1914
        %v2025 = vadd.f32 %v1579, %v1916
        %v2026 = vadd.f32 %v1580, %v1918
        %v2027 = vadd.f32 %v1581, %v1920
        %v2028 = vadd.f32 %v1582, %v1924
        %v2029 = vadd.f32 %v1583, %v1926
        %v2030 = vadd.f32 %v1584, %v1928
        %v2031 = vadd.f32 %v1585, %v1930
        %v2032 = vadd.f32 %v1586, %v1934
        %v2033 = vadd.f32 %v1587, %v1936
        %v2034 = vadd.f32 %v1588, %v1938
        %v2035 = vadd.f32 %v1589, %v1940
        %v2036 = vadd.f32 %v1590, %v1944
        %v2037 = vadd.f32 %v1591, %v1946
        %v2038 = vadd.f32 %v1592, %v1948
        %v2039 = vadd.f32 %v1593, %v1950
        %v2040 = vadd.f32 %v1594, %v1954
        %v2041 = vadd.f32 %v1595, %v1956
        %v2042 = vadd.f32 %v1596, %v1958
        %v2043 = vadd.f32 %v1597, %v1960
        %v2044 = vadd.f32 %v1598, %v1964
        %v2045 = vadd.f32 %v1599, %v1966
        %v2046 = vadd.f32 %v1600, %v1968
        %v2047 = vadd.f32 %v1601, %v1970
        %v2048 = vadd.f32 %v1602, %v1974
        %v2049 = vadd.f32 %v1603, %v1976
        %v2050 = vadd.f32 %v1604, %v1978
        %v2051 = vadd.f32 %v1605, %v1980
        %v2052 = vadd.f32 %v1606, %v1984
        %v2053 = vadd.f32 %v1607, %v1986
        %v2054 = vadd.f32 %v1608, %v1988
        %v2055 = vadd.f32 %v1609, %v1990
        %vm2056 = vcmask 1045504
        %v2057 = vrot.slane %v420, 2
        %v2058 = vrot.slane %v421, 2
        %v2059 = vsel %vm2056, %v2057, %v2058
        %v2060 = vrot.slane %v422, 2
        %v2061 = vsel %vm2056, %v2058, %v2060
        %v2062 = vrot.slane %v423, 2
        %v2063 = vsel %vm2056, %v2060, %v2062
        %v2064 = vrot.slane %v424, 2
        %v2065 = vsel %vm2056, %v2062, %v2064
        %v2066 = vrot.slane %v425, 2
        %v2067 = vsel %vm2056, %v2064, %v2066
        %v2068 = vrot.slane %v426, 2
        %v2069 = vsel %vm2056, %v2066, %v2068
        %v2070 = vrot.slane %v427, 2
        %v2071 = vsel %vm2056, %v2068, %v2070
        %v2072 = vrot.slane %v428, 2
        %v2073 = vsel %vm2056, %v2070, %v2072
        %v2074 = vrot.slane %v429, 2
        %v2075 = vsel %vm2056, %v2072, %v2074
        %v2076 = vrot.slane %v430, 2
        %v2077 = vsel %vm2056, %v2074, %v2076
        %v2078 = vrot.slane %v431, 2
        %v2079 = vsel %vm2056, %v2076, %v2078
        %v2080 = vrot.slane %v432, 2
        %v2081 = vsel %vm2056, %v2078, %v2080
        %v2082 = vrot.slane %v433, 2
        %v2083 = vsel %vm2056, %v2080, %v2082
        %v2084 = vrot.slane %v434, 2
        %v2085 = vsel %vm2056, %v2082, %v2084
        %v2086 = vrot.slane %v435, 2
        %v2087 = vsel %vm2056, %v2084, %v2086
        %vm2088 = vcmask 1045504
        %v2091 = vsel %vm2088, %v2086, %v2057
        %s2092 = scalar_lea.vmem %s1, 384
        %v2093 = vld [vmem:[%s2092] sm:$0xff]
        %v2094 = vld [vmem:[%s2092 + $0x8] sm:$0xff]
        %v2095 = vld [vmem:[%s2092 + $0x10] sm:$0xff]
        %v2096 = vld [vmem:[%s2092 + $0x18] sm:$0xff]
        %v2097 = vld [vmem:[%s2092 + $0x20] sm:$0xff]
        %v2098 = vld [vmem:[%s2092 + $0x28] sm:$0xff]
        %v2099 = vld [vmem:[%s2092 + $0x30] sm:$0xff]
        %v2100 = vld [vmem:[%s2092 + $0x38] sm:$0xff]
        %v2101 = vld [vmem:[%s2092 + $0x40] sm:$0xff]
        %v2102 = vld [vmem:[%s2092 + $0x48] sm:$0xff]
        %v2103 = vld [vmem:[%s2092 + $0x50] sm:$0xff]
        %v2104 = vld [vmem:[%s2092 + $0x58] sm:$0xff]
        %v2117 = vunpack.c.l.b16 %v2093
        %v2118 = vunpack.c.h.b16 %v2093
        %v2119 = vunpack.c.l.b16 %v2094
        %v2120 = vunpack.c.h.b16 %v2094
        %v2121 = vunpack.c.l.b16 %v2095
        %v2122 = vunpack.c.h.b16 %v2095
        %v2123 = vunpack.c.l.b16 %v2096
        %v2124 = vunpack.c.h.b16 %v2096
        %v2125 = vunpack.c.l.b16 %v2097
        %v2126 = vunpack.c.h.b16 %v2097
        %v2127 = vunpack.c.l.b16 %v2098
        %v2128 = vunpack.c.h.b16 %v2098
        %v2129 = vunpack.c.l.b16 %v2099
        %v2130 = vunpack.c.h.b16 %v2099
        %v2131 = vunpack.c.l.b16 %v2100
        %v2132 = vunpack.c.h.b16 %v2100
        %v2133 = vunpack.c.l.b16 %v2101
        %v2134 = vunpack.c.h.b16 %v2101
        %v2135 = vunpack.c.l.b16 %v2102
        %v2136 = vunpack.c.h.b16 %v2102
        %v2137 = vunpack.c.l.b16 %v2103
        %v2138 = vunpack.c.h.b16 %v2103
        %v2139 = vunpack.c.l.b16 %v2104
        %v2140 = vunpack.c.h.b16 %v2104
        %v2141 = vpack.c.b16 %v2119, %v2117
        %v2142 = vpack.c.b16 %v2120, %v2118
        %v2143 = vpack.c.b16 %v2123, %v2121
        %v2144 = vpack.c.b16 %v2124, %v2122
        %v2145 = vpack.c.b16 %v2127, %v2125
        %v2146 = vpack.c.b16 %v2128, %v2126
        %v2147 = vpack.c.b16 %v2131, %v2129
        %v2148 = vpack.c.b16 %v2132, %v2130
        %v2149 = vpack.c.b16 %v2135, %v2133
        %v2150 = vpack.c.b16 %v2136, %v2134
        %v2151 = vpack.c.b16 %v2139, %v2137
        %v2152 = vpack.c.b16 %v2140, %v2138
        %v2166 = vsel %vm654, %v2059, 0
        %v2169 = vsel %vm654, %v2061, 0
        %v2172 = vsel %vm654, %v2063, 0
        %v2175 = vsel %vm654, %v2065, 0
        %v2178 = vsel %vm654, %v2067, 0
        %v2181 = vsel %vm654, %v2069, 0
        %v2184 = vsel %vm654, %v2071, 0
        %v2187 = vsel %vm654, %v2073, 0
        %v2190 = vsel %vm654, %v2075, 0
        %v2193 = vsel %vm654, %v2077, 0
        %v2196 = vsel %vm654, %v2079, 0
        %v2199 = vsel %vm654, %v2081, 0
        %v2202 = vsel %vm654, %v2083, 0
        %v2205 = vsel %vm654, %v2085, 0
        %v2208 = vsel %vm654, %v2087, 0
        %v2210 = vsel %vm654, %v2091, 0
        %2212 = vmatprep.subr.bf16.mxu0 %v2142
        %2213 = vmatpush1.bf16.msra.mxu0 %v2141
        %2214 = vmatprep.subr.bf16.mxu0 %v2144
        %2215 = vmatpush1.bf16.msra.mxu0 %v2143
        %2216 = vmatprep.subr.bf16.mxu0 %v2146
        %2217 = vmatpush1.bf16.msra.mxu0 %v2145
        %2218 = vmatprep.subr.bf16.mxu0 %v2148
        %2219 = vmatpush1.bf16.msra.mxu0 %v2147
        %2220 = vmatprep.subr.bf16.mxu0 %v2150
        %2221 = vmatpush1.bf16.msra.mxu0 %v2149
        %2222 = vmatprep.subr.bf16.mxu0 %v2152
        %2223 = vmatpush1.bf16.msra.mxu0 %v2151
        %2224 = vmatprep.subr.bf16.mxu0 0
        %2225 = vmatpush1.bf16.msra.mxu0 0
        %2226 = vmatprep.subr.bf16.mxu0 0
        %2227 = vmatpush1.bf16.msra.mxu0 0
        %2228 = vmatprep.subr.bf16.mxu0 0
        %2229 = vmatpush1.bf16.msra.mxu0 0
        %2230 = vmatprep.subr.bf16.mxu0 0
        %2231 = vmatpush1.bf16.msra.mxu0 0
        %2232 = vmatprep.subr.bf16.mxu0 0
        %2233 = vmatpush1.bf16.msra.mxu0 0
        %2234 = vmatprep.subr.bf16.mxu0 0
        %2235 = vmatpush1.bf16.msra.mxu0 0
        %2236 = vmatprep.subr.bf16.mxu0 0
        %2237 = vmatpush1.bf16.msra.mxu0 0
        %2238 = vmatprep.subr.bf16.mxu0 0
        %2239 = vmatpush1.bf16.msra.mxu0 0
        %2240 = vmatprep.subr.bf16.mxu0 0
        %2241 = vmatpush1.bf16.msra.mxu0 0
        %2242 = vmatprep.subr.bf16.mxu0 0
        %2243 = vmatpush1.bf16.msra.mxu0 0
        %2244 = vmatprep.mubr.bf16.mxu0 0
        %2245 = vmatmul.mubr.bf16.gmra.mrb[0].mxu0 %v2166
        %v2246 = vpop.f32.mrb[0].mxu0
        %v2247 = vadd.f32 0.0, %v2246
        %v2248 = vpop.f32.mrb[0].mxu0
        %v2249 = vadd.f32 0.0, %v2248
        %v2250 = vpop.f32.mrb[0].mxu0
        %v2251 = vadd.f32 0.0, %v2250
        %v2252 = vpop.f32.mrb[0].mxu0
        %v2253 = vadd.f32 0.0, %v2252
        %2254 = vmatprep.mubr.bf16.mxu0 0
        %2255 = vmatmul.mubr.bf16.gmra.mrb[0].mxu0 %v2169
        %v2256 = vpop.f32.mrb[0].mxu0
        %v2257 = vadd.f32 0.0, %v2256
        %v2258 = vpop.f32.mrb[0].mxu0
        %v2259 = vadd.f32 0.0, %v2258
        %v2260 = vpop.f32.mrb[0].mxu0
        %v2261 = vadd.f32 0.0, %v2260
        %v2262 = vpop.f32.mrb[0].mxu0
        %v2263 = vadd.f32 0.0, %v2262
        %2264 = vmatprep.mubr.bf16.mxu0 0
        %2265 = vmatmul.mubr.bf16.gmra.mrb[0].mxu0 %v2172
        %v2266 = vpop.f32.mrb[0].mxu0
        %v2267 = vadd.f32 0.0, %v2266
        %v2268 = vpop.f32.mrb[0].mxu0
        %v2269 = vadd.f32 0.0, %v2268
        %v2270 = vpop.f32.mrb[0].mxu0
        %v2271 = vadd.f32 0.0, %v2270
        %v2272 = vpop.f32.mrb[0].mxu0
        %v2273 = vadd.f32 0.0, %v2272
        %2274 = vmatprep.mubr.bf16.mxu0 0
        %2275 = vmatmul.mubr.bf16.gmra.mrb[0].mxu0 %v2175
        %v2276 = vpop.f32.mrb[0].mxu0
        %v2277 = vadd.f32 0.0, %v2276
        %v2278 = vpop.f32.mrb[0].mxu0
        %v2279 = vadd.f32 0.0, %v2278
        %v2280 = vpop.f32.mrb[0].mxu0
        %v2281 = vadd.f32 0.0, %v2280
        %v2282 = vpop.f32.mrb[0].mxu0
        %v2283 = vadd.f32 0.0, %v2282
        %2284 = vmatprep.mubr.bf16.mxu0 0
        %2285 = vmatmul.mubr.bf16.gmra.mrb[0].mxu0 %v2178
        %v2286 = vpop.f32.mrb[0].mxu0
        %v2287 = vadd.f32 0.0, %v2286
        %v2288 = vpop.f32.mrb[0].mxu0
        %v2289 = vadd.f32 0.0, %v2288
        %v2290 = vpop.f32.mrb[0].mxu0
        %v2291 = vadd.f32 0.0, %v2290
        %v2292 = vpop.f32.mrb[0].mxu0
        %v2293 = vadd.f32 0.0, %v2292
        %2294 = vmatprep.mubr.bf16.mxu0 0
        %2295 = vmatmul.mubr.bf16.gmra.mrb[0].mxu0 %v2181
        %v2296 = vpop.f32.mrb[0].mxu0
        %v2297 = vadd.f32 0.0, %v2296
        %v2298 = vpop.f32.mrb[0].mxu0
        %v2299 = vadd.f32 0.0, %v2298
        %v2300 = vpop.f32.mrb[0].mxu0
        %v2301 = vadd.f32 0.0, %v2300
        %v2302 = vpop.f32.mrb[0].mxu0
        %v2303 = vadd.f32 0.0, %v2302
        %2304 = vmatprep.mubr.bf16.mxu0 0
        %2305 = vmatmul.mubr.bf16.gmra.mrb[0].mxu0 %v2184
        %v2306 = vpop.f32.mrb[0].mxu0
        %v2307 = vadd.f32 0.0, %v2306
        %v2308 = vpop.f32.mrb[0].mxu0
        %v2309 = vadd.f32 0.0, %v2308
        %v2310 = vpop.f32.mrb[0].mxu0
        %v2311 = vadd.f32 0.0, %v2310
        %v2312 = vpop.f32.mrb[0].mxu0
        %v2313 = vadd.f32 0.0, %v2312
        %2314 = vmatprep.mubr.bf16.mxu0 0
        %2315 = vmatmul.mubr.bf16.gmra.mrb[0].mxu0 %v2187
        %v2316 = vpop.f32.mrb[0].mxu0
        %v2317 = vadd.f32 0.0, %v2316
        %v2318 = vpop.f32.mrb[0].mxu0
        %v2319 = vadd.f32 0.0, %v2318
        %v2320 = vpop.f32.mrb[0].mxu0
        %v2321 = vadd.f32 0.0, %v2320
        %v2322 = vpop.f32.mrb[0].mxu0
        %v2323 = vadd.f32 0.0, %v2322
        %2324 = vmatprep.mubr.bf16.mxu0 0
        %2325 = vmatmul.mubr.bf16.gmra.mrb[0].mxu0 %v2190
        %v2326 = vpop.f32.mrb[0].mxu0
        %v2327 = vadd.f32 0.0, %v2326
        %v2328 = vpop.f32.mrb[0].mxu0
        %v2329 = vadd.f32 0.0, %v2328
        %v2330 = vpop.f32.mrb[0].mxu0
        %v2331 = vadd.f32 0.0, %v2330
        %v2332 = vpop.f32.mrb[0].mxu0
        %v2333 = vadd.f32 0.0, %v2332
        %2334 = vmatprep.mubr.bf16.mxu0 0
        %2335 = vmatmul.mubr.bf16.gmra.mrb[0].mxu0 %v2193
        %v2336 = vpop.f32.mrb[0].mxu0
        %v2337 = vadd.f32 0.0, %v2336
        %v2338 = vpop.f32.mrb[0].mxu0
        %v2339 = vadd.f32 0.0, %v2338
        %v2340 = vpop.f32.mrb[0].mxu0
        %v2341 = vadd.f32 0.0, %v2340
        %v2342 = vpop.f32.mrb[0].mxu0
        %v2343 = vadd.f32 0.0, %v2342
        %2344 = vmatprep.mubr.bf16.mxu0 0
        %2345 = vmatmul.mubr.bf16.gmra.mrb[0].mxu0 %v2196
        %v2346 = vpop.f32.mrb[0].mxu0
        %v2347 = vadd.f32 0.0, %v2346
        %v2348 = vpop.f32.mrb[0].mxu0
        %v2349 = vadd.f32 0.0, %v2348
        %v2350 = vpop.f32.mrb[0].mxu0
        %v2351 = vadd.f32 0.0, %v2350
        %v2352 = vpop.f32.mrb[0].mxu0
        %v2353 = vadd.f32 0.0, %v2352
        %2354 = vmatprep.mubr.bf16.mxu0 0
        %2355 = vmatmul.mubr.bf16.gmra.mrb[0].mxu0 %v2199
        %v2356 = vpop.f32.mrb[0].mxu0
        %v2357 = vadd.f32 0.0, %v2356
        %v2358 = vpop.f32.mrb[0].mxu0
        %v2359 = vadd.f32 0.0, %v2358
        %v2360 = vpop.f32.mrb[0].mxu0
        %v2361 = vadd.f32 0.0, %v2360
        %v2362 = vpop.f32.mrb[0].mxu0
        %v2363 = vadd.f32 0.0, %v2362
        %2364 = vmatprep.mubr.bf16.mxu0 0
        %2365 = vmatmul.mubr.bf16.gmra.mrb[0].mxu0 %v2202
        %v2366 = vpop.f32.mrb[0].mxu0
        %v2367 = vadd.f32 0.0, %v2366
        %v2368 = vpop.f32.mrb[0].mxu0
        %v2369 = vadd.f32 0.0, %v2368
        %v2370 = vpop.f32.mrb[0].mxu0
        %v2371 = vadd.f32 0.0, %v2370
        %v2372 = vpop.f32.mrb[0].mxu0
        %v2373 = vadd.f32 0.0, %v2372
        %2374 = vmatprep.mubr.bf16.mxu0 0
        %2375 = vmatmul.mubr.bf16.gmra.mrb[0].mxu0 %v2205
        %v2376 = vpop.f32.mrb[0].mxu0
        %v2377 = vadd.f32 0.0, %v2376
        %v2378 = vpop.f32.mrb[0].mxu0
        %v2379 = vadd.f32 0.0, %v2378
        %v2380 = vpop.f32.mrb[0].mxu0
        %v2381 = vadd.f32 0.0, %v2380
        %v2382 = vpop.f32.mrb[0].mxu0
        %v2383 = vadd.f32 0.0, %v2382
        %2384 = vmatprep.mubr.bf16.mxu0 0
        %2385 = vmatmul.mubr.bf16.gmra.mrb[0].mxu0 %v2208
        %v2386 = vpop.f32.mrb[0].mxu0
        %v2387 = vadd.f32 0.0, %v2386
        %v2388 = vpop.f32.mrb[0].mxu0
        %v2389 = vadd.f32 0.0, %v2388
        %v2390 = vpop.f32.mrb[0].mxu0
        %v2391 = vadd.f32 0.0, %v2390
        %v2392 = vpop.f32.mrb[0].mxu0
        %v2393 = vadd.f32 0.0, %v2392
        %2394 = vmatprep.mubr.bf16.mxu0 0
        %2395 = vmatmul.mubr.bf16.gmra.mrb[0].mxu0 %v2210
        %v2396 = vpop.f32.mrb[0].mxu0
        %v2397 = vadd.f32 0.0, %v2396
        %v2398 = vpop.f32.mrb[0].mxu0
        %v2399 = vadd.f32 0.0, %v2398
        %v2400 = vpop.f32.mrb[0].mxu0
        %v2401 = vadd.f32 0.0, %v2400
        %v2402 = vpop.f32.mrb[0].mxu0
        %v2403 = vadd.f32 0.0, %v2402
        %2404 = vdwg.mxu0
        %v2405 = vadd.f32 %v1992, %v2247
        %v2406 = vadd.f32 %v1993, %v2249
        %v2407 = vadd.f32 %v1994, %v2251
        %v2408 = vadd.f32 %v1995, %v2253
        %v2409 = vadd.f32 %v1996, %v2257
        %v2410 = vadd.f32 %v1997, %v2259
        %v2411 = vadd.f32 %v1998, %v2261
        %v2412 = vadd.f32 %v1999, %v2263
        %v2413 = vadd.f32 %v2000, %v2267
        %v2414 = vadd.f32 %v2001, %v2269
        %v2415 = vadd.f32 %v2002, %v2271
        %v2416 = vadd.f32 %v2003, %v2273
        %v2417 = vadd.f32 %v2004, %v2277
        %v2418 = vadd.f32 %v2005, %v2279
        %v2419 = vadd.f32 %v2006, %v2281
        %v2420 = vadd.f32 %v2007, %v2283
        %v2421 = vadd.f32 %v2008, %v2287
        %v2422 = vadd.f32 %v2009, %v2289
        %v2423 = vadd.f32 %v2010, %v2291
        %v2424 = vadd.f32 %v2011, %v2293
        %v2425 = vadd.f32 %v2012, %v2297
        %v2426 = vadd.f32 %v2013, %v2299
        %v2427 = vadd.f32 %v2014, %v2301
        %v2428 = vadd.f32 %v2015, %v2303
        %v2429 = vadd.f32 %v2016, %v2307
        %v2430 = vadd.f32 %v2017, %v2309
        %v2431 = vadd.f32 %v2018, %v2311
        %v2432 = vadd.f32 %v2019, %v2313
        %v2433 = vadd.f32 %v2020, %v2317
        %v2434 = vadd.f32 %v2021, %v2319
        %v2435 = vadd.f32 %v2022, %v2321
        %v2436 = vadd.f32 %v2023, %v2323
        %v2437 = vadd.f32 %v2024, %v2327
        %v2438 = vadd.f32 %v2025, %v2329
        %v2439 = vadd.f32 %v2026, %v2331
        %v2440 = vadd.f32 %v2027, %v2333
        %v2441 = vadd.f32 %v2028, %v2337
        %v2442 = vadd.f32 %v2029, %v2339
        %v2443 = vadd.f32 %v2030, %v2341
        %v2444 = vadd.f32 %v2031, %v2343
        %v2445 = vadd.f32 %v2032, %v2347
        %v2446 = vadd.f32 %v2033, %v2349
        %v2447 = vadd.f32 %v2034, %v2351
        %v2448 = vadd.f32 %v2035, %v2353
        %v2449 = vadd.f32 %v2036, %v2357
        %v2450 = vadd.f32 %v2037, %v2359
        %v2451 = vadd.f32 %v2038, %v2361
        %v2452 = vadd.f32 %v2039, %v2363
        %v2453 = vadd.f32 %v2040, %v2367
        %v2454 = vadd.f32 %v2041, %v2369
        %v2455 = vadd.f32 %v2042, %v2371
        %v2456 = vadd.f32 %v2043, %v2373
        %v2457 = vadd.f32 %v2044, %v2377
        %v2458 = vadd.f32 %v2045, %v2379
        %v2459 = vadd.f32 %v2046, %v2381
        %v2460 = vadd.f32 %v2047, %v2383
        %v2461 = vadd.f32 %v2048, %v2387
        %v2462 = vadd.f32 %v2049, %v2389
        %v2463 = vadd.f32 %v2050, %v2391
        %v2464 = vadd.f32 %v2051, %v2393
        %v2465 = vadd.f32 %v2052, %v2397
        %v2466 = vadd.f32 %v2053, %v2399
        %v2467 = vadd.f32 %v2054, %v2401
        %v2468 = vadd.f32 %v2055, %v2403
        %v2469 = vld [vmem:[%s2] sm:$0x3]
        %v2471 = vlaneseq
        %v2472 = vshrl.u32 %v2471, 7
        %v2473 = vsub.s32 0, %v2472
        %v2474 = vrot.slane %v2469, %v2473
        %v2475 = vlaneseq
        %v2476 = vshrl.u32 %v2475, 7
        %v2477 = vsub.s32 1, %v2476
        %v2478 = vrot.slane %v2469, %v2477
        %v2481 = vadd.f32 %v2405, %v2474
        %v2482 = vadd.f32 %v2406, %v2478
        %v2483 = vadd.f32 %v2407, %v2474
        %v2484 = vadd.f32 %v2408, %v2478
        %v2485 = vadd.f32 %v2409, %v2474
        %v2486 = vadd.f32 %v2410, %v2478
        %v2487 = vadd.f32 %v2411, %v2474
        %v2488 = vadd.f32 %v2412, %v2478
        %v2489 = vadd.f32 %v2413, %v2474
        %v2490 = vadd.f32 %v2414, %v2478
        %v2491 = vadd.f32 %v2415, %v2474
        %v2492 = vadd.f32 %v2416, %v2478
        %v2493 = vadd.f32 %v2417, %v2474
        %v2494 = vadd.f32 %v2418, %v2478
        %v2495 = vadd.f32 %v2419, %v2474
        %v2496 = vadd.f32 %v2420, %v2478
        %v2497 = vadd.f32 %v2421, %v2474
        %v2498 = vadd.f32 %v2422, %v2478
        %v2499 = vadd.f32 %v2423, %v2474
        %v2500 = vadd.f32 %v2424, %v2478
        %v2501 = vadd.f32 %v2425, %v2474
        %v2502 = vadd.f32 %v2426, %v2478
        %v2503 = vadd.f32 %v2427, %v2474
        %v2504 = vadd.f32 %v2428, %v2478
        %v2505 = vadd.f32 %v2429, %v2474
        %v2506 = vadd.f32 %v2430, %v2478
        %v2507 = vadd.f32 %v2431, %v2474
        %v2508 = vadd.f32 %v2432, %v2478
        %v2509 = vadd.f32 %v2433, %v2474
        %v2510 = vadd.f32 %v2434, %v2478
        %v2511 = vadd.f32 %v2435, %v2474
        %v2512 = vadd.f32 %v2436, %v2478
        %v2513 = vadd.f32 %v2437, %v2474
        %v2514 = vadd.f32 %v2438, %v2478
        %v2515 = vadd.f32 %v2439, %v2474
        %v2516 = vadd.f32 %v2440, %v2478
        %v2517 = vadd.f32 %v2441, %v2474
        %v2518 = vadd.f32 %v2442, %v2478
        %v2519 = vadd.f32 %v2443, %v2474
        %v2520 = vadd.f32 %v2444, %v2478
        %v2521 = vadd.f32 %v2445, %v2474
        %v2522 = vadd.f32 %v2446, %v2478
        %v2523 = vadd.f32 %v2447, %v2474
        %v2524 = vadd.f32 %v2448, %v2478
        %v2525 = vadd.f32 %v2449, %v2474
        %v2526 = vadd.f32 %v2450, %v2478
        %v2527 = vadd.f32 %v2451, %v2474
        %v2528 = vadd.f32 %v2452, %v2478
        %v2529 = vadd.f32 %v2453, %v2474
        %v2530 = vadd.f32 %v2454, %v2478
        %v2531 = vadd.f32 %v2455, %v2474
        %v2532 = vadd.f32 %v2456, %v2478
        %v2533 = vadd.f32 %v2457, %v2474
        %v2534 = vadd.f32 %v2458, %v2478
        %v2535 = vadd.f32 %v2459, %v2474
        %v2536 = vadd.f32 %v2460, %v2478
        %v2537 = vadd.f32 %v2461, %v2474
        %v2538 = vadd.f32 %v2462, %v2478
        %v2539 = vadd.f32 %v2463, %v2474
        %v2540 = vadd.f32 %v2464, %v2478
        %v2541 = vadd.f32 %v2465, %v2474
        %v2542 = vadd.f32 %v2466, %v2478
        %v2543 = vadd.f32 %v2467, %v2474
        %v2544 = vadd.f32 %v2468, %v2478
        %v2545 = vmax.f32 %v2481, 0.0
        %v2546 = vmax.f32 %v2482, 0.0
        %v2547 = vmax.f32 %v2483, 0.0
        %v2548 = vmax.f32 %v2484, 0.0
        %v2549 = vmax.f32 %v2485, 0.0
        %v2550 = vmax.f32 %v2486, 0.0
        %v2551 = vmax.f32 %v2487, 0.0
        %v2552 = vmax.f32 %v2488, 0.0
        %v2553 = vmax.f32 %v2489, 0.0
        %v2554 = vmax.f32 %v2490, 0.0
        %v2555 = vmax.f32 %v2491, 0.0
        %v2556 = vmax.f32 %v2492, 0.0
        %v2557 = vmax.f32 %v2493, 0.0
        %v2558 = vmax.f32 %v2494, 0.0
        %v2559 = vmax.f32 %v2495, 0.0
        %v2560 = vmax.f32 %v2496, 0.0
        %v2561 = vmax.f32 %v2497, 0.0
        %v2562 = vmax.f32 %v2498, 0.0
        %v2563 = vmax.f32 %v2499, 0.0
        %v2564 = vmax.f32 %v2500, 0.0
        %v2565 = vmax.f32 %v2501, 0.0
        %v2566 = vmax.f32 %v2502, 0.0
        %v2567 = vmax.f32 %v2503, 0.0
        %v2568 = vmax.f32 %v2504, 0.0
        %v2569 = vmax.f32 %v2505, 0.0
        %v2570 = vmax.f32 %v2506, 0.0
        %v2571 = vmax.f32 %v2507, 0.0
        %v2572 = vmax.f32 %v2508, 0.0
        %v2573 = vmax.f32 %v2509, 0.0
        %v2574 = vmax.f32 %v2510, 0.0
        %v2575 = vmax.f32 %v2511, 0.0
        %v2576 = vmax.f32 %v2512, 0.0
        %v2577 = vmax.f32 %v2513, 0.0
        %v2578 = vmax.f32 %v2514, 0.0
        %v2579 = vmax.f32 %v2515, 0.0
        %v2580 = vmax.f32 %v2516, 0.0
        %v2581 = vmax.f32 %v2517, 0.0
        %v2582 = vmax.f32 %v2518, 0.0
        %v2583 = vmax.f32 %v2519, 0.0
        %v2584 = vmax.f32 %v2520, 0.0
        %v2585 = vmax.f32 %v2521, 0.0
        %v2586 = vmax.f32 %v2522, 0.0
        %v2587 = vmax.f32 %v2523, 0.0
        %v2588 = vmax.f32 %v2524, 0.0
        %v2589 = vmax.f32 %v2525, 0.0
        %v2590 = vmax.f32 %v2526, 0.0
        %v2591 = vmax.f32 %v2527, 0.0
        %v2592 = vmax.f32 %v2528, 0.0
        %v2593 = vmax.f32 %v2529, 0.0
        %v2594 = vmax.f32 %v2530, 0.0
        %v2595 = vmax.f32 %v2531, 0.0
        %v2596 = vmax.f32 %v2532, 0.0
        %v2597 = vmax.f32 %v2533, 0.0
        %v2598 = vmax.f32 %v2534, 0.0
        %v2599 = vmax.f32 %v2535, 0.0
        %v2600 = vmax.f32 %v2536, 0.0
        %v2601 = vmax.f32 %v2537, 0.0
        %v2602 = vmax.f32 %v2538, 0.0
        %v2603 = vmax.f32 %v2539, 0.0
        %v2604 = vmax.f32 %v2540, 0.0
        %v2605 = vmax.f32 %v2541, 0.0
        %v2606 = vmax.f32 %v2542, 0.0
        %v2607 = vmax.f32 %v2543, 0.0
        %v2608 = vmax.f32 %v2544, 0.0
        %v2673 = vrot.slane %v2545, 1
        %v2674 = vrot.slane %v2547, 1
        %v2675 = vsel %vm1229, %v2673, %v2674
        %v2676 = vrot.slane %v2546, 1
        %v2677 = vrot.slane %v2548, 1
        %v2678 = vsel %vm1229, %v2676, %v2677
        %v2679 = vrot.slane %v2549, 1
        %v2680 = vsel %vm1229, %v2674, %v2679
        %v2681 = vrot.slane %v2550, 1
        %v2682 = vsel %vm1229, %v2677, %v2681
        %v2683 = vrot.slane %v2551, 1
        %v2684 = vsel %vm1229, %v2679, %v2683
        %v2685 = vrot.slane %v2552, 1
        %v2686 = vsel %vm1229, %v2681, %v2685
        %v2687 = vrot.slane %v2553, 1
        %v2688 = vsel %vm1229, %v2683, %v2687
        %v2689 = vrot.slane %v2554, 1
        %v2690 = vsel %vm1229, %v2685, %v2689
        %v2691 = vrot.slane %v2555, 1
        %v2692 = vsel %vm1229, %v2687, %v2691
        %v2693 = vrot.slane %v2556, 1
        %v2694 = vsel %vm1229, %v2689, %v2693
        %v2695 = vrot.slane %v2557, 1
        %v2696 = vsel %vm1229, %v2691, %v2695
        %v2697 = vrot.slane %v2558, 1
        %v2698 = vsel %vm1229, %v2693, %v2697
        %v2699 = vrot.slane %v2559, 1
        %v2700 = vsel %vm1229, %v2695, %v2699
        %v2701 = vrot.slane %v2560, 1
        %v2702 = vsel %vm1229, %v2697, %v2701
        %v2703 = vrot.slane %v2561, 1
        %v2704 = vsel %vm1229, %v2699, %v2703
        %v2705 = vrot.slane %v2562, 1
        %v2706 = vsel %vm1229, %v2701, %v2705
        %v2707 = vrot.slane %v2563, 1
        %v2708 = vsel %vm1229, %v2703, %v2707
        %v2709 = vrot.slane %v2564, 1
        %v2710 = vsel %vm1229, %v2705, %v2709
        %v2711 = vrot.slane %v2565, 1
        %v2712 = vsel %vm1229, %v2707, %v2711
        %v2713 = vrot.slane %v2566, 1
        %v2714 = vsel %vm1229, %v2709, %v2713
        %v2715 = vrot.slane %v2567, 1
        %v2716 = vsel %vm1229, %v2711, %v2715
        %v2717 = vrot.slane %v2568, 1
        %v2718 = vsel %vm1229, %v2713, %v2717
        %v2719 = vrot.slane %v2569, 1
        %v2720 = vsel %vm1229, %v2715, %v2719
        %v2721 = vrot.slane %v2570, 1
        %v2722 = vsel %vm1229, %v2717, %v2721
        %v2723 = vrot.slane %v2571, 1
        %v2724 = vsel %vm1229, %v2719, %v2723
        %v2725 = vrot.slane %v2572, 1
        %v2726 = vsel %vm1229, %v2721, %v2725
        %v2727 = vrot.slane %v2573, 1
        %v2728 = vsel %vm1229, %v2723, %v2727
        %v2729 = vrot.slane %v2574, 1
        %v2730 = vsel %vm1229, %v2725, %v2729
        %v2731 = vrot.slane %v2575, 1
        %v2732 = vsel %vm1229, %v2727, %v2731
        %v2733 = vrot.slane %v2576, 1
        %v2734 = vsel %vm1229, %v2729, %v2733
        %v2735 = vrot.slane %v2577, 1
        %v2736 = vsel %vm1229, %v2731, %v2735
        %v2737 = vrot.slane %v2578, 1
        %v2738 = vsel %vm1229, %v2733, %v2737
        %v2739 = vrot.slane %v2579, 1
        %v2740 = vsel %vm1229, %v2735, %v2739
        %v2741 = vrot.slane %v2580, 1
        %v2742 = vsel %vm1229, %v2737, %v2741
        %v2743 = vrot.slane %v2581, 1
        %v2744 = vsel %vm1229, %v2739, %v2743
        %v2745 = vrot.slane %v2582, 1
        %v2746 = vsel %vm1229, %v2741, %v2745
        %v2747 = vrot.slane %v2583, 1
        %v2748 = vsel %vm1229, %v2743, %v2747
        %v2749 = vrot.slane %v2584, 1
        %v2750 = vsel %vm1229, %v2745, %v2749
        %v2751 = vrot.slane %v2585, 1
        %v2752 = vsel %vm1229, %v2747, %v2751
        %v2753 = vrot.slane %v2586, 1
        %v2754 = vsel %vm1229, %v2749, %v2753
        %v2755 = vrot.slane %v2587, 1
        %v2756 = vsel %vm1229, %v2751, %v2755
        %v2757 = vrot.slane %v2588, 1
        %v2758 = vsel %vm1229, %v2753, %v2757
        %v2759 = vrot.slane %v2589, 1
        %v2760 = vsel %vm1229, %v2755, %v2759
        %v2761 = vrot.slane %v2590, 1
        %v2762 = vsel %vm1229, %v2757, %v2761
        %v2763 = vrot.slane %v2591, 1
        %v2764 = vsel %vm1229, %v2759, %v2763
        %v2765 = vrot.slane %v2592, 1
        %v2766 = vsel %vm1229, %v2761, %v2765
        %v2767 = vrot.slane %v2593, 1
        %v2768 = vsel %vm1229, %v2763, %v2767
        %v2769 = vrot.slane %v2594, 1
        %v2770 = vsel %vm1229, %v2765, %v2769
        %v2771 = vrot.slane %v2595, 1
        %v2772 = vsel %vm1229, %v2767, %v2771
        %v2773 = vrot.slane %v2596, 1
        %v2774 = vsel %vm1229, %v2769, %v2773
        %v2775 = vrot.slane %v2597, 1
        %v2776 = vsel %vm1229, %v2771, %v2775
        %v2777 = vrot.slane %v2598, 1
        %v2778 = vsel %vm1229, %v2773, %v2777
        %v2779 = vrot.slane %v2599, 1
        %v2780 = vsel %vm1229, %v2775, %v2779
        %v2781 = vrot.slane %v2600, 1
        %v2782 = vsel %vm1229, %v2777, %v2781
        %v2783 = vrot.slane %v2601, 1
        %v2784 = vsel %vm1229, %v2779, %v2783
        %v2785 = vrot.slane %v2602, 1
        %v2786 = vsel %vm1229, %v2781, %v2785
        %v2787 = vrot.slane %v2603, 1
        %v2788 = vsel %vm1229, %v2783, %v2787
        %v2789 = vrot.slane %v2604, 1
        %v2790 = vsel %vm1229, %v2785, %v2789
        %v2791 = vrot.slane %v2605, 1
        %v2792 = vsel %vm1229, %v2787, %v2791
        %v2793 = vrot.slane %v2606, 1
        %v2794 = vsel %vm1229, %v2789, %v2793
        %v2795 = vrot.slane %v2607, 1
        %v2796 = vsel %vm1229, %v2791, %v2795
        %v2797 = vrot.slane %v2608, 1
        %v2798 = vsel %vm1229, %v2793, %v2797
        %v2865 = vsel %vm1229, %v2795, %v2673
        %v2866 = vsel %vm1229, %v2797, %v2676
        %v2867 = vmax.f32 %v2545, %v2675
        %v2868 = vmax.f32 %v2546, %v2678
        %v2869 = vmax.f32 %v2547, %v2680
        %v2870 = vmax.f32 %v2548, %v2682
        %v2871 = vmax.f32 %v2549, %v2684
        %v2872 = vmax.f32 %v2550, %v2686
        %v2873 = vmax.f32 %v2551, %v2688
        %v2874 = vmax.f32 %v2552, %v2690
        %v2875 = vmax.f32 %v2553, %v2692
        %v2876 = vmax.f32 %v2554, %v2694
        %v2877 = vmax.f32 %v2555, %v2696
        %v2878 = vmax.f32 %v2556, %v2698
        %v2879 = vmax.f32 %v2557, %v2700
        %v2880 = vmax.f32 %v2558, %v2702
        %v2881 = vmax.f32 %v2559, %v2704
        %v2882 = vmax.f32 %v2560, %v2706
        %v2883 = vmax.f32 %v2561, %v2708
        %v2884 = vmax.f32 %v2562, %v2710
        %v2885 = vmax.f32 %v2563, %v2712
        %v2886 = vmax.f32 %v2564, %v2714
        %v2887 = vmax.f32 %v2565, %v2716
        %v2888 = vmax.f32 %v2566, %v2718
        %v2889 = vmax.f32 %v2567, %v2720
        %v2890 = vmax.f32 %v2568, %v2722
        %v2891 = vmax.f32 %v2569, %v2724
        %v2892 = vmax.f32 %v2570, %v2726
        %v2893 = vmax.f32 %v2571, %v2728
        %v2894 = vmax.f32 %v2572, %v2730
        %v2895 = vmax.f32 %v2573, %v2732
        %v2896 = vmax.f32 %v2574, %v2734
        %v2897 = vmax.f32 %v2575, %v2736
        %v2898 = vmax.f32 %v2576, %v2738
        %v2899 = vmax.f32 %v2577, %v2740
        %v2900 = vmax.f32 %v2578, %v2742
        %v2901 = vmax.f32 %v2579, %v2744
        %v2902 = vmax.f32 %v2580, %v2746
        %v2903 = vmax.f32 %v2581, %v2748
        %v2904 = vmax.f32 %v2582, %v2750
        %v2905 = vmax.f32 %v2583, %v2752
        %v2906 = vmax.f32 %v2584, %v2754
        %v2907 = vmax.f32 %v2585, %v2756
        %v2908 = vmax.f32 %v2586, %v2758
        %v2909 = vmax.f32 %v2587, %v2760
        %v2910 = vmax.f32 %v2588, %v2762
        %v2911 = vmax.f32 %v2589, %v2764
        %v2912 = vmax.f32 %v2590, %v2766
        %v2913 = vmax.f32 %v2591, %v2768
        %v2914 = vmax.f32 %v2592, %v2770
        %v2915 = vmax.f32 %v2593, %v2772
        %v2916 = vmax.f32 %v2594, %v2774
        %v2917 = vmax.f32 %v2595, %v2776
        %v2918 = vmax.f32 %v2596, %v2778
        %v2919 = vmax.f32 %v2597, %v2780
        %v2920 = vmax.f32 %v2598, %v2782
        %v2921 = vmax.f32 %v2599, %v2784
        %v2922 = vmax.f32 %v2600, %v2786
        %v2923 = vmax.f32 %v2601, %v2788
        %v2924 = vmax.f32 %v2602, %v2790
        %v2925 = vmax.f32 %v2603, %v2792
        %v2926 = vmax.f32 %v2604, %v2794
        %v2927 = vmax.f32 %v2605, %v2796
        %v2928 = vmax.f32 %v2606, %v2798
        %v2929 = vmax.f32 %v2607, %v2865
        %v2930 = vmax.f32 %v2608, %v2866
        %2995 = vrot.lane.b32.xlu0 %v2867, 122
        %v2996 = vpop.permute.xlu0 %2995
        %2997 = vrot.lane.b32.xlu0 %v2868, 122
        %v2998 = vpop.permute.xlu0 %2997
        %2999 = vrot.lane.b32.xlu0 %v2869, 122
        %v3000 = vpop.permute.xlu0 %2999
        %3001 = vrot.lane.b32.xlu0 %v2870, 122
        %v3002 = vpop.permute.xlu0 %3001
        %3003 = vrot.lane.b32.xlu0 %v2871, 122
        %v3004 = vpop.permute.xlu0 %3003
        %3005 = vrot.lane.b32.xlu0 %v2872, 122
        %v3006 = vpop.permute.xlu0 %3005
        %3007 = vrot.lane.b32.xlu0 %v2873, 122
        %v3008 = vpop.permute.xlu0 %3007
        %3009 = vrot.lane.b32.xlu0 %v2874, 122
        %v3010 = vpop.permute.xlu0 %3009
        %3011 = vrot.lane.b32.xlu0 %v2875, 122
        %v3012 = vpop.permute.xlu0 %3011
        %3013 = vrot.lane.b32.xlu0 %v2876, 122
        %v3014 = vpop.permute.xlu0 %3013
        %3015 = vrot.lane.b32.xlu0 %v2877, 122
        %v3016 = vpop.permute.xlu0 %3015
        %3017 = vrot.lane.b32.xlu0 %v2878, 122
        %v3018 = vpop.permute.xlu0 %3017
        %3019 = vrot.lane.b32.xlu0 %v2879, 122
        %v3020 = vpop.permute.xlu0 %3019
        %3021 = vrot.lane.b32.xlu0 %v2880, 122
        %v3022 = vpop.permute.xlu0 %3021
        %3023 = vrot.lane.b32.xlu0 %v2881, 122
        %v3024 = vpop.permute.xlu0 %3023
        %3025 = vrot.lane.b32.xlu0 %v2882, 122
        %v3026 = vpop.permute.xlu0 %3025
        %3027 = vrot.lane.b32.xlu0 %v2883, 122
        %v3028 = vpop.permute.xlu0 %3027
        %3029 = vrot.lane.b32.xlu0 %v2884, 122
        %v3030 = vpop.permute.xlu0 %3029
        %3031 = vrot.lane.b32.xlu0 %v2885, 122
        %v3032 = vpop.permute.xlu0 %3031
        %3033 = vrot.lane.b32.xlu0 %v2886, 122
        %v3034 = vpop.permute.xlu0 %3033
        %3035 = vrot.lane.b32.xlu0 %v2887, 122
        %v3036 = vpop.permute.xlu0 %3035
        %3037 = vrot.lane.b32.xlu0 %v2888, 122
        %v3038 = vpop.permute.xlu0 %3037
        %3039 = vrot.lane.b32.xlu0 %v2889, 122
        %v3040 = vpop.permute.xlu0 %3039
        %3041 = vrot.lane.b32.xlu0 %v2890, 122
        %v3042 = vpop.permute.xlu0 %3041
        %3043 = vrot.lane.b32.xlu0 %v2891, 122
        %v3044 = vpop.permute.xlu0 %3043
        %3045 = vrot.lane.b32.xlu0 %v2892, 122
        %v3046 = vpop.permute.xlu0 %3045
        %3047 = vrot.lane.b32.xlu0 %v2893, 122
        %v3048 = vpop.permute.xlu0 %3047
        %3049 = vrot.lane.b32.xlu0 %v2894, 122
        %v3050 = vpop.permute.xlu0 %3049
        %3051 = vrot.lane.b32.xlu0 %v2895, 122
        %v3052 = vpop.permute.xlu0 %3051
        %3053 = vrot.lane.b32.xlu0 %v2896, 122
        %v3054 = vpop.permute.xlu0 %3053
        %3055 = vrot.lane.b32.xlu0 %v2897, 122
        %v3056 = vpop.permute.xlu0 %3055
        %3057 = vrot.lane.b32.xlu0 %v2898, 122
        %v3058 = vpop.permute.xlu0 %3057
        %3059 = vrot.lane.b32.xlu0 %v2899, 122
        %v3060 = vpop.permute.xlu0 %3059
        %3061 = vrot.lane.b32.xlu0 %v2900, 122
        %v3062 = vpop.permute.xlu0 %3061
        %3063 = vrot.lane.b32.xlu0 %v2901, 122
        %v3064 = vpop.permute.xlu0 %3063
        %3065 = vrot.lane.b32.xlu0 %v2902, 122
        %v3066 = vpop.permute.xlu0 %3065
        %3067 = vrot.lane.b32.xlu0 %v2903, 122
        %v3068 = vpop.permute.xlu0 %3067
        %3069 = vrot.lane.b32.xlu0 %v2904, 122
        %v3070 = vpop.permute.xlu0 %3069
        %3071 = vrot.lane.b32.xlu0 %v2905, 122
        %v3072 = vpop.permute.xlu0 %3071
        %3073 = vrot.lane.b32.xlu0 %v2906, 122
        %v3074 = vpop.permute.xlu0 %3073
        %3075 = vrot.lane.b32.xlu0 %v2907, 122
        %v3076 = vpop.permute.xlu0 %3075
        %3077 = vrot.lane.b32.xlu0 %v2908, 122
        %v3078 = vpop.permute.xlu0 %3077
        %3079 = vrot.lane.b32.xlu0 %v2909, 122
        %v3080 = vpop.permute.xlu0 %3079
        %3081 = vrot.lane.b32.xlu0 %v2910, 122
        %v3082 = vpop.permute.xlu0 %3081
        %3083 = vrot.lane.b32.xlu0 %v2911, 122
        %v3084 = vpop.permute.xlu0 %3083
        %3085 = vrot.lane.b32.xlu0 %v2912, 122
        %v3086 = vpop.permute.xlu0 %3085
        %3087 = vrot.lane.b32.xlu0 %v2913, 122
        %v3088 = vpop.permute.xlu0 %3087
        %3089 = vrot.lane.b32.xlu0 %v2914, 122
        %v3090 = vpop.permute.xlu0 %3089
        %3091 = vrot.lane.b32.xlu0 %v2915, 122
        %v3092 = vpop.permute.xlu0 %3091
        %3093 = vrot.lane.b32.xlu0 %v2916, 122
        %v3094 = vpop.permute.xlu0 %3093
        %3095 = vrot.lane.b32.xlu0 %v2917, 122
        %v3096 = vpop.permute.xlu0 %3095
        %3097 = vrot.lane.b32.xlu0 %v2918, 122
        %v3098 = vpop.permute.xlu0 %3097
        %3099 = vrot.lane.b32.xlu0 %v2919, 122
        %v3100 = vpop.permute.xlu0 %3099
        %3101 = vrot.lane.b32.xlu0 %v2920, 122
        %v3102 = vpop.permute.xlu0 %3101
        %3103 = vrot.lane.b32.xlu0 %v2921, 122
        %v3104 = vpop.permute.xlu0 %3103
        %3105 = vrot.lane.b32.xlu0 %v2922, 122
        %v3106 = vpop.permute.xlu0 %3105
        %3107 = vrot.lane.b32.xlu0 %v2923, 122
        %v3108 = vpop.permute.xlu0 %3107
        %3109 = vrot.lane.b32.xlu0 %v2924, 122
        %v3110 = vpop.permute.xlu0 %3109
        %3111 = vrot.lane.b32.xlu0 %v2925, 122
        %v3112 = vpop.permute.xlu0 %3111
        %3113 = vrot.lane.b32.xlu0 %v2926, 122
        %v3114 = vpop.permute.xlu0 %3113
        %3115 = vrot.lane.b32.xlu0 %v2927, 122
        %v3116 = vpop.permute.xlu0 %3115
        %3117 = vrot.lane.b32.xlu0 %v2928, 122
        %v3118 = vpop.permute.xlu0 %3117
        %3119 = vrot.lane.b32.xlu0 %v2929, 122
        %v3120 = vpop.permute.xlu0 %3119
        %3121 = vrot.lane.b32.xlu0 %v2930, 122
        %v3122 = vpop.permute.xlu0 %3121
        %vm3123 = vcmask 998400
        %v3124 = vsel %vm3123, %v2996, %v2998
        %v3125 = vsel %vm3123, %v3000, %v3002
        %v3126 = vsel %vm3123, %v3004, %v3006
        %v3127 = vsel %vm3123, %v3008, %v3010
        %v3128 = vsel %vm3123, %v3012, %v3014
        %v3129 = vsel %vm3123, %v3016, %v3018
        %v3130 = vsel %vm3123, %v3020, %v3022
        %v3131 = vsel %vm3123, %v3024, %v3026
        %v3132 = vsel %vm3123, %v3028, %v3030
        %v3133 = vsel %vm3123, %v3032, %v3034
        %v3134 = vsel %vm3123, %v3036, %v3038
        %v3135 = vsel %vm3123, %v3040, %v3042
        %v3136 = vsel %vm3123, %v3044, %v3046
        %v3137 = vsel %vm3123, %v3048, %v3050
        %v3138 = vsel %vm3123, %v3052, %v3054
        %v3139 = vsel %vm3123, %v3056, %v3058
        %v3140 = vsel %vm3123, %v3060, %v3062
        %v3141 = vsel %vm3123, %v3064, %v3066
        %v3142 = vsel %vm3123, %v3068, %v3070
        %v3143 = vsel %vm3123, %v3072, %v3074
        %v3144 = vsel %vm3123, %v3076, %v3078
        %v3145 = vsel %vm3123, %v3080, %v3082
        %v3146 = vsel %vm3123, %v3084, %v3086
        %v3147 = vsel %vm3123, %v3088, %v3090
        %v3148 = vsel %vm3123, %v3092, %v3094
        %v3149 = vsel %vm3123, %v3096, %v3098
        %v3150 = vsel %vm3123, %v3100, %v3102
        %v3151 = vsel %vm3123, %v3104, %v3106
        %v3152 = vsel %vm3123, %v3108, %v3110
        %v3153 = vsel %vm3123, %v3112, %v3114
        %v3154 = vsel %vm3123, %v3116, %v3118
        %v3155 = vsel %vm3123, %v3120, %v3122
        %3220 = vrot.lane.b32.xlu0 %v2867, 34
        %v3221 = vpop.permute.xlu0 %3220
        %3222 = vrot.lane.b32.xlu0 %v2869, 34
        %v3223 = vpop.permute.xlu0 %3222
        %3224 = vrot.lane.b32.xlu0 %v2871, 34
        %v3225 = vpop.permute.xlu0 %3224
        %3226 = vrot.lane.b32.xlu0 %v2873, 34
        %v3227 = vpop.permute.xlu0 %3226
        %3228 = vrot.lane.b32.xlu0 %v2875, 34
        %v3229 = vpop.permute.xlu0 %3228
        %3230 = vrot.lane.b32.xlu0 %v2877, 34
        %v3231 = vpop.permute.xlu0 %3230
        %3232 = vrot.lane.b32.xlu0 %v2879, 34
        %v3233 = vpop.permute.xlu0 %3232
        %3234 = vrot.lane.b32.xlu0 %v2881, 34
        %v3235 = vpop.permute.xlu0 %3234
        %3236 = vrot.lane.b32.xlu0 %v2883, 34
        %v3237 = vpop.permute.xlu0 %3236
        %3238 = vrot.lane.b32.xlu0 %v2885, 34
        %v3239 = vpop.permute.xlu0 %3238
        %3240 = vrot.lane.b32.xlu0 %v2887, 34
        %v3241 = vpop.permute.xlu0 %3240
        %3242 = vrot.lane.b32.xlu0 %v2889, 34
        %v3243 = vpop.permute.xlu0 %3242
        %3244 = vrot.lane.b32.xlu0 %v2891, 34
        %v3245 = vpop.permute.xlu0 %3244
        %3246 = vrot.lane.b32.xlu0 %v2893, 34
        %v3247 = vpop.permute.xlu0 %3246
        %3248 = vrot.lane.b32.xlu0 %v2895, 34
        %v3249 = vpop.permute.xlu0 %3248
        %3250 = vrot.lane.b32.xlu0 %v2897, 34
        %v3251 = vpop.permute.xlu0 %3250
        %3252 = vrot.lane.b32.xlu0 %v2899, 34
        %v3253 = vpop.permute.xlu0 %3252
        %3254 = vrot.lane.b32.xlu0 %v2901, 34
        %v3255 = vpop.permute.xlu0 %3254
        %3256 = vrot.lane.b32.xlu0 %v2903, 34
        %v3257 = vpop.permute.xlu0 %3256
        %3258 = vrot.lane.b32.xlu0 %v2905, 34
        %v3259 = vpop.permute.xlu0 %3258
        %3260 = vrot.lane.b32.xlu0 %v2907, 34
        %v3261 = vpop.permute.xlu0 %3260
        %3262 = vrot.lane.b32.xlu0 %v2909, 34
        %v3263 = vpop.permute.xlu0 %3262
        %3264 = vrot.lane.b32.xlu0 %v2911, 34
        %v3265 = vpop.permute.xlu0 %3264
        %3266 = vrot.lane.b32.xlu0 %v2913, 34
        %v3267 = vpop.permute.xlu0 %3266
        %3268 = vrot.lane.b32.xlu0 %v2915, 34
        %v3269 = vpop.permute.xlu0 %3268
        %3270 = vrot.lane.b32.xlu0 %v2917, 34
        %v3271 = vpop.permute.xlu0 %3270
        %3272 = vrot.lane.b32.xlu0 %v2919, 34
        %v3273 = vpop.permute.xlu0 %3272
        %3274 = vrot.lane.b32.xlu0 %v2921, 34
        %v3275 = vpop.permute.xlu0 %3274
        %3276 = vrot.lane.b32.xlu0 %v2923, 34
        %v3277 = vpop.permute.xlu0 %3276
        %3278 = vrot.lane.b32.xlu0 %v2925, 34
        %v3279 = vpop.permute.xlu0 %3278
        %3280 = vrot.lane.b32.xlu0 %v2927, 34
        %v3281 = vpop.permute.xlu0 %3280
        %3282 = vrot.lane.b32.xlu0 %v2929, 34
        %v3283 = vpop.permute.xlu0 %3282
        %vm3316 = vcmask 277504
        %v3317 = vsel %vm3316, %v2998, %v3221
        %v3318 = vsel %vm3316, %v3002, %v3223
        %v3319 = vsel %vm3316, %v3006, %v3225
        %v3320 = vsel %vm3316, %v3010, %v3227
        %v3321 = vsel %vm3316, %v3014, %v3229
        %v3322 = vsel %vm3316, %v3018, %v3231
        %v3323 = vsel %vm3316, %v3022, %v3233
        %v3324 = vsel %vm3316, %v3026, %v3235
        %v3325 = vsel %vm3316, %v3030, %v3237
        %v3326 = vsel %vm3316, %v3034, %v3239
        %v3327 = vsel %vm3316, %v3038, %v3241
        %v3328 = vsel %vm3316, %v3042, %v3243
        %v3329 = vsel %vm3316, %v3046, %v3245
        %v3330 = vsel %vm3316, %v3050, %v3247
        %v3331 = vsel %vm3316, %v3054, %v3249
        %v3332 = vsel %vm3316, %v3058, %v3251
        %v3333 = vsel %vm3316, %v3062, %v3253
        %v3334 = vsel %vm3316, %v3066, %v3255
        %v3335 = vsel %vm3316, %v3070, %v3257
        %v3336 = vsel %vm3316, %v3074, %v3259
        %v3337 = vsel %vm3316, %v3078, %v3261
        %v3338 = vsel %vm3316, %v3082, %v3263
        %v3339 = vsel %vm3316, %v3086, %v3265
        %v3340 = vsel %vm3316, %v3090, %v3267
        %v3341 = vsel %vm3316, %v3094, %v3269
        %v3342 = vsel %vm3316, %v3098, %v3271
        %v3343 = vsel %vm3316, %v3102, %v3273
        %v3344 = vsel %vm3316, %v3106, %v3275
        %v3345 = vsel %vm3316, %v3110, %v3277
        %v3346 = vsel %vm3316, %v3114, %v3279
        %v3347 = vsel %vm3316, %v3118, %v3281
        %v3348 = vsel %vm3316, %v3122, %v3283
        %v3349 = vmax.f32 %v2867, %v3124
        %v3350 = vmax.f32 %v2868, %v3317
        %v3351 = vmax.f32 %v2869, %v3125
        %v3352 = vmax.f32 %v2870, %v3318
        %v3353 = vmax.f32 %v2871, %v3126
        %v3354 = vmax.f32 %v2872, %v3319
        %v3355 = vmax.f32 %v2873, %v3127
        %v3356 = vmax.f32 %v2874, %v3320
        %v3357 = vmax.f32 %v2875, %v3128
        %v3358 = vmax.f32 %v2876, %v3321
        %v3359 = vmax.f32 %v2877, %v3129
        %v3360 = vmax.f32 %v2878, %v3322
        %v3361 = vmax.f32 %v2879, %v3130
        %v3362 = vmax.f32 %v2880, %v3323
        %v3363 = vmax.f32 %v2881, %v3131
        %v3364 = vmax.f32 %v2882, %v3324
        %v3365 = vmax.f32 %v2883, %v3132
        %v3366 = vmax.f32 %v2884, %v3325
        %v3367 = vmax.f32 %v2885, %v3133
        %v3368 = vmax.f32 %v2886, %v3326
        %v3369 = vmax.f32 %v2887, %v3134
        %v3370 = vmax.f32 %v2888, %v3327
        %v3371 = vmax.f32 %v2889, %v3135
        %v3372 = vmax.f32 %v2890, %v3328
        %v3373 = vmax.f32 %v2891, %v3136
        %v3374 = vmax.f32 %v2892, %v3329
        %v3375 = vmax.f32 %v2893, %v3137
        %v3376 = vmax.f32 %v2894, %v3330
        %v3377 = vmax.f32 %v2895, %v3138
        %v3378 = vmax.f32 %v2896, %v3331
        %v3379 = vmax.f32 %v2897, %v3139
        %v3380 = vmax.f32 %v2898, %v3332
        %v3381 = vmax.f32 %v2899, %v3140
        %v3382 = vmax.f32 %v2900, %v3333
        %v3383 = vmax.f32 %v2901, %v3141
        %v3384 = vmax.f32 %v2902, %v3334
        %v3385 = vmax.f32 %v2903, %v3142
        %v3386 = vmax.f32 %v2904, %v3335
        %v3387 = vmax.f32 %v2905, %v3143
        %v3388 = vmax.f32 %v2906, %v3336
        %v3389 = vmax.f32 %v2907, %v3144
        %v3390 = vmax.f32 %v2908, %v3337
        %v3391 = vmax.f32 %v2909, %v3145
        %v3392 = vmax.f32 %v2910, %v3338
        %v3393 = vmax.f32 %v2911, %v3146
        %v3394 = vmax.f32 %v2912, %v3339
        %v3395 = vmax.f32 %v2913, %v3147
        %v3396 = vmax.f32 %v2914, %v3340
        %v3397 = vmax.f32 %v2915, %v3148
        %v3398 = vmax.f32 %v2916, %v3341
        %v3399 = vmax.f32 %v2917, %v3149
        %v3400 = vmax.f32 %v2918, %v3342
        %v3401 = vmax.f32 %v2919, %v3150
        %v3402 = vmax.f32 %v2920, %v3343
        %v3403 = vmax.f32 %v2921, %v3151
        %v3404 = vmax.f32 %v2922, %v3344
        %v3405 = vmax.f32 %v2923, %v3152
        %v3406 = vmax.f32 %v2924, %v3345
        %v3407 = vmax.f32 %v2925, %v3153
        %v3408 = vmax.f32 %v2926, %v3346
        %v3409 = vmax.f32 %v2927, %v3154
        %v3410 = vmax.f32 %v2928, %v3347
        %v3411 = vmax.f32 %v2929, %v3155
        %v3412 = vmax.f32 %v2930, %v3348
        %v3413 = vpack.c.bf16 %v3351, %v3349
        %v3414 = vpack.c.bf16 %v3352, %v3350
        %v3415 = vpack.c.bf16 %v3355, %v3353
        %v3416 = vpack.c.bf16 %v3356, %v3354
        %v3417 = vpack.c.bf16 %v3359, %v3357
        %v3418 = vpack.c.bf16 %v3360, %v3358
        %v3419 = vpack.c.bf16 %v3363, %v3361
        %v3420 = vpack.c.bf16 %v3364, %v3362
        %v3421 = vpack.c.bf16 %v3367, %v3365
        %v3422 = vpack.c.bf16 %v3368, %v3366
        %v3423 = vpack.c.bf16 %v3371, %v3369
        %v3424 = vpack.c.bf16 %v3372, %v3370
        %v3425 = vpack.c.bf16 %v3375, %v3373
        %v3426 = vpack.c.bf16 %v3376, %v3374
        %v3427 = vpack.c.bf16 %v3379, %v3377
        %v3428 = vpack.c.bf16 %v3380, %v3378
        %v3429 = vpack.c.bf16 %v3383, %v3381
        %v3430 = vpack.c.bf16 %v3384, %v3382
        %v3431 = vpack.c.bf16 %v3387, %v3385
        %v3432 = vpack.c.bf16 %v3388, %v3386
        %v3433 = vpack.c.bf16 %v3391, %v3389
        %v3434 = vpack.c.bf16 %v3392, %v3390
        %v3435 = vpack.c.bf16 %v3395, %v3393
        %v3436 = vpack.c.bf16 %v3396, %v3394
        %v3437 = vpack.c.bf16 %v3399, %v3397
        %v3438 = vpack.c.bf16 %v3400, %v3398
        %v3439 = vpack.c.bf16 %v3403, %v3401
        %v3440 = vpack.c.bf16 %v3404, %v3402
        %v3441 = vpack.c.bf16 %v3407, %v3405
        %v3442 = vpack.c.bf16 %v3408, %v3406
        %v3443 = vpack.c.bf16 %v3411, %v3409
        %v3444 = vpack.c.bf16 %v3412, %v3410
        %v3445 = vld [vmem:[%s3] sm:$0xff]
        %v3446 = vld [vmem:[%s3 + $0x8] sm:$0xff]
        %v3447 = vld [vmem:[%s3 + $0x10] sm:$0xff]
        %v3448 = vld [vmem:[%s3 + $0x18] sm:$0xff]
        %v3449 = vld [vmem:[%s3 + $0x20] sm:$0xff]
        %v3450 = vld [vmem:[%s3 + $0x28] sm:$0xff]
        %v3451 = vld [vmem:[%s3 + $0x30] sm:$0xff]
        %v3452 = vld [vmem:[%s3 + $0x38] sm:$0xff]
        %v3453 = vld [vmem:[%s3 + $0x40] sm:$0xff]
        %v3454 = vld [vmem:[%s3 + $0x48] sm:$0xff]
        %v3455 = vld [vmem:[%s3 + $0x50] sm:$0xff]
        %v3456 = vld [vmem:[%s3 + $0x58] sm:$0xff]
        %v3457 = vld [vmem:[%s3 + $0x60] sm:$0xff]
        %v3458 = vld [vmem:[%s3 + $0x68] sm:$0xff]
        %v3459 = vld [vmem:[%s3 + $0x70] sm:$0xff]
        %v3460 = vld [vmem:[%s3 + $0x78] sm:$0xff]
        %v3461 = vld [vmem:[%s3 + $0x80] sm:$0xff]
        %v3462 = vld [vmem:[%s3 + $0x88] sm:$0xff]
        %v3463 = vld [vmem:[%s3 + $0x90] sm:$0xff]
        %v3464 = vld [vmem:[%s3 + $0x98] sm:$0xff]
        %v3465 = vld [vmem:[%s3 + $0xa0] sm:$0xff]
        %v3498 = vrot.slane %v3413, 1
        %v3499 = vrot.slane %v3415, 1
        %v3500 = vsel %vm1197, %v3498, %v3499
        %v3501 = vrot.slane %v3414, 1
        %v3502 = vrot.slane %v3416, 1
        %v3503 = vsel %vm1197, %v3501, %v3502
        %v3504 = vrot.slane %v3417, 1
        %v3505 = vsel %vm1197, %v3499, %v3504
        %v3506 = vrot.slane %v3418, 1
        %v3507 = vsel %vm1197, %v3502, %v3506
        %v3508 = vrot.slane %v3419, 1
        %v3509 = vsel %vm1197, %v3504, %v3508
        %v3510 = vrot.slane %v3420, 1
        %v3511 = vsel %vm1197, %v3506, %v3510
        %v3512 = vrot.slane %v3421, 1
        %v3513 = vsel %vm1197, %v3508, %v3512
        %v3514 = vrot.slane %v3422, 1
        %v3515 = vsel %vm1197, %v3510, %v3514
        %v3516 = vrot.slane %v3423, 1
        %v3517 = vsel %vm1197, %v3512, %v3516
        %v3518 = vrot.slane %v3424, 1
        %v3519 = vsel %vm1197, %v3514, %v3518
        %v3520 = vrot.slane %v3425, 1
        %v3521 = vsel %vm1197, %v3516, %v3520
        %v3522 = vrot.slane %v3426, 1
        %v3523 = vsel %vm1197, %v3518, %v3522
        %v3524 = vrot.slane %v3427, 1
        %v3525 = vsel %vm1197, %v3520, %v3524
        %v3526 = vrot.slane %v3428, 1
        %v3527 = vsel %vm1197, %v3522, %v3526
        %v3528 = vrot.slane %v3429, 1
        %v3529 = vsel %vm1197, %v3524, %v3528
        %v3530 = vrot.slane %v3430, 1
        %v3531 = vsel %vm1197, %v3526, %v3530
        %v3532 = vrot.slane %v3431, 1
        %v3533 = vsel %vm1197, %v3528, %v3532
        %v3534 = vrot.slane %v3432, 1
        %v3535 = vsel %vm1197, %v3530, %v3534
        %v3536 = vrot.slane %v3433, 1
        %v3537 = vsel %vm1197, %v3532, %v3536
        %v3538 = vrot.slane %v3434, 1
        %v3539 = vsel %vm1197, %v3534, %v3538
        %v3540 = vrot.slane %v3435, 1
        %v3541 = vsel %vm1197, %v3536, %v3540
        %v3542 = vrot.slane %v3436, 1
        %v3543 = vsel %vm1197, %v3538, %v3542
        %v3544 = vrot.slane %v3437, 1
        %v3545 = vsel %vm1197, %v3540, %v3544
        %v3546 = vrot.slane %v3438, 1
        %v3547 = vsel %vm1197, %v3542, %v3546
        %v3548 = vrot.slane %v3439, 1
        %v3549 = vsel %vm1197, %v3544, %v3548
        %v3550 = vrot.slane %v3440, 1
        %v3551 = vsel %vm1197, %v3546, %v3550
        %v3552 = vrot.slane %v3441, 1
        %v3553 = vsel %vm1197, %v3548, %v3552
        %v3554 = vrot.slane %v3442, 1
        %v3555 = vsel %vm1197, %v3550, %v3554
        %v3556 = vrot.slane %v3443, 1
        %v3557 = vsel %vm1197, %v3552, %v3556
        %v3558 = vrot.slane %v3444, 1
        %v3559 = vsel %vm1197, %v3554, %v3558
        %v3577 = vsel %vm1229, %v3556, %v3498
        %v3581 = vsel %vm1229, %v3558, %v3501
        %s3582 = scalar_lea.vmem %s3, 168
        %v3583 = vld [vmem:[%s3582] sm:$0xff]
        %v3584 = vld [vmem:[%s3582 + $0x8] sm:$0xff]
        %v3585 = vld [vmem:[%s3582 + $0x10] sm:$0xff]
        %v3586 = vld [vmem:[%s3582 + $0x18] sm:$0xff]
        %v3587 = vld [vmem:[%s3582 + $0x20] sm:$0xff]
        %v3588 = vld [vmem:[%s3582 + $0x28] sm:$0xff]
        %v3589 = vld [vmem:[%s3582 + $0x30] sm:$0xff]
        %v3590 = vld [vmem:[%s3582 + $0x38] sm:$0xff]
        %v3591 = vld [vmem:[%s3582 + $0x40] sm:$0xff]
        %v3592 = vld [vmem:[%s3582 + $0x48] sm:$0xff]
        %v3593 = vld [vmem:[%s3582 + $0x50] sm:$0xff]
        %v3594 = vld [vmem:[%s3582 + $0x58] sm:$0xff]
        %v3595 = vld [vmem:[%s3582 + $0x60] sm:$0xff]
        %v3596 = vld [vmem:[%s3582 + $0x68] sm:$0xff]
        %v3597 = vld [vmem:[%s3582 + $0x70] sm:$0xff]
        %v3598 = vld [vmem:[%s3582 + $0x78] sm:$0xff]
        %v3599 = vld [vmem:[%s3582 + $0x80] sm:$0xff]
        %v3600 = vld [vmem:[%s3582 + $0x88] sm:$0xff]
        %v3601 = vld [vmem:[%s3582 + $0x90] sm:$0xff]
        %v3602 = vld [vmem:[%s3582 + $0x98] sm:$0xff]
        %v3603 = vld [vmem:[%s3582 + $0xa0] sm:$0xff]
        %v3625 = vunpack.c.l.b16 %v3583
        %v3626 = vunpack.c.h.b16 %v3583
        %v3627 = vunpack.c.l.b16 %v3584
        %v3628 = vunpack.c.h.b16 %v3584
        %v3629 = vunpack.c.l.b16 %v3585
        %v3630 = vunpack.c.h.b16 %v3585
        %v3631 = vunpack.c.l.b16 %v3586
        %v3632 = vunpack.c.h.b16 %v3586
        %v3633 = vunpack.c.l.b16 %v3587
        %v3634 = vunpack.c.h.b16 %v3587
        %v3635 = vunpack.c.l.b16 %v3588
        %v3636 = vunpack.c.h.b16 %v3588
        %v3637 = vunpack.c.l.b16 %v3589
        %v3638 = vunpack.c.h.b16 %v3589
        %v3639 = vunpack.c.l.b16 %v3590
        %v3640 = vunpack.c.h.b16 %v3590
        %v3641 = vunpack.c.l.b16 %v3591
        %v3642 = vunpack.c.h.b16 %v3591
        %v3643 = vunpack.c.l.b16 %v3592
        %v3644 = vunpack.c.h.b16 %v3592
        %v3645 = vunpack.c.l.b16 %v3593
        %v3646 = vunpack.c.h.b16 %v3593
        %v3647 = vunpack.c.l.b16 %v3594
        %v3648 = vunpack.c.h.b16 %v3594
        %v3649 = vunpack.c.l.b16 %v3595
        %v3650 = vunpack.c.h.b16 %v3595
        %v3651 = vunpack.c.l.b16 %v3596
        %v3652 = vunpack.c.h.b16 %v3596
        %v3653 = vunpack.c.l.b16 %v3597
        %v3654 = vunpack.c.h.b16 %v3597
        %v3655 = vunpack.c.l.b16 %v3598
        %v3656 = vunpack.c.h.b16 %v3598
        %v3657 = vunpack.c.l.b16 %v3599
        %v3658 = vunpack.c.h.b16 %v3599
        %v3659 = vunpack.c.l.b16 %v3600
        %v3660 = vunpack.c.h.b16 %v3600
        %v3661 = vunpack.c.l.b16 %v3601
        %v3662 = vunpack.c.h.b16 %v3601
        %v3663 = vunpack.c.l.b16 %v3602
        %v3664 = vunpack.c.h.b16 %v3602
        %v3665 = vunpack.c.l.b16 %v3603
        %v3666 = vunpack.c.h.b16 %v3603
        %v3667 = vpack.c.b16 %v3627, %v3625
        %v3668 = vpack.c.b16 %v3628, %v3626
        %v3669 = vpack.c.b16 %v3631, %v3629
        %v3670 = vpack.c.b16 %v3632, %v3630
        %v3671 = vpack.c.b16 %v3635, %v3633
        %v3672 = vpack.c.b16 %v3636, %v3634
        %v3673 = vpack.c.b16 %v3639, %v3637
        %v3674 = vpack.c.b16 %v3640, %v3638
        %v3675 = vpack.c.b16 %v3643, %v3641
        %v3676 = vpack.c.b16 %v3644, %v3642
        %v3677 = vpack.c.b16 %v3647, %v3645
        %v3678 = vpack.c.b16 %v3648, %v3646
        %v3679 = vpack.c.b16 %v3651, %v3649
        %v3680 = vpack.c.b16 %v3652, %v3650
        %v3681 = vpack.c.b16 %v3655, %v3653
        %v3682 = vpack.c.b16 %v3656, %v3654
        %v3683 = vpack.c.b16 %v3659, %v3657
        %v3684 = vpack.c.b16 %v3660, %v3658
        %v3685 = vpack.c.b16 %v3663, %v3661
        %v3686 = vpack.c.b16 %v3664, %v3662
        %v3687 = vpack.c.b16 %v3665, %v3665
        %v3688 = vpack.c.b16 %v3666, %v3666
        %vm3709 = vcmask 326656
        %v3711 = vsel %vm3709, %v3503, 0
        %v3714 = vsel %vm3709, %v3507, 0
        %v3717 = vsel %vm3709, %v3511, 0
        %v3720 = vsel %vm3709, %v3515, 0
        %v3723 = vsel %vm3709, %v3519, 0
        %v3726 = vsel %vm3709, %v3523, 0
        %v3729 = vsel %vm3709, %v3527, 0
        %v3732 = vsel %vm3709, %v3531, 0
        %v3735 = vsel %vm3709, %v3535, 0
        %v3738 = vsel %vm3709, %v3539, 0
        %v3741 = vsel %vm3709, %v3543, 0
        %v3744 = vsel %vm3709, %v3547, 0
        %v3747 = vsel %vm3709, %v3551, 0
        %v3750 = vsel %vm3709, %v3555, 0
        %v3753 = vsel %vm3709, %v3559, 0
        %v3755 = vsel %vm3709, %v3581, 0
        %vm3757 = vcmask 1043456
        %v3759 = vsel %vm3757, %v3687, 0
        %v3762 = vsel %vm3757, %v3688, 0
        %3764 = vmatprep.subr.bf16.mxu0 %v3668
        %3765 = vmatpush1.bf16.msra.mxu0 %v3667
        %3766 = vmatprep.subr.bf16.mxu0 %v3670
        %3767 = vmatpush1.bf16.msra.mxu0 %v3669
        %3768 = vmatprep.subr.bf16.mxu0 %v3672
        %3769 = vmatpush1.bf16.msra.mxu0 %v3671
        %3770 = vmatprep.subr.bf16.mxu0 %v3674
        %3771 = vmatpush1.bf16.msra.mxu0 %v3673
        %3772 = vmatprep.subr.bf16.mxu0 %v3676
        %3773 = vmatpush1.bf16.msra.mxu0 %v3675
        %3774 = vmatprep.subr.bf16.mxu0 %v3678
        %3775 = vmatpush1.bf16.msra.mxu0 %v3677
        %3776 = vmatprep.subr.bf16.mxu0 %v3680
        %3777 = vmatpush1.bf16.msra.mxu0 %v3679
        %3778 = vmatprep.subr.bf16.mxu0 %v3682
        %3779 = vmatpush1.bf16.msra.mxu0 %v3681
        %3780 = vmatprep.subr.bf16.mxu0 %v3684
        %3781 = vmatpush1.bf16.msra.mxu0 %v3683
        %3782 = vmatprep.subr.bf16.mxu0 %v3686
        %3783 = vmatpush1.bf16.msra.mxu0 %v3685
        %3784 = vmatprep.subr.bf16.mxu0 %v3762
        %3785 = vmatpush1.bf16.msra.mxu0 %v3759
        %3786 = vmatprep.subr.bf16.mxu0 0
        %3787 = vmatpush1.bf16.msra.mxu0 0
        %3788 = vmatprep.subr.bf16.mxu0 0
        %3789 = vmatpush1.bf16.msra.mxu0 0
        %3790 = vmatprep.subr.bf16.mxu0 0
        %3791 = vmatpush1.bf16.msra.mxu0 0
        %3792 = vmatprep.subr.bf16.mxu0 0
        %3793 = vmatpush1.bf16.msra.mxu0 0
        %3794 = vmatprep.subr.bf16.mxu0 0
        %3795 = vmatpush1.bf16.msra.mxu0 0
        %3796 = vmatprep.mubr.bf16.mxu0 %v3711
        %3797 = vmatmul.mubr.bf16.gmra.mrb[0].mxu0 %v3500
        %v3798 = vpop.f32.mrb[0].mxu0
        %v3799 = vadd.f32 0.0, %v3798
        %v3800 = vpop.f32.mrb[0].mxu0
        %v3801 = vadd.f32 0.0, %v3800
        %v3802 = vpop.f32.mrb[0].mxu0
        %v3803 = vadd.f32 0.0, %v3802
        %v3804 = vpop.f32.mrb[0].mxu0
        %v3805 = vadd.f32 0.0, %v3804
        %3806 = vmatprep.mubr.bf16.mxu0 %v3714
        %3807 = vmatmul.mubr.bf16.gmra.mrb[0].mxu0 %v3505
        %v3808 = vpop.f32.mrb[0].mxu0
        %v3809 = vadd.f32 0.0, %v3808
        %v3810 = vpop.f32.mrb[0].mxu0
        %v3811 = vadd.f32 0.0, %v3810
        %v3812 = vpop.f32.mrb[0].mxu0
        %v3813 = vadd.f32 0.0, %v3812
        %v3814 = vpop.f32.mrb[0].mxu0
        %v3815 = vadd.f32 0.0, %v3814
        %3816 = vmatprep.mubr.bf16.mxu0 %v3717
        %3817 = vmatmul.mubr.bf16.gmra.mrb[0].mxu0 %v3509
        %v3818 = vpop.f32.mrb[0].mxu0
        %v3819 = vadd.f32 0.0, %v3818
        %v3820 = vpop.f32.mrb[0].mxu0
        %v3821 = vadd.f32 0.0, %v3820
        %v3822 = vpop.f32.mrb[0].mxu0
        %v3823 = vadd.f32 0.0, %v3822
        %v3824 = vpop.f32.mrb[0].mxu0
        %v3825 = vadd.f32 0.0, %v3824
        %3826 = vmatprep.mubr.bf16.mxu0 %v3720
        %3827 = vmatmul.mubr.bf16.gmra.mrb[0].mxu0 %v3513
        %v3828 = vpop.f32.mrb[0].mxu0
        %v3829 = vadd.f32 0.0, %v3828
        %v3830 = vpop.f32.mrb[0].mxu0
        %v3831 = vadd.f32 0.0, %v3830
        %v3832 = vpop.f32.mrb[0].mxu0
        %v3833 = vadd.f32 0.0, %v3832
        %v3834 = vpop.f32.mrb[0].mxu0
        %v3835 = vadd.f32 0.0, %v3834
        %3836 = vmatprep.mubr.bf16.mxu0 %v3723
        %3837 = vmatmul.mubr.bf16.gmra.mrb[0].mxu0 %v3517
        %v3838 = vpop.f32.mrb[0].mxu0
        %v3839 = vadd.f32 0.0, %v3838
        %v3840 = vpop.f32.mrb[0].mxu0
        %v3841 = vadd.f32 0.0, %v3840
        %v3842 = vpop.f32.mrb[0].mxu0
        %v3843 = vadd.f32 0.0, %v3842
        %v3844 = vpop.f32.mrb[0].mxu0
        %v3845 = vadd.f32 0.0, %v3844
        %3846 = vmatprep.mubr.bf16.mxu0 %v3726
        %3847 = vmatmul.mubr.bf16.gmra.mrb[0].mxu0 %v3521
        %v3848 = vpop.f32.mrb[0].mxu0
        %v3849 = vadd.f32 0.0, %v3848
        %v3850 = vpop.f32.mrb[0].mxu0
        %v3851 = vadd.f32 0.0, %v3850
        %v3852 = vpop.f32.mrb[0].mxu0
        %v3853 = vadd.f32 0.0, %v3852
        %v3854 = vpop.f32.mrb[0].mxu0
        %v3855 = vadd.f32 0.0, %v3854
        %3856 = vmatprep.mubr.bf16.mxu0 %v3729
        %3857 = vmatmul.mubr.bf16.gmra.mrb[0].mxu0 %v3525
        %v3858 = vpop.f32.mrb[0].mxu0
        %v3859 = vadd.f32 0.0, %v3858
        %v3860 = vpop.f32.mrb[0].mxu0
        %v3861 = vadd.f32 0.0, %v3860
        %v3862 = vpop.f32.mrb[0].mxu0
        %v3863 = vadd.f32 0.0, %v3862
        %v3864 = vpop.f32.mrb[0].mxu0
        %v3865 = vadd.f32 0.0, %v3864
        %3866 = vmatprep.mubr.bf16.mxu0 %v3732
        %3867 = vmatmul.mubr.bf16.gmra.mrb[0].mxu0 %v3529
        %v3868 = vpop.f32.mrb[0].mxu0
        %v3869 = vadd.f32 0.0, %v3868
        %v3870 = vpop.f32.mrb[0].mxu0
        %v3871 = vadd.f32 0.0, %v3870
        %v3872 = vpop.f32.mrb[0].mxu0
        %v3873 = vadd.f32 0.0, %v3872
        %v3874 = vpop.f32.mrb[0].mxu0
        %v3875 = vadd.f32 0.0, %v3874
        %3876 = vmatprep.mubr.bf16.mxu0 %v3735
        %3877 = vmatmul.mubr.bf16.gmra.mrb[0].mxu0 %v3533
        %v3878 = vpop.f32.mrb[0].mxu0
        %v3879 = vadd.f32 0.0, %v3878
        %v3880 = vpop.f32.mrb[0].mxu0
        %v3881 = vadd.f32 0.0, %v3880
        %v3882 = vpop.f32.mrb[0].mxu0
        %v3883 = vadd.f32 0.0, %v3882
        %v3884 = vpop.f32.mrb[0].mxu0
        %v3885 = vadd.f32 0.0, %v3884
        %3886 = vmatprep.mubr.bf16.mxu0 %v3738
        %3887 = vmatmul.mubr.bf16.gmra.mrb[0].mxu0 %v3537
        %v3888 = vpop.f32.mrb[0].mxu0
        %v3889 = vadd.f32 0.0, %v3888
        %v3890 = vpop.f32.mrb[0].mxu0
        %v3891 = vadd.f32 0.0, %v3890
        %v3892 = vpop.f32.mrb[0].mxu0
        %v3893 = vadd.f32 0.0, %v3892
        %v3894 = vpop.f32.mrb[0].mxu0
        %v3895 = vadd.f32 0.0, %v3894
        %3896 = vmatprep.mubr.bf16.mxu0 %v3741
        %3897 = vmatmul.mubr.bf16.gmra.mrb[0].mxu0 %v3541
        %v3898 = vpop.f32.mrb[0].mxu0
        %v3899 = vadd.f32 0.0, %v3898
        %v3900 = vpop.f32.mrb[0].mxu0
        %v3901 = vadd.f32 0.0, %v3900
        %v3902 = vpop.f32.mrb[0].mxu0
        %v3903 = vadd.f32 0.0, %v3902
        %v3904 = vpop.f32.mrb[0].mxu0
        %v3905 = vadd.f32 0.0, %v3904
        %3906 = vmatprep.mubr.bf16.mxu0 %v3744
        %3907 = vmatmul.mubr.bf16.gmra.mrb[0].mxu0 %v3545
        %v3908 = vpop.f32.mrb[0].mxu0
        %v3909 = vadd.f32 0.0, %v3908
        %v3910 = vpop.f32.mrb[0].mxu0
        %v3911 = vadd.f32 0.0, %v3910
        %v3912 = vpop.f32.mrb[0].mxu0
        %v3913 = vadd.f32 0.0, %v3912
        %v3914 = vpop.f32.mrb[0].mxu0
        %v3915 = vadd.f32 0.0, %v3914
        %3916 = vmatprep.mubr.bf16.mxu0 %v3747
        %3917 = vmatmul.mubr.bf16.gmra.mrb[0].mxu0 %v3549
        %v3918 = vpop.f32.mrb[0].mxu0
        %v3919 = vadd.f32 0.0, %v3918
        %v3920 = vpop.f32.mrb[0].mxu0
        %v3921 = vadd.f32 0.0, %v3920
        %v3922 = vpop.f32.mrb[0].mxu0
        %v3923 = vadd.f32 0.0, %v3922
        %v3924 = vpop.f32.mrb[0].mxu0
        %v3925 = vadd.f32 0.0, %v3924
        %3926 = vmatprep.mubr.bf16.mxu0 %v3750
        %3927 = vmatmul.mubr.bf16.gmra.mrb[0].mxu0 %v3553
        %v3928 = vpop.f32.mrb[0].mxu0
        %v3929 = vadd.f32 0.0, %v3928
        %v3930 = vpop.f32.mrb[0].mxu0
        %v3931 = vadd.f32 0.0, %v3930
        %v3932 = vpop.f32.mrb[0].mxu0
        %v3933 = vadd.f32 0.0, %v3932
        %v3934 = vpop.f32.mrb[0].mxu0
        %v3935 = vadd.f32 0.0, %v3934
        %3936 = vmatprep.mubr.bf16.mxu0 %v3753
        %3937 = vmatmul.mubr.bf16.gmra.mrb[0].mxu0 %v3557
        %v3938 = vpop.f32.mrb[0].mxu0
        %v3939 = vadd.f32 0.0, %v3938
        %v3940 = vpop.f32.mrb[0].mxu0
        %v3941 = vadd.f32 0.0, %v3940
        %v3942 = vpop.f32.mrb[0].mxu0
        %v3943 = vadd.f32 0.0, %v3942
        %v3944 = vpop.f32.mrb[0].mxu0
        %v3945 = vadd.f32 0.0, %v3944
        %3946 = vmatprep.mubr.bf16.mxu0 %v3755
        %3947 = vmatmul.mubr.bf16.gmra.mrb[0].mxu0 %v3577
        %v3948 = vpop.f32.mrb[0].mxu0
        %v3949 = vadd.f32 0.0, %v3948
        %v3950 = vpop.f32.mrb[0].mxu0
        %v3951 = vadd.f32 0.0, %v3950
        %v3952 = vpop.f32.mrb[0].mxu0
        %v3953 = vadd.f32 0.0, %v3952
        %v3954 = vpop.f32.mrb[0].mxu0
        %v3955 = vadd.f32 0.0, %v3954
        %3956 = vdwg.mxu0
        %v3978 = vunpack.c.l.b16 %v3445
        %v3979 = vunpack.c.h.b16 %v3445
        %v3980 = vunpack.c.l.b16 %v3446
        %v3981 = vunpack.c.h.b16 %v3446
        %v3982 = vunpack.c.l.b16 %v3447
        %v3983 = vunpack.c.h.b16 %v3447
        %v3984 = vunpack.c.l.b16 %v3448
        %v3985 = vunpack.c.h.b16 %v3448
        %v3986 = vunpack.c.l.b16 %v3449
        %v3987 = vunpack.c.h.b16 %v3449
        %v3988 = vunpack.c.l.b16 %v3450
        %v3989 = vunpack.c.h.b16 %v3450
        %v3990 = vunpack.c.l.b16 %v3451
        %v3991 = vunpack.c.h.b16 %v3451
        %v3992 = vunpack.c.l.b16 %v3452
        %v3993 = vunpack.c.h.b16 %v3452
        %v3994 = vunpack.c.l.b16 %v3453
        %v3995 = vunpack.c.h.b16 %v3453
        %v3996 = vunpack.c.l.b16 %v3454
        %v3997 = vunpack.c.h.b16 %v3454
        %v3998 = vunpack.c.l.b16 %v3455
        %v3999 = vunpack.c.h.b16 %v3455
        %v4000 = vunpack.c.l.b16 %v3456
        %v4001 = vunpack.c.h.b16 %v3456
        %v4002 = vunpack.c.l.b16 %v3457
        %v4003 = vunpack.c.h.b16 %v3457
        %v4004 = vunpack.c.l.b16 %v3458
        %v4005 = vunpack.c.h.b16 %v3458
        %v4006 = vunpack.c.l.b16 %v3459
        %v4007 = vunpack.c.h.b16 %v3459
        %v4008 = vunpack.c.l.b16 %v3460
        %v4009 = vunpack.c.h.b16 %v3460
        %v4010 = vunpack.c.l.b16 %v3461
        %v4011 = vunpack.c.h.b16 %v3461
        %v4012 = vunpack.c.l.b16 %v3462
        %v4013 = vunpack.c.h.b16 %v3462
        %v4014 = vunpack.c.l.b16 %v3463
        %v4015 = vunpack.c.h.b16 %v3463
        %v4016 = vunpack.c.l.b16 %v3464
        %v4017 = vunpack.c.h.b16 %v3464
        %v4018 = vunpack.c.l.b16 %v3465
        %v4019 = vunpack.c.h.b16 %v3465
        %v4020 = vpack.c.b16 %v3980, %v3978
        %v4021 = vpack.c.b16 %v3981, %v3979
        %v4022 = vpack.c.b16 %v3984, %v3982
        %v4023 = vpack.c.b16 %v3985, %v3983
        %v4024 = vpack.c.b16 %v3988, %v3986
        %v4025 = vpack.c.b16 %v3989, %v3987
        %v4026 = vpack.c.b16 %v3992, %v3990
        %v4027 = vpack.c.b16 %v3993, %v3991
        %v4028 = vpack.c.b16 %v3996, %v3994
        %v4029 = vpack.c.b16 %v3997, %v3995
        %v4030 = vpack.c.b16 %v4000, %v3998
        %v4031 = vpack.c.b16 %v4001, %v3999
        %v4032 = vpack.c.b16 %v4004, %v4002
        %v4033 = vpack.c.b16 %v4005, %v4003
        %v4034 = vpack.c.b16 %v4008, %v4006
        %v4035 = vpack.c.b16 %v4009, %v4007
        %v4036 = vpack.c.b16 %v4012, %v4010
        %v4037 = vpack.c.b16 %v4013, %v4011
        %v4038 = vpack.c.b16 %v4016, %v4014
        %v4039 = vpack.c.b16 %v4017, %v4015
        %v4040 = vpack.c.b16 %v4018, %v4018
        %v4041 = vpack.c.b16 %v4019, %v4019
        %v4063 = vsel %vm3709, %v3414, 0
        %v4066 = vsel %vm3709, %v3416, 0
        %v4069 = vsel %vm3709, %v3418, 0
        %v4072 = vsel %vm3709, %v3420, 0
        %v4075 = vsel %vm3709, %v3422, 0
        %v4078 = vsel %vm3709, %v3424, 0
        %v4081 = vsel %vm3709, %v3426, 0
        %v4084 = vsel %vm3709, %v3428, 0
        %v4087 = vsel %vm3709, %v3430, 0
        %v4090 = vsel %vm3709, %v3432, 0
        %v4093 = vsel %vm3709, %v3434, 0
        %v4096 = vsel %vm3709, %v3436, 0
        %v4099 = vsel %vm3709, %v3438, 0
        %v4102 = vsel %vm3709, %v3440, 0
        %v4105 = vsel %vm3709, %v3442, 0
        %v4108 = vsel %vm3709, %v3444, 0
        %v4111 = vsel %vm3757, %v4040, 0
        %v4114 = vsel %vm3757, %v4041, 0
        %4116 = vmatprep.subr.bf16.mxu0 %v4021
        %4117 = vmatpush1.bf16.msra.mxu0 %v4020
        %4118 = vmatprep.subr.bf16.mxu0 %v4023
        %4119 = vmatpush1.bf16.msra.mxu0 %v4022
        %4120 = vmatprep.subr.bf16.mxu0 %v4025
        %4121 = vmatpush1.bf16.msra.mxu0 %v4024
        %4122 = vmatprep.subr.bf16.mxu0 %v4027
        %4123 = vmatpush1.bf16.msra.mxu0 %v4026
        %4124 = vmatprep.subr.bf16.mxu0 %v4029
        %4125 = vmatpush1.bf16.msra.mxu0 %v4028
        %4126 = vmatprep.subr.bf16.mxu0 %v4031
        %4127 = vmatpush1.bf16.msra.mxu0 %v4030
        %4128 = vmatprep.subr.bf16.mxu0 %v4033
        %4129 = vmatpush1.bf16.msra.mxu0 %v4032
        %4130 = vmatprep.subr.bf16.mxu0 %v4035
        %4131 = vmatpush1.bf16.msra.mxu0 %v4034
        %4132 = vmatprep.subr.bf16.mxu0 %v4037
        %4133 = vmatpush1.bf16.msra.mxu0 %v4036
        %4134 = vmatprep.subr.bf16.mxu0 %v4039
        %4135 = vmatpush1.bf16.msra.mxu0 %v4038
        %4136 = vmatprep.subr.bf16.mxu0 %v4114
        %4137 = vmatpush1.bf16.msra.mxu0 %v4111
        %4138 = vmatprep.subr.bf16.mxu0 0
        %4139 = vmatpush1.bf16.msra.mxu0 0
        %4140 = vmatprep.subr.bf16.mxu0 0
        %4141 = vmatpush1.bf16.msra.mxu0 0
        %4142 = vmatprep.subr.bf16.mxu0 0
        %4143 = vmatpush1.bf16.msra.mxu0 0
        %4144 = vmatprep.subr.bf16.mxu0 0
        %4145 = vmatpush1.bf16.msra.mxu0 0
        %4146 = vmatprep.subr.bf16.mxu0 0
        %4147 = vmatpush1.bf16.msra.mxu0 0
        %4148 = vmatprep.mubr.bf16.mxu0 %v4063
        %4149 = vmatmul.mubr.bf16.gmra.mrb[0].mxu0 %v3413
        %v4150 = vpop.f32.mrb[0].mxu0
        %v4151 = vadd.f32 %v3799, %v4150
        %v4152 = vpop.f32.mrb[0].mxu0
        %v4153 = vadd.f32 %v3801, %v4152
        %v4154 = vpop.f32.mrb[0].mxu0
        %v4155 = vadd.f32 %v3803, %v4154
        %v4156 = vpop.f32.mrb[0].mxu0
        %v4157 = vadd.f32 %v3805, %v4156
        %4158 = vmatprep.mubr.bf16.mxu0 %v4066
        %4159 = vmatmul.mubr.bf16.gmra.mrb[0].mxu0 %v3415
        %v4160 = vpop.f32.mrb[0].mxu0
        %v4161 = vadd.f32 %v3809, %v4160
        %v4162 = vpop.f32.mrb[0].mxu0
        %v4163 = vadd.f32 %v3811, %v4162
        %v4164 = vpop.f32.mrb[0].mxu0
        %v4165 = vadd.f32 %v3813, %v4164
        %v4166 = vpop.f32.mrb[0].mxu0
        %v4167 = vadd.f32 %v3815, %v4166
        %4168 = vmatprep.mubr.bf16.mxu0 %v4069
        %4169 = vmatmul.mubr.bf16.gmra.mrb[0].mxu0 %v3417
        %v4170 = vpop.f32.mrb[0].mxu0
        %v4171 = vadd.f32 %v3819, %v4170
        %v4172 = vpop.f32.mrb[0].mxu0
        %v4173 = vadd.f32 %v3821, %v4172
        %v4174 = vpop.f32.mrb[0].mxu0
        %v4175 = vadd.f32 %v3823, %v4174
        %v4176 = vpop.f32.mrb[0].mxu0
        %v4177 = vadd.f32 %v3825, %v4176
        %4178 = vmatprep.mubr.bf16.mxu0 %v4072
        %4179 = vmatmul.mubr.bf16.gmra.mrb[0].mxu0 %v3419
        %v4180 = vpop.f32.mrb[0].mxu0
        %v4181 = vadd.f32 %v3829, %v4180
        %v4182 = vpop.f32.mrb[0].mxu0
        %v4183 = vadd.f32 %v3831, %v4182
        %v4184 = vpop.f32.mrb[0].mxu0
        %v4185 = vadd.f32 %v3833, %v4184
        %v4186 = vpop.f32.mrb[0].mxu0
        %v4187 = vadd.f32 %v3835, %v4186
        %4188 = vmatprep.mubr.bf16.mxu0 %v4075
        %4189 = vmatmul.mubr.bf16.gmra.mrb[0].mxu0 %v3421
        %v4190 = vpop.f32.mrb[0].mxu0
        %v4191 = vadd.f32 %v3839, %v4190
        %v4192 = vpop.f32.mrb[0].mxu0
        %v4193 = vadd.f32 %v3841, %v4192
        %v4194 = vpop.f32.mrb[0].mxu0
        %v4195 = vadd.f32 %v3843, %v4194
        %v4196 = vpop.f32.mrb[0].mxu0
        %v4197 = vadd.f32 %v3845, %v4196
        %4198 = vmatprep.mubr.bf16.mxu0 %v4078
        %4199 = vmatmul.mubr.bf16.gmra.mrb[0].mxu0 %v3423
        %v4200 = vpop.f32.mrb[0].mxu0
        %v4201 = vadd.f32 %v3849, %v4200
        %v4202 = vpop.f32.mrb[0].mxu0
        %v4203 = vadd.f32 %v3851, %v4202
        %v4204 = vpop.f32.mrb[0].mxu0
        %v4205 = vadd.f32 %v3853, %v4204
        %v4206 = vpop.f32.mrb[0].mxu0
        %v4207 = vadd.f32 %v3855, %v4206
        %4208 = vmatprep.mubr.bf16.mxu0 %v4081
        %4209 = vmatmul.mubr.bf16.gmra.mrb[0].mxu0 %v3425
        %v4210 = vpop.f32.mrb[0].mxu0
        %v4211 = vadd.f32 %v3859, %v4210
        %v4212 = vpop.f32.mrb[0].mxu0
        %v4213 = vadd.f32 %v3861, %v4212
        %v4214 = vpop.f32.mrb[0].mxu0
        %v4215 = vadd.f32 %v3863, %v4214
        %v4216 = vpop.f32.mrb[0].mxu0
        %v4217 = vadd.f32 %v3865, %v4216
        %4218 = vmatprep.mubr.bf16.mxu0 %v4084
        %4219 = vmatmul.mubr.bf16.gmra.mrb[0].mxu0 %v3427
        %v4220 = vpop.f32.mrb[0].mxu0
        %v4221 = vadd.f32 %v3869, %v4220
        %v4222 = vpop.f32.mrb[0].mxu0
        %v4223 = vadd.f32 %v3871, %v4222
        %v4224 = vpop.f32.mrb[0].mxu0
        %v4225 = vadd.f32 %v3873, %v4224
        %v4226 = vpop.f32.mrb[0].mxu0
        %v4227 = vadd.f32 %v3875, %v4226
        %4228 = vmatprep.mubr.bf16.mxu0 %v4087
        %4229 = vmatmul.mubr.bf16.gmra.mrb[0].mxu0 %v3429
        %v4230 = vpop.f32.mrb[0].mxu0
        %v4231 = vadd.f32 %v3879, %v4230
        %v4232 = vpop.f32.mrb[0].mxu0
        %v4233 = vadd.f32 %v3881, %v4232
        %v4234 = vpop.f32.mrb[0].mxu0
        %v4235 = vadd.f32 %v3883, %v4234
        %v4236 = vpop.f32.mrb[0].mxu0
        %v4237 = vadd.f32 %v3885, %v4236
        %4238 = vmatprep.mubr.bf16.mxu0 %v4090
        %4239 = vmatmul.mubr.bf16.gmra.mrb[0].mxu0 %v3431
        %v4240 = vpop.f32.mrb[0].mxu0
        %v4241 = vadd.f32 %v3889, %v4240
        %v4242 = vpop.f32.mrb[0].mxu0
        %v4243 = vadd.f32 %v3891, %v4242
        %v4244 = vpop.f32.mrb[0].mxu0
        %v4245 = vadd.f32 %v3893, %v4244
        %v4246 = vpop.f32.mrb[0].mxu0
        %v4247 = vadd.f32 %v3895, %v4246
        %4248 = vmatprep.mubr.bf16.mxu0 %v4093
        %4249 = vmatmul.mubr.bf16.gmra.mrb[0].mxu0 %v3433
        %v4250 = vpop.f32.mrb[0].mxu0
        %v4251 = vadd.f32 %v3899, %v4250
        %v4252 = vpop.f32.mrb[0].mxu0
        %v4253 = vadd.f32 %v3901, %v4252
        %v4254 = vpop.f32.mrb[0].mxu0
        %v4255 = vadd.f32 %v3903, %v4254
        %v4256 = vpop.f32.mrb[0].mxu0
        %v4257 = vadd.f32 %v3905, %v4256
        %4258 = vmatprep.mubr.bf16.mxu0 %v4096
        %4259 = vmatmul.mubr.bf16.gmra.mrb[0].mxu0 %v3435
        %v4260 = vpop.f32.mrb[0].mxu0
        %v4261 = vadd.f32 %v3909, %v4260
        %v4262 = vpop.f32.mrb[0].mxu0
        %v4263 = vadd.f32 %v3911, %v4262
        %v4264 = vpop.f32.mrb[0].mxu0
        %v4265 = vadd.f32 %v3913, %v4264
        %v4266 = vpop.f32.mrb[0].mxu0
        %v4267 = vadd.f32 %v3915, %v4266
        %4268 = vmatprep.mubr.bf16.mxu0 %v4099
        %4269 = vmatmul.mubr.bf16.gmra.mrb[0].mxu0 %v3437
        %v4270 = vpop.f32.mrb[0].mxu0
        %v4271 = vadd.f32 %v3919, %v4270
        %v4272 = vpop.f32.mrb[0].mxu0
        %v4273 = vadd.f32 %v3921, %v4272
        %v4274 = vpop.f32.mrb[0].mxu0
        %v4275 = vadd.f32 %v3923, %v4274
        %v4276 = vpop.f32.mrb[0].mxu0
        %v4277 = vadd.f32 %v3925, %v4276
        %4278 = vmatprep.mubr.bf16.mxu0 %v4102
        %4279 = vmatmul.mubr.bf16.gmra.mrb[0].mxu0 %v3439
        %v4280 = vpop.f32.mrb[0].mxu0
        %v4281 = vadd.f32 %v3929, %v4280
        %v4282 = vpop.f32.mrb[0].mxu0
        %v4283 = vadd.f32 %v3931, %v4282
        %v4284 = vpop.f32.mrb[0].mxu0
        %v4285 = vadd.f32 %v3933, %v4284
        %v4286 = vpop.f32.mrb[0].mxu0
        %v4287 = vadd.f32 %v3935, %v4286
        %4288 = vmatprep.mubr.bf16.mxu0 %v4105
        %4289 = vmatmul.mubr.bf16.gmra.mrb[0].mxu0 %v3441
        %v4290 = vpop.f32.mrb[0].mxu0
        %v4291 = vadd.f32 %v3939, %v4290
        %v4292 = vpop.f32.mrb[0].mxu0
        %v4293 = vadd.f32 %v3941, %v4292
        %v4294 = vpop.f32.mrb[0].mxu0
        %v4295 = vadd.f32 %v3943, %v4294
        %v4296 = vpop.f32.mrb[0].mxu0
        %v4297 = vadd.f32 %v3945, %v4296
        %4298 = vmatprep.mubr.bf16.mxu0 %v4108
        %4299 = vmatmul.mubr.bf16.gmra.mrb[0].mxu0 %v3443
        %v4300 = vpop.f32.mrb[0].mxu0
        %v4301 = vadd.f32 %v3949, %v4300
        %v4302 = vpop.f32.mrb[0].mxu0
        %v4303 = vadd.f32 %v3951, %v4302
        %v4304 = vpop.f32.mrb[0].mxu0
        %v4305 = vadd.f32 %v3953, %v4304
        %v4306 = vpop.f32.mrb[0].mxu0
        %v4307 = vadd.f32 %v3955, %v4306
        %4308 = vdwg.mxu0
        %v4309 = vrot.slane %v3413, 2
        %v4310 = vrot.slane %v3415, 2
        %v4311 = vsel %vm2056, %v4309, %v4310
        %v4312 = vrot.slane %v3414, 2
        %v4313 = vrot.slane %v3416, 2
        %v4314 = vsel %vm2056, %v4312, %v4313
        %v4315 = vrot.slane %v3417, 2
        %v4316 = vsel %vm2056, %v4310, %v4315
        %v4317 = vrot.slane %v3418, 2
        %v4318 = vsel %vm2056, %v4313, %v4317
        %v4319 = vrot.slane %v3419, 2
        %v4320 = vsel %vm2056, %v4315, %v4319
        %v4321 = vrot.slane %v3420, 2
        %v4322 = vsel %vm2056, %v4317, %v4321
        %v4323 = vrot.slane %v3421, 2
        %v4324 = vsel %vm2056, %v4319, %v4323
        %v4325 = vrot.slane %v3422, 2
        %v4326 = vsel %vm2056, %v4321, %v4325
        %v4327 = vrot.slane %v3423, 2
        %v4328 = vsel %vm2056, %v4323, %v4327
        %v4329 = vrot.slane %v3424, 2
        %v4330 = vsel %vm2056, %v4325, %v4329
        %v4331 = vrot.slane %v3425, 2
        %v4332 = vsel %vm2056, %v4327, %v4331
        %v4333 = vrot.slane %v3426, 2
        %v4334 = vsel %vm2056, %v4329, %v4333
        %v4335 = vrot.slane %v3427, 2
        %v4336 = vsel %vm2056, %v4331, %v4335
        %v4337 = vrot.slane %v3428, 2
        %v4338 = vsel %vm2056, %v4333, %v4337
        %v4339 = vrot.slane %v3429, 2
        %v4340 = vsel %vm2056, %v4335, %v4339
        %v4341 = vrot.slane %v3430, 2
        %v4342 = vsel %vm2056, %v4337, %v4341
        %v4343 = vrot.slane %v3431, 2
        %v4344 = vsel %vm2056, %v4339, %v4343
        %v4345 = vrot.slane %v3432, 2
        %v4346 = vsel %vm2056, %v4341, %v4345
        %v4347 = vrot.slane %v3433, 2
        %v4348 = vsel %vm2056, %v4343, %v4347
        %v4349 = vrot.slane %v3434, 2
        %v4350 = vsel %vm2056, %v4345, %v4349
        %v4351 = vrot.slane %v3435, 2
        %v4352 = vsel %vm2056, %v4347, %v4351
        %v4353 = vrot.slane %v3436, 2
        %v4354 = vsel %vm2056, %v4349, %v4353
        %v4355 = vrot.slane %v3437, 2
        %v4356 = vsel %vm2056, %v4351, %v4355
        %v4357 = vrot.slane %v3438, 2
        %v4358 = vsel %vm2056, %v4353, %v4357
        %v4359 = vrot.slane %v3439, 2
        %v4360 = vsel %vm2056, %v4355, %v4359
        %v4361 = vrot.slane %v3440, 2
        %v4362 = vsel %vm2056, %v4357, %v4361
        %v4363 = vrot.slane %v3441, 2
        %v4364 = vsel %vm2056, %v4359, %v4363
        %v4365 = vrot.slane %v3442, 2
        %v4366 = vsel %vm2056, %v4361, %v4365
        %v4367 = vrot.slane %v3443, 2
        %v4368 = vsel %vm2056, %v4363, %v4367
        %v4369 = vrot.slane %v3444, 2
        %v4370 = vsel %vm2056, %v4365, %v4369
        %v4388 = vsel %vm2088, %v4367, %v4309
        %v4392 = vsel %vm2088, %v4369, %v4312
        %s4393 = scalar_lea.vmem %s3, 336
        %v4394 = vld [vmem:[%s4393] sm:$0xff]
        %v4395 = vld [vmem:[%s4393 + $0x8] sm:$0xff]
        %v4396 = vld [vmem:[%s4393 + $0x10] sm:$0xff]
        %v4397 = vld [vmem:[%s4393 + $0x18] sm:$0xff]
        %v4398 = vld [vmem:[%s4393 + $0x20] sm:$0xff]
        %v4399 = vld [vmem:[%s4393 + $0x28] sm:$0xff]
        %v4400 = vld [vmem:[%s4393 + $0x30] sm:$0xff]
        %v4401 = vld [vmem:[%s4393 + $0x38] sm:$0xff]
        %v4402 = vld [vmem:[%s4393 + $0x40] sm:$0xff]
        %v4403 = vld [vmem:[%s4393 + $0x48] sm:$0xff]
        %v4404 = vld [vmem:[%s4393 + $0x50] sm:$0xff]
        %v4405 = vld [vmem:[%s4393 + $0x58] sm:$0xff]
        %v4406 = vld [vmem:[%s4393 + $0x60] sm:$0xff]
        %v4407 = vld [vmem:[%s4393 + $0x68] sm:$0xff]
        %v4408 = vld [vmem:[%s4393 + $0x70] sm:$0xff]
        %v4409 = vld [vmem:[%s4393 + $0x78] sm:$0xff]
        %v4410 = vld [vmem:[%s4393 + $0x80] sm:$0xff]
        %v4411 = vld [vmem:[%s4393 + $0x88] sm:$0xff]
        %v4412 = vld [vmem:[%s4393 + $0x90] sm:$0xff]
        %v4413 = vld [vmem:[%s4393 + $0x98] sm:$0xff]
        %v4414 = vld [vmem:[%s4393 + $0xa0] sm:$0xff]
        %v4436 = vunpack.c.l.b16 %v4394
        %v4437 = vunpack.c.h.b16 %v4394
        %v4438 = vunpack.c.l.b16 %v4395
        %v4439 = vunpack.c.h.b16 %v4395
        %v4440 = vunpack.c.l.b16 %v4396
        %v4441 = vunpack.c.h.b16 %v4396
        %v4442 = vunpack.c.l.b16 %v4397
        %v4443 = vunpack.c.h.b16 %v4397
        %v4444 = vunpack.c.l.b16 %v4398
        %v4445 = vunpack.c.h.b16 %v4398
        %v4446 = vunpack.c.l.b16 %v4399
        %v4447 = vunpack.c.h.b16 %v4399
        %v4448 = vunpack.c.l.b16 %v4400
        %v4449 = vunpack.c.h.b16 %v4400
        %v4450 = vunpack.c.l.b16 %v4401
        %v4451 = vunpack.c.h.b16 %v4401
        %v4452 = vunpack.c.l.b16 %v4402
        %v4453 = vunpack.c.h.b16 %v4402
        %v4454 = vunpack.c.l.b16 %v4403
        %v4455 = vunpack.c.h.b16 %v4403
        %v4456 = vunpack.c.l.b16 %v4404
        %v4457 = vunpack.c.h.b16 %v4404
        %v4458 = vunpack.c.l.b16 %v4405
        %v4459 = vunpack.c.h.b16 %v4405
        %v4460 = vunpack.c.l.b16 %v4406
        %v4461 = vunpack.c.h.b16 %v4406
        %v4462 = vunpack.c.l.b16 %v4407
        %v4463 = vunpack.c.h.b16 %v4407
        %v4464 = vunpack.c.l.b16 %v4408
        %v4465 = vunpack.c.h.b16 %v4408
        %v4466 = vunpack.c.l.b16 %v4409
        %v4467 = vunpack.c.h.b16 %v4409
        %v4468 = vunpack.c.l.b16 %v4410
        %v4469 = vunpack.c.h.b16 %v4410
        %v4470 = vunpack.c.l.b16 %v4411
        %v4471 = vunpack.c.h.b16 %v4411
        %v4472 = vunpack.c.l.b16 %v4412
        %v4473 = vunpack.c.h.b16 %v4412
        %v4474 = vunpack.c.l.b16 %v4413
        %v4475 = vunpack.c.h.b16 %v4413
        %v4476 = vunpack.c.l.b16 %v4414
        %v4477 = vunpack.c.h.b16 %v4414
        %v4478 = vpack.c.b16 %v4438, %v4436
        %v4479 = vpack.c.b16 %v4439, %v4437
        %v4480 = vpack.c.b16 %v4442, %v4440
        %v4481 = vpack.c.b16 %v4443, %v4441
        %v4482 = vpack.c.b16 %v4446, %v4444
        %v4483 = vpack.c.b16 %v4447, %v4445
        %v4484 = vpack.c.b16 %v4450, %v4448
        %v4485 = vpack.c.b16 %v4451, %v4449
        %v4486 = vpack.c.b16 %v4454, %v4452
        %v4487 = vpack.c.b16 %v4455, %v4453
        %v4488 = vpack.c.b16 %v4458, %v4456
        %v4489 = vpack.c.b16 %v4459, %v4457
        %v4490 = vpack.c.b16 %v4462, %v4460
        %v4491 = vpack.c.b16 %v4463, %v4461
        %v4492 = vpack.c.b16 %v4466, %v4464
        %v4493 = vpack.c.b16 %v4467, %v4465
        %v4494 = vpack.c.b16 %v4470, %v4468
        %v4495 = vpack.c.b16 %v4471, %v4469
        %v4496 = vpack.c.b16 %v4474, %v4472
        %v4497 = vpack.c.b16 %v4475, %v4473
        %v4498 = vpack.c.b16 %v4476, %v4476
        %v4499 = vpack.c.b16 %v4477, %v4477
        %v4521 = vsel %vm3709, %v4314, 0
        %v4524 = vsel %vm3709, %v4318, 0
        %v4527 = vsel %vm3709, %v4322, 0
        %v4530 = vsel %vm3709, %v4326, 0
        %v4533 = vsel %vm3709, %v4330, 0
        %v4536 = vsel %vm3709, %v4334, 0
        %v4539 = vsel %vm3709, %v4338, 0
        %v4542 = vsel %vm3709, %v4342, 0
        %v4545 = vsel %vm3709, %v4346, 0
        %v4548 = vsel %vm3709, %v4350, 0
        %v4551 = vsel %vm3709, %v4354, 0
        %v4554 = vsel %vm3709, %v4358, 0
        %v4557 = vsel %vm3709, %v4362, 0
        %v4560 = vsel %vm3709, %v4366, 0
        %v4563 = vsel %vm3709, %v4370, 0
        %v4565 = vsel %vm3709, %v4392, 0
        %v4568 = vsel %vm3757, %v4498, 0
        %v4571 = vsel %vm3757, %v4499, 0
        %4573 = vmatprep.subr.bf16.mxu0 %v4479
        %4574 = vmatpush1.bf16.msra.mxu0 %v4478
        %4575 = vmatprep.subr.bf16.mxu0 %v4481
        %4576 = vmatpush1.bf16.msra.mxu0 %v4480
        %4577 = vmatprep.subr.bf16.mxu0 %v4483
        %4578 = vmatpush1.bf16.msra.mxu0 %v4482
        %4579 = vmatprep.subr.bf16.mxu0 %v4485
        %4580 = vmatpush1.bf16.msra.mxu0 %v4484
        %4581 = vmatprep.subr.bf16.mxu0 %v4487
        %4582 = vmatpush1.bf16.msra.mxu0 %v4486
        %4583 = vmatprep.subr.bf16.mxu0 %v4489
        %4584 = vmatpush1.bf16.msra.mxu0 %v4488
        %4585 = vmatprep.subr.bf16.mxu0 %v4491
        %4586 = vmatpush1.bf16.msra.mxu0 %v4490
        %4587 = vmatprep.subr.bf16.mxu0 %v4493
        %4588 = vmatpush1.bf16.msra.mxu0 %v4492
        %4589 = vmatprep.subr.bf16.mxu0 %v4495
        %4590 = vmatpush1.bf16.msra.mxu0 %v4494
        %4591 = vmatprep.subr.bf16.mxu0 %v4497
        %4592 = vmatpush1.bf16.msra.mxu0 %v4496
        %4593 = vmatprep.subr.bf16.mxu0 %v4571
        %4594 = vmatpush1.bf16.msra.mxu0 %v4568
        %4595 = vmatprep.subr.bf16.mxu0 0
        %4596 = vmatpush1.bf16.msra.mxu0 0
        %4597 = vmatprep.subr.bf16.mxu0 0
        %4598 = vmatpush1.bf16.msra.mxu0 0
        %4599 = vmatprep.subr.bf16.mxu0 0
        %4600 = vmatpush1.bf16.msra.mxu0 0
        %4601 = vmatprep.subr.bf16.mxu0 0
        %4602 = vmatpush1.bf16.msra.mxu0 0
        %4603 = vmatprep.subr.bf16.mxu0 0
        %4604 = vmatpush1.bf16.msra.mxu0 0
        %4605 = vmatprep.mubr.bf16.mxu0 %v4521
        %4606 = vmatmul.mubr.bf16.gmra.mrb[0].mxu0 %v4311
        %v4607 = vpop.f32.mrb[0].mxu0
        %v4608 = vadd.f32 0.0, %v4607
        %v4609 = vpop.f32.mrb[0].mxu0
        %v4610 = vadd.f32 0.0, %v4609
        %v4611 = vpop.f32.mrb[0].mxu0
        %v4612 = vadd.f32 0.0, %v4611
        %v4613 = vpop.f32.mrb[0].mxu0
        %v4614 = vadd.f32 0.0, %v4613
        %4615 = vmatprep.mubr.bf16.mxu0 %v4524
        %4616 = vmatmul.mubr.bf16.gmra.mrb[0].mxu0 %v4316
        %v4617 = vpop.f32.mrb[0].mxu0
        %v4618 = vadd.f32 0.0, %v4617
        %v4619 = vpop.f32.mrb[0].mxu0
        %v4620 = vadd.f32 0.0, %v4619
        %v4621 = vpop.f32.mrb[0].mxu0
        %v4622 = vadd.f32 0.0, %v4621
        %v4623 = vpop.f32.mrb[0].mxu0
        %v4624 = vadd.f32 0.0, %v4623
        %4625 = vmatprep.mubr.bf16.mxu0 %v4527
        %4626 = vmatmul.mubr.bf16.gmra.mrb[0].mxu0 %v4320
        %v4627 = vpop.f32.mrb[0].mxu0
        %v4628 = vadd.f32 0.0, %v4627
        %v4629 = vpop.f32.mrb[0].mxu0
        %v4630 = vadd.f32 0.0, %v4629
        %v4631 = vpop.f32.mrb[0].mxu0
        %v4632 = vadd.f32 0.0, %v4631
        %v4633 = vpop.f32.mrb[0].mxu0
        %v4634 = vadd.f32 0.0, %v4633
        %4635 = vmatprep.mubr.bf16.mxu0 %v4530
        %4636 = vmatmul.mubr.bf16.gmra.mrb[0].mxu0 %v4324
        %v4637 = vpop.f32.mrb[0].mxu0
        %v4638 = vadd.f32 0.0, %v4637
        %v4639 = vpop.f32.mrb[0].mxu0
        %v4640 = vadd.f32 0.0, %v4639
        %v4641 = vpop.f32.mrb[0].mxu0
        %v4642 = vadd.f32 0.0, %v4641
        %v4643 = vpop.f32.mrb[0].mxu0
        %v4644 = vadd.f32 0.0, %v4643
        %4645 = vmatprep.mubr.bf16.mxu0 %v4533
        %4646 = vmatmul.mubr.bf16.gmra.mrb[0].mxu0 %v4328
        %v4647 = vpop.f32.mrb[0].mxu0
        %v4648 = vadd.f32 0.0, %v4647
        %v4649 = vpop.f32.mrb[0].mxu0
        %v4650 = vadd.f32 0.0, %v4649
        %v4651 = vpop.f32.mrb[0].mxu0
        %v4652 = vadd.f32 0.0, %v4651
        %v4653 = vpop.f32.mrb[0].mxu0
        %v4654 = vadd.f32 0.0, %v4653
        %4655 = vmatprep.mubr.bf16.mxu0 %v4536
        %4656 = vmatmul.mubr.bf16.gmra.mrb[0].mxu0 %v4332
        %v4657 = vpop.f32.mrb[0].mxu0
        %v4658 = vadd.f32 0.0, %v4657
        %v4659 = vpop.f32.mrb[0].mxu0
        %v4660 = vadd.f32 0.0, %v4659
        %v4661 = vpop.f32.mrb[0].mxu0
        %v4662 = vadd.f32 0.0, %v4661
        %v4663 = vpop.f32.mrb[0].mxu0
        %v4664 = vadd.f32 0.0, %v4663
        %4665 = vmatprep.mubr.bf16.mxu0 %v4539
        %4666 = vmatmul.mubr.bf16.gmra.mrb[0].mxu0 %v4336
        %v4667 = vpop.f32.mrb[0].mxu0
        %v4668 = vadd.f32 0.0, %v4667
        %v4669 = vpop.f32.mrb[0].mxu0
        %v4670 = vadd.f32 0.0, %v4669
        %v4671 = vpop.f32.mrb[0].mxu0
        %v4672 = vadd.f32 0.0, %v4671
        %v4673 = vpop.f32.mrb[0].mxu0
        %v4674 = vadd.f32 0.0, %v4673
        %4675 = vmatprep.mubr.bf16.mxu0 %v4542
        %4676 = vmatmul.mubr.bf16.gmra.mrb[0].mxu0 %v4340
        %v4677 = vpop.f32.mrb[0].mxu0
        %v4678 = vadd.f32 0.0, %v4677
        %v4679 = vpop.f32.mrb[0].mxu0
        %v4680 = vadd.f32 0.0, %v4679
        %v4681 = vpop.f32.mrb[0].mxu0
        %v4682 = vadd.f32 0.0, %v4681
        %v4683 = vpop.f32.mrb[0].mxu0
        %v4684 = vadd.f32 0.0, %v4683
        %4685 = vmatprep.mubr.bf16.mxu0 %v4545
        %4686 = vmatmul.mubr.bf16.gmra.mrb[0].mxu0 %v4344
        %v4687 = vpop.f32.mrb[0].mxu0
        %v4688 = vadd.f32 0.0, %v4687
        %v4689 = vpop.f32.mrb[0].mxu0
        %v4690 = vadd.f32 0.0, %v4689
        %v4691 = vpop.f32.mrb[0].mxu0
        %v4692 = vadd.f32 0.0, %v4691
        %v4693 = vpop.f32.mrb[0].mxu0
        %v4694 = vadd.f32 0.0, %v4693
        %4695 = vmatprep.mubr.bf16.mxu0 %v4548
        %4696 = vmatmul.mubr.bf16.gmra.mrb[0].mxu0 %v4348
        %v4697 = vpop.f32.mrb[0].mxu0
        %v4698 = vadd.f32 0.0, %v4697
        %v4699 = vpop.f32.mrb[0].mxu0
        %v4700 = vadd.f32 0.0, %v4699
        %v4701 = vpop.f32.mrb[0].mxu0
        %v4702 = vadd.f32 0.0, %v4701
        %v4703 = vpop.f32.mrb[0].mxu0
        %v4704 = vadd.f32 0.0, %v4703
        %4705 = vmatprep.mubr.bf16.mxu0 %v4551
        %4706 = vmatmul.mubr.bf16.gmra.mrb[0].mxu0 %v4352
        %v4707 = vpop.f32.mrb[0].mxu0
        %v4708 = vadd.f32 0.0, %v4707
        %v4709 = vpop.f32.mrb[0].mxu0
        %v4710 = vadd.f32 0.0, %v4709
        %v4711 = vpop.f32.mrb[0].mxu0
        %v4712 = vadd.f32 0.0, %v4711
        %v4713 = vpop.f32.mrb[0].mxu0
        %v4714 = vadd.f32 0.0, %v4713
        %4715 = vmatprep.mubr.bf16.mxu0 %v4554
        %4716 = vmatmul.mubr.bf16.gmra.mrb[0].mxu0 %v4356
        %v4717 = vpop.f32.mrb[0].mxu0
        %v4718 = vadd.f32 0.0, %v4717
        %v4719 = vpop.f32.mrb[0].mxu0
        %v4720 = vadd.f32 0.0, %v4719
        %v4721 = vpop.f32.mrb[0].mxu0
        %v4722 = vadd.f32 0.0, %v4721
        %v4723 = vpop.f32.mrb[0].mxu0
        %v4724 = vadd.f32 0.0, %v4723
        %4725 = vmatprep.mubr.bf16.mxu0 %v4557
        %4726 = vmatmul.mubr.bf16.gmra.mrb[0].mxu0 %v4360
        %v4727 = vpop.f32.mrb[0].mxu0
        %v4728 = vadd.f32 0.0, %v4727
        %v4729 = vpop.f32.mrb[0].mxu0
        %v4730 = vadd.f32 0.0, %v4729
        %v4731 = vpop.f32.mrb[0].mxu0
        %v4732 = vadd.f32 0.0, %v4731
        %v4733 = vpop.f32.mrb[0].mxu0
        %v4734 = vadd.f32 0.0, %v4733
        %4735 = vmatprep.mubr.bf16.mxu0 %v4560
        %4736 = vmatmul.mubr.bf16.gmra.mrb[0].mxu0 %v4364
        %v4737 = vpop.f32.mrb[0].mxu0
        %v4738 = vadd.f32 0.0, %v4737
        %v4739 = vpop.f32.mrb[0].mxu0
        %v4740 = vadd.f32 0.0, %v4739
        %v4741 = vpop.f32.mrb[0].mxu0
        %v4742 = vadd.f32 0.0, %v4741
        %v4743 = vpop.f32.mrb[0].mxu0
        %v4744 = vadd.f32 0.0, %v4743
        %4745 = vmatprep.mubr.bf16.mxu0 %v4563
        %4746 = vmatmul.mubr.bf16.gmra.mrb[0].mxu0 %v4368
        %v4747 = vpop.f32.mrb[0].mxu0
        %v4748 = vadd.f32 0.0, %v4747
        %v4749 = vpop.f32.mrb[0].mxu0
        %v4750 = vadd.f32 0.0, %v4749
        %v4751 = vpop.f32.mrb[0].mxu0
        %v4752 = vadd.f32 0.0, %v4751
        %v4753 = vpop.f32.mrb[0].mxu0
        %v4754 = vadd.f32 0.0, %v4753
        %4755 = vmatprep.mubr.bf16.mxu0 %v4565
        %4756 = vmatmul.mubr.bf16.gmra.mrb[0].mxu0 %v4388
        %v4757 = vpop.f32.mrb[0].mxu0
        %v4758 = vadd.f32 0.0, %v4757
        %v4759 = vpop.f32.mrb[0].mxu0
        %v4760 = vadd.f32 0.0, %v4759
        %v4761 = vpop.f32.mrb[0].mxu0
        %v4762 = vadd.f32 0.0, %v4761
        %v4763 = vpop.f32.mrb[0].mxu0
        %v4764 = vadd.f32 0.0, %v4763
        %4765 = vdwg.mxu0
        %v4766 = vadd.f32 %v4151, %v4608
        %v4767 = vadd.f32 %v4153, %v4610
        %v4768 = vadd.f32 %v4155, %v4612
        %v4769 = vadd.f32 %v4157, %v4614
        %v4770 = vadd.f32 %v4161, %v4618
        %v4771 = vadd.f32 %v4163, %v4620
        %v4772 = vadd.f32 %v4165, %v4622
        %v4773 = vadd.f32 %v4167, %v4624
        %v4774 = vadd.f32 %v4171, %v4628
        %v4775 = vadd.f32 %v4173, %v4630
        %v4776 = vadd.f32 %v4175, %v4632
        %v4777 = vadd.f32 %v4177, %v4634
        %v4778 = vadd.f32 %v4181, %v4638
        %v4779 = vadd.f32 %v4183, %v4640
        %v4780 = vadd.f32 %v4185, %v4642
        %v4781 = vadd.f32 %v4187, %v4644
        %v4782 = vadd.f32 %v4191, %v4648
        %v4783 = vadd.f32 %v4193, %v4650
        %v4784 = vadd.f32 %v4195, %v4652
        %v4785 = vadd.f32 %v4197, %v4654
        %v4786 = vadd.f32 %v4201, %v4658
        %v4787 = vadd.f32 %v4203, %v4660
        %v4788 = vadd.f32 %v4205, %v4662
        %v4789 = vadd.f32 %v4207, %v4664
        %v4790 = vadd.f32 %v4211, %v4668
        %v4791 = vadd.f32 %v4213, %v4670
        %v4792 = vadd.f32 %v4215, %v4672
        %v4793 = vadd.f32 %v4217, %v4674
        %v4794 = vadd.f32 %v4221, %v4678
        %v4795 = vadd.f32 %v4223, %v4680
        %v4796 = vadd.f32 %v4225, %v4682
        %v4797 = vadd.f32 %v4227, %v4684
        %v4798 = vadd.f32 %v4231, %v4688
        %v4799 = vadd.f32 %v4233, %v4690
        %v4800 = vadd.f32 %v4235, %v4692
        %v4801 = vadd.f32 %v4237, %v4694
        %v4802 = vadd.f32 %v4241, %v4698
        %v4803 = vadd.f32 %v4243, %v4700
        %v4804 = vadd.f32 %v4245, %v4702
        %v4805 = vadd.f32 %v4247, %v4704
        %v4806 = vadd.f32 %v4251, %v4708
        %v4807 = vadd.f32 %v4253, %v4710
        %v4808 = vadd.f32 %v4255, %v4712
        %v4809 = vadd.f32 %v4257, %v4714
        %v4810 = vadd.f32 %v4261, %v4718
        %v4811 = vadd.f32 %v4263, %v4720
        %v4812 = vadd.f32 %v4265, %v4722
        %v4813 = vadd.f32 %v4267, %v4724
        %v4814 = vadd.f32 %v4271, %v4728
        %v4815 = vadd.f32 %v4273, %v4730
        %v4816 = vadd.f32 %v4275, %v4732
        %v4817 = vadd.f32 %v4277, %v4734
        %v4818 = vadd.f32 %v4281, %v4738
        %v4819 = vadd.f32 %v4283, %v4740
        %v4820 = vadd.f32 %v4285, %v4742
        %v4821 = vadd.f32 %v4287, %v4744
        %v4822 = vadd.f32 %v4291, %v4748
        %v4823 = vadd.f32 %v4293, %v4750
        %v4824 = vadd.f32 %v4295, %v4752
        %v4825 = vadd.f32 %v4297, %v4754
        %v4826 = vadd.f32 %v4301, %v4758
        %v4827 = vadd.f32 %v4303, %v4760
        %v4828 = vadd.f32 %v4305, %v4762
        %v4829 = vadd.f32 %v4307, %v4764
        %vm4830 = vcmask 1044480
        %v4831 = vrot.slane %v3413, 3
        %v4832 = vrot.slane %v3415, 3
        %v4833 = vsel %vm4830, %v4831, %v4832
        %v4834 = vrot.slane %v3414, 3
        %v4835 = vrot.slane %v3416, 3
        %v4836 = vsel %vm4830, %v4834, %v4835
        %v4837 = vrot.slane %v3417, 3
        %v4838 = vsel %vm4830, %v4832, %v4837
        %v4839 = vrot.slane %v3418, 3
        %v4840 = vsel %vm4830, %v4835, %v4839
        %v4841 = vrot.slane %v3419, 3
        %v4842 = vsel %vm4830, %v4837, %v4841
        %v4843 = vrot.slane %v3420, 3
        %v4844 = vsel %vm4830, %v4839, %v4843
        %v4845 = vrot.slane %v3421, 3
        %v4846 = vsel %vm4830, %v4841, %v4845
        %v4847 = vrot.slane %v3422, 3
        %v4848 = vsel %vm4830, %v4843, %v4847
        %v4849 = vrot.slane %v3423, 3
        %v4850 = vsel %vm4830, %v4845, %v4849
        %v4851 = vrot.slane %v3424, 3
        %v4852 = vsel %vm4830, %v4847, %v4851
        %v4853 = vrot.slane %v3425, 3
        %v4854 = vsel %vm4830, %v4849, %v4853
        %v4855 = vrot.slane %v3426, 3
        %v4856 = vsel %vm4830, %v4851, %v4855
        %v4857 = vrot.slane %v3427, 3
        %v4858 = vsel %vm4830, %v4853, %v4857
        %v4859 = vrot.slane %v3428, 3
        %v4860 = vsel %vm4830, %v4855, %v4859
        %v4861 = vrot.slane %v3429, 3
        %v4862 = vsel %vm4830, %v4857, %v4861
        %v4863 = vrot.slane %v3430, 3
        %v4864 = vsel %vm4830, %v4859, %v4863
        %v4865 = vrot.slane %v3431, 3
        %v4866 = vsel %vm4830, %v4861, %v4865
        %v4867 = vrot.slane %v3432, 3
        %v4868 = vsel %vm4830, %v4863, %v4867
        %v4869 = vrot.slane %v3433, 3
        %v4870 = vsel %vm4830, %v4865, %v4869
        %v4871 = vrot.slane %v3434, 3
        %v4872 = vsel %vm4830, %v4867, %v4871
        %v4873 = vrot.slane %v3435, 3
        %v4874 = vsel %vm4830, %v4869, %v4873
        %v4875 = vrot.slane %v3436, 3
        %v4876 = vsel %vm4830, %v4871, %v4875
        %v4877 = vrot.slane %v3437, 3
        %v4878 = vsel %vm4830, %v4873, %v4877
        %v4879 = vrot.slane %v3438, 3
        %v4880 = vsel %vm4830, %v4875, %v4879
        %v4881 = vrot.slane %v3439, 3
        %v4882 = vsel %vm4830, %v4877, %v4881
        %v4883 = vrot.slane %v3440, 3
        %v4884 = vsel %vm4830, %v4879, %v4883
        %v4885 = vrot.slane %v3441, 3
        %v4886 = vsel %vm4830, %v4881, %v4885
        %v4887 = vrot.slane %v3442, 3
        %v4888 = vsel %vm4830, %v4883, %v4887
        %v4889 = vrot.slane %v3443, 3
        %v4890 = vsel %vm4830, %v4885, %v4889
        %v4891 = vrot.slane %v3444, 3
        %v4892 = vsel %vm4830, %v4887, %v4891
        %vm4908 = vcmask 1044480
        %v4911 = vsel %vm4908, %v4889, %v4831
        %v4915 = vsel %vm4908, %v4891, %v4834
        %s4916 = scalar_lea.vmem %s3, 504
        %v4917 = vld [vmem:[%s4916] sm:$0xff]
        %v4918 = vld [vmem:[%s4916 + $0x8] sm:$0xff]
        %v4919 = vld [vmem:[%s4916 + $0x10] sm:$0xff]
        %v4920 = vld [vmem:[%s4916 + $0x18] sm:$0xff]
        %v4921 = vld [vmem:[%s4916 + $0x20] sm:$0xff]
        %v4922 = vld [vmem:[%s4916 + $0x28] sm:$0xff]
        %v4923 = vld [vmem:[%s4916 + $0x30] sm:$0xff]
        %v4924 = vld [vmem:[%s4916 + $0x38] sm:$0xff]
        %v4925 = vld [vmem:[%s4916 + $0x40] sm:$0xff]
        %v4926 = vld [vmem:[%s4916 + $0x48] sm:$0xff]
        %v4927 = vld [vmem:[%s4916 + $0x50] sm:$0xff]
        %v4928 = vld [vmem:[%s4916 + $0x58] sm:$0xff]
        %v4929 = vld [vmem:[%s4916 + $0x60] sm:$0xff]
        %v4930 = vld [vmem:[%s4916 + $0x68] sm:$0xff]
        %v4931 = vld [vmem:[%s4916 + $0x70] sm:$0xff]
        %v4932 = vld [vmem:[%s4916 + $0x78] sm:$0xff]
        %v4933 = vld [vmem:[%s4916 + $0x80] sm:$0xff]
        %v4934 = vld [vmem:[%s4916 + $0x88] sm:$0xff]
        %v4935 = vld [vmem:[%s4916 + $0x90] sm:$0xff]
        %v4936 = vld [vmem:[%s4916 + $0x98] sm:$0xff]
        %v4937 = vld [vmem:[%s4916 + $0xa0] sm:$0xff]
        %v4959 = vunpack.c.l.b16 %v4917
        %v4960 = vunpack.c.h.b16 %v4917
        %v4961 = vunpack.c.l.b16 %v4918
        %v4962 = vunpack.c.h.b16 %v4918
        %v4963 = vunpack.c.l.b16 %v4919
        %v4964 = vunpack.c.h.b16 %v4919
        %v4965 = vunpack.c.l.b16 %v4920
        %v4966 = vunpack.c.h.b16 %v4920
        %v4967 = vunpack.c.l.b16 %v4921
        %v4968 = vunpack.c.h.b16 %v4921
        %v4969 = vunpack.c.l.b16 %v4922
        %v4970 = vunpack.c.h.b16 %v4922
        %v4971 = vunpack.c.l.b16 %v4923
        %v4972 = vunpack.c.h.b16 %v4923
        %v4973 = vunpack.c.l.b16 %v4924
        %v4974 = vunpack.c.h.b16 %v4924
        %v4975 = vunpack.c.l.b16 %v4925
        %v4976 = vunpack.c.h.b16 %v4925
        %v4977 = vunpack.c.l.b16 %v4926
        %v4978 = vunpack.c.h.b16 %v4926
        %v4979 = vunpack.c.l.b16 %v4927
        %v4980 = vunpack.c.h.b16 %v4927
        %v4981 = vunpack.c.l.b16 %v4928
        %v4982 = vunpack.c.h.b16 %v4928
        %v4983 = vunpack.c.l.b16 %v4929
        %v4984 = vunpack.c.h.b16 %v4929
        %v4985 = vunpack.c.l.b16 %v4930
        %v4986 = vunpack.c.h.b16 %v4930
        %v4987 = vunpack.c.l.b16 %v4931
        %v4988 = vunpack.c.h.b16 %v4931
        %v4989 = vunpack.c.l.b16 %v4932
        %v4990 = vunpack.c.h.b16 %v4932
        %v4991 = vunpack.c.l.b16 %v4933
        %v4992 = vunpack.c.h.b16 %v4933
        %v4993 = vunpack.c.l.b16 %v4934
        %v4994 = vunpack.c.h.b16 %v4934
        %v4995 = vunpack.c.l.b16 %v4935
        %v4996 = vunpack.c.h.b16 %v4935
        %v4997 = vunpack.c.l.b16 %v4936
        %v4998 = vunpack.c.h.b16 %v4936
        %v4999 = vunpack.c.l.b16 %v4937
        %v5000 = vunpack.c.h.b16 %v4937
        %v5001 = vpack.c.b16 %v4961, %v4959
        %v5002 = vpack.c.b16 %v4962, %v4960
        %v5003 = vpack.c.b16 %v4965, %v4963
        %v5004 = vpack.c.b16 %v4966, %v4964
        %v5005 = vpack.c.b16 %v4969, %v4967
        %v5006 = vpack.c.b16 %v4970, %v4968
        %v5007 = vpack.c.b16 %v4973, %v4971
        %v5008 = vpack.c.b16 %v4974, %v4972
        %v5009 = vpack.c.b16 %v4977, %v4975
        %v5010 = vpack.c.b16 %v4978, %v4976
        %v5011 = vpack.c.b16 %v4981, %v4979
        %v5012 = vpack.c.b16 %v4982, %v4980
        %v5013 = vpack.c.b16 %v4985, %v4983
        %v5014 = vpack.c.b16 %v4986, %v4984
        %v5015 = vpack.c.b16 %v4989, %v4987
        %v5016 = vpack.c.b16 %v4990, %v4988
        %v5017 = vpack.c.b16 %v4993, %v4991
        %v5018 = vpack.c.b16 %v4994, %v4992
        %v5019 = vpack.c.b16 %v4997, %v4995
        %v5020 = vpack.c.b16 %v4998, %v4996
        %v5021 = vpack.c.b16 %v4999, %v4999
        %v5022 = vpack.c.b16 %v5000, %v5000
        %v5044 = vsel %vm3709, %v4836, 0
        %v5047 = vsel %vm3709, %v4840, 0
        %v5050 = vsel %vm3709, %v4844, 0
        %v5053 = vsel %vm3709, %v4848, 0
        %v5056 = vsel %vm3709, %v4852, 0
        %v5059 = vsel %vm3709, %v4856, 0
        %v5062 = vsel %vm3709, %v4860, 0
        %v5065 = vsel %vm3709, %v4864, 0
        %v5068 = vsel %vm3709, %v4868, 0
        %v5071 = vsel %vm3709, %v4872, 0
        %v5074 = vsel %vm3709, %v4876, 0
        %v5077 = vsel %vm3709, %v4880, 0
        %v5080 = vsel %vm3709, %v4884, 0
        %v5083 = vsel %vm3709, %v4888, 0
        %v5086 = vsel %vm3709, %v4892, 0
        %v5088 = vsel %vm3709, %v4915, 0
        %v5091 = vsel %vm3757, %v5021, 0
        %v5094 = vsel %vm3757, %v5022, 0
        %5096 = vmatprep.subr.bf16.mxu0 %v5002
        %5097 = vmatpush1.bf16.msra.mxu0 %v5001
        %5098 = vmatprep.subr.bf16.mxu0 %v5004
        %5099 = vmatpush1.bf16.msra.mxu0 %v5003
        %5100 = vmatprep.subr.bf16.mxu0 %v5006
        %5101 = vmatpush1.bf16.msra.mxu0 %v5005
        %5102 = vmatprep.subr.bf16.mxu0 %v5008
        %5103 = vmatpush1.bf16.msra.mxu0 %v5007
        %5104 = vmatprep.subr.bf16.mxu0 %v5010
        %5105 = vmatpush1.bf16.msra.mxu0 %v5009
        %5106 = vmatprep.subr.bf16.mxu0 %v5012
        %5107 = vmatpush1.bf16.msra.mxu0 %v5011
        %5108 = vmatprep.subr.bf16.mxu0 %v5014
        %5109 = vmatpush1.bf16.msra.mxu0 %v5013
        %5110 = vmatprep.subr.bf16.mxu0 %v5016
        %5111 = vmatpush1.bf16.msra.mxu0 %v5015
        %5112 = vmatprep.subr.bf16.mxu0 %v5018
        %5113 = vmatpush1.bf16.msra.mxu0 %v5017
        %5114 = vmatprep.subr.bf16.mxu0 %v5020
        %5115 = vmatpush1.bf16.msra.mxu0 %v5019
        %5116 = vmatprep.subr.bf16.mxu0 %v5094
        %5117 = vmatpush1.bf16.msra.mxu0 %v5091
        %5118 = vmatprep.subr.bf16.mxu0 0
        %5119 = vmatpush1.bf16.msra.mxu0 0
        %5120 = vmatprep.subr.bf16.mxu0 0
        %5121 = vmatpush1.bf16.msra.mxu0 0
        %5122 = vmatprep.subr.bf16.mxu0 0
        %5123 = vmatpush1.bf16.msra.mxu0 0
        %5124 = vmatprep.subr.bf16.mxu0 0
        %5125 = vmatpush1.bf16.msra.mxu0 0
        %5126 = vmatprep.subr.bf16.mxu0 0
        %5127 = vmatpush1.bf16.msra.mxu0 0
        %5128 = vmatprep.mubr.bf16.mxu0 %v5044
        %5129 = vmatmul.mubr.bf16.gmra.mrb[0].mxu0 %v4833
        %v5130 = vpop.f32.mrb[0].mxu0
        %v5131 = vadd.f32 0.0, %v5130
        %v5132 = vpop.f32.mrb[0].mxu0
        %v5133 = vadd.f32 0.0, %v5132
        %v5134 = vpop.f32.mrb[0].mxu0
        %v5135 = vadd.f32 0.0, %v5134
        %v5136 = vpop.f32.mrb[0].mxu0
        %v5137 = vadd.f32 0.0, %v5136
        %5138 = vmatprep.mubr.bf16.mxu0 %v5047
        %5139 = vmatmul.mubr.bf16.gmra.mrb[0].mxu0 %v4838
        %v5140 = vpop.f32.mrb[0].mxu0
        %v5141 = vadd.f32 0.0, %v5140
        %v5142 = vpop.f32.mrb[0].mxu0
        %v5143 = vadd.f32 0.0, %v5142
        %v5144 = vpop.f32.mrb[0].mxu0
        %v5145 = vadd.f32 0.0, %v5144
        %v5146 = vpop.f32.mrb[0].mxu0
        %v5147 = vadd.f32 0.0, %v5146
        %5148 = vmatprep.mubr.bf16.mxu0 %v5050
        %5149 = vmatmul.mubr.bf16.gmra.mrb[0].mxu0 %v4842
        %v5150 = vpop.f32.mrb[0].mxu0
        %v5151 = vadd.f32 0.0, %v5150
        %v5152 = vpop.f32.mrb[0].mxu0
        %v5153 = vadd.f32 0.0, %v5152
        %v5154 = vpop.f32.mrb[0].mxu0
        %v5155 = vadd.f32 0.0, %v5154
        %v5156 = vpop.f32.mrb[0].mxu0
        %v5157 = vadd.f32 0.0, %v5156
        %5158 = vmatprep.mubr.bf16.mxu0 %v5053
        %5159 = vmatmul.mubr.bf16.gmra.mrb[0].mxu0 %v4846
        %v5160 = vpop.f32.mrb[0].mxu0
        %v5161 = vadd.f32 0.0, %v5160
        %v5162 = vpop.f32.mrb[0].mxu0
        %v5163 = vadd.f32 0.0, %v5162
        %v5164 = vpop.f32.mrb[0].mxu0
        %v5165 = vadd.f32 0.0, %v5164
        %v5166 = vpop.f32.mrb[0].mxu0
        %v5167 = vadd.f32 0.0, %v5166
        %5168 = vmatprep.mubr.bf16.mxu0 %v5056
        %5169 = vmatmul.mubr.bf16.gmra.mrb[0].mxu0 %v4850
        %v5170 = vpop.f32.mrb[0].mxu0
        %v5171 = vadd.f32 0.0, %v5170
        %v5172 = vpop.f32.mrb[0].mxu0
        %v5173 = vadd.f32 0.0, %v5172
        %v5174 = vpop.f32.mrb[0].mxu0
        %v5175 = vadd.f32 0.0, %v5174
        %v5176 = vpop.f32.mrb[0].mxu0
        %v5177 = vadd.f32 0.0, %v5176
        %5178 = vmatprep.mubr.bf16.mxu0 %v5059
        %5179 = vmatmul.mubr.bf16.gmra.mrb[0].mxu0 %v4854
        %v5180 = vpop.f32.mrb[0].mxu0
        %v5181 = vadd.f32 0.0, %v5180
        %v5182 = vpop.f32.mrb[0].mxu0
        %v5183 = vadd.f32 0.0, %v5182
        %v5184 = vpop.f32.mrb[0].mxu0
        %v5185 = vadd.f32 0.0, %v5184
        %v5186 = vpop.f32.mrb[0].mxu0
        %v5187 = vadd.f32 0.0, %v5186
        %5188 = vmatprep.mubr.bf16.mxu0 %v5062
        %5189 = vmatmul.mubr.bf16.gmra.mrb[0].mxu0 %v4858
        %v5190 = vpop.f32.mrb[0].mxu0
        %v5191 = vadd.f32 0.0, %v5190
        %v5192 = vpop.f32.mrb[0].mxu0
        %v5193 = vadd.f32 0.0, %v5192
        %v5194 = vpop.f32.mrb[0].mxu0
        %v5195 = vadd.f32 0.0, %v5194
        %v5196 = vpop.f32.mrb[0].mxu0
        %v5197 = vadd.f32 0.0, %v5196
        %5198 = vmatprep.mubr.bf16.mxu0 %v5065
        %5199 = vmatmul.mubr.bf16.gmra.mrb[0].mxu0 %v4862
        %v5200 = vpop.f32.mrb[0].mxu0
        %v5201 = vadd.f32 0.0, %v5200
        %v5202 = vpop.f32.mrb[0].mxu0
        %v5203 = vadd.f32 0.0, %v5202
        %v5204 = vpop.f32.mrb[0].mxu0
        %v5205 = vadd.f32 0.0, %v5204
        %v5206 = vpop.f32.mrb[0].mxu0
        %v5207 = vadd.f32 0.0, %v5206
        %5208 = vmatprep.mubr.bf16.mxu0 %v5068
        %5209 = vmatmul.mubr.bf16.gmra.mrb[0].mxu0 %v4866
        %v5210 = vpop.f32.mrb[0].mxu0
        %v5211 = vadd.f32 0.0, %v5210
        %v5212 = vpop.f32.mrb[0].mxu0
        %v5213 = vadd.f32 0.0, %v5212
        %v5214 = vpop.f32.mrb[0].mxu0
        %v5215 = vadd.f32 0.0, %v5214
        %v5216 = vpop.f32.mrb[0].mxu0
        %v5217 = vadd.f32 0.0, %v5216
        %5218 = vmatprep.mubr.bf16.mxu0 %v5071
        %5219 = vmatmul.mubr.bf16.gmra.mrb[0].mxu0 %v4870
        %v5220 = vpop.f32.mrb[0].mxu0
        %v5221 = vadd.f32 0.0, %v5220
        %v5222 = vpop.f32.mrb[0].mxu0
        %v5223 = vadd.f32 0.0, %v5222
        %v5224 = vpop.f32.mrb[0].mxu0
        %v5225 = vadd.f32 0.0, %v5224
        %v5226 = vpop.f32.mrb[0].mxu0
        %v5227 = vadd.f32 0.0, %v5226
        %5228 = vmatprep.mubr.bf16.mxu0 %v5074
        %5229 = vmatmul.mubr.bf16.gmra.mrb[0].mxu0 %v4874
        %v5230 = vpop.f32.mrb[0].mxu0
        %v5231 = vadd.f32 0.0, %v5230
        %v5232 = vpop.f32.mrb[0].mxu0
        %v5233 = vadd.f32 0.0, %v5232
        %v5234 = vpop.f32.mrb[0].mxu0
        %v5235 = vadd.f32 0.0, %v5234
        %v5236 = vpop.f32.mrb[0].mxu0
        %v5237 = vadd.f32 0.0, %v5236
        %5238 = vmatprep.mubr.bf16.mxu0 %v5077
        %5239 = vmatmul.mubr.bf16.gmra.mrb[0].mxu0 %v4878
        %v5240 = vpop.f32.mrb[0].mxu0
        %v5241 = vadd.f32 0.0, %v5240
        %v5242 = vpop.f32.mrb[0].mxu0
        %v5243 = vadd.f32 0.0, %v5242
        %v5244 = vpop.f32.mrb[0].mxu0
        %v5245 = vadd.f32 0.0, %v5244
        %v5246 = vpop.f32.mrb[0].mxu0
        %v5247 = vadd.f32 0.0, %v5246
        %5248 = vmatprep.mubr.bf16.mxu0 %v5080
        %5249 = vmatmul.mubr.bf16.gmra.mrb[0].mxu0 %v4882
        %v5250 = vpop.f32.mrb[0].mxu0
        %v5251 = vadd.f32 0.0, %v5250
        %v5252 = vpop.f32.mrb[0].mxu0
        %v5253 = vadd.f32 0.0, %v5252
        %v5254 = vpop.f32.mrb[0].mxu0
        %v5255 = vadd.f32 0.0, %v5254
        %v5256 = vpop.f32.mrb[0].mxu0
        %v5257 = vadd.f32 0.0, %v5256
        %5258 = vmatprep.mubr.bf16.mxu0 %v5083
        %5259 = vmatmul.mubr.bf16.gmra.mrb[0].mxu0 %v4886
        %v5260 = vpop.f32.mrb[0].mxu0
        %v5261 = vadd.f32 0.0, %v5260
        %v5262 = vpop.f32.mrb[0].mxu0
        %v5263 = vadd.f32 0.0, %v5262
        %v5264 = vpop.f32.mrb[0].mxu0
        %v5265 = vadd.f32 0.0, %v5264
        %v5266 = vpop.f32.mrb[0].mxu0
        %v5267 = vadd.f32 0.0, %v5266
        %5268 = vmatprep.mubr.bf16.mxu0 %v5086
        %5269 = vmatmul.mubr.bf16.gmra.mrb[0].mxu0 %v4890
        %v5270 = vpop.f32.mrb[0].mxu0
        %v5271 = vadd.f32 0.0, %v5270
        %v5272 = vpop.f32.mrb[0].mxu0
        %v5273 = vadd.f32 0.0, %v5272
        %v5274 = vpop.f32.mrb[0].mxu0
        %v5275 = vadd.f32 0.0, %v5274
        %v5276 = vpop.f32.mrb[0].mxu0
        %v5277 = vadd.f32 0.0, %v5276
        %5278 = vmatprep.mubr.bf16.mxu0 %v5088
        %5279 = vmatmul.mubr.bf16.gmra.mrb[0].mxu0 %v4911
        %v5280 = vpop.f32.mrb[0].mxu0
        %v5281 = vadd.f32 0.0, %v5280
        %v5282 = vpop.f32.mrb[0].mxu0
        %v5283 = vadd.f32 0.0, %v5282
        %v5284 = vpop.f32.mrb[0].mxu0
        %v5285 = vadd.f32 0.0, %v5284
        %v5286 = vpop.f32.mrb[0].mxu0
        %v5287 = vadd.f32 0.0, %v5286
        %5288 = vdwg.mxu0
        %v5289 = vadd.f32 %v4766, %v5131
        %v5290 = vadd.f32 %v4767, %v5133
        %v5291 = vadd.f32 %v4768, %v5135
        %v5292 = vadd.f32 %v4769, %v5137
        %v5293 = vadd.f32 %v4770, %v5141
        %v5294 = vadd.f32 %v4771, %v5143
        %v5295 = vadd.f32 %v4772, %v5145
        %v5296 = vadd.f32 %v4773, %v5147
        %v5297 = vadd.f32 %v4774, %v5151
        %v5298 = vadd.f32 %v4775, %v5153
        %v5299 = vadd.f32 %v4776, %v5155
        %v5300 = vadd.f32 %v4777, %v5157
        %v5301 = vadd.f32 %v4778, %v5161
        %v5302 = vadd.f32 %v4779, %v5163
        %v5303 = vadd.f32 %v4780, %v5165
        %v5304 = vadd.f32 %v4781, %v5167
        %v5305 = vadd.f32 %v4782, %v5171
        %v5306 = vadd.f32 %v4783, %v5173
        %v5307 = vadd.f32 %v4784, %v5175
        %v5308 = vadd.f32 %v4785, %v5177
        %v5309 = vadd.f32 %v4786, %v5181
        %v5310 = vadd.f32 %v4787, %v5183
        %v5311 = vadd.f32 %v4788, %v5185
        %v5312 = vadd.f32 %v4789, %v5187
        %v5313 = vadd.f32 %v4790, %v5191
        %v5314 = vadd.f32 %v4791, %v5193
        %v5315 = vadd.f32 %v4792, %v5195
        %v5316 = vadd.f32 %v4793, %v5197
        %v5317 = vadd.f32 %v4794, %v5201
        %v5318 = vadd.f32 %v4795, %v5203
        %v5319 = vadd.f32 %v4796, %v5205
        %v5320 = vadd.f32 %v4797, %v5207
        %v5321 = vadd.f32 %v4798, %v5211
        %v5322 = vadd.f32 %v4799, %v5213
        %v5323 = vadd.f32 %v4800, %v5215
        %v5324 = vadd.f32 %v4801, %v5217
        %v5325 = vadd.f32 %v4802, %v5221
        %v5326 = vadd.f32 %v4803, %v5223
        %v5327 = vadd.f32 %v4804, %v5225
        %v5328 = vadd.f32 %v4805, %v5227
        %v5329 = vadd.f32 %v4806, %v5231
        %v5330 = vadd.f32 %v4807, %v5233
        %v5331 = vadd.f32 %v4808, %v5235
        %v5332 = vadd.f32 %v4809, %v5237
        %v5333 = vadd.f32 %v4810, %v5241
        %v5334 = vadd.f32 %v4811, %v5243
        %v5335 = vadd.f32 %v4812, %v5245
        %v5336 = vadd.f32 %v4813, %v5247
        %v5337 = vadd.f32 %v4814, %v5251
        %v5338 = vadd.f32 %v4815, %v5253
        %v5339 = vadd.f32 %v4816, %v5255
        %v5340 = vadd.f32 %v4817, %v5257
        %v5341 = vadd.f32 %v4818, %v5261
        %v5342 = vadd.f32 %v4819, %v5263
        %v5343 = vadd.f32 %v4820, %v5265
        %v5344 = vadd.f32 %v4821, %v5267
        %v5345 = vadd.f32 %v4822, %v5271
        %v5346 = vadd.f32 %v4823, %v5273
        %v5347 = vadd.f32 %v4824, %v5275
        %v5348 = vadd.f32 %v4825, %v5277
        %v5349 = vadd.f32 %v4826, %v5281
        %v5350 = vadd.f32 %v4827, %v5283
        %v5351 = vadd.f32 %v4828, %v5285
        %v5352 = vadd.f32 %v4829, %v5287
        %vm5353 = vcmask 1043456
        %v5354 = vrot.slane %v3413, 4
        %v5355 = vrot.slane %v3415, 4
        %v5356 = vsel %vm5353, %v5354, %v5355
        %v5357 = vrot.slane %v3414, 4
        %v5358 = vrot.slane %v3416, 4
        %v5359 = vsel %vm5353, %v5357, %v5358
        %v5360 = vrot.slane %v3417, 4
        %v5361 = vsel %vm5353, %v5355, %v5360
        %v5362 = vrot.slane %v3418, 4
        %v5363 = vsel %vm5353, %v5358, %v5362
        %v5364 = vrot.slane %v3419, 4
        %v5365 = vsel %vm5353, %v5360, %v5364
        %v5366 = vrot.slane %v3420, 4
        %v5367 = vsel %vm5353, %v5362, %v5366
        %v5368 = vrot.slane %v3421, 4
        %v5369 = vsel %vm5353, %v5364, %v5368
        %v5370 = vrot.slane %v3422, 4
        %v5371 = vsel %vm5353, %v5366, %v5370
        %v5372 = vrot.slane %v3423, 4
        %v5373 = vsel %vm5353, %v5368, %v5372
        %v5374 = vrot.slane %v3424, 4
        %v5375 = vsel %vm5353, %v5370, %v5374
        %v5376 = vrot.slane %v3425, 4
        %v5377 = vsel %vm5353, %v5372, %v5376
        %v5378 = vrot.slane %v3426, 4
        %v5379 = vsel %vm5353, %v5374, %v5378
        %v5380 = vrot.slane %v3427, 4
        %v5381 = vsel %vm5353, %v5376, %v5380
        %v5382 = vrot.slane %v3428, 4
        %v5383 = vsel %vm5353, %v5378, %v5382
        %v5384 = vrot.slane %v3429, 4
        %v5385 = vsel %vm5353, %v5380, %v5384
        %v5386 = vrot.slane %v3430, 4
        %v5387 = vsel %vm5353, %v5382, %v5386
        %v5388 = vrot.slane %v3431, 4
        %v5389 = vsel %vm5353, %v5384, %v5388
        %v5390 = vrot.slane %v3432, 4
        %v5391 = vsel %vm5353, %v5386, %v5390
        %v5392 = vrot.slane %v3433, 4
        %v5393 = vsel %vm5353, %v5388, %v5392
        %v5394 = vrot.slane %v3434, 4
        %v5395 = vsel %vm5353, %v5390, %v5394
        %v5396 = vrot.slane %v3435, 4
        %v5397 = vsel %vm5353, %v5392, %v5396
        %v5398 = vrot.slane %v3436, 4
        %v5399 = vsel %vm5353, %v5394, %v5398
        %v5400 = vrot.slane %v3437, 4
        %v5401 = vsel %vm5353, %v5396, %v5400
        %v5402 = vrot.slane %v3438, 4
        %v5403 = vsel %vm5353, %v5398, %v5402
        %v5404 = vrot.slane %v3439, 4
        %v5405 = vsel %vm5353, %v5400, %v5404
        %v5406 = vrot.slane %v3440, 4
        %v5407 = vsel %vm5353, %v5402, %v5406
        %v5408 = vrot.slane %v3441, 4
        %v5409 = vsel %vm5353, %v5404, %v5408
        %v5410 = vrot.slane %v3442, 4
        %v5411 = vsel %vm5353, %v5406, %v5410
        %v5412 = vrot.slane %v3443, 4
        %v5413 = vsel %vm5353, %v5408, %v5412
        %v5414 = vrot.slane %v3444, 4
        %v5415 = vsel %vm5353, %v5410, %v5414
        %v5433 = vsel %vm3757, %v5412, %v5354
        %v5437 = vsel %vm3757, %v5414, %v5357
        %s5438 = scalar_lea.vmem %s3, 672
        %v5439 = vld [vmem:[%s5438] sm:$0xff]
        %v5440 = vld [vmem:[%s5438 + $0x8] sm:$0xff]
        %v5441 = vld [vmem:[%s5438 + $0x10] sm:$0xff]
        %v5442 = vld [vmem:[%s5438 + $0x18] sm:$0xff]
        %v5443 = vld [vmem:[%s5438 + $0x20] sm:$0xff]
        %v5444 = vld [vmem:[%s5438 + $0x28] sm:$0xff]
        %v5445 = vld [vmem:[%s5438 + $0x30] sm:$0xff]
        %v5446 = vld [vmem:[%s5438 + $0x38] sm:$0xff]
        %v5447 = vld [vmem:[%s5438 + $0x40] sm:$0xff]
        %v5448 = vld [vmem:[%s5438 + $0x48] sm:$0xff]
        %v5449 = vld [vmem:[%s5438 + $0x50] sm:$0xff]
        %v5450 = vld [vmem:[%s5438 + $0x58] sm:$0xff]
        %v5451 = vld [vmem:[%s5438 + $0x60] sm:$0xff]
        %v5452 = vld [vmem:[%s5438 + $0x68] sm:$0xff]
        %v5453 = vld [vmem:[%s5438 + $0x70] sm:$0xff]
        %v5454 = vld [vmem:[%s5438 + $0x78] sm:$0xff]
        %v5455 = vld [vmem:[%s5438 + $0x80] sm:$0xff]
        %v5456 = vld [vmem:[%s5438 + $0x88] sm:$0xff]
        %v5457 = vld [vmem:[%s5438 + $0x90] sm:$0xff]
        %v5458 = vld [vmem:[%s5438 + $0x98] sm:$0xff]
        %v5459 = vld [vmem:[%s5438 + $0xa0] sm:$0xff]
        %v5481 = vunpack.c.l.b16 %v5439
        %v5482 = vunpack.c.h.b16 %v5439
        %v5483 = vunpack.c.l.b16 %v5440
        %v5484 = vunpack.c.h.b16 %v5440
        %v5485 = vunpack.c.l.b16 %v5441
        %v5486 = vunpack.c.h.b16 %v5441
        %v5487 = vunpack.c.l.b16 %v5442
        %v5488 = vunpack.c.h.b16 %v5442
        %v5489 = vunpack.c.l.b16 %v5443
        %v5490 = vunpack.c.h.b16 %v5443
        %v5491 = vunpack.c.l.b16 %v5444
        %v5492 = vunpack.c.h.b16 %v5444
        %v5493 = vunpack.c.l.b16 %v5445
        %v5494 = vunpack.c.h.b16 %v5445
        %v5495 = vunpack.c.l.b16 %v5446
        %v5496 = vunpack.c.h.b16 %v5446
        %v5497 = vunpack.c.l.b16 %v5447
        %v5498 = vunpack.c.h.b16 %v5447
        %v5499 = vunpack.c.l.b16 %v5448
        %v5500 = vunpack.c.h.b16 %v5448
        %v5501 = vunpack.c.l.b16 %v5449
        %v5502 = vunpack.c.h.b16 %v5449
        %v5503 = vunpack.c.l.b16 %v5450
        %v5504 = vunpack.c.h.b16 %v5450
        %v5505 = vunpack.c.l.b16 %v5451
        %v5506 = vunpack.c.h.b16 %v5451
        %v5507 = vunpack.c.l.b16 %v5452
        %v5508 = vunpack.c.h.b16 %v5452
        %v5509 = vunpack.c.l.b16 %v5453
        %v5510 = vunpack.c.h.b16 %v5453
        %v5511 = vunpack.c.l.b16 %v5454
        %v5512 = vunpack.c.h.b16 %v5454
        %v5513 = vunpack.c.l.b16 %v5455
        %v5514 = vunpack.c.h.b16 %v5455
        %v5515 = vunpack.c.l.b16 %v5456
        %v5516 = vunpack.c.h.b16 %v5456
        %v5517 = vunpack.c.l.b16 %v5457
        %v5518 = vunpack.c.h.b16 %v5457
        %v5519 = vunpack.c.l.b16 %v5458
        %v5520 = vunpack.c.h.b16 %v5458
        %v5521 = vunpack.c.l.b16 %v5459
        %v5522 = vunpack.c.h.b16 %v5459
        %v5523 = vpack.c.b16 %v5483, %v5481
        %v5524 = vpack.c.b16 %v5484, %v5482
        %v5525 = vpack.c.b16 %v5487, %v5485
        %v5526 = vpack.c.b16 %v5488, %v5486
        %v5527 = vpack.c.b16 %v5491, %v5489
        %v5528 = vpack.c.b16 %v5492, %v5490
        %v5529 = vpack.c.b16 %v5495, %v5493
        %v5530 = vpack.c.b16 %v5496, %v5494
        %v5531 = vpack.c.b16 %v5499, %v5497
        %v5532 = vpack.c.b16 %v5500, %v5498
        %v5533 = vpack.c.b16 %v5503, %v5501
        %v5534 = vpack.c.b16 %v5504, %v5502
        %v5535 = vpack.c.b16 %v5507, %v5505
        %v5536 = vpack.c.b16 %v5508, %v5506
        %v5537 = vpack.c.b16 %v5511, %v5509
        %v5538 = vpack.c.b16 %v5512, %v5510
        %v5539 = vpack.c.b16 %v5515, %v5513
        %v5540 = vpack.c.b16 %v5516, %v5514
        %v5541 = vpack.c.b16 %v5519, %v5517
        %v5542 = vpack.c.b16 %v5520, %v5518
        %v5543 = vpack.c.b16 %v5521, %v5521
        %v5544 = vpack.c.b16 %v5522, %v5522
        %v5566 = vsel %vm3709, %v5359, 0
        %v5569 = vsel %vm3709, %v5363, 0
        %v5572 = vsel %vm3709, %v5367, 0
        %v5575 = vsel %vm3709, %v5371, 0
        %v5578 = vsel %vm3709, %v5375, 0
        %v5581 = vsel %vm3709, %v5379, 0
        %v5584 = vsel %vm3709, %v5383, 0
        %v5587 = vsel %vm3709, %v5387, 0
        %v5590 = vsel %vm3709, %v5391, 0
        %v5593 = vsel %vm3709, %v5395, 0
        %v5596 = vsel %vm3709, %v5399, 0
        %v5599 = vsel %vm3709, %v5403, 0
        %v5602 = vsel %vm3709, %v5407, 0
        %v5605 = vsel %vm3709, %v5411, 0
        %v5608 = vsel %vm3709, %v5415, 0
        %v5610 = vsel %vm3709, %v5437, 0
        %v5613 = vsel %vm3757, %v5543, 0
        %v5616 = vsel %vm3757, %v5544, 0
        %5618 = vmatprep.subr.bf16.mxu0 %v5524
        %5619 = vmatpush1.bf16.msra.mxu0 %v5523
        %5620 = vmatprep.subr.bf16.mxu0 %v5526
        %5621 = vmatpush1.bf16.msra.mxu0 %v5525
        %5622 = vmatprep.subr.bf16.mxu0 %v5528
        %5623 = vmatpush1.bf16.msra.mxu0 %v5527
        %5624 = vmatprep.subr.bf16.mxu0 %v5530
        %5625 = vmatpush1.bf16.msra.mxu0 %v5529
        %5626 = vmatprep.subr.bf16.mxu0 %v5532
        %5627 = vmatpush1.bf16.msra.mxu0 %v5531
        %5628 = vmatprep.subr.bf16.mxu0 %v5534
        %5629 = vmatpush1.bf16.msra.mxu0 %v5533
        %5630 = vmatprep.subr.bf16.mxu0 %v5536
        %5631 = vmatpush1.bf16.msra.mxu0 %v5535
        %5632 = vmatprep.subr.bf16.mxu0 %v5538
        %5633 = vmatpush1.bf16.msra.mxu0 %v5537
        %5634 = vmatprep.subr.bf16.mxu0 %v5540
        %5635 = vmatpush1.bf16.msra.mxu0 %v5539
        %5636 = vmatprep.subr.bf16.mxu0 %v5542
        %5637 = vmatpush1.bf16.msra.mxu0 %v5541
        %5638 = vmatprep.subr.bf16.mxu0 %v5616
        %5639 = vmatpush1.bf16.msra.mxu0 %v5613
        %5640 = vmatprep.subr.bf16.mxu0 0
        %5641 = vmatpush1.bf16.msra.mxu0 0
        %5642 = vmatprep.subr.bf16.mxu0 0
        %5643 = vmatpush1.bf16.msra.mxu0 0
        %5644 = vmatprep.subr.bf16.mxu0 0
        %5645 = vmatpush1.bf16.msra.mxu0 0
        %5646 = vmatprep.subr.bf16.mxu0 0
        %5647 = vmatpush1.bf16.msra.mxu0 0
        %5648 = vmatprep.subr.bf16.mxu0 0
        %5649 = vmatpush1.bf16.msra.mxu0 0
        %5650 = vmatprep.mubr.bf16.mxu0 %v5566
        %5651 = vmatmul.mubr.bf16.gmra.mrb[0].mxu0 %v5356
        %v5652 = vpop.f32.mrb[0].mxu0
        %v5653 = vadd.f32 0.0, %v5652
        %v5654 = vpop.f32.mrb[0].mxu0
        %v5655 = vadd.f32 0.0, %v5654
        %v5656 = vpop.f32.mrb[0].mxu0
        %v5657 = vadd.f32 0.0, %v5656
        %v5658 = vpop.f32.mrb[0].mxu0
        %v5659 = vadd.f32 0.0, %v5658
        %5660 = vmatprep.mubr.bf16.mxu0 %v5569
        %5661 = vmatmul.mubr.bf16.gmra.mrb[0].mxu0 %v5361
        %v5662 = vpop.f32.mrb[0].mxu0
        %v5663 = vadd.f32 0.0, %v5662
        %v5664 = vpop.f32.mrb[0].mxu0
        %v5665 = vadd.f32 0.0, %v5664
        %v5666 = vpop.f32.mrb[0].mxu0
        %v5667 = vadd.f32 0.0, %v5666
        %v5668 = vpop.f32.mrb[0].mxu0
        %v5669 = vadd.f32 0.0, %v5668
        %5670 = vmatprep.mubr.bf16.mxu0 %v5572
        %5671 = vmatmul.mubr.bf16.gmra.mrb[0].mxu0 %v5365
        %v5672 = vpop.f32.mrb[0].mxu0
        %v5673 = vadd.f32 0.0, %v5672
        %v5674 = vpop.f32.mrb[0].mxu0
        %v5675 = vadd.f32 0.0, %v5674
        %v5676 = vpop.f32.mrb[0].mxu0
        %v5677 = vadd.f32 0.0, %v5676
        %v5678 = vpop.f32.mrb[0].mxu0
        %v5679 = vadd.f32 0.0, %v5678
        %5680 = vmatprep.mubr.bf16.mxu0 %v5575
        %5681 = vmatmul.mubr.bf16.gmra.mrb[0].mxu0 %v5369
        %v5682 = vpop.f32.mrb[0].mxu0
        %v5683 = vadd.f32 0.0, %v5682
        %v5684 = vpop.f32.mrb[0].mxu0
        %v5685 = vadd.f32 0.0, %v5684
        %v5686 = vpop.f32.mrb[0].mxu0
        %v5687 = vadd.f32 0.0, %v5686
        %v5688 = vpop.f32.mrb[0].mxu0
        %v5689 = vadd.f32 0.0, %v5688
        %5690 = vmatprep.mubr.bf16.mxu0 %v5578
        %5691 = vmatmul.mubr.bf16.gmra.mrb[0].mxu0 %v5373
        %v5692 = vpop.f32.mrb[0].mxu0
        %v5693 = vadd.f32 0.0, %v5692
        %v5694 = vpop.f32.mrb[0].mxu0
        %v5695 = vadd.f32 0.0, %v5694
        %v5696 = vpop.f32.mrb[0].mxu0
        %v5697 = vadd.f32 0.0, %v5696
        %v5698 = vpop.f32.mrb[0].mxu0
        %v5699 = vadd.f32 0.0, %v5698
        %5700 = vmatprep.mubr.bf16.mxu0 %v5581
        %5701 = vmatmul.mubr.bf16.gmra.mrb[0].mxu0 %v5377
        %v5702 = vpop.f32.mrb[0].mxu0
        %v5703 = vadd.f32 0.0, %v5702
        %v5704 = vpop.f32.mrb[0].mxu0
        %v5705 = vadd.f32 0.0, %v5704
        %v5706 = vpop.f32.mrb[0].mxu0
        %v5707 = vadd.f32 0.0, %v5706
        %v5708 = vpop.f32.mrb[0].mxu0
        %v5709 = vadd.f32 0.0, %v5708
        %5710 = vmatprep.mubr.bf16.mxu0 %v5584
        %5711 = vmatmul.mubr.bf16.gmra.mrb[0].mxu0 %v5381
        %v5712 = vpop.f32.mrb[0].mxu0
        %v5713 = vadd.f32 0.0, %v5712
        %v5714 = vpop.f32.mrb[0].mxu0
        %v5715 = vadd.f32 0.0, %v5714
        %v5716 = vpop.f32.mrb[0].mxu0
        %v5717 = vadd.f32 0.0, %v5716
        %v5718 = vpop.f32.mrb[0].mxu0
        %v5719 = vadd.f32 0.0, %v5718
        %5720 = vmatprep.mubr.bf16.mxu0 %v5587
        %5721 = vmatmul.mubr.bf16.gmra.mrb[0].mxu0 %v5385
        %v5722 = vpop.f32.mrb[0].mxu0
        %v5723 = vadd.f32 0.0, %v5722
        %v5724 = vpop.f32.mrb[0].mxu0
        %v5725 = vadd.f32 0.0, %v5724
        %v5726 = vpop.f32.mrb[0].mxu0
        %v5727 = vadd.f32 0.0, %v5726
        %v5728 = vpop.f32.mrb[0].mxu0
        %v5729 = vadd.f32 0.0, %v5728
        %5730 = vmatprep.mubr.bf16.mxu0 %v5590
        %5731 = vmatmul.mubr.bf16.gmra.mrb[0].mxu0 %v5389
        %v5732 = vpop.f32.mrb[0].mxu0
        %v5733 = vadd.f32 0.0, %v5732
        %v5734 = vpop.f32.mrb[0].mxu0
        %v5735 = vadd.f32 0.0, %v5734
        %v5736 = vpop.f32.mrb[0].mxu0
        %v5737 = vadd.f32 0.0, %v5736
        %v5738 = vpop.f32.mrb[0].mxu0
        %v5739 = vadd.f32 0.0, %v5738
        %5740 = vmatprep.mubr.bf16.mxu0 %v5593
        %5741 = vmatmul.mubr.bf16.gmra.mrb[0].mxu0 %v5393
        %v5742 = vpop.f32.mrb[0].mxu0
        %v5743 = vadd.f32 0.0, %v5742
        %v5744 = vpop.f32.mrb[0].mxu0
        %v5745 = vadd.f32 0.0, %v5744
        %v5746 = vpop.f32.mrb[0].mxu0
        %v5747 = vadd.f32 0.0, %v5746
        %v5748 = vpop.f32.mrb[0].mxu0
        %v5749 = vadd.f32 0.0, %v5748
        %5750 = vmatprep.mubr.bf16.mxu0 %v5596
        %5751 = vmatmul.mubr.bf16.gmra.mrb[0].mxu0 %v5397
        %v5752 = vpop.f32.mrb[0].mxu0
        %v5753 = vadd.f32 0.0, %v5752
        %v5754 = vpop.f32.mrb[0].mxu0
        %v5755 = vadd.f32 0.0, %v5754
        %v5756 = vpop.f32.mrb[0].mxu0
        %v5757 = vadd.f32 0.0, %v5756
        %v5758 = vpop.f32.mrb[0].mxu0
        %v5759 = vadd.f32 0.0, %v5758
        %5760 = vmatprep.mubr.bf16.mxu0 %v5599
        %5761 = vmatmul.mubr.bf16.gmra.mrb[0].mxu0 %v5401
        %v5762 = vpop.f32.mrb[0].mxu0
        %v5763 = vadd.f32 0.0, %v5762
        %v5764 = vpop.f32.mrb[0].mxu0
        %v5765 = vadd.f32 0.0, %v5764
        %v5766 = vpop.f32.mrb[0].mxu0
        %v5767 = vadd.f32 0.0, %v5766
        %v5768 = vpop.f32.mrb[0].mxu0
        %v5769 = vadd.f32 0.0, %v5768
        %5770 = vmatprep.mubr.bf16.mxu0 %v5602
        %5771 = vmatmul.mubr.bf16.gmra.mrb[0].mxu0 %v5405
        %v5772 = vpop.f32.mrb[0].mxu0
        %v5773 = vadd.f32 0.0, %v5772
        %v5774 = vpop.f32.mrb[0].mxu0
        %v5775 = vadd.f32 0.0, %v5774
        %v5776 = vpop.f32.mrb[0].mxu0
        %v5777 = vadd.f32 0.0, %v5776
        %v5778 = vpop.f32.mrb[0].mxu0
        %v5779 = vadd.f32 0.0, %v5778
        %5780 = vmatprep.mubr.bf16.mxu0 %v5605
        %5781 = vmatmul.mubr.bf16.gmra.mrb[0].mxu0 %v5409
        %v5782 = vpop.f32.mrb[0].mxu0
        %v5783 = vadd.f32 0.0, %v5782
        %v5784 = vpop.f32.mrb[0].mxu0
        %v5785 = vadd.f32 0.0, %v5784
        %v5786 = vpop.f32.mrb[0].mxu0
        %v5787 = vadd.f32 0.0, %v5786
        %v5788 = vpop.f32.mrb[0].mxu0
        %v5789 = vadd.f32 0.0, %v5788
        %5790 = vmatprep.mubr.bf16.mxu0 %v5608
        %5791 = vmatmul.mubr.bf16.gmra.mrb[0].mxu0 %v5413
        %v5792 = vpop.f32.mrb[0].mxu0
        %v5793 = vadd.f32 0.0, %v5792
        %v5794 = vpop.f32.mrb[0].mxu0
        %v5795 = vadd.f32 0.0, %v5794
        %v5796 = vpop.f32.mrb[0].mxu0
        %v5797 = vadd.f32 0.0, %v5796
        %v5798 = vpop.f32.mrb[0].mxu0
        %v5799 = vadd.f32 0.0, %v5798
        %5800 = vmatprep.mubr.bf16.mxu0 %v5610
        %5801 = vmatmul.mubr.bf16.gmra.mrb[0].mxu0 %v5433
        %v5802 = vpop.f32.mrb[0].mxu0
        %v5803 = vadd.f32 0.0, %v5802
        %v5804 = vpop.f32.mrb[0].mxu0
        %v5805 = vadd.f32 0.0, %v5804
        %v5806 = vpop.f32.mrb[0].mxu0
        %v5807 = vadd.f32 0.0, %v5806
        %v5808 = vpop.f32.mrb[0].mxu0
        %v5809 = vadd.f32 0.0, %v5808
        %5810 = vdwg.mxu0
        %v5811 = vadd.f32 %v5289, %v5653
        %v5812 = vadd.f32 %v5290, %v5655
        %v5813 = vadd.f32 %v5291, %v5657
        %v5814 = vadd.f32 %v5292, %v5659
        %v5815 = vadd.f32 %v5293, %v5663
        %v5816 = vadd.f32 %v5294, %v5665
        %v5817 = vadd.f32 %v5295, %v5667
        %v5818 = vadd.f32 %v5296, %v5669
        %v5819 = vadd.f32 %v5297, %v5673
        %v5820 = vadd.f32 %v5298, %v5675
        %v5821 = vadd.f32 %v5299, %v5677
        %v5822 = vadd.f32 %v5300, %v5679
        %v5823 = vadd.f32 %v5301, %v5683
        %v5824 = vadd.f32 %v5302, %v5685
        %v5825 = vadd.f32 %v5303, %v5687
        %v5826 = vadd.f32 %v5304, %v5689
        %v5827 = vadd.f32 %v5305, %v5693
        %v5828 = vadd.f32 %v5306, %v5695
        %v5829 = vadd.f32 %v5307, %v5697
        %v5830 = vadd.f32 %v5308, %v5699
        %v5831 = vadd.f32 %v5309, %v5703
        %v5832 = vadd.f32 %v5310, %v5705
        %v5833 = vadd.f32 %v5311, %v5707
        %v5834 = vadd.f32 %v5312, %v5709
        %v5835 = vadd.f32 %v5313, %v5713
        %v5836 = vadd.f32 %v5314, %v5715
        %v5837 = vadd.f32 %v5315, %v5717
        %v5838 = vadd.f32 %v5316, %v5719
        %v5839 = vadd.f32 %v5317, %v5723
        %v5840 = vadd.f32 %v5318, %v5725
        %v5841 = vadd.f32 %v5319, %v5727
        %v5842 = vadd.f32 %v5320, %v5729
        %v5843 = vadd.f32 %v5321, %v5733
        %v5844 = vadd.f32 %v5322, %v5735
        %v5845 = vadd.f32 %v5323, %v5737
        %v5846 = vadd.f32 %v5324, %v5739
        %v5847 = vadd.f32 %v5325, %v5743
        %v5848 = vadd.f32 %v5326, %v5745
        %v5849 = vadd.f32 %v5327, %v5747
        %v5850 = vadd.f32 %v5328, %v5749
        %v5851 = vadd.f32 %v5329, %v5753
        %v5852 = vadd.f32 %v5330, %v5755
        %v5853 = vadd.f32 %v5331, %v5757
        %v5854 = vadd.f32 %v5332, %v5759
        %v5855 = vadd.f32 %v5333, %v5763
        %v5856 = vadd.f32 %v5334, %v5765
        %v5857 = vadd.f32 %v5335, %v5767
        %v5858 = vadd.f32 %v5336, %v5769
        %v5859 = vadd.f32 %v5337, %v5773
        %v5860 = vadd.f32 %v5338, %v5775
        %v5861 = vadd.f32 %v5339, %v5777
        %v5862 = vadd.f32 %v5340, %v5779
        %v5863 = vadd.f32 %v5341, %v5783
        %v5864 = vadd.f32 %v5342, %v5785
        %v5865 = vadd.f32 %v5343, %v5787
        %v5866 = vadd.f32 %v5344, %v5789
        %v5867 = vadd.f32 %v5345, %v5793
        %v5868 = vadd.f32 %v5346, %v5795
        %v5869 = vadd.f32 %v5347, %v5797
        %v5870 = vadd.f32 %v5348, %v5799
        %v5871 = vadd.f32 %v5349, %v5803
        %v5872 = vadd.f32 %v5350, %v5805
        %v5873 = vadd.f32 %v5351, %v5807
        %v5874 = vadd.f32 %v5352, %v5809
        %v5875 = vld [vmem:[%s4] sm:$0x3]
        %v5877 = vlaneseq
        %v5878 = vshrl.u32 %v5877, 7
        %v5879 = vsub.s32 0, %v5878
        %v5880 = vrot.slane %v5875, %v5879
        %v5881 = vlaneseq
        %v5882 = vshrl.u32 %v5881, 7
        %v5883 = vsub.s32 1, %v5882
        %v5884 = vrot.slane %v5875, %v5883
        %v5887 = vadd.f32 %v5811, %v5880
        %v5888 = vadd.f32 %v5812, %v5884
        %v5889 = vadd.f32 %v5813, %v5880
        %v5890 = vadd.f32 %v5814, %v5884
        %v5891 = vadd.f32 %v5815, %v5880
        %v5892 = vadd.f32 %v5816, %v5884
        %v5893 = vadd.f32 %v5817, %v5880
        %v5894 = vadd.f32 %v5818, %v5884
        %v5895 = vadd.f32 %v5819, %v5880
        %v5896 = vadd.f32 %v5820, %v5884
        %v5897 = vadd.f32 %v5821, %v5880
        %v5898 = vadd.f32 %v5822, %v5884
        %v5899 = vadd.f32 %v5823, %v5880
        %v5900 = vadd.f32 %v5824, %v5884
        %v5901 = vadd.f32 %v5825, %v5880
        %v5902 = vadd.f32 %v5826, %v5884
        %v5903 = vadd.f32 %v5827, %v5880
        %v5904 = vadd.f32 %v5828, %v5884
        %v5905 = vadd.f32 %v5829, %v5880
        %v5906 = vadd.f32 %v5830, %v5884
        %v5907 = vadd.f32 %v5831, %v5880
        %v5908 = vadd.f32 %v5832, %v5884
        %v5909 = vadd.f32 %v5833, %v5880
        %v5910 = vadd.f32 %v5834, %v5884
        %v5911 = vadd.f32 %v5835, %v5880
        %v5912 = vadd.f32 %v5836, %v5884
        %v5913 = vadd.f32 %v5837, %v5880
        %v5914 = vadd.f32 %v5838, %v5884
        %v5915 = vadd.f32 %v5839, %v5880
        %v5916 = vadd.f32 %v5840, %v5884
        %v5917 = vadd.f32 %v5841, %v5880
        %v5918 = vadd.f32 %v5842, %v5884
        %v5919 = vadd.f32 %v5843, %v5880
        %v5920 = vadd.f32 %v5844, %v5884
        %v5921 = vadd.f32 %v5845, %v5880
        %v5922 = vadd.f32 %v5846, %v5884
        %v5923 = vadd.f32 %v5847, %v5880
        %v5924 = vadd.f32 %v5848, %v5884
        %v5925 = vadd.f32 %v5849, %v5880
        %v5926 = vadd.f32 %v5850, %v5884
        %v5927 = vadd.f32 %v5851, %v5880
        %v5928 = vadd.f32 %v5852, %v5884
        %v5929 = vadd.f32 %v5853, %v5880
        %v5930 = vadd.f32 %v5854, %v5884
        %v5931 = vadd.f32 %v5855, %v5880
        %v5932 = vadd.f32 %v5856, %v5884
        %v5933 = vadd.f32 %v5857, %v5880
        %v5934 = vadd.f32 %v5858, %v5884
        %v5935 = vadd.f32 %v5859, %v5880
        %v5936 = vadd.f32 %v5860, %v5884
        %v5937 = vadd.f32 %v5861, %v5880
        %v5938 = vadd.f32 %v5862, %v5884
        %v5939 = vadd.f32 %v5863, %v5880
        %v5940 = vadd.f32 %v5864, %v5884
        %v5941 = vadd.f32 %v5865, %v5880
        %v5942 = vadd.f32 %v5866, %v5884
        %v5943 = vadd.f32 %v5867, %v5880
        %v5944 = vadd.f32 %v5868, %v5884
        %v5945 = vadd.f32 %v5869, %v5880
        %v5946 = vadd.f32 %v5870, %v5884
        %v5947 = vadd.f32 %v5871, %v5880
        %v5948 = vadd.f32 %v5872, %v5884
        %v5949 = vadd.f32 %v5873, %v5880
        %v5950 = vadd.f32 %v5874, %v5884
        %v5951 = vmax.f32 %v5887, 0.0
        %v5952 = vmax.f32 %v5888, 0.0
        %v5953 = vmax.f32 %v5889, 0.0
        %v5954 = vmax.f32 %v5890, 0.0
        %v5955 = vmax.f32 %v5891, 0.0
        %v5956 = vmax.f32 %v5892, 0.0
        %v5957 = vmax.f32 %v5893, 0.0
        %v5958 = vmax.f32 %v5894, 0.0
        %v5959 = vmax.f32 %v5895, 0.0
        %v5960 = vmax.f32 %v5896, 0.0
        %v5961 = vmax.f32 %v5897, 0.0
        %v5962 = vmax.f32 %v5898, 0.0
        %v5963 = vmax.f32 %v5899, 0.0
        %v5964 = vmax.f32 %v5900, 0.0
        %v5965 = vmax.f32 %v5901, 0.0
        %v5966 = vmax.f32 %v5902, 0.0
        %v5967 = vmax.f32 %v5903, 0.0
        %v5968 = vmax.f32 %v5904, 0.0
        %v5969 = vmax.f32 %v5905, 0.0
        %v5970 = vmax.f32 %v5906, 0.0
        %v5971 = vmax.f32 %v5907, 0.0
        %v5972 = vmax.f32 %v5908, 0.0
        %v5973 = vmax.f32 %v5909, 0.0
        %v5974 = vmax.f32 %v5910, 0.0
        %v5975 = vmax.f32 %v5911, 0.0
        %v5976 = vmax.f32 %v5912, 0.0
        %v5977 = vmax.f32 %v5913, 0.0
        %v5978 = vmax.f32 %v5914, 0.0
        %v5979 = vmax.f32 %v5915, 0.0
        %v5980 = vmax.f32 %v5916, 0.0
        %v5981 = vmax.f32 %v5917, 0.0
        %v5982 = vmax.f32 %v5918, 0.0
        %v5983 = vmax.f32 %v5919, 0.0
        %v5984 = vmax.f32 %v5920, 0.0
        %v5985 = vmax.f32 %v5921, 0.0
        %v5986 = vmax.f32 %v5922, 0.0
        %v5987 = vmax.f32 %v5923, 0.0
        %v5988 = vmax.f32 %v5924, 0.0
        %v5989 = vmax.f32 %v5925, 0.0
        %v5990 = vmax.f32 %v5926, 0.0
        %v5991 = vmax.f32 %v5927, 0.0
        %v5992 = vmax.f32 %v5928, 0.0
        %v5993 = vmax.f32 %v5929, 0.0
        %v5994 = vmax.f32 %v5930, 0.0
        %v5995 = vmax.f32 %v5931, 0.0
        %v5996 = vmax.f32 %v5932, 0.0
        %v5997 = vmax.f32 %v5933, 0.0
        %v5998 = vmax.f32 %v5934, 0.0
        %v5999 = vmax.f32 %v5935, 0.0
        %v6000 = vmax.f32 %v5936, 0.0
        %v6001 = vmax.f32 %v5937, 0.0
        %v6002 = vmax.f32 %v5938, 0.0
        %v6003 = vmax.f32 %v5939, 0.0
        %v6004 = vmax.f32 %v5940, 0.0
        %v6005 = vmax.f32 %v5941, 0.0
        %v6006 = vmax.f32 %v5942, 0.0
        %v6007 = vmax.f32 %v5943, 0.0
        %v6008 = vmax.f32 %v5944, 0.0
        %v6009 = vmax.f32 %v5945, 0.0
        %v6010 = vmax.f32 %v5946, 0.0
        %v6011 = vmax.f32 %v5947, 0.0
        %v6012 = vmax.f32 %v5948, 0.0
        %v6013 = vmax.f32 %v5949, 0.0
        %v6014 = vmax.f32 %v5950, 0.0
        %v6079 = vrot.slane %v5951, 2
        %v6080 = vrot.slane %v5953, 2
        %v6081 = vsel %vm2088, %v6079, %v6080
        %v6082 = vrot.slane %v5952, 2
        %v6083 = vrot.slane %v5954, 2
        %v6084 = vsel %vm2088, %v6082, %v6083
        %v6085 = vrot.slane %v5955, 2
        %v6086 = vsel %vm2088, %v6080, %v6085
        %v6087 = vrot.slane %v5956, 2
        %v6088 = vsel %vm2088, %v6083, %v6087
        %v6089 = vrot.slane %v5957, 2
        %v6090 = vsel %vm2088, %v6085, %v6089
        %v6091 = vrot.slane %v5958, 2
        %v6092 = vsel %vm2088, %v6087, %v6091
        %v6093 = vrot.slane %v5959, 2
        %v6094 = vsel %vm2088, %v6089, %v6093
        %v6095 = vrot.slane %v5960, 2
        %v6096 = vsel %vm2088, %v6091, %v6095
        %v6097 = vrot.slane %v5961, 2
        %v6098 = vsel %vm2088, %v6093, %v6097
        %v6099 = vrot.slane %v5962, 2
        %v6100 = vsel %vm2088, %v6095, %v6099
        %v6101 = vrot.slane %v5963, 2
        %v6102 = vsel %vm2088, %v6097, %v6101
        %v6103 = vrot.slane %v5964, 2
        %v6104 = vsel %vm2088, %v6099, %v6103
        %v6105 = vrot.slane %v5965, 2
        %v6106 = vsel %vm2088, %v6101, %v6105
        %v6107 = vrot.slane %v5966, 2
        %v6108 = vsel %vm2088, %v6103, %v6107
        %v6109 = vrot.slane %v5967, 2
        %v6110 = vsel %vm2088, %v6105, %v6109
        %v6111 = vrot.slane %v5968, 2
        %v6112 = vsel %vm2088, %v6107, %v6111
        %v6113 = vrot.slane %v5969, 2
        %v6114 = vsel %vm2088, %v6109, %v6113
        %v6115 = vrot.slane %v5970, 2
        %v6116 = vsel %vm2088, %v6111, %v6115
        %v6117 = vrot.slane %v5971, 2
        %v6118 = vsel %vm2088, %v6113, %v6117
        %v6119 = vrot.slane %v5972, 2
        %v6120 = vsel %vm2088, %v6115, %v6119
        %v6121 = vrot.slane %v5973, 2
        %v6122 = vsel %vm2088, %v6117, %v6121
        %v6123 = vrot.slane %v5974, 2
        %v6124 = vsel %vm2088, %v6119, %v6123
        %v6125 = vrot.slane %v5975, 2
        %v6126 = vsel %vm2088, %v6121, %v6125
        %v6127 = vrot.slane %v5976, 2
        %v6128 = vsel %vm2088, %v6123, %v6127
        %v6129 = vrot.slane %v5977, 2
        %v6130 = vsel %vm2088, %v6125, %v6129
        %v6131 = vrot.slane %v5978, 2
        %v6132 = vsel %vm2088, %v6127, %v6131
        %v6133 = vrot.slane %v5979, 2
        %v6134 = vsel %vm2088, %v6129, %v6133
        %v6135 = vrot.slane %v5980, 2
        %v6136 = vsel %vm2088, %v6131, %v6135
        %v6137 = vrot.slane %v5981, 2
        %v6138 = vsel %vm2088, %v6133, %v6137
        %v6139 = vrot.slane %v5982, 2
        %v6140 = vsel %vm2088, %v6135, %v6139
        %v6141 = vrot.slane %v5983, 2
        %v6142 = vsel %vm2088, %v6137, %v6141
        %v6143 = vrot.slane %v5984, 2
        %v6144 = vsel %vm2088, %v6139, %v6143
        %v6145 = vrot.slane %v5985, 2
        %v6146 = vsel %vm2088, %v6141, %v6145
        %v6147 = vrot.slane %v5986, 2
        %v6148 = vsel %vm2088, %v6143, %v6147
        %v6149 = vrot.slane %v5987, 2
        %v6150 = vsel %vm2088, %v6145, %v6149
        %v6151 = vrot.slane %v5988, 2
        %v6152 = vsel %vm2088, %v6147, %v6151
        %v6153 = vrot.slane %v5989, 2
        %v6154 = vsel %vm2088, %v6149, %v6153
        %v6155 = vrot.slane %v5990, 2
        %v6156 = vsel %vm2088, %v6151, %v6155
        %v6157 = vrot.slane %v5991, 2
        %v6158 = vsel %vm2088, %v6153, %v6157
        %v6159 = vrot.slane %v5992, 2
        %v6160 = vsel %vm2088, %v6155, %v6159
        %v6161 = vrot.slane %v5993, 2
        %v6162 = vsel %vm2088, %v6157, %v6161
        %v6163 = vrot.slane %v5994, 2
        %v6164 = vsel %vm2088, %v6159, %v6163
        %v6165 = vrot.slane %v5995, 2
        %v6166 = vsel %vm2088, %v6161, %v6165
        %v6167 = vrot.slane %v5996, 2
        %v6168 = vsel %vm2088, %v6163, %v6167
        %v6169 = vrot.slane %v5997, 2
        %v6170 = vsel %vm2088, %v6165, %v6169
        %v6171 = vrot.slane %v5998, 2
        %v6172 = vsel %vm2088, %v6167, %v6171
        %v6173 = vrot.slane %v5999, 2
        %v6174 = vsel %vm2088, %v6169, %v6173
        %v6175 = vrot.slane %v6000, 2
        %v6176 = vsel %vm2088, %v6171, %v6175
        %v6177 = vrot.slane %v6001, 2
        %v6178 = vsel %vm2088, %v6173, %v6177
        %v6179 = vrot.slane %v6002, 2
        %v6180 = vsel %vm2088, %v6175, %v6179
        %v6181 = vrot.slane %v6003, 2
        %v6182 = vsel %vm2088, %v6177, %v6181
        %v6183 = vrot.slane %v6004, 2
        %v6184 = vsel %vm2088, %v6179, %v6183
        %v6185 = vrot.slane %v6005, 2
        %v6186 = vsel %vm2088, %v6181, %v6185
        %v6187 = vrot.slane %v6006, 2
        %v6188 = vsel %vm2088, %v6183, %v6187
        %v6189 = vrot.slane %v6007, 2
        %v6190 = vsel %vm2088, %v6185, %v6189
        %v6191 = vrot.slane %v6008, 2
        %v6192 = vsel %vm2088, %v6187, %v6191
        %v6193 = vrot.slane %v6009, 2
        %v6194 = vsel %vm2088, %v6189, %v6193
        %v6195 = vrot.slane %v6010, 2
        %v6196 = vsel %vm2088, %v6191, %v6195
        %v6197 = vrot.slane %v6011, 2
        %v6198 = vsel %vm2088, %v6193, %v6197
        %v6199 = vrot.slane %v6012, 2
        %v6200 = vsel %vm2088, %v6195, %v6199
        %v6201 = vrot.slane %v6013, 2
        %v6202 = vsel %vm2088, %v6197, %v6201
        %v6203 = vrot.slane %v6014, 2
        %v6204 = vsel %vm2088, %v6199, %v6203
        %v6271 = vsel %vm2088, %v6201, %v6079
        %v6272 = vsel %vm2088, %v6203, %v6082
        %v6273 = vmax.f32 %v5951, %v6081
        %v6274 = vmax.f32 %v5952, %v6084
        %v6275 = vmax.f32 %v5953, %v6086
        %v6276 = vmax.f32 %v5954, %v6088
        %v6277 = vmax.f32 %v5955, %v6090
        %v6278 = vmax.f32 %v5956, %v6092
        %v6279 = vmax.f32 %v5957, %v6094
        %v6280 = vmax.f32 %v5958, %v6096
        %v6281 = vmax.f32 %v5959, %v6098
        %v6282 = vmax.f32 %v5960, %v6100
        %v6283 = vmax.f32 %v5961, %v6102
        %v6284 = vmax.f32 %v5962, %v6104
        %v6285 = vmax.f32 %v5963, %v6106
        %v6286 = vmax.f32 %v5964, %v6108
        %v6287 = vmax.f32 %v5965, %v6110
        %v6288 = vmax.f32 %v5966, %v6112
        %v6289 = vmax.f32 %v5967, %v6114
        %v6290 = vmax.f32 %v5968, %v6116
        %v6291 = vmax.f32 %v5969, %v6118
        %v6292 = vmax.f32 %v5970, %v6120
        %v6293 = vmax.f32 %v5971, %v6122
        %v6294 = vmax.f32 %v5972, %v6124
        %v6295 = vmax.f32 %v5973, %v6126
        %v6296 = vmax.f32 %v5974, %v6128
        %v6297 = vmax.f32 %v5975, %v6130
        %v6298 = vmax.f32 %v5976, %v6132
        %v6299 = vmax.f32 %v5977, %v6134
        %v6300 = vmax.f32 %v5978, %v6136
        %v6301 = vmax.f32 %v5979, %v6138
        %v6302 = vmax.f32 %v5980, %v6140
        %v6303 = vmax.f32 %v5981, %v6142
        %v6304 = vmax.f32 %v5982, %v6144
        %v6305 = vmax.f32 %v5983, %v6146
        %v6306 = vmax.f32 %v5984, %v6148
        %v6307 = vmax.f32 %v5985, %v6150
        %v6308 = vmax.f32 %v5986, %v6152
        %v6309 = vmax.f32 %v5987, %v6154
        %v6310 = vmax.f32 %v5988, %v6156
        %v6311 = vmax.f32 %v5989, %v6158
        %v6312 = vmax.f32 %v5990, %v6160
        %v6313 = vmax.f32 %v5991, %v6162
        %v6314 = vmax.f32 %v5992, %v6164
        %v6315 = vmax.f32 %v5993, %v6166
        %v6316 = vmax.f32 %v5994, %v6168
        %v6317 = vmax.f32 %v5995, %v6170
        %v6318 = vmax.f32 %v5996, %v6172
        %v6319 = vmax.f32 %v5997, %v6174
        %v6320 = vmax.f32 %v5998, %v6176
        %v6321 = vmax.f32 %v5999, %v6178
        %v6322 = vmax.f32 %v6000, %v6180
        %v6323 = vmax.f32 %v6001, %v6182
        %v6324 = vmax.f32 %v6002, %v6184
        %v6325 = vmax.f32 %v6003, %v6186
        %v6326 = vmax.f32 %v6004, %v6188
        %v6327 = vmax.f32 %v6005, %v6190
        %v6328 = vmax.f32 %v6006, %v6192
        %v6329 = vmax.f32 %v6007, %v6194
        %v6330 = vmax.f32 %v6008, %v6196
        %v6331 = vmax.f32 %v6009, %v6198
        %v6332 = vmax.f32 %v6010, %v6200
        %v6333 = vmax.f32 %v6011, %v6202
        %v6334 = vmax.f32 %v6012, %v6204
        %v6335 = vmax.f32 %v6013, %v6271
        %v6336 = vmax.f32 %v6014, %v6272
        %6401 = vrot.lane.b32.xlu0 %v6273, 112
        %v6402 = vpop.permute.xlu0 %6401
        %6403 = vrot.lane.b32.xlu0 %v6274, 112
        %v6404 = vpop.permute.xlu0 %6403
        %6405 = vrot.lane.b32.xlu0 %v6275, 112
        %v6406 = vpop.permute.xlu0 %6405
        %6407 = vrot.lane.b32.xlu0 %v6276, 112
        %v6408 = vpop.permute.xlu0 %6407
        %6409 = vrot.lane.b32.xlu0 %v6277, 112
        %v6410 = vpop.permute.xlu0 %6409
        %6411 = vrot.lane.b32.xlu0 %v6278, 112
        %v6412 = vpop.permute.xlu0 %6411
        %6413 = vrot.lane.b32.xlu0 %v6279, 112
        %v6414 = vpop.permute.xlu0 %6413
        %6415 = vrot.lane.b32.xlu0 %v6280, 112
        %v6416 = vpop.permute.xlu0 %6415
        %6417 = vrot.lane.b32.xlu0 %v6281, 112
        %v6418 = vpop.permute.xlu0 %6417
        %6419 = vrot.lane.b32.xlu0 %v6282, 112
        %v6420 = vpop.permute.xlu0 %6419
        %6421 = vrot.lane.b32.xlu0 %v6283, 112
        %v6422 = vpop.permute.xlu0 %6421
        %6423 = vrot.lane.b32.xlu0 %v6284, 112
        %v6424 = vpop.permute.xlu0 %6423
        %6425 = vrot.lane.b32.xlu0 %v6285, 112
        %v6426 = vpop.permute.xlu0 %6425
        %6427 = vrot.lane.b32.xlu0 %v6286, 112
        %v6428 = vpop.permute.xlu0 %6427
        %6429 = vrot.lane.b32.xlu0 %v6287, 112
        %v6430 = vpop.permute.xlu0 %6429
        %6431 = vrot.lane.b32.xlu0 %v6288, 112
        %v6432 = vpop.permute.xlu0 %6431
        %6433 = vrot.lane.b32.xlu0 %v6289, 112
        %v6434 = vpop.permute.xlu0 %6433
        %6435 = vrot.lane.b32.xlu0 %v6290, 112
        %v6436 = vpop.permute.xlu0 %6435
        %6437 = vrot.lane.b32.xlu0 %v6291, 112
        %v6438 = vpop.permute.xlu0 %6437
        %6439 = vrot.lane.b32.xlu0 %v6292, 112
        %v6440 = vpop.permute.xlu0 %6439
        %6441 = vrot.lane.b32.xlu0 %v6293, 112
        %v6442 = vpop.permute.xlu0 %6441
        %6443 = vrot.lane.b32.xlu0 %v6294, 112
        %v6444 = vpop.permute.xlu0 %6443
        %6445 = vrot.lane.b32.xlu0 %v6295, 112
        %v6446 = vpop.permute.xlu0 %6445
        %6447 = vrot.lane.b32.xlu0 %v6296, 112
        %v6448 = vpop.permute.xlu0 %6447
        %6449 = vrot.lane.b32.xlu0 %v6297, 112
        %v6450 = vpop.permute.xlu0 %6449
        %6451 = vrot.lane.b32.xlu0 %v6298, 112
        %v6452 = vpop.permute.xlu0 %6451
        %6453 = vrot.lane.b32.xlu0 %v6299, 112
        %v6454 = vpop.permute.xlu0 %6453
        %6455 = vrot.lane.b32.xlu0 %v6300, 112
        %v6456 = vpop.permute.xlu0 %6455
        %6457 = vrot.lane.b32.xlu0 %v6301, 112
        %v6458 = vpop.permute.xlu0 %6457
        %6459 = vrot.lane.b32.xlu0 %v6302, 112
        %v6460 = vpop.permute.xlu0 %6459
        %6461 = vrot.lane.b32.xlu0 %v6303, 112
        %v6462 = vpop.permute.xlu0 %6461
        %6463 = vrot.lane.b32.xlu0 %v6304, 112
        %v6464 = vpop.permute.xlu0 %6463
        %6465 = vrot.lane.b32.xlu0 %v6305, 112
        %v6466 = vpop.permute.xlu0 %6465
        %6467 = vrot.lane.b32.xlu0 %v6306, 112
        %v6468 = vpop.permute.xlu0 %6467
        %6469 = vrot.lane.b32.xlu0 %v6307, 112
        %v6470 = vpop.permute.xlu0 %6469
        %6471 = vrot.lane.b32.xlu0 %v6308, 112
        %v6472 = vpop.permute.xlu0 %6471
        %6473 = vrot.lane.b32.xlu0 %v6309, 112
        %v6474 = vpop.permute.xlu0 %6473
        %6475 = vrot.lane.b32.xlu0 %v6310, 112
        %v6476 = vpop.permute.xlu0 %6475
        %6477 = vrot.lane.b32.xlu0 %v6311, 112
        %v6478 = vpop.permute.xlu0 %6477
        %6479 = vrot.lane.b32.xlu0 %v6312, 112
        %v6480 = vpop.permute.xlu0 %6479
        %6481 = vrot.lane.b32.xlu0 %v6313, 112
        %v6482 = vpop.permute.xlu0 %6481
        %6483 = vrot.lane.b32.xlu0 %v6314, 112
        %v6484 = vpop.permute.xlu0 %6483
        %6485 = vrot.lane.b32.xlu0 %v6315, 112
        %v6486 = vpop.permute.xlu0 %6485
        %6487 = vrot.lane.b32.xlu0 %v6316, 112
        %v6488 = vpop.permute.xlu0 %6487
        %6489 = vrot.lane.b32.xlu0 %v6317, 112
        %v6490 = vpop.permute.xlu0 %6489
        %6491 = vrot.lane.b32.xlu0 %v6318, 112
        %v6492 = vpop.permute.xlu0 %6491
        %6493 = vrot.lane.b32.xlu0 %v6319, 112
        %v6494 = vpop.permute.xlu0 %6493
        %6495 = vrot.lane.b32.xlu0 %v6320, 112
        %v6496 = vpop.permute.xlu0 %6495
        %6497 = vrot.lane.b32.xlu0 %v6321, 112
        %v6498 = vpop.permute.xlu0 %6497
        %6499 = vrot.lane.b32.xlu0 %v6322, 112
        %v6500 = vpop.permute.xlu0 %6499
        %6501 = vrot.lane.b32.xlu0 %v6323, 112
        %v6502 = vpop.permute.xlu0 %6501
        %6503 = vrot.lane.b32.xlu0 %v6324, 112
        %v6504 = vpop.permute.xlu0 %6503
        %6505 = vrot.lane.b32.xlu0 %v6325, 112
        %v6506 = vpop.permute.xlu0 %6505
        %6507 = vrot.lane.b32.xlu0 %v6326, 112
        %v6508 = vpop.permute.xlu0 %6507
        %6509 = vrot.lane.b32.xlu0 %v6327, 112
        %v6510 = vpop.permute.xlu0 %6509
        %6511 = vrot.lane.b32.xlu0 %v6328, 112
        %v6512 = vpop.permute.xlu0 %6511
        %6513 = vrot.lane.b32.xlu0 %v6329, 112
        %v6514 = vpop.permute.xlu0 %6513
        %6515 = vrot.lane.b32.xlu0 %v6330, 112
        %v6516 = vpop.permute.xlu0 %6515
        %6517 = vrot.lane.b32.xlu0 %v6331, 112
        %v6518 = vpop.permute.xlu0 %6517
        %6519 = vrot.lane.b32.xlu0 %v6332, 112
        %v6520 = vpop.permute.xlu0 %6519
        %6521 = vrot.lane.b32.xlu0 %v6333, 112
        %v6522 = vpop.permute.xlu0 %6521
        %6523 = vrot.lane.b32.xlu0 %v6334, 112
        %v6524 = vpop.permute.xlu0 %6523
        %6525 = vrot.lane.b32.xlu0 %v6335, 112
        %v6526 = vpop.permute.xlu0 %6525
        %6527 = vrot.lane.b32.xlu0 %v6336, 112
        %v6528 = vpop.permute.xlu0 %6527
        %vm6529 = vcmask 916480
        %v6530 = vsel %vm6529, %v6402, %v6404
        %v6531 = vsel %vm6529, %v6406, %v6408
        %v6532 = vsel %vm6529, %v6410, %v6412
        %v6533 = vsel %vm6529, %v6414, %v6416
        %v6534 = vsel %vm6529, %v6418, %v6420
        %v6535 = vsel %vm6529, %v6422, %v6424
        %v6536 = vsel %vm6529, %v6426, %v6428
        %v6537 = vsel %vm6529, %v6430, %v6432
        %v6538 = vsel %vm6529, %v6434, %v6436
        %v6539 = vsel %vm6529, %v6438, %v6440
        %v6540 = vsel %vm6529, %v6442, %v6444
        %v6541 = vsel %vm6529, %v6446, %v6448
        %v6542 = vsel %vm6529, %v6450, %v6452
        %v6543 = vsel %vm6529, %v6454, %v6456
        %v6544 = vsel %vm6529, %v6458, %v6460
        %v6545 = vsel %vm6529, %v6462, %v6464
        %v6546 = vsel %vm6529, %v6466, %v6468
        %v6547 = vsel %vm6529, %v6470, %v6472
        %v6548 = vsel %vm6529, %v6474, %v6476
        %v6549 = vsel %vm6529, %v6478, %v6480
        %v6550 = vsel %vm6529, %v6482, %v6484
        %v6551 = vsel %vm6529, %v6486, %v6488
        %v6552 = vsel %vm6529, %v6490, %v6492
        %v6553 = vsel %vm6529, %v6494, %v6496
        %v6554 = vsel %vm6529, %v6498, %v6500
        %v6555 = vsel %vm6529, %v6502, %v6504
        %v6556 = vsel %vm6529, %v6506, %v6508
        %v6557 = vsel %vm6529, %v6510, %v6512
        %v6558 = vsel %vm6529, %v6514, %v6516
        %v6559 = vsel %vm6529, %v6518, %v6520
        %v6560 = vsel %vm6529, %v6522, %v6524
        %v6561 = vsel %vm6529, %v6526, %v6528
        %6626 = vrot.lane.b32.xlu0 %v6273, 16
        %v6627 = vpop.permute.xlu0 %6626
        %6628 = vrot.lane.b32.xlu0 %v6275, 16
        %v6629 = vpop.permute.xlu0 %6628
        %6630 = vrot.lane.b32.xlu0 %v6277, 16
        %v6631 = vpop.permute.xlu0 %6630
        %6632 = vrot.lane.b32.xlu0 %v6279, 16
        %v6633 = vpop.permute.xlu0 %6632
        %6634 = vrot.lane.b32.xlu0 %v6281, 16
        %v6635 = vpop.permute.xlu0 %6634
        %6636 = vrot.lane.b32.xlu0 %v6283, 16
        %v6637 = vpop.permute.xlu0 %6636
        %6638 = vrot.lane.b32.xlu0 %v6285, 16
        %v6639 = vpop.permute.xlu0 %6638
        %6640 = vrot.lane.b32.xlu0 %v6287, 16
        %v6641 = vpop.permute.xlu0 %6640
        %6642 = vrot.lane.b32.xlu0 %v6289, 16
        %v6643 = vpop.permute.xlu0 %6642
        %6644 = vrot.lane.b32.xlu0 %v6291, 16
        %v6645 = vpop.permute.xlu0 %6644
        %6646 = vrot.lane.b32.xlu0 %v6293, 16
        %v6647 = vpop.permute.xlu0 %6646
        %6648 = vrot.lane.b32.xlu0 %v6295, 16
        %v6649 = vpop.permute.xlu0 %6648
        %6650 = vrot.lane.b32.xlu0 %v6297, 16
        %v6651 = vpop.permute.xlu0 %6650
        %6652 = vrot.lane.b32.xlu0 %v6299, 16
        %v6653 = vpop.permute.xlu0 %6652
        %6654 = vrot.lane.b32.xlu0 %v6301, 16
        %v6655 = vpop.permute.xlu0 %6654
        %6656 = vrot.lane.b32.xlu0 %v6303, 16
        %v6657 = vpop.permute.xlu0 %6656
        %6658 = vrot.lane.b32.xlu0 %v6305, 16
        %v6659 = vpop.permute.xlu0 %6658
        %6660 = vrot.lane.b32.xlu0 %v6307, 16
        %v6661 = vpop.permute.xlu0 %6660
        %6662 = vrot.lane.b32.xlu0 %v6309, 16
        %v6663 = vpop.permute.xlu0 %6662
        %6664 = vrot.lane.b32.xlu0 %v6311, 16
        %v6665 = vpop.permute.xlu0 %6664
        %6666 = vrot.lane.b32.xlu0 %v6313, 16
        %v6667 = vpop.permute.xlu0 %6666
        %6668 = vrot.lane.b32.xlu0 %v6315, 16
        %v6669 = vpop.permute.xlu0 %6668
        %6670 = vrot.lane.b32.xlu0 %v6317, 16
        %v6671 = vpop.permute.xlu0 %6670
        %6672 = vrot.lane.b32.xlu0 %v6319, 16
        %v6673 = vpop.permute.xlu0 %6672
        %6674 = vrot.lane.b32.xlu0 %v6321, 16
        %v6675 = vpop.permute.xlu0 %6674
        %6676 = vrot.lane.b32.xlu0 %v6323, 16
        %v6677 = vpop.permute.xlu0 %6676
        %6678 = vrot.lane.b32.xlu0 %v6325, 16
        %v6679 = vpop.permute.xlu0 %6678
        %6680 = vrot.lane.b32.xlu0 %v6327, 16
        %v6681 = vpop.permute.xlu0 %6680
        %6682 = vrot.lane.b32.xlu0 %v6329, 16
        %v6683 = vpop.permute.xlu0 %6682
        %6684 = vrot.lane.b32.xlu0 %v6331, 16
        %v6685 = vpop.permute.xlu0 %6684
        %6686 = vrot.lane.b32.xlu0 %v6333, 16
        %v6687 = vpop.permute.xlu0 %6686
        %6688 = vrot.lane.b32.xlu0 %v6335, 16
        %v6689 = vpop.permute.xlu0 %6688
        %vm6722 = vcmask 130048
        %v6723 = vsel %vm6722, %v6404, %v6627
        %v6724 = vsel %vm6722, %v6408, %v6629
        %v6725 = vsel %vm6722, %v6412, %v6631
        %v6726 = vsel %vm6722, %v6416, %v6633
        %v6727 = vsel %vm6722, %v6420, %v6635
        %v6728 = vsel %vm6722, %v6424, %v6637
        %v6729 = vsel %vm6722, %v6428, %v6639
        %v6730 = vsel %vm6722, %v6432, %v6641
        %v6731 = vsel %vm6722, %v6436, %v6643
        %v6732 = vsel %vm6722, %v6440, %v6645
        %v6733 = vsel %vm6722, %v6444, %v6647
        %v6734 = vsel %vm6722, %v6448, %v6649
        %v6735 = vsel %vm6722, %v6452, %v6651
        %v6736 = vsel %vm6722, %v6456, %v6653
        %v6737 = vsel %vm6722, %v6460, %v6655
        %v6738 = vsel %vm6722, %v6464, %v6657
        %v6739 = vsel %vm6722, %v6468, %v6659
        %v6740 = vsel %vm6722, %v6472, %v6661
        %v6741 = vsel %vm6722, %v6476, %v6663
        %v6742 = vsel %vm6722, %v6480, %v6665
        %v6743 = vsel %vm6722, %v6484, %v6667
        %v6744 = vsel %vm6722, %v6488, %v6669
        %v6745 = vsel %vm6722, %v6492, %v6671
        %v6746 = vsel %vm6722, %v6496, %v6673
        %v6747 = vsel %vm6722, %v6500, %v6675
        %v6748 = vsel %vm6722, %v6504, %v6677
        %v6749 = vsel %vm6722, %v6508, %v6679
        %v6750 = vsel %vm6722, %v6512, %v6681
        %v6751 = vsel %vm6722, %v6516, %v6683
        %v6752 = vsel %vm6722, %v6520, %v6685
        %v6753 = vsel %vm6722, %v6524, %v6687
        %v6754 = vsel %vm6722, %v6528, %v6689
        %v6755 = vmax.f32 %v6273, %v6530
        %v6756 = vmax.f32 %v6274, %v6723
        %v6757 = vmax.f32 %v6275, %v6531
        %v6758 = vmax.f32 %v6276, %v6724
        %v6759 = vmax.f32 %v6277, %v6532
        %v6760 = vmax.f32 %v6278, %v6725
        %v6761 = vmax.f32 %v6279, %v6533
        %v6762 = vmax.f32 %v6280, %v6726
        %v6763 = vmax.f32 %v6281, %v6534
        %v6764 = vmax.f32 %v6282, %v6727
        %v6765 = vmax.f32 %v6283, %v6535
        %v6766 = vmax.f32 %v6284, %v6728
        %v6767 = vmax.f32 %v6285, %v6536
        %v6768 = vmax.f32 %v6286, %v6729
        %v6769 = vmax.f32 %v6287, %v6537
        %v6770 = vmax.f32 %v6288, %v6730
        %v6771 = vmax.f32 %v6289, %v6538
        %v6772 = vmax.f32 %v6290, %v6731
        %v6773 = vmax.f32 %v6291, %v6539
        %v6774 = vmax.f32 %v6292, %v6732
        %v6775 = vmax.f32 %v6293, %v6540
        %v6776 = vmax.f32 %v6294, %v6733
        %v6777 = vmax.f32 %v6295, %v6541
        %v6778 = vmax.f32 %v6296, %v6734
        %v6779 = vmax.f32 %v6297, %v6542
        %v6780 = vmax.f32 %v6298, %v6735
        %v6781 = vmax.f32 %v6299, %v6543
        %v6782 = vmax.f32 %v6300, %v6736
        %v6783 = vmax.f32 %v6301, %v6544
        %v6784 = vmax.f32 %v6302, %v6737
        %v6785 = vmax.f32 %v6303, %v6545
        %v6786 = vmax.f32 %v6304, %v6738
        %v6787 = vmax.f32 %v6305, %v6546
        %v6788 = vmax.f32 %v6306, %v6739
        %v6789 = vmax.f32 %v6307, %v6547
        %v6790 = vmax.f32 %v6308, %v6740
        %v6791 = vmax.f32 %v6309, %v6548
        %v6792 = vmax.f32 %v6310, %v6741
        %v6793 = vmax.f32 %v6311, %v6549
        %v6794 = vmax.f32 %v6312, %v6742
        %v6795 = vmax.f32 %v6313, %v6550
        %v6796 = vmax.f32 %v6314, %v6743
        %v6797 = vmax.f32 %v6315, %v6551
        %v6798 = vmax.f32 %v6316, %v6744
        %v6799 = vmax.f32 %v6317, %v6552
        %v6800 = vmax.f32 %v6318, %v6745
        %v6801 = vmax.f32 %v6319, %v6553
        %v6802 = vmax.f32 %v6320, %v6746
        %v6803 = vmax.f32 %v6321, %v6554
        %v6804 = vmax.f32 %v6322, %v6747
        %v6805 = vmax.f32 %v6323, %v6555
        %v6806 = vmax.f32 %v6324, %v6748
        %v6807 = vmax.f32 %v6325, %v6556
        %v6808 = vmax.f32 %v6326, %v6749
        %v6809 = vmax.f32 %v6327, %v6557
        %v6810 = vmax.f32 %v6328, %v6750
        %v6811 = vmax.f32 %v6329, %v6558
        %v6812 = vmax.f32 %v6330, %v6751
        %v6813 = vmax.f32 %v6331, %v6559
        %v6814 = vmax.f32 %v6332, %v6752
        %v6815 = vmax.f32 %v6333, %v6560
        %v6816 = vmax.f32 %v6334, %v6753
        %v6817 = vmax.f32 %v6335, %v6561
        %v6818 = vmax.f32 %v6336, %v6754
        %v6819 = vpack.c.bf16 %v6757, %v6755
        %v6820 = vpack.c.bf16 %v6758, %v6756
        %v6821 = vpack.c.bf16 %v6761, %v6759
        %v6822 = vpack.c.bf16 %v6762, %v6760
        %v6823 = vpack.c.bf16 %v6765, %v6763
        %v6824 = vpack.c.bf16 %v6766, %v6764
        %v6825 = vpack.c.bf16 %v6769, %v6767
        %v6826 = vpack.c.bf16 %v6770, %v6768
        %v6827 = vpack.c.bf16 %v6773, %v6771
        %v6828 = vpack.c.bf16 %v6774, %v6772
        %v6829 = vpack.c.bf16 %v6777, %v6775
        %v6830 = vpack.c.bf16 %v6778, %v6776
        %v6831 = vpack.c.bf16 %v6781, %v6779
        %v6832 = vpack.c.bf16 %v6782, %v6780
        %v6833 = vpack.c.bf16 %v6785, %v6783
        %v6834 = vpack.c.bf16 %v6786, %v6784
        %v6835 = vpack.c.bf16 %v6789, %v6787
        %v6836 = vpack.c.bf16 %v6790, %v6788
        %v6837 = vpack.c.bf16 %v6793, %v6791
        %v6838 = vpack.c.bf16 %v6794, %v6792
        %v6839 = vpack.c.bf16 %v6797, %v6795
        %v6840 = vpack.c.bf16 %v6798, %v6796
        %v6841 = vpack.c.bf16 %v6801, %v6799
        %v6842 = vpack.c.bf16 %v6802, %v6800
        %v6843 = vpack.c.bf16 %v6805, %v6803
        %v6844 = vpack.c.bf16 %v6806, %v6804
        %v6845 = vpack.c.bf16 %v6809, %v6807
        %v6846 = vpack.c.bf16 %v6810, %v6808
        %v6847 = vpack.c.bf16 %v6813, %v6811
        %v6848 = vpack.c.bf16 %v6814, %v6812
        %v6849 = vpack.c.bf16 %v6817, %v6815
        %v6850 = vpack.c.bf16 %v6818, %v6816
        %v6851 = vld [vmem:[%s5] sm:$0xf]
        %v6852 = vld [vmem:[%s5 + $0x4] sm:$0xf]
        %v6853 = vld [vmem:[%s5 + $0x8] sm:$0xf]
        %v6854 = vld [vmem:[%s5 + $0xc] sm:$0xf]
        %v6855 = vld [vmem:[%s5 + $0x10] sm:$0xf]
        %v6856 = vld [vmem:[%s5 + $0x14] sm:$0xf]
        %v6857 = vld [vmem:[%s5 + $0x18] sm:$0xf]
        %v6858 = vld [vmem:[%s5 + $0x1c] sm:$0xf]
        %v6859 = vld [vmem:[%s5 + $0x20] sm:$0xf]
        %v6860 = vld [vmem:[%s5 + $0x24] sm:$0xf]
        %v6861 = vld [vmem:[%s5 + $0x28] sm:$0xf]
        %v6862 = vld [vmem:[%s5 + $0x2c] sm:$0xf]
        %v6863 = vld [vmem:[%s5 + $0x30] sm:$0xf]
        %v6864 = vld [vmem:[%s5 + $0x34] sm:$0xf]
        %v6865 = vld [vmem:[%s5 + $0x38] sm:$0xf]
        %v6866 = vld [vmem:[%s5 + $0x3c] sm:$0xf]
        %v6867 = vld [vmem:[%s5 + $0x40] sm:$0xf]
        %v6868 = vld [vmem:[%s5 + $0x44] sm:$0xf]
        %v6869 = vld [vmem:[%s5 + $0x48] sm:$0xf]
        %v6870 = vld [vmem:[%s5 + $0x4c] sm:$0xf]
        %v6903 = vrot.slane %v6819, 2
        %v6904 = vrot.slane %v6821, 2
        %v6905 = vsel %vm2056, %v6903, %v6904
        %v6906 = vrot.slane %v6820, 2
        %v6907 = vrot.slane %v6822, 2
        %v6908 = vsel %vm2056, %v6906, %v6907
        %v6909 = vrot.slane %v6823, 2
        %v6910 = vsel %vm2056, %v6904, %v6909
        %v6911 = vrot.slane %v6824, 2
        %v6912 = vsel %vm2056, %v6907, %v6911
        %v6913 = vrot.slane %v6825, 2
        %v6914 = vsel %vm2056, %v6909, %v6913
        %v6915 = vrot.slane %v6826, 2
        %v6916 = vsel %vm2056, %v6911, %v6915
        %v6917 = vrot.slane %v6827, 2
        %v6918 = vsel %vm2056, %v6913, %v6917
        %v6919 = vrot.slane %v6828, 2
        %v6920 = vsel %vm2056, %v6915, %v6919
        %v6921 = vrot.slane %v6829, 2
        %v6922 = vsel %vm2056, %v6917, %v6921
        %v6923 = vrot.slane %v6830, 2
        %v6924 = vsel %vm2056, %v6919, %v6923
        %v6925 = vrot.slane %v6831, 2
        %v6926 = vsel %vm2056, %v6921, %v6925
        %v6927 = vrot.slane %v6832, 2
        %v6928 = vsel %vm2056, %v6923, %v6927
        %v6929 = vrot.slane %v6833, 2
        %v6930 = vsel %vm2056, %v6925, %v6929
        %v6931 = vrot.slane %v6834, 2
        %v6932 = vsel %vm2056, %v6927, %v6931
        %v6933 = vrot.slane %v6835, 2
        %v6934 = vsel %vm2056, %v6929, %v6933
        %v6935 = vrot.slane %v6836, 2
        %v6936 = vsel %vm2056, %v6931, %v6935
        %v6937 = vrot.slane %v6837, 2
        %v6938 = vsel %vm2056, %v6933, %v6937
        %v6939 = vrot.slane %v6838, 2
        %v6940 = vsel %vm2056, %v6935, %v6939
        %v6941 = vrot.slane %v6839, 2
        %v6942 = vsel %vm2056, %v6937, %v6941
        %v6943 = vrot.slane %v6840, 2
        %v6944 = vsel %vm2056, %v6939, %v6943
        %v6945 = vrot.slane %v6841, 2
        %v6946 = vsel %vm2056, %v6941, %v6945
        %v6947 = vrot.slane %v6842, 2
        %v6948 = vsel %vm2056, %v6943, %v6947
        %v6949 = vrot.slane %v6843, 2
        %v6950 = vsel %vm2056, %v6945, %v6949
        %v6951 = vrot.slane %v6844, 2
        %v6952 = vsel %vm2056, %v6947, %v6951
        %v6953 = vrot.slane %v6845, 2
        %v6954 = vsel %vm2056, %v6949, %v6953
        %v6955 = vrot.slane %v6846, 2
        %v6956 = vsel %vm2056, %v6951, %v6955
        %v6957 = vrot.slane %v6847, 2
        %v6958 = vsel %vm2056, %v6953, %v6957
        %v6959 = vrot.slane %v6848, 2
        %v6960 = vsel %vm2056, %v6955, %v6959
        %v6961 = vrot.slane %v6849, 2
        %v6962 = vsel %vm2056, %v6957, %v6961
        %v6963 = vrot.slane %v6850, 2
        %v6964 = vsel %vm2056, %v6959, %v6963
        %v6982 = vsel %vm2088, %v6961, %v6903
        %v6986 = vsel %vm2088, %v6963, %v6906
        %s6987 = scalar_lea.vmem %s5, 80
        %v6988 = vld [vmem:[%s6987] sm:$0xf]
        %v6989 = vld [vmem:[%s6987 + $0x4] sm:$0xf]
        %v6990 = vld [vmem:[%s6987 + $0x8] sm:$0xf]
        %v6991 = vld [vmem:[%s6987 + $0xc] sm:$0xf]
        %v6992 = vld [vmem:[%s6987 + $0x10] sm:$0xf]
        %v6993 = vld [vmem:[%s6987 + $0x14] sm:$0xf]
        %v6994 = vld [vmem:[%s6987 + $0x18] sm:$0xf]
        %v6995 = vld [vmem:[%s6987 + $0x1c] sm:$0xf]
        %v6996 = vld [vmem:[%s6987 + $0x20] sm:$0xf]
        %v6997 = vld [vmem:[%s6987 + $0x24] sm:$0xf]
        %v6998 = vld [vmem:[%s6987 + $0x28] sm:$0xf]
        %v6999 = vld [vmem:[%s6987 + $0x2c] sm:$0xf]
        %v7000 = vld [vmem:[%s6987 + $0x30] sm:$0xf]
        %v7001 = vld [vmem:[%s6987 + $0x34] sm:$0xf]
        %v7002 = vld [vmem:[%s6987 + $0x38] sm:$0xf]
        %v7003 = vld [vmem:[%s6987 + $0x3c] sm:$0xf]
        %v7004 = vld [vmem:[%s6987 + $0x40] sm:$0xf]
        %v7005 = vld [vmem:[%s6987 + $0x44] sm:$0xf]
        %v7006 = vld [vmem:[%s6987 + $0x48] sm:$0xf]
        %v7007 = vld [vmem:[%s6987 + $0x4c] sm:$0xf]
        %v7028 = vunpack.c.l.b16 %v6988
        %v7029 = vunpack.c.l.b16 %v6989
        %v7030 = vunpack.c.l.b16 %v6990
        %v7031 = vunpack.c.l.b16 %v6991
        %v7032 = vunpack.c.l.b16 %v6992
        %v7033 = vunpack.c.l.b16 %v6993
        %v7034 = vunpack.c.l.b16 %v6994
        %v7035 = vunpack.c.l.b16 %v6995
        %v7036 = vunpack.c.l.b16 %v6996
        %v7037 = vunpack.c.l.b16 %v6997
        %v7038 = vunpack.c.l.b16 %v6998
        %v7039 = vunpack.c.l.b16 %v6999
        %v7040 = vunpack.c.l.b16 %v7000
        %v7041 = vunpack.c.l.b16 %v7001
        %v7042 = vunpack.c.l.b16 %v7002
        %v7043 = vunpack.c.l.b16 %v7003
        %v7044 = vunpack.c.l.b16 %v7004
        %v7045 = vunpack.c.l.b16 %v7005
        %v7046 = vunpack.c.l.b16 %v7006
        %v7047 = vunpack.c.l.b16 %v7007
        %v7048 = vpack.c.b16 %v7029, %v7028
        %v7049 = vpack.c.b16 %v7031, %v7030
        %v7050 = vpack.c.b16 %v7033, %v7032
        %v7051 = vpack.c.b16 %v7035, %v7034
        %v7052 = vpack.c.b16 %v7037, %v7036
        %v7053 = vpack.c.b16 %v7039, %v7038
        %v7054 = vpack.c.b16 %v7041, %v7040
        %v7055 = vpack.c.b16 %v7043, %v7042
        %v7056 = vpack.c.b16 %v7045, %v7044
        %v7057 = vpack.c.b16 %v7047, %v7046
        %vm7068 = vcmask 261120
        %v7070 = vsel %vm7068, %v6908, 0
        %v7073 = vsel %vm7068, %v6912, 0
        %v7076 = vsel %vm7068, %v6916, 0
        %v7079 = vsel %vm7068, %v6920, 0
        %v7082 = vsel %vm7068, %v6924, 0
        %v7085 = vsel %vm7068, %v6928, 0
        %v7088 = vsel %vm7068, %v6932, 0
        %v7091 = vsel %vm7068, %v6936, 0
        %v7094 = vsel %vm7068, %v6940, 0
        %v7097 = vsel %vm7068, %v6944, 0
        %v7100 = vsel %vm7068, %v6948, 0
        %v7103 = vsel %vm7068, %v6952, 0
        %v7106 = vsel %vm7068, %v6956, 0
        %v7109 = vsel %vm7068, %v6960, 0
        %v7112 = vsel %vm7068, %v6964, 0
        %v7114 = vsel %vm7068, %v6986, 0
        %7116 = vmatprep.subr.bf16.mxu0 0
        %7117 = vmatpush1.bf16.msra.mxu0 %v7048
        %7118 = vmatprep.subr.bf16.mxu0 0
        %7119 = vmatpush1.bf16.msra.mxu0 %v7049
        %7120 = vmatprep.subr.bf16.mxu0 0
        %7121 = vmatpush1.bf16.msra.mxu0 %v7050
        %7122 = vmatprep.subr.bf16.mxu0 0
        %7123 = vmatpush1.bf16.msra.mxu0 %v7051
        %7124 = vmatprep.subr.bf16.mxu0 0
        %7125 = vmatpush1.bf16.msra.mxu0 %v7052
        %7126 = vmatprep.subr.bf16.mxu0 0
        %7127 = vmatpush1.bf16.msra.mxu0 %v7053
        %7128 = vmatprep.subr.bf16.mxu0 0
        %7129 = vmatpush1.bf16.msra.mxu0 %v7054
        %7130 = vmatprep.subr.bf16.mxu0 0
        %7131 = vmatpush1.bf16.msra.mxu0 %v7055
        %7132 = vmatprep.subr.bf16.mxu0 0
        %7133 = vmatpush1.bf16.msra.mxu0 %v7056
        %7134 = vmatprep.subr.bf16.mxu0 0
        %7135 = vmatpush1.bf16.msra.mxu0 %v7057
        %7136 = vmatprep.subr.bf16.mxu0 0
        %7137 = vmatpush1.bf16.msra.mxu0 0
        %7138 = vmatprep.subr.bf16.mxu0 0
        %7139 = vmatpush1.bf16.msra.mxu0 0
        %7140 = vmatprep.subr.bf16.mxu0 0
        %7141 = vmatpush1.bf16.msra.mxu0 0
        %7142 = vmatprep.subr.bf16.mxu0 0
        %7143 = vmatpush1.bf16.msra.mxu0 0
        %7144 = vmatprep.subr.bf16.mxu0 0
        %7145 = vmatpush1.bf16.msra.mxu0 0
        %7146 = vmatprep.subr.bf16.mxu0 0
        %7147 = vmatpush1.bf16.msra.mxu0 0
        %7148 = vmatprep.mubr.bf16.mxu0 %v7070
        %7149 = vmatmul.mubr.bf16.gmra.mrb[0].mxu0 %v6905
        %v7150 = vpop.f32.mrb[0].mxu0
        %v7151 = vadd.f32 0.0, %v7150
        %v7152 = vpop.f32.mrb[0].mxu0
        %v7153 = vpop.f32.mrb[0].mxu0
        %v7154 = vadd.f32 0.0, %v7153
        %v7155 = vpop.f32.mrb[0].mxu0
        %7156 = vmatprep.mubr.bf16.mxu0 %v7073
        %7157 = vmatmul.mubr.bf16.gmra.mrb[0].mxu0 %v6910
        %v7158 = vpop.f32.mrb[0].mxu0
        %v7159 = vadd.f32 0.0, %v7158
        %v7160 = vpop.f32.mrb[0].mxu0
        %v7161 = vpop.f32.mrb[0].mxu0
        %v7162 = vadd.f32 0.0, %v7161
        %v7163 = vpop.f32.mrb[0].mxu0
        %7164 = vmatprep.mubr.bf16.mxu0 %v7076
        %7165 = vmatmul.mubr.bf16.gmra.mrb[0].mxu0 %v6914
        %v7166 = vpop.f32.mrb[0].mxu0
        %v7167 = vadd.f32 0.0, %v7166
        %v7168 = vpop.f32.mrb[0].mxu0
        %v7169 = vpop.f32.mrb[0].mxu0
        %v7170 = vadd.f32 0.0, %v7169
        %v7171 = vpop.f32.mrb[0].mxu0
        %7172 = vmatprep.mubr.bf16.mxu0 %v7079
        %7173 = vmatmul.mubr.bf16.gmra.mrb[0].mxu0 %v6918
        %v7174 = vpop.f32.mrb[0].mxu0
        %v7175 = vadd.f32 0.0, %v7174
        %v7176 = vpop.f32.mrb[0].mxu0
        %v7177 = vpop.f32.mrb[0].mxu0
        %v7178 = vadd.f32 0.0, %v7177
        %v7179 = vpop.f32.mrb[0].mxu0
        %7180 = vmatprep.mubr.bf16.mxu0 %v7082
        %7181 = vmatmul.mubr.bf16.gmra.mrb[0].mxu0 %v6922
        %v7182 = vpop.f32.mrb[0].mxu0
        %v7183 = vadd.f32 0.0, %v7182
        %v7184 = vpop.f32.mrb[0].mxu0
        %v7185 = vpop.f32.mrb[0].mxu0
        %v7186 = vadd.f32 0.0, %v7185
        %v7187 = vpop.f32.mrb[0].mxu0
        %7188 = vmatprep.mubr.bf16.mxu0 %v7085
        %7189 = vmatmul.mubr.bf16.gmra.mrb[0].mxu0 %v6926
        %v7190 = vpop.f32.mrb[0].mxu0
        %v7191 = vadd.f32 0.0, %v7190
        %v7192 = vpop.f32.mrb[0].mxu0
        %v7193 = vpop.f32.mrb[0].mxu0
        %v7194 = vadd.f32 0.0, %v7193
        %v7195 = vpop.f32.mrb[0].mxu0
        %7196 = vmatprep.mubr.bf16.mxu0 %v7088
        %7197 = vmatmul.mubr.bf16.gmra.mrb[0].mxu0 %v6930
        %v7198 = vpop.f32.mrb[0].mxu0
        %v7199 = vadd.f32 0.0, %v7198
        %v7200 = vpop.f32.mrb[0].mxu0
        %v7201 = vpop.f32.mrb[0].mxu0
        %v7202 = vadd.f32 0.0, %v7201
        %v7203 = vpop.f32.mrb[0].mxu0
        %7204 = vmatprep.mubr.bf16.mxu0 %v7091
        %7205 = vmatmul.mubr.bf16.gmra.mrb[0].mxu0 %v6934
        %v7206 = vpop.f32.mrb[0].mxu0
        %v7207 = vadd.f32 0.0, %v7206
        %v7208 = vpop.f32.mrb[0].mxu0
        %v7209 = vpop.f32.mrb[0].mxu0
        %v7210 = vadd.f32 0.0, %v7209
        %v7211 = vpop.f32.mrb[0].mxu0
        %7212 = vmatprep.mubr.bf16.mxu0 %v7094
        %7213 = vmatmul.mubr.bf16.gmra.mrb[0].mxu0 %v6938
        %v7214 = vpop.f32.mrb[0].mxu0
        %v7215 = vadd.f32 0.0, %v7214
        %v7216 = vpop.f32.mrb[0].mxu0
        %v7217 = vpop.f32.mrb[0].mxu0
        %v7218 = vadd.f32 0.0, %v7217
        %v7219 = vpop.f32.mrb[0].mxu0
        %7220 = vmatprep.mubr.bf16.mxu0 %v7097
        %7221 = vmatmul.mubr.bf16.gmra.mrb[0].mxu0 %v6942
        %v7222 = vpop.f32.mrb[0].mxu0
        %v7223 = vadd.f32 0.0, %v7222
        %v7224 = vpop.f32.mrb[0].mxu0
        %v7225 = vpop.f32.mrb[0].mxu0
        %v7226 = vadd.f32 0.0, %v7225
        %v7227 = vpop.f32.mrb[0].mxu0
        %7228 = vmatprep.mubr.bf16.mxu0 %v7100
        %7229 = vmatmul.mubr.bf16.gmra.mrb[0].mxu0 %v6946
        %v7230 = vpop.f32.mrb[0].mxu0
        %v7231 = vadd.f32 0.0, %v7230
        %v7232 = vpop.f32.mrb[0].mxu0
        %v7233 = vpop.f32.mrb[0].mxu0
        %v7234 = vadd.f32 0.0, %v7233
        %v7235 = vpop.f32.mrb[0].mxu0
        %7236 = vmatprep.mubr.bf16.mxu0 %v7103
        %7237 = vmatmul.mubr.bf16.gmra.mrb[0].mxu0 %v6950
        %v7238 = vpop.f32.mrb[0].mxu0
        %v7239 = vadd.f32 0.0, %v7238
        %v7240 = vpop.f32.mrb[0].mxu0
        %v7241 = vpop.f32.mrb[0].mxu0
        %v7242 = vadd.f32 0.0, %v7241
        %v7243 = vpop.f32.mrb[0].mxu0
        %7244 = vmatprep.mubr.bf16.mxu0 %v7106
        %7245 = vmatmul.mubr.bf16.gmra.mrb[0].mxu0 %v6954
        %v7246 = vpop.f32.mrb[0].mxu0
        %v7247 = vadd.f32 0.0, %v7246
        %v7248 = vpop.f32.mrb[0].mxu0
        %v7249 = vpop.f32.mrb[0].mxu0
        %v7250 = vadd.f32 0.0, %v7249
        %v7251 = vpop.f32.mrb[0].mxu0
        %7252 = vmatprep.mubr.bf16.mxu0 %v7109
        %7253 = vmatmul.mubr.bf16.gmra.mrb[0].mxu0 %v6958
        %v7254 = vpop.f32.mrb[0].mxu0
        %v7255 = vadd.f32 0.0, %v7254
        %v7256 = vpop.f32.mrb[0].mxu0
        %v7257 = vpop.f32.mrb[0].mxu0
        %v7258 = vadd.f32 0.0, %v7257
        %v7259 = vpop.f32.mrb[0].mxu0
        %7260 = vmatprep.mubr.bf16.mxu0 %v7112
        %7261 = vmatmul.mubr.bf16.gmra.mrb[0].mxu0 %v6962
        %v7262 = vpop.f32.mrb[0].mxu0
        %v7263 = vadd.f32 0.0, %v7262
        %v7264 = vpop.f32.mrb[0].mxu0
        %v7265 = vpop.f32.mrb[0].mxu0
        %v7266 = vadd.f32 0.0, %v7265
        %v7267 = vpop.f32.mrb[0].mxu0
        %7268 = vmatprep.mubr.bf16.mxu0 %v7114
        %7269 = vmatmul.mubr.bf16.gmra.mrb[0].mxu0 %v6982
        %v7270 = vpop.f32.mrb[0].mxu0
        %v7271 = vadd.f32 0.0, %v7270
        %v7272 = vpop.f32.mrb[0].mxu0
        %v7273 = vpop.f32.mrb[0].mxu0
        %v7274 = vadd.f32 0.0, %v7273
        %v7275 = vpop.f32.mrb[0].mxu0
        %7276 = vdwg.mxu0
        %v7297 = vunpack.c.l.b16 %v6851
        %v7298 = vunpack.c.l.b16 %v6852
        %v7299 = vunpack.c.l.b16 %v6853
        %v7300 = vunpack.c.l.b16 %v6854
        %v7301 = vunpack.c.l.b16 %v6855
        %v7302 = vunpack.c.l.b16 %v6856
        %v7303 = vunpack.c.l.b16 %v6857
        %v7304 = vunpack.c.l.b16 %v6858
        %v7305 = vunpack.c.l.b16 %v6859
        %v7306 = vunpack.c.l.b16 %v6860
        %v7307 = vunpack.c.l.b16 %v6861
        %v7308 = vunpack.c.l.b16 %v6862
        %v7309 = vunpack.c.l.b16 %v6863
        %v7310 = vunpack.c.l.b16 %v6864
        %v7311 = vunpack.c.l.b16 %v6865
        %v7312 = vunpack.c.l.b16 %v6866
        %v7313 = vunpack.c.l.b16 %v6867
        %v7314 = vunpack.c.l.b16 %v6868
        %v7315 = vunpack.c.l.b16 %v6869
        %v7316 = vunpack.c.l.b16 %v6870
        %v7317 = vpack.c.b16 %v7298, %v7297
        %v7318 = vpack.c.b16 %v7300, %v7299
        %v7319 = vpack.c.b16 %v7302, %v7301
        %v7320 = vpack.c.b16 %v7304, %v7303
        %v7321 = vpack.c.b16 %v7306, %v7305
        %v7322 = vpack.c.b16 %v7308, %v7307
        %v7323 = vpack.c.b16 %v7310, %v7309
        %v7324 = vpack.c.b16 %v7312, %v7311
        %v7325 = vpack.c.b16 %v7314, %v7313
        %v7326 = vpack.c.b16 %v7316, %v7315
        %v7338 = vsel %vm7068, %v6820, 0
        %v7341 = vsel %vm7068, %v6822, 0
        %v7344 = vsel %vm7068, %v6824, 0
        %v7347 = vsel %vm7068, %v6826, 0
        %v7350 = vsel %vm7068, %v6828, 0
        %v7353 = vsel %vm7068, %v6830, 0
        %v7356 = vsel %vm7068, %v6832, 0
        %v7359 = vsel %vm7068, %v6834, 0
        %v7362 = vsel %vm7068, %v6836, 0
        %v7365 = vsel %vm7068, %v6838, 0
        %v7368 = vsel %vm7068, %v6840, 0
        %v7371 = vsel %vm7068, %v6842, 0
        %v7374 = vsel %vm7068, %v6844, 0
        %v7377 = vsel %vm7068, %v6846, 0
        %v7380 = vsel %vm7068, %v6848, 0
        %v7383 = vsel %vm7068, %v6850, 0
        %7385 = vmatprep.subr.bf16.mxu0 0
        %7386 = vmatpush1.bf16.msra.mxu0 %v7317
        %7387 = vmatprep.subr.bf16.mxu0 0
        %7388 = vmatpush1.bf16.msra.mxu0 %v7318
        %7389 = vmatprep.subr.bf16.mxu0 0
        %7390 = vmatpush1.bf16.msra.mxu0 %v7319
        %7391 = vmatprep.subr.bf16.mxu0 0
        %7392 = vmatpush1.bf16.msra.mxu0 %v7320
        %7393 = vmatprep.subr.bf16.mxu0 0
        %7394 = vmatpush1.bf16.msra.mxu0 %v7321
        %7395 = vmatprep.subr.bf16.mxu0 0
        %7396 = vmatpush1.bf16.msra.mxu0 %v7322
        %7397 = vmatprep.subr.bf16.mxu0 0
        %7398 = vmatpush1.bf16.msra.mxu0 %v7323
        %7399 = vmatprep.subr.bf16.mxu0 0
        %7400 = vmatpush1.bf16.msra.mxu0 %v7324
        %7401 = vmatprep.subr.bf16.mxu0 0
        %7402 = vmatpush1.bf16.msra.mxu0 %v7325
        %7403 = vmatprep.subr.bf16.mxu0 0
        %7404 = vmatpush1.bf16.msra.mxu0 %v7326
        %7405 = vmatprep.subr.bf16.mxu0 0
        %7406 = vmatpush1.bf16.msra.mxu0 0
        %7407 = vmatprep.subr.bf16.mxu0 0
        %7408 = vmatpush1.bf16.msra.mxu0 0
        %7409 = vmatprep.subr.bf16.mxu0 0
        %7410 = vmatpush1.bf16.msra.mxu0 0
        %7411 = vmatprep.subr.bf16.mxu0 0
        %7412 = vmatpush1.bf16.msra.mxu0 0
        %7413 = vmatprep.subr.bf16.mxu0 0
        %7414 = vmatpush1.bf16.msra.mxu0 0
        %7415 = vmatprep.subr.bf16.mxu0 0
        %7416 = vmatpush1.bf16.msra.mxu0 0
        %7417 = vmatprep.mubr.bf16.mxu0 %v7338
        %7418 = vmatmul.mubr.bf16.gmra.mrb[0].mxu0 %v6819
        %v7419 = vpop.f32.mrb[0].mxu0
        %v7420 = vadd.f32 %v7151, %v7419
        %v7421 = vpop.f32.mrb[0].mxu0
        %v7422 = vpop.f32.mrb[0].mxu0
        %v7423 = vadd.f32 %v7154, %v7422
        %v7424 = vpop.f32.mrb[0].mxu0
        %7425 = vmatprep.mubr.bf16.mxu0 %v7341
        %7426 = vmatmul.mubr.bf16.gmra.mrb[0].mxu0 %v6821
        %v7427 = vpop.f32.mrb[0].mxu0
        %v7428 = vadd.f32 %v7159, %v7427
        %v7429 = vpop.f32.mrb[0].mxu0
        %v7430 = vpop.f32.mrb[0].mxu0
        %v7431 = vadd.f32 %v7162, %v7430
        %v7432 = vpop.f32.mrb[0].mxu0
        %7433 = vmatprep.mubr.bf16.mxu0 %v7344
        %7434 = vmatmul.mubr.bf16.gmra.mrb[0].mxu0 %v6823
        %v7435 = vpop.f32.mrb[0].mxu0
        %v7436 = vadd.f32 %v7167, %v7435
        %v7437 = vpop.f32.mrb[0].mxu0
        %v7438 = vpop.f32.mrb[0].mxu0
        %v7439 = vadd.f32 %v7170, %v7438
        %v7440 = vpop.f32.mrb[0].mxu0
        %7441 = vmatprep.mubr.bf16.mxu0 %v7347
        %7442 = vmatmul.mubr.bf16.gmra.mrb[0].mxu0 %v6825
        %v7443 = vpop.f32.mrb[0].mxu0
        %v7444 = vadd.f32 %v7175, %v7443
        %v7445 = vpop.f32.mrb[0].mxu0
        %v7446 = vpop.f32.mrb[0].mxu0
        %v7447 = vadd.f32 %v7178, %v7446
        %v7448 = vpop.f32.mrb[0].mxu0
        %7449 = vmatprep.mubr.bf16.mxu0 %v7350
        %7450 = vmatmul.mubr.bf16.gmra.mrb[0].mxu0 %v6827
        %v7451 = vpop.f32.mrb[0].mxu0
        %v7452 = vadd.f32 %v7183, %v7451
        %v7453 = vpop.f32.mrb[0].mxu0
        %v7454 = vpop.f32.mrb[0].mxu0
        %v7455 = vadd.f32 %v7186, %v7454
        %v7456 = vpop.f32.mrb[0].mxu0
        %7457 = vmatprep.mubr.bf16.mxu0 %v7353
        %7458 = vmatmul.mubr.bf16.gmra.mrb[0].mxu0 %v6829
        %v7459 = vpop.f32.mrb[0].mxu0
        %v7460 = vadd.f32 %v7191, %v7459
        %v7461 = vpop.f32.mrb[0].mxu0
        %v7462 = vpop.f32.mrb[0].mxu0
        %v7463 = vadd.f32 %v7194, %v7462
        %v7464 = vpop.f32.mrb[0].mxu0
        %7465 = vmatprep.mubr.bf16.mxu0 %v7356
        %7466 = vmatmul.mubr.bf16.gmra.mrb[0].mxu0 %v6831
        %v7467 = vpop.f32.mrb[0].mxu0
        %v7468 = vadd.f32 %v7199, %v7467
        %v7469 = vpop.f32.mrb[0].mxu0
        %v7470 = vpop.f32.mrb[0].mxu0
        %v7471 = vadd.f32 %v7202, %v7470
        %v7472 = vpop.f32.mrb[0].mxu0
        %7473 = vmatprep.mubr.bf16.mxu0 %v7359
        %7474 = vmatmul.mubr.bf16.gmra.mrb[0].mxu0 %v6833
        %v7475 = vpop.f32.mrb[0].mxu0
        %v7476 = vadd.f32 %v7207, %v7475
        %v7477 = vpop.f32.mrb[0].mxu0
        %v7478 = vpop.f32.mrb[0].mxu0
        %v7479 = vadd.f32 %v7210, %v7478
        %v7480 = vpop.f32.mrb[0].mxu0
        %7481 = vmatprep.mubr.bf16.mxu0 %v7362
        %7482 = vmatmul.mubr.bf16.gmra.mrb[0].mxu0 %v6835
        %v7483 = vpop.f32.mrb[0].mxu0
        %v7484 = vadd.f32 %v7215, %v7483
        %v7485 = vpop.f32.mrb[0].mxu0
        %v7486 = vpop.f32.mrb[0].mxu0
        %v7487 = vadd.f32 %v7218, %v7486
        %v7488 = vpop.f32.mrb[0].mxu0
        %7489 = vmatprep.mubr.bf16.mxu0 %v7365
        %7490 = vmatmul.mubr.bf16.gmra.mrb[0].mxu0 %v6837
        %v7491 = vpop.f32.mrb[0].mxu0
        %v7492 = vadd.f32 %v7223, %v7491
        %v7493 = vpop.f32.mrb[0].mxu0
        %v7494 = vpop.f32.mrb[0].mxu0
        %v7495 = vadd.f32 %v7226, %v7494
        %v7496 = vpop.f32.mrb[0].mxu0
        %7497 = vmatprep.mubr.bf16.mxu0 %v7368
        %7498 = vmatmul.mubr.bf16.gmra.mrb[0].mxu0 %v6839
        %v7499 = vpop.f32.mrb[0].mxu0
        %v7500 = vadd.f32 %v7231, %v7499
        %v7501 = vpop.f32.mrb[0].mxu0
        %v7502 = vpop.f32.mrb[0].mxu0
        %v7503 = vadd.f32 %v7234, %v7502
        %v7504 = vpop.f32.mrb[0].mxu0
        %7505 = vmatprep.mubr.bf16.mxu0 %v7371
        %7506 = vmatmul.mubr.bf16.gmra.mrb[0].mxu0 %v6841
        %v7507 = vpop.f32.mrb[0].mxu0
        %v7508 = vadd.f32 %v7239, %v7507
        %v7509 = vpop.f32.mrb[0].mxu0
        %v7510 = vpop.f32.mrb[0].mxu0
        %v7511 = vadd.f32 %v7242, %v7510
        %v7512 = vpop.f32.mrb[0].mxu0
        %7513 = vmatprep.mubr.bf16.mxu0 %v7374
        %7514 = vmatmul.mubr.bf16.gmra.mrb[0].mxu0 %v6843
        %v7515 = vpop.f32.mrb[0].mxu0
        %v7516 = vadd.f32 %v7247, %v7515
        %v7517 = vpop.f32.mrb[0].mxu0
        %v7518 = vpop.f32.mrb[0].mxu0
        %v7519 = vadd.f32 %v7250, %v7518
        %v7520 = vpop.f32.mrb[0].mxu0
        %7521 = vmatprep.mubr.bf16.mxu0 %v7377
        %7522 = vmatmul.mubr.bf16.gmra.mrb[0].mxu0 %v6845
        %v7523 = vpop.f32.mrb[0].mxu0
        %v7524 = vadd.f32 %v7255, %v7523
        %v7525 = vpop.f32.mrb[0].mxu0
        %v7526 = vpop.f32.mrb[0].mxu0
        %v7527 = vadd.f32 %v7258, %v7526
        %v7528 = vpop.f32.mrb[0].mxu0
        %7529 = vmatprep.mubr.bf16.mxu0 %v7380
        %7530 = vmatmul.mubr.bf16.gmra.mrb[0].mxu0 %v6847
        %v7531 = vpop.f32.mrb[0].mxu0
        %v7532 = vadd.f32 %v7263, %v7531
        %v7533 = vpop.f32.mrb[0].mxu0
        %v7534 = vpop.f32.mrb[0].mxu0
        %v7535 = vadd.f32 %v7266, %v7534
        %v7536 = vpop.f32.mrb[0].mxu0
        %7537 = vmatprep.mubr.bf16.mxu0 %v7383
        %7538 = vmatmul.mubr.bf16.gmra.mrb[0].mxu0 %v6849
        %v7539 = vpop.f32.mrb[0].mxu0
        %v7540 = vadd.f32 %v7271, %v7539
        %v7541 = vpop.f32.mrb[0].mxu0
        %v7542 = vpop.f32.mrb[0].mxu0
        %v7543 = vadd.f32 %v7274, %v7542
        %v7544 = vpop.f32.mrb[0].mxu0
        %7545 = vdwg.mxu0
        %v7546 = vrot.slane %v6819, 4
        %v7547 = vrot.slane %v6821, 4
        %v7548 = vsel %vm5353, %v7546, %v7547
        %v7549 = vrot.slane %v6820, 4
        %v7550 = vrot.slane %v6822, 4
        %v7551 = vsel %vm5353, %v7549, %v7550
        %v7552 = vrot.slane %v6823, 4
        %v7553 = vsel %vm5353, %v7547, %v7552
        %v7554 = vrot.slane %v6824, 4
        %v7555 = vsel %vm5353, %v7550, %v7554
        %v7556 = vrot.slane %v6825, 4
        %v7557 = vsel %vm5353, %v7552, %v7556
        %v7558 = vrot.slane %v6826, 4
        %v7559 = vsel %vm5353, %v7554, %v7558
        %v7560 = vrot.slane %v6827, 4
        %v7561 = vsel %vm5353, %v7556, %v7560
        %v7562 = vrot.slane %v6828, 4
        %v7563 = vsel %vm5353, %v7558, %v7562
        %v7564 = vrot.slane %v6829, 4
        %v7565 = vsel %vm5353, %v7560, %v7564
        %v7566 = vrot.slane %v6830, 4
        %v7567 = vsel %vm5353, %v7562, %v7566
        %v7568 = vrot.slane %v6831, 4
        %v7569 = vsel %vm5353, %v7564, %v7568
        %v7570 = vrot.slane %v6832, 4
        %v7571 = vsel %vm5353, %v7566, %v7570
        %v7572 = vrot.slane %v6833, 4
        %v7573 = vsel %vm5353, %v7568, %v7572
        %v7574 = vrot.slane %v6834, 4
        %v7575 = vsel %vm5353, %v7570, %v7574
        %v7576 = vrot.slane %v6835, 4
        %v7577 = vsel %vm5353, %v7572, %v7576
        %v7578 = vrot.slane %v6836, 4
        %v7579 = vsel %vm5353, %v7574, %v7578
        %v7580 = vrot.slane %v6837, 4
        %v7581 = vsel %vm5353, %v7576, %v7580
        %v7582 = vrot.slane %v6838, 4
        %v7583 = vsel %vm5353, %v7578, %v7582
        %v7584 = vrot.slane %v6839, 4
        %v7585 = vsel %vm5353, %v7580, %v7584
        %v7586 = vrot.slane %v6840, 4
        %v7587 = vsel %vm5353, %v7582, %v7586
        %v7588 = vrot.slane %v6841, 4
        %v7589 = vsel %vm5353, %v7584, %v7588
        %v7590 = vrot.slane %v6842, 4
        %v7591 = vsel %vm5353, %v7586, %v7590
        %v7592 = vrot.slane %v6843, 4
        %v7593 = vsel %vm5353, %v7588, %v7592
        %v7594 = vrot.slane %v6844, 4
        %v7595 = vsel %vm5353, %v7590, %v7594
        %v7596 = vrot.slane %v6845, 4
        %v7597 = vsel %vm5353, %v7592, %v7596
        %v7598 = vrot.slane %v6846, 4
        %v7599 = vsel %vm5353, %v7594, %v7598
        %v7600 = vrot.slane %v6847, 4
        %v7601 = vsel %vm5353, %v7596, %v7600
        %v7602 = vrot.slane %v6848, 4
        %v7603 = vsel %vm5353, %v7598, %v7602
        %v7604 = vrot.slane %v6849, 4
        %v7605 = vsel %vm5353, %v7600, %v7604
        %v7606 = vrot.slane %v6850, 4
        %v7607 = vsel %vm5353, %v7602, %v7606
        %v7625 = vsel %vm3757, %v7604, %v7546
        %v7629 = vsel %vm3757, %v7606, %v7549
        %s7630 = scalar_lea.vmem %s5, 160
        %v7631 = vld [vmem:[%s7630] sm:$0xf]
        %v7632 = vld [vmem:[%s7630 + $0x4] sm:$0xf]
        %v7633 = vld [vmem:[%s7630 + $0x8] sm:$0xf]
        %v7634 = vld [vmem:[%s7630 + $0xc] sm:$0xf]
        %v7635 = vld [vmem:[%s7630 + $0x10] sm:$0xf]
        %v7636 = vld [vmem:[%s7630 + $0x14] sm:$0xf]
        %v7637 = vld [vmem:[%s7630 + $0x18] sm:$0xf]
        %v7638 = vld [vmem:[%s7630 + $0x1c] sm:$0xf]
        %v7639 = vld [vmem:[%s7630 + $0x20] sm:$0xf]
        %v7640 = vld [vmem:[%s7630 + $0x24] sm:$0xf]
        %v7641 = vld [vmem:[%s7630 + $0x28] sm:$0xf]
        %v7642 = vld [vmem:[%s7630 + $0x2c] sm:$0xf]
        %v7643 = vld [vmem:[%s7630 + $0x30] sm:$0xf]
        %v7644 = vld [vmem:[%s7630 + $0x34] sm:$0xf]
        %v7645 = vld [vmem:[%s7630 + $0x38] sm:$0xf]
        %v7646 = vld [vmem:[%s7630 + $0x3c] sm:$0xf]
        %v7647 = vld [vmem:[%s7630 + $0x40] sm:$0xf]
        %v7648 = vld [vmem:[%s7630 + $0x44] sm:$0xf]
        %v7649 = vld [vmem:[%s7630 + $0x48] sm:$0xf]
        %v7650 = vld [vmem:[%s7630 + $0x4c] sm:$0xf]
        %v7671 = vunpack.c.l.b16 %v7631
        %v7672 = vunpack.c.l.b16 %v7632
        %v7673 = vunpack.c.l.b16 %v7633
        %v7674 = vunpack.c.l.b16 %v7634
        %v7675 = vunpack.c.l.b16 %v7635
        %v7676 = vunpack.c.l.b16 %v7636
        %v7677 = vunpack.c.l.b16 %v7637
        %v7678 = vunpack.c.l.b16 %v7638
        %v7679 = vunpack.c.l.b16 %v7639
        %v7680 = vunpack.c.l.b16 %v7640
        %v7681 = vunpack.c.l.b16 %v7641
        %v7682 = vunpack.c.l.b16 %v7642
        %v7683 = vunpack.c.l.b16 %v7643
        %v7684 = vunpack.c.l.b16 %v7644
        %v7685 = vunpack.c.l.b16 %v7645
        %v7686 = vunpack.c.l.b16 %v7646
        %v7687 = vunpack.c.l.b16 %v7647
        %v7688 = vunpack.c.l.b16 %v7648
        %v7689 = vunpack.c.l.b16 %v7649
        %v7690 = vunpack.c.l.b16 %v7650
        %v7691 = vpack.c.b16 %v7672, %v7671
        %v7692 = vpack.c.b16 %v7674, %v7673
        %v7693 = vpack.c.b16 %v7676, %v7675
        %v7694 = vpack.c.b16 %v7678, %v7677
        %v7695 = vpack.c.b16 %v7680, %v7679
        %v7696 = vpack.c.b16 %v7682, %v7681
        %v7697 = vpack.c.b16 %v7684, %v7683
        %v7698 = vpack.c.b16 %v7686, %v7685
        %v7699 = vpack.c.b16 %v7688, %v7687
        %v7700 = vpack.c.b16 %v7690, %v7689
        %v7712 = vsel %vm7068, %v7551, 0
        %v7715 = vsel %vm7068, %v7555, 0
        %v7718 = vsel %vm7068, %v7559, 0
        %v7721 = vsel %vm7068, %v7563, 0
        %v7724 = vsel %vm7068, %v7567, 0
        %v7727 = vsel %vm7068, %v7571, 0
        %v7730 = vsel %vm7068, %v7575, 0
        %v7733 = vsel %vm7068, %v7579, 0
        %v7736 = vsel %vm7068, %v7583, 0
        %v7739 = vsel %vm7068, %v7587, 0
        %v7742 = vsel %vm7068, %v7591, 0
        %v7745 = vsel %vm7068, %v7595, 0
        %v7748 = vsel %vm7068, %v7599, 0
        %v7751 = vsel %vm7068, %v7603, 0
        %v7754 = vsel %vm7068, %v7607, 0
        %v7756 = vsel %vm7068, %v7629, 0
        %7758 = vmatprep.subr.bf16.mxu0 0
        %7759 = vmatpush1.bf16.msra.mxu0 %v7691
        %7760 = vmatprep.subr.bf16.mxu0 0
        %7761 = vmatpush1.bf16.msra.mxu0 %v7692
        %7762 = vmatprep.subr.bf16.mxu0 0
        %7763 = vmatpush1.bf16.msra.mxu0 %v7693
        %7764 = vmatprep.subr.bf16.mxu0 0
        %7765 = vmatpush1.bf16.msra.mxu0 %v7694
        %7766 = vmatprep.subr.bf16.mxu0 0
        %7767 = vmatpush1.bf16.msra.mxu0 %v7695
        %7768 = vmatprep.subr.bf16.mxu0 0
        %7769 = vmatpush1.bf16.msra.mxu0 %v7696
        %7770 = vmatprep.subr.bf16.mxu0 0
        %7771 = vmatpush1.bf16.msra.mxu0 %v7697
        %7772 = vmatprep.subr.bf16.mxu0 0
        %7773 = vmatpush1.bf16.msra.mxu0 %v7698
        %7774 = vmatprep.subr.bf16.mxu0 0
        %7775 = vmatpush1.bf16.msra.mxu0 %v7699
        %7776 = vmatprep.subr.bf16.mxu0 0
        %7777 = vmatpush1.bf16.msra.mxu0 %v7700
        %7778 = vmatprep.subr.bf16.mxu0 0
        %7779 = vmatpush1.bf16.msra.mxu0 0
        %7780 = vmatprep.subr.bf16.mxu0 0
        %7781 = vmatpush1.bf16.msra.mxu0 0
        %7782 = vmatprep.subr.bf16.mxu0 0
        %7783 = vmatpush1.bf16.msra.mxu0 0
        %7784 = vmatprep.subr.bf16.mxu0 0
        %7785 = vmatpush1.bf16.msra.mxu0 0
        %7786 = vmatprep.subr.bf16.mxu0 0
        %7787 = vmatpush1.bf16.msra.mxu0 0
        %7788 = vmatprep.subr.bf16.mxu0 0
        %7789 = vmatpush1.bf16.msra.mxu0 0
        %7790 = vmatprep.mubr.bf16.mxu0 %v7712
        %7791 = vmatmul.mubr.bf16.gmra.mrb[0].mxu0 %v7548
        %v7792 = vpop.f32.mrb[0].mxu0
        %v7793 = vadd.f32 0.0, %v7792
        %v7794 = vpop.f32.mrb[0].mxu0
        %v7795 = vpop.f32.mrb[0].mxu0
        %v7796 = vadd.f32 0.0, %v7795
        %v7797 = vpop.f32.mrb[0].mxu0
        %7798 = vmatprep.mubr.bf16.mxu0 %v7715
        %7799 = vmatmul.mubr.bf16.gmra.mrb[0].mxu0 %v7553
        %v7800 = vpop.f32.mrb[0].mxu0
        %v7801 = vadd.f32 0.0, %v7800
        %v7802 = vpop.f32.mrb[0].mxu0
        %v7803 = vpop.f32.mrb[0].mxu0
        %v7804 = vadd.f32 0.0, %v7803
        %v7805 = vpop.f32.mrb[0].mxu0
        %7806 = vmatprep.mubr.bf16.mxu0 %v7718
        %7807 = vmatmul.mubr.bf16.gmra.mrb[0].mxu0 %v7557
        %v7808 = vpop.f32.mrb[0].mxu0
        %v7809 = vadd.f32 0.0, %v7808
        %v7810 = vpop.f32.mrb[0].mxu0
        %v7811 = vpop.f32.mrb[0].mxu0
        %v7812 = vadd.f32 0.0, %v7811
        %v7813 = vpop.f32.mrb[0].mxu0
        %7814 = vmatprep.mubr.bf16.mxu0 %v7721
        %7815 = vmatmul.mubr.bf16.gmra.mrb[0].mxu0 %v7561
        %v7816 = vpop.f32.mrb[0].mxu0
        %v7817 = vadd.f32 0.0, %v7816
        %v7818 = vpop.f32.mrb[0].mxu0
        %v7819 = vpop.f32.mrb[0].mxu0
        %v7820 = vadd.f32 0.0, %v7819
        %v7821 = vpop.f32.mrb[0].mxu0
        %7822 = vmatprep.mubr.bf16.mxu0 %v7724
        %7823 = vmatmul.mubr.bf16.gmra.mrb[0].mxu0 %v7565
        %v7824 = vpop.f32.mrb[0].mxu0
        %v7825 = vadd.f32 0.0, %v7824
        %v7826 = vpop.f32.mrb[0].mxu0
        %v7827 = vpop.f32.mrb[0].mxu0
        %v7828 = vadd.f32 0.0, %v7827
        %v7829 = vpop.f32.mrb[0].mxu0
        %7830 = vmatprep.mubr.bf16.mxu0 %v7727
        %7831 = vmatmul.mubr.bf16.gmra.mrb[0].mxu0 %v7569
        %v7832 = vpop.f32.mrb[0].mxu0
        %v7833 = vadd.f32 0.0, %v7832
        %v7834 = vpop.f32.mrb[0].mxu0
        %v7835 = vpop.f32.mrb[0].mxu0
        %v7836 = vadd.f32 0.0, %v7835
        %v7837 = vpop.f32.mrb[0].mxu0
        %7838 = vmatprep.mubr.bf16.mxu0 %v7730
        %7839 = vmatmul.mubr.bf16.gmra.mrb[0].mxu0 %v7573
        %v7840 = vpop.f32.mrb[0].mxu0
        %v7841 = vadd.f32 0.0, %v7840
        %v7842 = vpop.f32.mrb[0].mxu0
        %v7843 = vpop.f32.mrb[0].mxu0
        %v7844 = vadd.f32 0.0, %v7843
        %v7845 = vpop.f32.mrb[0].mxu0
        %7846 = vmatprep.mubr.bf16.mxu0 %v7733
        %7847 = vmatmul.mubr.bf16.gmra.mrb[0].mxu0 %v7577
        %v7848 = vpop.f32.mrb[0].mxu0
        %v7849 = vadd.f32 0.0, %v7848
        %v7850 = vpop.f32.mrb[0].mxu0
        %v7851 = vpop.f32.mrb[0].mxu0
        %v7852 = vadd.f32 0.0, %v7851
        %v7853 = vpop.f32.mrb[0].mxu0
        %7854 = vmatprep.mubr.bf16.mxu0 %v7736
        %7855 = vmatmul.mubr.bf16.gmra.mrb[0].mxu0 %v7581
        %v7856 = vpop.f32.mrb[0].mxu0
        %v7857 = vadd.f32 0.0, %v7856
        %v7858 = vpop.f32.mrb[0].mxu0
        %v7859 = vpop.f32.mrb[0].mxu0
        %v7860 = vadd.f32 0.0, %v7859
        %v7861 = vpop.f32.mrb[0].mxu0
        %7862 = vmatprep.mubr.bf16.mxu0 %v7739
        %7863 = vmatmul.mubr.bf16.gmra.mrb[0].mxu0 %v7585
        %v7864 = vpop.f32.mrb[0].mxu0
        %v7865 = vadd.f32 0.0, %v7864
        %v7866 = vpop.f32.mrb[0].mxu0
        %v7867 = vpop.f32.mrb[0].mxu0
        %v7868 = vadd.f32 0.0, %v7867
        %v7869 = vpop.f32.mrb[0].mxu0
        %7870 = vmatprep.mubr.bf16.mxu0 %v7742
        %7871 = vmatmul.mubr.bf16.gmra.mrb[0].mxu0 %v7589
        %v7872 = vpop.f32.mrb[0].mxu0
        %v7873 = vadd.f32 0.0, %v7872
        %v7874 = vpop.f32.mrb[0].mxu0
        %v7875 = vpop.f32.mrb[0].mxu0
        %v7876 = vadd.f32 0.0, %v7875
        %v7877 = vpop.f32.mrb[0].mxu0
        %7878 = vmatprep.mubr.bf16.mxu0 %v7745
        %7879 = vmatmul.mubr.bf16.gmra.mrb[0].mxu0 %v7593
        %v7880 = vpop.f32.mrb[0].mxu0
        %v7881 = vadd.f32 0.0, %v7880
        %v7882 = vpop.f32.mrb[0].mxu0
        %v7883 = vpop.f32.mrb[0].mxu0
        %v7884 = vadd.f32 0.0, %v7883
        %v7885 = vpop.f32.mrb[0].mxu0
        %7886 = vmatprep.mubr.bf16.mxu0 %v7748
        %7887 = vmatmul.mubr.bf16.gmra.mrb[0].mxu0 %v7597
        %v7888 = vpop.f32.mrb[0].mxu0
        %v7889 = vadd.f32 0.0, %v7888
        %v7890 = vpop.f32.mrb[0].mxu0
        %v7891 = vpop.f32.mrb[0].mxu0
        %v7892 = vadd.f32 0.0, %v7891
        %v7893 = vpop.f32.mrb[0].mxu0
        %7894 = vmatprep.mubr.bf16.mxu0 %v7751
        %7895 = vmatmul.mubr.bf16.gmra.mrb[0].mxu0 %v7601
        %v7896 = vpop.f32.mrb[0].mxu0
        %v7897 = vadd.f32 0.0, %v7896
        %v7898 = vpop.f32.mrb[0].mxu0
        %v7899 = vpop.f32.mrb[0].mxu0
        %v7900 = vadd.f32 0.0, %v7899
        %v7901 = vpop.f32.mrb[0].mxu0
        %7902 = vmatprep.mubr.bf16.mxu0 %v7754
        %7903 = vmatmul.mubr.bf16.gmra.mrb[0].mxu0 %v7605
        %v7904 = vpop.f32.mrb[0].mxu0
        %v7905 = vadd.f32 0.0, %v7904
        %v7906 = vpop.f32.mrb[0].mxu0
        %v7907 = vpop.f32.mrb[0].mxu0
        %v7908 = vadd.f32 0.0, %v7907
        %v7909 = vpop.f32.mrb[0].mxu0
        %7910 = vmatprep.mubr.bf16.mxu0 %v7756
        %7911 = vmatmul.mubr.bf16.gmra.mrb[0].mxu0 %v7625
        %v7912 = vpop.f32.mrb[0].mxu0
        %v7913 = vadd.f32 0.0, %v7912
        %v7914 = vpop.f32.mrb[0].mxu0
        %v7915 = vpop.f32.mrb[0].mxu0
        %v7916 = vadd.f32 0.0, %v7915
        %v7917 = vpop.f32.mrb[0].mxu0
        %7918 = vdwg.mxu0
        %v7919 = vadd.f32 %v7420, %v7793
        %v7920 = vadd.f32 %v7423, %v7796
        %v7921 = vadd.f32 %v7428, %v7801
        %v7922 = vadd.f32 %v7431, %v7804
        %v7923 = vadd.f32 %v7436, %v7809
        %v7924 = vadd.f32 %v7439, %v7812
        %v7925 = vadd.f32 %v7444, %v7817
        %v7926 = vadd.f32 %v7447, %v7820
        %v7927 = vadd.f32 %v7452, %v7825
        %v7928 = vadd.f32 %v7455, %v7828
        %v7929 = vadd.f32 %v7460, %v7833
        %v7930 = vadd.f32 %v7463, %v7836
        %v7931 = vadd.f32 %v7468, %v7841
        %v7932 = vadd.f32 %v7471, %v7844
        %v7933 = vadd.f32 %v7476, %v7849
        %v7934 = vadd.f32 %v7479, %v7852
        %v7935 = vadd.f32 %v7484, %v7857
        %v7936 = vadd.f32 %v7487, %v7860
        %v7937 = vadd.f32 %v7492, %v7865
        %v7938 = vadd.f32 %v7495, %v7868
        %v7939 = vadd.f32 %v7500, %v7873
        %v7940 = vadd.f32 %v7503, %v7876
        %v7941 = vadd.f32 %v7508, %v7881
        %v7942 = vadd.f32 %v7511, %v7884
        %v7943 = vadd.f32 %v7516, %v7889
        %v7944 = vadd.f32 %v7519, %v7892
        %v7945 = vadd.f32 %v7524, %v7897
        %v7946 = vadd.f32 %v7527, %v7900
        %v7947 = vadd.f32 %v7532, %v7905
        %v7948 = vadd.f32 %v7535, %v7908
        %v7949 = vadd.f32 %v7540, %v7913
        %v7950 = vadd.f32 %v7543, %v7916
        %vm7951 = vcmask 1041408
        %v7952 = vrot.slane %v6819, 6
        %v7953 = vrot.slane %v6821, 6
        %v7954 = vsel %vm7951, %v7952, %v7953
        %v7955 = vrot.slane %v6820, 6
        %v7956 = vrot.slane %v6822, 6
        %v7957 = vsel %vm7951, %v7955, %v7956
        %v7958 = vrot.slane %v6823, 6
        %v7959 = vsel %vm7951, %v7953, %v7958
        %v7960 = vrot.slane %v6824, 6
        %v7961 = vsel %vm7951, %v7956, %v7960
        %v7962 = vrot.slane %v6825, 6
        %v7963 = vsel %vm7951, %v7958, %v7962
        %v7964 = vrot.slane %v6826, 6
        %v7965 = vsel %vm7951, %v7960, %v7964
        %v7966 = vrot.slane %v6827, 6
        %v7967 = vsel %vm7951, %v7962, %v7966
        %v7968 = vrot.slane %v6828, 6
        %v7969 = vsel %vm7951, %v7964, %v7968
        %v7970 = vrot.slane %v6829, 6
        %v7971 = vsel %vm7951, %v7966, %v7970
        %v7972 = vrot.slane %v6830, 6
        %v7973 = vsel %vm7951, %v7968, %v7972
        %v7974 = vrot.slane %v6831, 6
        %v7975 = vsel %vm7951, %v7970, %v7974
        %v7976 = vrot.slane %v6832, 6
        %v7977 = vsel %vm7951, %v7972, %v7976
        %v7978 = vrot.slane %v6833, 6
        %v7979 = vsel %vm7951, %v7974, %v7978
        %v7980 = vrot.slane %v6834, 6
        %v7981 = vsel %vm7951, %v7976, %v7980
        %v7982 = vrot.slane %v6835, 6
        %v7983 = vsel %vm7951, %v7978, %v7982
        %v7984 = vrot.slane %v6836, 6
        %v7985 = vsel %vm7951, %v7980, %v7984
        %v7986 = vrot.slane %v6837, 6
        %v7987 = vsel %vm7951, %v7982, %v7986
        %v7988 = vrot.slane %v6838, 6
        %v7989 = vsel %vm7951, %v7984, %v7988
        %v7990 = vrot.slane %v6839, 6
        %v7991 = vsel %vm7951, %v7986, %v7990
        %v7992 = vrot.slane %v6840, 6
        %v7993 = vsel %vm7951, %v7988, %v7992
        %v7994 = vrot.slane %v6841, 6
        %v7995 = vsel %vm7951, %v7990, %v7994
        %v7996 = vrot.slane %v6842, 6
        %v7997 = vsel %vm7951, %v7992, %v7996
        %v7998 = vrot.slane %v6843, 6
        %v7999 = vsel %vm7951, %v7994, %v7998
        %v8000 = vrot.slane %v6844, 6
        %v8001 = vsel %vm7951, %v7996, %v8000
        %v8002 = vrot.slane %v6845, 6
        %v8003 = vsel %vm7951, %v7998, %v8002
        %v8004 = vrot.slane %v6846, 6
        %v8005 = vsel %vm7951, %v8000, %v8004
        %v8006 = vrot.slane %v6847, 6
        %v8007 = vsel %vm7951, %v8002, %v8006
        %v8008 = vrot.slane %v6848, 6
        %v8009 = vsel %vm7951, %v8004, %v8008
        %v8010 = vrot.slane %v6849, 6
        %v8011 = vsel %vm7951, %v8006, %v8010
        %v8012 = vrot.slane %v6850, 6
        %v8013 = vsel %vm7951, %v8008, %v8012
        %vm8029 = vcmask 1041408
        %v8032 = vsel %vm8029, %v8010, %v7952
        %v8036 = vsel %vm8029, %v8012, %v7955
        %s8037 = scalar_lea.vmem %s5, 240
        %v8038 = vld [vmem:[%s8037] sm:$0xf]
        %v8039 = vld [vmem:[%s8037 + $0x4] sm:$0xf]
        %v8040 = vld [vmem:[%s8037 + $0x8] sm:$0xf]
        %v8041 = vld [vmem:[%s8037 + $0xc] sm:$0xf]
        %v8042 = vld [vmem:[%s8037 + $0x10] sm:$0xf]
        %v8043 = vld [vmem:[%s8037 + $0x14] sm:$0xf]
        %v8044 = vld [vmem:[%s8037 + $0x18] sm:$0xf]
        %v8045 = vld [vmem:[%s8037 + $0x1c] sm:$0xf]
        %v8046 = vld [vmem:[%s8037 + $0x20] sm:$0xf]
        %v8047 = vld [vmem:[%s8037 + $0x24] sm:$0xf]
        %v8048 = vld [vmem:[%s8037 + $0x28] sm:$0xf]
        %v8049 = vld [vmem:[%s8037 + $0x2c] sm:$0xf]
        %v8050 = vld [vmem:[%s8037 + $0x30] sm:$0xf]
        %v8051 = vld [vmem:[%s8037 + $0x34] sm:$0xf]
        %v8052 = vld [vmem:[%s8037 + $0x38] sm:$0xf]
        %v8053 = vld [vmem:[%s8037 + $0x3c] sm:$0xf]
        %v8054 = vld [vmem:[%s8037 + $0x40] sm:$0xf]
        %v8055 = vld [vmem:[%s8037 + $0x44] sm:$0xf]
        %v8056 = vld [vmem:[%s8037 + $0x48] sm:$0xf]
        %v8057 = vld [vmem:[%s8037 + $0x4c] sm:$0xf]
        %v8078 = vunpack.c.l.b16 %v8038
        %v8079 = vunpack.c.l.b16 %v8039
        %v8080 = vunpack.c.l.b16 %v8040
        %v8081 = vunpack.c.l.b16 %v8041
        %v8082 = vunpack.c.l.b16 %v8042
        %v8083 = vunpack.c.l.b16 %v8043
        %v8084 = vunpack.c.l.b16 %v8044
        %v8085 = vunpack.c.l.b16 %v8045
        %v8086 = vunpack.c.l.b16 %v8046
        %v8087 = vunpack.c.l.b16 %v8047
        %v8088 = vunpack.c.l.b16 %v8048
        %v8089 = vunpack.c.l.b16 %v8049
        %v8090 = vunpack.c.l.b16 %v8050
        %v8091 = vunpack.c.l.b16 %v8051
        %v8092 = vunpack.c.l.b16 %v8052
        %v8093 = vunpack.c.l.b16 %v8053
        %v8094 = vunpack.c.l.b16 %v8054
        %v8095 = vunpack.c.l.b16 %v8055
        %v8096 = vunpack.c.l.b16 %v8056
        %v8097 = vunpack.c.l.b16 %v8057
        %v8098 = vpack.c.b16 %v8079, %v8078
        %v8099 = vpack.c.b16 %v8081, %v8080
        %v8100 = vpack.c.b16 %v8083, %v8082
        %v8101 = vpack.c.b16 %v8085, %v8084
        %v8102 = vpack.c.b16 %v8087, %v8086
        %v8103 = vpack.c.b16 %v8089, %v8088
        %v8104 = vpack.c.b16 %v8091, %v8090
        %v8105 = vpack.c.b16 %v8093, %v8092
        %v8106 = vpack.c.b16 %v8095, %v8094
        %v8107 = vpack.c.b16 %v8097, %v8096
        %v8119 = vsel %vm7068, %v7957, 0
        %v8122 = vsel %vm7068, %v7961, 0
        %v8125 = vsel %vm7068, %v7965, 0
        %v8128 = vsel %vm7068, %v7969, 0
        %v8131 = vsel %vm7068, %v7973, 0
        %v8134 = vsel %vm7068, %v7977, 0
        %v8137 = vsel %vm7068, %v7981, 0
        %v8140 = vsel %vm7068, %v7985, 0
        %v8143 = vsel %vm7068, %v7989, 0
        %v8146 = vsel %vm7068, %v7993, 0
        %v8149 = vsel %vm7068, %v7997, 0
        %v8152 = vsel %vm7068, %v8001, 0
        %v8155 = vsel %vm7068, %v8005, 0
        %v8158 = vsel %vm7068, %v8009, 0
        %v8161 = vsel %vm7068, %v8013, 0
        %v8163 = vsel %vm7068, %v8036, 0
        %8165 = vmatprep.subr.bf16.mxu0 0
        %8166 = vmatpush1.bf16.msra.mxu0 %v8098
        %8167 = vmatprep.subr.bf16.mxu0 0
        %8168 = vmatpush1.bf16.msra.mxu0 %v8099
        %8169 = vmatprep.subr.bf16.mxu0 0
        %8170 = vmatpush1.bf16.msra.mxu0 %v8100
        %8171 = vmatprep.subr.bf16.mxu0 0
        %8172 = vmatpush1.bf16.msra.mxu0 %v8101
        %8173 = vmatprep.subr.bf16.mxu0 0
        %8174 = vmatpush1.bf16.msra.mxu0 %v8102
        %8175 = vmatprep.subr.bf16.mxu0 0
        %8176 = vmatpush1.bf16.msra.mxu0 %v8103
        %8177 = vmatprep.subr.bf16.mxu0 0
        %8178 = vmatpush1.bf16.msra.mxu0 %v8104
        %8179 = vmatprep.subr.bf16.mxu0 0
        %8180 = vmatpush1.bf16.msra.mxu0 %v8105
        %8181 = vmatprep.subr.bf16.mxu0 0
        %8182 = vmatpush1.bf16.msra.mxu0 %v8106
        %8183 = vmatprep.subr.bf16.mxu0 0
        %8184 = vmatpush1.bf16.msra.mxu0 %v8107
        %8185 = vmatprep.subr.bf16.mxu0 0
        %8186 = vmatpush1.bf16.msra.mxu0 0
        %8187 = vmatprep.subr.bf16.mxu0 0
        %8188 = vmatpush1.bf16.msra.mxu0 0
        %8189 = vmatprep.subr.bf16.mxu0 0
        %8190 = vmatpush1.bf16.msra.mxu0 0
        %8191 = vmatprep.subr.bf16.mxu0 0
        %8192 = vmatpush1.bf16.msra.mxu0 0
        %8193 = vmatprep.subr.bf16.mxu0 0
        %8194 = vmatpush1.bf16.msra.mxu0 0
        %8195 = vmatprep.subr.bf16.mxu0 0
        %8196 = vmatpush1.bf16.msra.mxu0 0
        %8197 = vmatprep.mubr.bf16.mxu0 %v8119
        %8198 = vmatmul.mubr.bf16.gmra.mrb[0].mxu0 %v7954
        %v8199 = vpop.f32.mrb[0].mxu0
        %v8200 = vadd.f32 0.0, %v8199
        %v8201 = vpop.f32.mrb[0].mxu0
        %v8202 = vpop.f32.mrb[0].mxu0
        %v8203 = vadd.f32 0.0, %v8202
        %v8204 = vpop.f32.mrb[0].mxu0
        %8205 = vmatprep.mubr.bf16.mxu0 %v8122
        %8206 = vmatmul.mubr.bf16.gmra.mrb[0].mxu0 %v7959
        %v8207 = vpop.f32.mrb[0].mxu0
        %v8208 = vadd.f32 0.0, %v8207
        %v8209 = vpop.f32.mrb[0].mxu0
        %v8210 = vpop.f32.mrb[0].mxu0
        %v8211 = vadd.f32 0.0, %v8210
        %v8212 = vpop.f32.mrb[0].mxu0
        %8213 = vmatprep.mubr.bf16.mxu0 %v8125
        %8214 = vmatmul.mubr.bf16.gmra.mrb[0].mxu0 %v7963
        %v8215 = vpop.f32.mrb[0].mxu0
        %v8216 = vadd.f32 0.0, %v8215
        %v8217 = vpop.f32.mrb[0].mxu0
        %v8218 = vpop.f32.mrb[0].mxu0
        %v8219 = vadd.f32 0.0, %v8218
        %v8220 = vpop.f32.mrb[0].mxu0
        %8221 = vmatprep.mubr.bf16.mxu0 %v8128
        %8222 = vmatmul.mubr.bf16.gmra.mrb[0].mxu0 %v7967
        %v8223 = vpop.f32.mrb[0].mxu0
        %v8224 = vadd.f32 0.0, %v8223
        %v8225 = vpop.f32.mrb[0].mxu0
        %v8226 = vpop.f32.mrb[0].mxu0
        %v8227 = vadd.f32 0.0, %v8226
        %v8228 = vpop.f32.mrb[0].mxu0
        %8229 = vmatprep.mubr.bf16.mxu0 %v8131
        %8230 = vmatmul.mubr.bf16.gmra.mrb[0].mxu0 %v7971
        %v8231 = vpop.f32.mrb[0].mxu0
        %v8232 = vadd.f32 0.0, %v8231
        %v8233 = vpop.f32.mrb[0].mxu0
        %v8234 = vpop.f32.mrb[0].mxu0
        %v8235 = vadd.f32 0.0, %v8234
        %v8236 = vpop.f32.mrb[0].mxu0
        %8237 = vmatprep.mubr.bf16.mxu0 %v8134
        %8238 = vmatmul.mubr.bf16.gmra.mrb[0].mxu0 %v7975
        %v8239 = vpop.f32.mrb[0].mxu0
        %v8240 = vadd.f32 0.0, %v8239
        %v8241 = vpop.f32.mrb[0].mxu0
        %v8242 = vpop.f32.mrb[0].mxu0
        %v8243 = vadd.f32 0.0, %v8242
        %v8244 = vpop.f32.mrb[0].mxu0
        %8245 = vmatprep.mubr.bf16.mxu0 %v8137
        %8246 = vmatmul.mubr.bf16.gmra.mrb[0].mxu0 %v7979
        %v8247 = vpop.f32.mrb[0].mxu0
        %v8248 = vadd.f32 0.0, %v8247
        %v8249 = vpop.f32.mrb[0].mxu0
        %v8250 = vpop.f32.mrb[0].mxu0
        %v8251 = vadd.f32 0.0, %v8250
        %v8252 = vpop.f32.mrb[0].mxu0
        %8253 = vmatprep.mubr.bf16.mxu0 %v8140
        %8254 = vmatmul.mubr.bf16.gmra.mrb[0].mxu0 %v7983
        %v8255 = vpop.f32.mrb[0].mxu0
        %v8256 = vadd.f32 0.0, %v8255
        %v8257 = vpop.f32.mrb[0].mxu0
        %v8258 = vpop.f32.mrb[0].mxu0
        %v8259 = vadd.f32 0.0, %v8258
        %v8260 = vpop.f32.mrb[0].mxu0
        %8261 = vmatprep.mubr.bf16.mxu0 %v8143
        %8262 = vmatmul.mubr.bf16.gmra.mrb[0].mxu0 %v7987
        %v8263 = vpop.f32.mrb[0].mxu0
        %v8264 = vadd.f32 0.0, %v8263
        %v8265 = vpop.f32.mrb[0].mxu0
        %v8266 = vpop.f32.mrb[0].mxu0
        %v8267 = vadd.f32 0.0, %v8266
        %v8268 = vpop.f32.mrb[0].mxu0
        %8269 = vmatprep.mubr.bf16.mxu0 %v8146
        %8270 = vmatmul.mubr.bf16.gmra.mrb[0].mxu0 %v7991
        %v8271 = vpop.f32.mrb[0].mxu0
        %v8272 = vadd.f32 0.0, %v8271
        %v8273 = vpop.f32.mrb[0].mxu0
        %v8274 = vpop.f32.mrb[0].mxu0
        %v8275 = vadd.f32 0.0, %v8274
        %v8276 = vpop.f32.mrb[0].mxu0
        %8277 = vmatprep.mubr.bf16.mxu0 %v8149
        %8278 = vmatmul.mubr.bf16.gmra.mrb[0].mxu0 %v7995
        %v8279 = vpop.f32.mrb[0].mxu0
        %v8280 = vadd.f32 0.0, %v8279
        %v8281 = vpop.f32.mrb[0].mxu0
        %v8282 = vpop.f32.mrb[0].mxu0
        %v8283 = vadd.f32 0.0, %v8282
        %v8284 = vpop.f32.mrb[0].mxu0
        %8285 = vmatprep.mubr.bf16.mxu0 %v8152
        %8286 = vmatmul.mubr.bf16.gmra.mrb[0].mxu0 %v7999
        %v8287 = vpop.f32.mrb[0].mxu0
        %v8288 = vadd.f32 0.0, %v8287
        %v8289 = vpop.f32.mrb[0].mxu0
        %v8290 = vpop.f32.mrb[0].mxu0
        %v8291 = vadd.f32 0.0, %v8290
        %v8292 = vpop.f32.mrb[0].mxu0
        %8293 = vmatprep.mubr.bf16.mxu0 %v8155
        %8294 = vmatmul.mubr.bf16.gmra.mrb[0].mxu0 %v8003
        %v8295 = vpop.f32.mrb[0].mxu0
        %v8296 = vadd.f32 0.0, %v8295
        %v8297 = vpop.f32.mrb[0].mxu0
        %v8298 = vpop.f32.mrb[0].mxu0
        %v8299 = vadd.f32 0.0, %v8298
        %v8300 = vpop.f32.mrb[0].mxu0
        %8301 = vmatprep.mubr.bf16.mxu0 %v8158
        %8302 = vmatmul.mubr.bf16.gmra.mrb[0].mxu0 %v8007
        %v8303 = vpop.f32.mrb[0].mxu0
        %v8304 = vadd.f32 0.0, %v8303
        %v8305 = vpop.f32.mrb[0].mxu0
        %v8306 = vpop.f32.mrb[0].mxu0
        %v8307 = vadd.f32 0.0, %v8306
        %v8308 = vpop.f32.mrb[0].mxu0
        %8309 = vmatprep.mubr.bf16.mxu0 %v8161
        %8310 = vmatmul.mubr.bf16.gmra.mrb[0].mxu0 %v8011
        %v8311 = vpop.f32.mrb[0].mxu0
        %v8312 = vadd.f32 0.0, %v8311
        %v8313 = vpop.f32.mrb[0].mxu0
        %v8314 = vpop.f32.mrb[0].mxu0
        %v8315 = vadd.f32 0.0, %v8314
        %v8316 = vpop.f32.mrb[0].mxu0
        %8317 = vmatprep.mubr.bf16.mxu0 %v8163
        %8318 = vmatmul.mubr.bf16.gmra.mrb[0].mxu0 %v8032
        %v8319 = vpop.f32.mrb[0].mxu0
        %v8320 = vadd.f32 0.0, %v8319
        %v8321 = vpop.f32.mrb[0].mxu0
        %v8322 = vpop.f32.mrb[0].mxu0
        %v8323 = vadd.f32 0.0, %v8322
        %v8324 = vpop.f32.mrb[0].mxu0
        %8325 = vdwg.mxu0
        %v8326 = vadd.f32 %v7919, %v8200
        %v8327 = vadd.f32 %v7920, %v8203
        %v8328 = vadd.f32 %v7921, %v8208
        %v8329 = vadd.f32 %v7922, %v8211
        %v8330 = vadd.f32 %v7923, %v8216
        %v8331 = vadd.f32 %v7924, %v8219
        %v8332 = vadd.f32 %v7925, %v8224
        %v8333 = vadd.f32 %v7926, %v8227
        %v8334 = vadd.f32 %v7927, %v8232
        %v8335 = vadd.f32 %v7928, %v8235
        %v8336 = vadd.f32 %v7929, %v8240
        %v8337 = vadd.f32 %v7930, %v8243
        %v8338 = vadd.f32 %v7931, %v8248
        %v8339 = vadd.f32 %v7932, %v8251
        %v8340 = vadd.f32 %v7933, %v8256
        %v8341 = vadd.f32 %v7934, %v8259
        %v8342 = vadd.f32 %v7935, %v8264
        %v8343 = vadd.f32 %v7936, %v8267
        %v8344 = vadd.f32 %v7937, %v8272
        %v8345 = vadd.f32 %v7938, %v8275
        %v8346 = vadd.f32 %v7939, %v8280
        %v8347 = vadd.f32 %v7940, %v8283
        %v8348 = vadd.f32 %v7941, %v8288
        %v8349 = vadd.f32 %v7942, %v8291
        %v8350 = vadd.f32 %v7943, %v8296
        %v8351 = vadd.f32 %v7944, %v8299
        %v8352 = vadd.f32 %v7945, %v8304
        %v8353 = vadd.f32 %v7946, %v8307
        %v8354 = vadd.f32 %v7947, %v8312
        %v8355 = vadd.f32 %v7948, %v8315
        %v8356 = vadd.f32 %v7949, %v8320
        %v8357 = vadd.f32 %v7950, %v8323
        %s8358 = scalar_lea.vmem %s5, 320
        %v8359 = vld [vmem:[%s8358] sm:$0xf]
        %v8360 = vld [vmem:[%s8358 + $0x4] sm:$0xf]
        %v8361 = vld [vmem:[%s8358 + $0x8] sm:$0xf]
        %v8362 = vld [vmem:[%s8358 + $0xc] sm:$0xf]
        %v8363 = vld [vmem:[%s8358 + $0x10] sm:$0xf]
        %v8364 = vld [vmem:[%s8358 + $0x14] sm:$0xf]
        %v8365 = vld [vmem:[%s8358 + $0x18] sm:$0xf]
        %v8366 = vld [vmem:[%s8358 + $0x1c] sm:$0xf]
        %v8367 = vld [vmem:[%s8358 + $0x20] sm:$0xf]
        %v8368 = vld [vmem:[%s8358 + $0x24] sm:$0xf]
        %v8369 = vld [vmem:[%s8358 + $0x28] sm:$0xf]
        %v8370 = vld [vmem:[%s8358 + $0x2c] sm:$0xf]
        %v8371 = vld [vmem:[%s8358 + $0x30] sm:$0xf]
        %v8372 = vld [vmem:[%s8358 + $0x34] sm:$0xf]
        %v8373 = vld [vmem:[%s8358 + $0x38] sm:$0xf]
        %v8374 = vld [vmem:[%s8358 + $0x3c] sm:$0xf]
        %v8375 = vld [vmem:[%s8358 + $0x40] sm:$0xf]
        %v8376 = vld [vmem:[%s8358 + $0x44] sm:$0xf]
        %v8377 = vld [vmem:[%s8358 + $0x48] sm:$0xf]
        %v8378 = vld [vmem:[%s8358 + $0x4c] sm:$0xf]
        %v8399 = vunpack.c.l.b16 %v8359
        %v8400 = vunpack.c.l.b16 %v8360
        %v8401 = vunpack.c.l.b16 %v8361
        %v8402 = vunpack.c.l.b16 %v8362
        %v8403 = vunpack.c.l.b16 %v8363
        %v8404 = vunpack.c.l.b16 %v8364
        %v8405 = vunpack.c.l.b16 %v8365
        %v8406 = vunpack.c.l.b16 %v8366
        %v8407 = vunpack.c.l.b16 %v8367
        %v8408 = vunpack.c.l.b16 %v8368
        %v8409 = vunpack.c.l.b16 %v8369
        %v8410 = vunpack.c.l.b16 %v8370
        %v8411 = vunpack.c.l.b16 %v8371
        %v8412 = vunpack.c.l.b16 %v8372
        %v8413 = vunpack.c.l.b16 %v8373
        %v8414 = vunpack.c.l.b16 %v8374
        %v8415 = vunpack.c.l.b16 %v8375
        %v8416 = vunpack.c.l.b16 %v8376
        %v8417 = vunpack.c.l.b16 %v8377
        %v8418 = vunpack.c.l.b16 %v8378
        %v8419 = vpack.c.b16 %v8400, %v8399
        %v8420 = vpack.c.b16 %v8402, %v8401
        %v8421 = vpack.c.b16 %v8404, %v8403
        %v8422 = vpack.c.b16 %v8406, %v8405
        %v8423 = vpack.c.b16 %v8408, %v8407
        %v8424 = vpack.c.b16 %v8410, %v8409
        %v8425 = vpack.c.b16 %v8412, %v8411
        %v8426 = vpack.c.b16 %v8414, %v8413
        %v8427 = vpack.c.b16 %v8416, %v8415
        %v8428 = vpack.c.b16 %v8418, %v8417
        %8439 = vmatprep.subr.bf16.mxu0 0
        %8440 = vmatpush1.bf16.msra.mxu0 %v8419
        %8441 = vmatprep.subr.bf16.mxu0 0
        %8442 = vmatpush1.bf16.msra.mxu0 %v8420
        %8443 = vmatprep.subr.bf16.mxu0 0
        %8444 = vmatpush1.bf16.msra.mxu0 %v8421
        %8445 = vmatprep.subr.bf16.mxu0 0
        %8446 = vmatpush1.bf16.msra.mxu0 %v8422
        %8447 = vmatprep.subr.bf16.mxu0 0
        %8448 = vmatpush1.bf16.msra.mxu0 %v8423
        %8449 = vmatprep.subr.bf16.mxu0 0
        %8450 = vmatpush1.bf16.msra.mxu0 %v8424
        %8451 = vmatprep.subr.bf16.mxu0 0
        %8452 = vmatpush1.bf16.msra.mxu0 %v8425
        %8453 = vmatprep.subr.bf16.mxu0 0
        %8454 = vmatpush1.bf16.msra.mxu0 %v8426
        %8455 = vmatprep.subr.bf16.mxu0 0
        %8456 = vmatpush1.bf16.msra.mxu0 %v8427
        %8457 = vmatprep.subr.bf16.mxu0 0
        %8458 = vmatpush1.bf16.msra.mxu0 %v8428
        %8459 = vmatprep.subr.bf16.mxu0 0
        %8460 = vmatpush1.bf16.msra.mxu0 0
        %8461 = vmatprep.subr.bf16.mxu0 0
        %8462 = vmatpush1.bf16.msra.mxu0 0
        %8463 = vmatprep.subr.bf16.mxu0 0
        %8464 = vmatpush1.bf16.msra.mxu0 0
        %8465 = vmatprep.subr.bf16.mxu0 0
        %8466 = vmatpush1.bf16.msra.mxu0 0
        %8467 = vmatprep.subr.bf16.mxu0 0
        %8468 = vmatpush1.bf16.msra.mxu0 0
        %8469 = vmatprep.subr.bf16.mxu0 0
        %8470 = vmatpush1.bf16.msra.mxu0 0
        %8471 = vmatprep.mubr.bf16.mxu0 %v7341
        %8472 = vmatmul.mubr.bf16.gmra.mrb[0].mxu0 %v6821
        %v8473 = vpop.f32.mrb[0].mxu0
        %v8474 = vadd.f32 0.0, %v8473
        %v8475 = vpop.f32.mrb[0].mxu0
        %v8476 = vpop.f32.mrb[0].mxu0
        %v8477 = vadd.f32 0.0, %v8476
        %v8478 = vpop.f32.mrb[0].mxu0
        %8479 = vmatprep.mubr.bf16.mxu0 %v7344
        %8480 = vmatmul.mubr.bf16.gmra.mrb[0].mxu0 %v6823
        %v8481 = vpop.f32.mrb[0].mxu0
        %v8482 = vadd.f32 0.0, %v8481
        %v8483 = vpop.f32.mrb[0].mxu0
        %v8484 = vpop.f32.mrb[0].mxu0
        %v8485 = vadd.f32 0.0, %v8484
        %v8486 = vpop.f32.mrb[0].mxu0
        %8487 = vmatprep.mubr.bf16.mxu0 %v7347
        %8488 = vmatmul.mubr.bf16.gmra.mrb[0].mxu0 %v6825
        %v8489 = vpop.f32.mrb[0].mxu0
        %v8490 = vadd.f32 0.0, %v8489
        %v8491 = vpop.f32.mrb[0].mxu0
        %v8492 = vpop.f32.mrb[0].mxu0
        %v8493 = vadd.f32 0.0, %v8492
        %v8494 = vpop.f32.mrb[0].mxu0
        %8495 = vmatprep.mubr.bf16.mxu0 %v7350
        %8496 = vmatmul.mubr.bf16.gmra.mrb[0].mxu0 %v6827
        %v8497 = vpop.f32.mrb[0].mxu0
        %v8498 = vadd.f32 0.0, %v8497
        %v8499 = vpop.f32.mrb[0].mxu0
        %v8500 = vpop.f32.mrb[0].mxu0
        %v8501 = vadd.f32 0.0, %v8500
        %v8502 = vpop.f32.mrb[0].mxu0
        %8503 = vmatprep.mubr.bf16.mxu0 %v7353
        %8504 = vmatmul.mubr.bf16.gmra.mrb[0].mxu0 %v6829
        %v8505 = vpop.f32.mrb[0].mxu0
        %v8506 = vadd.f32 0.0, %v8505
        %v8507 = vpop.f32.mrb[0].mxu0
        %v8508 = vpop.f32.mrb[0].mxu0
        %v8509 = vadd.f32 0.0, %v8508
        %v8510 = vpop.f32.mrb[0].mxu0
        %8511 = vmatprep.mubr.bf16.mxu0 %v7356
        %8512 = vmatmul.mubr.bf16.gmra.mrb[0].mxu0 %v6831
        %v8513 = vpop.f32.mrb[0].mxu0
        %v8514 = vadd.f32 0.0, %v8513
        %v8515 = vpop.f32.mrb[0].mxu0
        %v8516 = vpop.f32.mrb[0].mxu0
        %v8517 = vadd.f32 0.0, %v8516
        %v8518 = vpop.f32.mrb[0].mxu0
        %8519 = vmatprep.mubr.bf16.mxu0 %v7359
        %8520 = vmatmul.mubr.bf16.gmra.mrb[0].mxu0 %v6833
        %v8521 = vpop.f32.mrb[0].mxu0
        %v8522 = vadd.f32 0.0, %v8521
        %v8523 = vpop.f32.mrb[0].mxu0
        %v8524 = vpop.f32.mrb[0].mxu0
        %v8525 = vadd.f32 0.0, %v8524
        %v8526 = vpop.f32.mrb[0].mxu0
        %8527 = vmatprep.mubr.bf16.mxu0 %v7362
        %8528 = vmatmul.mubr.bf16.gmra.mrb[0].mxu0 %v6835
        %v8529 = vpop.f32.mrb[0].mxu0
        %v8530 = vadd.f32 0.0, %v8529
        %v8531 = vpop.f32.mrb[0].mxu0
        %v8532 = vpop.f32.mrb[0].mxu0
        %v8533 = vadd.f32 0.0, %v8532
        %v8534 = vpop.f32.mrb[0].mxu0
        %8535 = vmatprep.mubr.bf16.mxu0 %v7365
        %8536 = vmatmul.mubr.bf16.gmra.mrb[0].mxu0 %v6837
        %v8537 = vpop.f32.mrb[0].mxu0
        %v8538 = vadd.f32 0.0, %v8537
        %v8539 = vpop.f32.mrb[0].mxu0
        %v8540 = vpop.f32.mrb[0].mxu0
        %v8541 = vadd.f32 0.0, %v8540
        %v8542 = vpop.f32.mrb[0].mxu0
        %8543 = vmatprep.mubr.bf16.mxu0 %v7368
        %8544 = vmatmul.mubr.bf16.gmra.mrb[0].mxu0 %v6839
        %v8545 = vpop.f32.mrb[0].mxu0
        %v8546 = vadd.f32 0.0, %v8545
        %v8547 = vpop.f32.mrb[0].mxu0
        %v8548 = vpop.f32.mrb[0].mxu0
        %v8549 = vadd.f32 0.0, %v8548
        %v8550 = vpop.f32.mrb[0].mxu0
        %8551 = vmatprep.mubr.bf16.mxu0 %v7371
        %8552 = vmatmul.mubr.bf16.gmra.mrb[0].mxu0 %v6841
        %v8553 = vpop.f32.mrb[0].mxu0
        %v8554 = vadd.f32 0.0, %v8553
        %v8555 = vpop.f32.mrb[0].mxu0
        %v8556 = vpop.f32.mrb[0].mxu0
        %v8557 = vadd.f32 0.0, %v8556
        %v8558 = vpop.f32.mrb[0].mxu0
        %8559 = vmatprep.mubr.bf16.mxu0 %v7374
        %8560 = vmatmul.mubr.bf16.gmra.mrb[0].mxu0 %v6843
        %v8561 = vpop.f32.mrb[0].mxu0
        %v8562 = vadd.f32 0.0, %v8561
        %v8563 = vpop.f32.mrb[0].mxu0
        %v8564 = vpop.f32.mrb[0].mxu0
        %v8565 = vadd.f32 0.0, %v8564
        %v8566 = vpop.f32.mrb[0].mxu0
        %8567 = vmatprep.mubr.bf16.mxu0 %v7377
        %8568 = vmatmul.mubr.bf16.gmra.mrb[0].mxu0 %v6845
        %v8569 = vpop.f32.mrb[0].mxu0
        %v8570 = vadd.f32 0.0, %v8569
        %v8571 = vpop.f32.mrb[0].mxu0
        %v8572 = vpop.f32.mrb[0].mxu0
        %v8573 = vadd.f32 0.0, %v8572
        %v8574 = vpop.f32.mrb[0].mxu0
        %8575 = vmatprep.mubr.bf16.mxu0 %v7380
        %8576 = vmatmul.mubr.bf16.gmra.mrb[0].mxu0 %v6847
        %v8577 = vpop.f32.mrb[0].mxu0
        %v8578 = vadd.f32 0.0, %v8577
        %v8579 = vpop.f32.mrb[0].mxu0
        %v8580 = vpop.f32.mrb[0].mxu0
        %v8581 = vadd.f32 0.0, %v8580
        %v8582 = vpop.f32.mrb[0].mxu0
        %8583 = vmatprep.mubr.bf16.mxu0 %v7383
        %8584 = vmatmul.mubr.bf16.gmra.mrb[0].mxu0 %v6849
        %v8585 = vpop.f32.mrb[0].mxu0
        %v8586 = vadd.f32 0.0, %v8585
        %v8587 = vpop.f32.mrb[0].mxu0
        %v8588 = vpop.f32.mrb[0].mxu0
        %v8589 = vadd.f32 0.0, %v8588
        %v8590 = vpop.f32.mrb[0].mxu0
        %8591 = vmatprep.mubr.bf16.mxu0 %v7338
        %8592 = vmatmul.mubr.bf16.gmra.mrb[0].mxu0 %v6819
        %v8593 = vpop.f32.mrb[0].mxu0
        %v8594 = vadd.f32 0.0, %v8593
        %v8595 = vpop.f32.mrb[0].mxu0
        %v8596 = vpop.f32.mrb[0].mxu0
        %v8597 = vadd.f32 0.0, %v8596
        %v8598 = vpop.f32.mrb[0].mxu0
        %8599 = vdwg.mxu0
        %v8600 = vadd.f32 %v8326, %v8474
        %v8601 = vadd.f32 %v8327, %v8477
        %v8602 = vadd.f32 %v8328, %v8482
        %v8603 = vadd.f32 %v8329, %v8485
        %v8604 = vadd.f32 %v8330, %v8490
        %v8605 = vadd.f32 %v8331, %v8493
        %v8606 = vadd.f32 %v8332, %v8498
        %v8607 = vadd.f32 %v8333, %v8501
        %v8608 = vadd.f32 %v8334, %v8506
        %v8609 = vadd.f32 %v8335, %v8509
        %v8610 = vadd.f32 %v8336, %v8514
        %v8611 = vadd.f32 %v8337, %v8517
        %v8612 = vadd.f32 %v8338, %v8522
        %v8613 = vadd.f32 %v8339, %v8525
        %v8614 = vadd.f32 %v8340, %v8530
        %v8615 = vadd.f32 %v8341, %v8533
        %v8616 = vadd.f32 %v8342, %v8538
        %v8617 = vadd.f32 %v8343, %v8541
        %v8618 = vadd.f32 %v8344, %v8546
        %v8619 = vadd.f32 %v8345, %v8549
        %v8620 = vadd.f32 %v8346, %v8554
        %v8621 = vadd.f32 %v8347, %v8557
        %v8622 = vadd.f32 %v8348, %v8562
        %v8623 = vadd.f32 %v8349, %v8565
        %v8624 = vadd.f32 %v8350, %v8570
        %v8625 = vadd.f32 %v8351, %v8573
        %v8626 = vadd.f32 %v8352, %v8578
        %v8627 = vadd.f32 %v8353, %v8581
        %v8628 = vadd.f32 %v8354, %v8586
        %v8629 = vadd.f32 %v8355, %v8589
        %v8630 = vadd.f32 %v8356, %v8594
        %v8631 = vadd.f32 %v8357, %v8597
        %v8632 = vlaneseq
        %v8633 = vshrl.u32 %v8632, 7
        %v8634 = vlaneseq
        %v8635 = vand.u32 %v8634, 127
        %v8636 = vadd.s32 %v8635, 128
        %v8637 = vmul.u32 %v8633, 32
        %vm8638 = vcmp.eq.s32.totalorder %v8635, %v8637
        %vm8639 = vcmp.eq.s32.totalorder %v8636, %v8637
        %v8640 = vsel %vm8638, 1.0, 0.0
        %v8641 = vsel %vm8639, 1.0, 0.0
        %v8642 = vld [vmem:[%s6] sm:$0x1]
        %v8644 = vlaneseq
        %v8645 = vshrl.u32 %v8644, 7
        %v8646 = vsub.s32 0, %v8645
        %v8647 = vrot.slane %v8642, %v8646
        %8649 = vmatprep.subr.mxu0 0.0
        %8650 = vmatpush1.msra.mxu0 %v8600
        %8651 = vmatprep.subr.mxu0 0.0
        %8652 = vmatpush1.msra.mxu0 %v8601
        %8653 = vmatprep.subr.mxu0 0.0
        %8654 = vmatpush1.msra.mxu0 %v8602
        %8655 = vmatprep.subr.mxu0 0.0
        %8656 = vmatpush1.msra.mxu0 %v8603
        %8657 = vmatprep.subr.mxu0 0.0
        %8658 = vmatpush1.msra.mxu0 %v8604
        %8659 = vmatprep.subr.mxu0 0.0
        %8660 = vmatpush1.msra.mxu0 %v8605
        %8661 = vmatprep.subr.mxu0 0.0
        %8662 = vmatpush1.msra.mxu0 %v8606
        %8663 = vmatprep.subr.mxu0 0.0
        %8664 = vmatpush1.msra.mxu0 %v8607
        %8665 = vmatprep.subr.mxu0 0.0
        %8666 = vmatpush1.msra.mxu0 %v8608
        %8667 = vmatprep.subr.mxu0 0.0
        %8668 = vmatpush1.msra.mxu0 %v8609
        %8669 = vmatprep.subr.mxu0 0.0
        %8670 = vmatpush1.msra.mxu0 %v8610
        %8671 = vmatprep.subr.mxu0 0.0
        %8672 = vmatpush1.msra.mxu0 %v8611
        %8673 = vmatprep.subr.mxu0 0.0
        %8674 = vmatpush1.msra.mxu0 %v8612
        %8675 = vmatprep.subr.mxu0 0.0
        %8676 = vmatpush1.msra.mxu0 %v8613
        %8677 = vmatprep.subr.mxu0 0.0
        %8678 = vmatpush1.msra.mxu0 %v8614
        %8679 = vmatprep.subr.mxu0 0.0
        %8680 = vmatpush1.msra.mxu0 %v8615
        %8681 = vmatprep.subr.mxu0 0.0
        %8682 = vmatpush1.msra.mxu0 %v8616
        %8683 = vmatprep.subr.mxu0 0.0
        %8684 = vmatpush1.msra.mxu0 %v8617
        %8685 = vmatprep.subr.mxu0 0.0
        %8686 = vmatpush1.msra.mxu0 %v8618
        %8687 = vmatprep.subr.mxu0 0.0
        %8688 = vmatpush1.msra.mxu0 %v8619
        %8689 = vmatprep.subr.mxu0 0.0
        %8690 = vmatpush1.msra.mxu0 %v8620
        %8691 = vmatprep.subr.mxu0 0.0
        %8692 = vmatpush1.msra.mxu0 %v8621
        %8693 = vmatprep.subr.mxu0 0.0
        %8694 = vmatpush1.msra.mxu0 %v8622
        %8695 = vmatprep.subr.mxu0 0.0
        %8696 = vmatpush1.msra.mxu0 %v8623
        %8697 = vmatprep.subr.mxu0 0.0
        %8698 = vmatpush1.msra.mxu0 %v8624
        %8699 = vmatprep.subr.mxu0 0.0
        %8700 = vmatpush1.msra.mxu0 %v8625
        %8701 = vmatprep.subr.mxu0 0.0
        %8702 = vmatpush1.msra.mxu0 %v8626
        %8703 = vmatprep.subr.mxu0 0.0
        %8704 = vmatpush1.msra.mxu0 %v8627
        %8705 = vmatprep.subr.mxu0 0.0
        %8706 = vmatpush1.msra.mxu0 %v8628
        %8707 = vmatprep.subr.mxu0 0.0
        %8708 = vmatpush1.msra.mxu0 %v8629
        %8709 = vmatprep.subr.mxu0 0.0
        %8710 = vmatpush1.msra.mxu0 %v8630
        %8711 = vmatprep.subr.mxu0 0.0
        %8712 = vmatpush1.msra.mxu0 %v8631
        %8713 = vmatprep.mubr.f32.mxu0 %v8641
        %8714 = vmatmul.mubr.f32.gmra.mrb[0].mxu0 %v8640
        %v8715 = vpop.f32.mrb[0].mxu0
        %v8716 = vadd.f32 %v8647, %v8715
        %v8717 = vpop.f32.mrb[0].mxu0
        %8718 = vdwg.mxu0
        %v8719 = vmax.f32 %v8716, 0.0
        %v8720 = vpack.c.bf16 %v8719, %v8719
        %v8721 = vld [vmem:[%s7] sm:$0xf]
        %v8722 = vld [vmem:[%s7 + $0x4] sm:$0xf]
        %v8723 = vld [vmem:[%s7 + $0x8] sm:$0xf]
        %v8724 = vld [vmem:[%s7 + $0xc] sm:$0xf]
        %v8725 = vld [vmem:[%s7 + $0x10] sm:$0xf]
        %v8726 = vld [vmem:[%s7 + $0x14] sm:$0xf]
        %v8727 = vld [vmem:[%s7 + $0x18] sm:$0xf]
        %v8728 = vld [vmem:[%s7 + $0x1c] sm:$0xf]
        %v8729 = vld [vmem:[%s7 + $0x20] sm:$0xf]
        %v8730 = vld [vmem:[%s7 + $0x24] sm:$0xf]
        %v8731 = vld [vmem:[%s7 + $0x28] sm:$0xf]
        %v8732 = vld [vmem:[%s7 + $0x2c] sm:$0xf]
        %v8733 = vld [vmem:[%s7 + $0x30] sm:$0xf]
        %v8734 = vld [vmem:[%s7 + $0x34] sm:$0xf]
        %v8735 = vld [vmem:[%s7 + $0x38] sm:$0xf]
        %v8736 = vld [vmem:[%s7 + $0x3c] sm:$0xf]
        %v8737 = vld [vmem:[%s8] sm:$0x1]
        %v8739 = vlaneseq
        %v8740 = vshrl.u32 %v8739, 7
        %v8741 = vsub.s32 0, %v8740
        %v8742 = vrot.slane %v8737, %v8741
        %v8760 = vunpack.c.l.b16 %v8721
        %v8761 = vunpack.c.l.b16 %v8722
        %v8762 = vunpack.c.l.b16 %v8723
        %v8763 = vunpack.c.l.b16 %v8724
        %v8764 = vunpack.c.l.b16 %v8725
        %v8765 = vunpack.c.l.b16 %v8726
        %v8766 = vunpack.c.l.b16 %v8727
        %v8767 = vunpack.c.l.b16 %v8728
        %v8768 = vunpack.c.l.b16 %v8729
        %v8769 = vunpack.c.l.b16 %v8730
        %v8770 = vunpack.c.l.b16 %v8731
        %v8771 = vunpack.c.l.b16 %v8732
        %v8772 = vunpack.c.l.b16 %v8733
        %v8773 = vunpack.c.l.b16 %v8734
        %v8774 = vunpack.c.l.b16 %v8735
        %v8775 = vunpack.c.l.b16 %v8736
        %v8776 = vpack.c.b16 %v8761, %v8760
        %v8777 = vpack.c.b16 %v8763, %v8762
        %v8778 = vpack.c.b16 %v8765, %v8764
        %v8779 = vpack.c.b16 %v8767, %v8766
        %v8780 = vpack.c.b16 %v8769, %v8768
        %v8781 = vpack.c.b16 %v8771, %v8770
        %v8782 = vpack.c.b16 %v8773, %v8772
        %v8783 = vpack.c.b16 %v8775, %v8774
        %8792 = vmatprep.subr.bf16.mxu0 0
        %8793 = vmatpush1.bf16.msra.mxu0 %v8776
        %8794 = vmatprep.subr.bf16.mxu0 0
        %8795 = vmatpush1.bf16.msra.mxu0 %v8777
        %8796 = vmatprep.subr.bf16.mxu0 0
        %8797 = vmatpush1.bf16.msra.mxu0 %v8778
        %8798 = vmatprep.subr.bf16.mxu0 0
        %8799 = vmatpush1.bf16.msra.mxu0 %v8779
        %8800 = vmatprep.subr.bf16.mxu0 0
        %8801 = vmatpush1.bf16.msra.mxu0 %v8780
        %8802 = vmatprep.subr.bf16.mxu0 0
        %8803 = vmatpush1.bf16.msra.mxu0 %v8781
        %8804 = vmatprep.subr.bf16.mxu0 0
        %8805 = vmatpush1.bf16.msra.mxu0 %v8782
        %8806 = vmatprep.subr.bf16.mxu0 0
        %8807 = vmatpush1.bf16.msra.mxu0 %v8783
        %8808 = vmatprep.subr.bf16.mxu0 0
        %8809 = vmatpush1.bf16.msra.mxu0 0
        %8810 = vmatprep.subr.bf16.mxu0 0
        %8811 = vmatpush1.bf16.msra.mxu0 0
        %8812 = vmatprep.subr.bf16.mxu0 0
        %8813 = vmatpush1.bf16.msra.mxu0 0
        %8814 = vmatprep.subr.bf16.mxu0 0
        %8815 = vmatpush1.bf16.msra.mxu0 0
        %8816 = vmatprep.subr.bf16.mxu0 0
        %8817 = vmatpush1.bf16.msra.mxu0 0
        %8818 = vmatprep.subr.bf16.mxu0 0
        %8819 = vmatpush1.bf16.msra.mxu0 0
        %8820 = vmatprep.subr.bf16.mxu0 0
        %8821 = vmatpush1.bf16.msra.mxu0 0
        %8822 = vmatprep.subr.bf16.mxu0 0
        %8823 = vmatpush1.bf16.msra.mxu0 0
        %8824 = vmatprep.mubr.bf16.mxu0 0
        %8825 = vmatmul.mubr.bf16.gmra.mrb[0].mxu0 %v8720
        %v8826 = vpop.f32.mrb[0].mxu0
        %v8827 = vadd.f32 %v8742, %v8826
        %v8828 = vpop.f32.mrb[0].mxu0
        %v8829 = vpop.f32.mrb[0].mxu0
        %v8830 = vpop.f32.mrb[0].mxu0
        %8831 = vdwg.mxu0
        %v8832 = vmax.f32 %v8827, 0.0
        %v8833 = vpack.c.bf16 %v8832, %v8832
        %v8834 = vld [vmem:[%s9] sm:$0xf]
        %v8835 = vld [vmem:[%s9 + $0x4] sm:$0xf]
        %v8836 = vld [vmem:[%s9 + $0x8] sm:$0xf]
        %v8837 = vld [vmem:[%s9 + $0xc] sm:$0xf]
        %v8838 = vld [vmem:[%s9 + $0x10] sm:$0xf]
        %v8839 = vld [vmem:[%s9 + $0x14] sm:$0xf]
        %v8840 = vld [vmem:[%s9 + $0x18] sm:$0xf]
        %v8841 = vld [vmem:[%s9 + $0x1c] sm:$0xf]
        %v8842 = vld [vmem:[%s9 + $0x20] sm:$0xf]
        %v8843 = vld [vmem:[%s9 + $0x24] sm:$0xf]
        %v8844 = vld [vmem:[%s9 + $0x28] sm:$0xf]
        %v8845 = vld [vmem:[%s9 + $0x2c] sm:$0xf]
        %v8846 = vld [vmem:[%s9 + $0x30] sm:$0xf]
        %v8847 = vld [vmem:[%s9 + $0x34] sm:$0xf]
        %v8848 = vld [vmem:[%s9 + $0x38] sm:$0xf]
        %v8849 = vld [vmem:[%s9 + $0x3c] sm:$0xf]
        %v8850 = vld [vmem:[%s10] sm:$0x1]
        %v8852 = vlaneseq
        %v8853 = vshrl.u32 %v8852, 7
        %v8854 = vsub.s32 0, %v8853
        %v8855 = vrot.slane %v8850, %v8854
        %v8873 = vunpack.c.l.b16 %v8834
        %v8874 = vunpack.c.l.b16 %v8835
        %v8875 = vunpack.c.l.b16 %v8836
        %v8876 = vunpack.c.l.b16 %v8837
        %v8877 = vunpack.c.l.b16 %v8838
        %v8878 = vunpack.c.l.b16 %v8839
        %v8879 = vunpack.c.l.b16 %v8840
        %v8880 = vunpack.c.l.b16 %v8841
        %v8881 = vunpack.c.l.b16 %v8842
        %v8882 = vunpack.c.l.b16 %v8843
        %v8883 = vunpack.c.l.b16 %v8844
        %v8884 = vunpack.c.l.b16 %v8845
        %v8885 = vunpack.c.l.b16 %v8846
        %v8886 = vunpack.c.l.b16 %v8847
        %v8887 = vunpack.c.l.b16 %v8848
        %v8888 = vunpack.c.l.b16 %v8849
        %v8889 = vpack.c.b16 %v8874, %v8873
        %v8890 = vpack.c.b16 %v8876, %v8875
        %v8891 = vpack.c.b16 %v8878, %v8877
        %v8892 = vpack.c.b16 %v8880, %v8879
        %v8893 = vpack.c.b16 %v8882, %v8881
        %v8894 = vpack.c.b16 %v8884, %v8883
        %v8895 = vpack.c.b16 %v8886, %v8885
        %v8896 = vpack.c.b16 %v8888, %v8887
        %8905 = vmatprep.subr.bf16.mxu0 0
        %8906 = vmatpush1.bf16.msra.mxu0 %v8889
        %8907 = vmatprep.subr.bf16.mxu0 0
        %8908 = vmatpush1.bf16.msra.mxu0 %v8890
        %8909 = vmatprep.subr.bf16.mxu0 0
        %8910 = vmatpush1.bf16.msra.mxu0 %v8891
        %8911 = vmatprep.subr.bf16.mxu0 0
        %8912 = vmatpush1.bf16.msra.mxu0 %v8892
        %8913 = vmatprep.subr.bf16.mxu0 0
        %8914 = vmatpush1.bf16.msra.mxu0 %v8893
        %8915 = vmatprep.subr.bf16.mxu0 0
        %8916 = vmatpush1.bf16.msra.mxu0 %v8894
        %8917 = vmatprep.subr.bf16.mxu0 0
        %8918 = vmatpush1.bf16.msra.mxu0 %v8895
        %8919 = vmatprep.subr.bf16.mxu0 0
        %8920 = vmatpush1.bf16.msra.mxu0 %v8896
        %8921 = vmatprep.subr.bf16.mxu0 0
        %8922 = vmatpush1.bf16.msra.mxu0 0
        %8923 = vmatprep.subr.bf16.mxu0 0
        %8924 = vmatpush1.bf16.msra.mxu0 0
        %8925 = vmatprep.subr.bf16.mxu0 0
        %8926 = vmatpush1.bf16.msra.mxu0 0
        %8927 = vmatprep.subr.bf16.mxu0 0
        %8928 = vmatpush1.bf16.msra.mxu0 0
        %8929 = vmatprep.subr.bf16.mxu0 0
        %8930 = vmatpush1.bf16.msra.mxu0 0
        %8931 = vmatprep.subr.bf16.mxu0 0
        %8932 = vmatpush1.bf16.msra.mxu0 0
        %8933 = vmatprep.subr.bf16.mxu0 0
        %8934 = vmatpush1.bf16.msra.mxu0 0
        %8935 = vmatprep.subr.bf16.mxu0 0
        %8936 = vmatpush1.bf16.msra.mxu0 0
        %8937 = vmatprep.mubr.bf16.mxu0 0
        %8938 = vmatmul.mubr.bf16.gmra.mrb[0].mxu0 %v8833
        %v8939 = vpop.f32.mrb[0].mxu0
        %v8940 = vadd.f32 %v8855, %v8939
        %v8941 = vpop.f32.mrb[0].mxu0
        %v8942 = vpop.f32.mrb[0].mxu0
        %v8943 = vpop.f32.mrb[0].mxu0
        %8944 = vdwg.mxu0
        %8945 = vst [vmem:[%s380] sm:$0xff] %v8940
        %s8946 = sand.u32 %s269, 1
        %s8947 = scalar_lea.sflag [#allocation3], %s8946
        %s8948 = sand.u32 %s269, 1
        %s8949 = smul.addr %s8948, 8
        %s8950 = scalar_lea.vmem [#allocation2], %s8949
        // Predicated region
        $region65: #{net_forward.1} parent=63 // pred_check
          %p8951 = pneg %p279
        $region66: #{net_forward.1} parent=63 // pred_check_branch
          %8953 = sbr.rel (%p8951) target = $region68
        $region67: #{net_forward.1} parent=63 // pred_region
          %s8955 = ssub.s32 128, 128
          %8956 = vsyncadd %s8947, %s8955
          %s8957 = smul.addr %s25, 128
          %s8958 = scalar_lea.hbm %s11, %s8957
          %s8960 = sshll.u32 %s8950, 4
          %s8961 = int_to_ptr.vmem [resolvable:$true] %s8960
          %8963 = dma.vmem_to_hbm [thread:$0]  %s8961, 128, %s8958, %s8947
        $region68: #{net_forward.1} parent=63 // pred_fallthru
          _
      $region64: #{net_forward.1} parent=5 // pred_fallthru
        _
      %p8964 = scmp.le.s32.totalorder 2, %s20
      // Predicated region
      $region69: #{net_forward.1} parent=5 // pred_check
        %p8965 = pneg %p8964
      $region70: #{net_forward.1} parent=5 // pred_check_branch
        %8967 = sbr.rel (%p8965) target = $region72
      $region71: #{net_forward.1} parent=5 // pred_region
        %s8968 = ssub.s32 %s20, 2
        // Predicated region
        $region73: #{net_forward.1} parent=71 // pred_check
          %p8969 = pneg %p285
        $region74: #{net_forward.1} parent=71 // pred_check_branch
          %8971 = sbr.rel (%p8969) target = $region76
        $region75: #{net_forward.1} parent=71 // pred_region
          %s8972 = sand.u32 %s270, 1
          %s8973 = scalar_lea.sflag [#allocation3], %s8972
          %s8974 = sand.u32 %s270, 1
          %s8975 = smul.addr %s8974, 8
          %s8976 = scalar_lea.vmem [#allocation2], %s8975
          %8977 = dma.done %s8973, 128
        $region76: #{net_forward.1} parent=71 // pred_fallthru
          _
      $region72: #{net_forward.1} parent=5 // pred_fallthru
        _
    $region6: #{net_forward.1} parent=1 // loop_footer
      %s24 = sadd.s32 1, %s20
    $region7: #{net_forward.1} parent=1 // loop_footer_branch
      %19 = sbr.rel target = $region3
    $region8: #{net_forward.1} parent=1 // loop_exit
      _
    %8978 = vsyncpa [#allocation3], 1
    %s8979 = scalar_lea.sflag [#allocation3], 1
    %8980 = vsyncpa %s8979, 1

</llo_original>
